<compile_context>
chip_gen: v7x
topology: tpu7x:2x2x1
jax: 0.10.0
libtpu: 0.0.40
codegen_flags: <defaults>
</compile_context>

<pallas_src>
import functools

import jax
import jax.numpy as jnp
from jax.experimental import pallas as pl
from jax.experimental.pallas import tpu as pltpu

K = 5                                   # 'K5' temporal conv kernel size
CONV_PATTERN = ("K5", "P2", "K5", "P2")  # conv_type == 2
BN_EPS = 1e-5                           # nn.BatchNorm1d default


# ---------------------------------------------------------------------------
# In-kernel helpers
# ---------------------------------------------------------------------------
def _conv_bn_relu(x, w_ref, b, k=K):
    """Valid temporal conv (kernel k) + folded BN/bias + ReLU.

    x     : (T, Cin)  value, channels-last
    w_ref : (k*Cin, Cout) ref, tap-major im2col layout, BN scale folded in
    b     : (1, Cout) value, folded bias
    returns (T-k+1, Cout) f32
    """
    t, cin = x.shape
    t_out = t - (k - 1)
    if cin % 128 == 0:
        # Lane-aligned input channels: im2col -> a single MXU matmul.
        win = jnp.concatenate([x[j:j + t_out, :] for j in range(k)], axis=-1)
        acc = jnp.dot(win, w_ref[...], preferred_element_type=jnp.float32)
    else:
        # Unaligned channel width: k shifted matmuls (avoids lane-unaligned
        # concatenation; each dot still spans the full time tile).
        acc = jnp.dot(x[0:t_out, :], w_ref[0:cin, :],
                      preferred_element_type=jnp.float32)
        for j in range(1, k):
            acc = acc + jnp.dot(x[j:j + t_out, :],
                                w_ref[j * cin:(j + 1) * cin, :],
                                preferred_element_type=jnp.float32)
    return jnp.maximum(acc + b, 0.0)


def _max_pool2(y, scr):
    """MaxPool1d(kernel=2, stride=2, ceil_mode=False) along time (rows).

    Even/odd row de-interleave is done with sublane-strided reads from a VMEM
    scratch (written once, never zero-filled); lanes stay dense.
    """
    t, _ = y.shape
    t_out = t // 2
    scr[0:t, :] = y
    even = scr[pl.ds(0, t_out, 2), :]
    odd = scr[pl.ds(1, t_out, 2), :]
    return jnp.maximum(even, odd)


def _dual_temporal_conv_kernel(skel_ref, hand_ref,
                               w1s_ref, w2s_ref, w1h_ref, w2h_ref,
                               wf_ref, wfc_ref, bias_ref,
                               skel_out_ref, hand_out_ref,
                               fused_out_ref, logits_out_ref,
                               scr_s, scr_h):
    """Fused dual-branch temporal conv + fusion + classifier for one batch tile.

    skel_ref : (BT, T, Cs_in)    hand_ref : (BT, T, Ch_in)
    w1s/w2s  : (K*Cin, CHS)      w1h/w2h  : (K*Cin, CHH)
    wf       : (CHS+CHH, CF)     wfc      : (CF, NC)
    bias_ref : (6, maxC)  rows = [b1s, b2s, b1h, b2h, b_fusion, b_fc]
    outputs  : (BT, T4, CHS/CHH/CF/NC)
    scr_*    : (T1, CHS/CHH) VMEM scratch for max-pool de-interleave
    """
    bt = skel_ref.shape[0]
    chs = w1s_ref.shape[1]
    chh = w1h_ref.shape[1]
    cf = wf_ref.shape[1]
    nc = wfc_ref.shape[1]

    b1s = bias_ref[0:1, 0:chs]
    b2s = bias_ref[1:2, 0:chs]
    b1h = bias_ref[2:3, 0:chh]
    b2h = bias_ref[3:4, 0:chh]
    bfu = bias_ref[4:5, 0:cf]
    bfc = bias_ref[5:6, 0:nc]

    for b in range(bt):  # static unroll over the rows of this batch tile
        # ---- skeleton branch: K5 -> P2 -> K5 -> P2 (BN/ReLU folded) ----
        s = _conv_bn_relu(skel_ref[b], w1s_ref, b1s)
        s = _max_pool2(s, scr_s)
        s = _conv_bn_relu(s, w2s_ref, b2s)
        s = _max_pool2(s, scr_s)                      # (T4, CHS)

        # ---- hand branch ----
        h = _conv_bn_relu(hand_ref[b], w1h_ref, b1h)
        h = _max_pool2(h, scr_h)
        h = _conv_bn_relu(h, w2h_ref, b2h)
        h = _max_pool2(h, scr_h)                      # (T4, CHH)

        skel_out_ref[b] = s
        hand_out_ref[b] = h

        # ---- fusion: cat(channels) -> 1x1 conv -> BN -> ReLU, expressed as a
        #      split-weight matmul (no channel concatenation needed).
        f = jnp.dot(s, wf_ref[0:chs, :], preferred_element_type=jnp.float32)
        f = f + jnp.dot(h, wf_ref[chs:chs + chh, :],
                        preferred_element_type=jnp.float32)
        f = jnp.maximum(f + bfu, 0.0)                 # (T4, CF)
        fused_out_ref[b] = f

        # ---- classifier head: nn.Linear applied per time step ----
        logits_out_ref[b] = (
            jnp.dot(f, wfc_ref[...], preferred_element_type=jnp.float32) + bfc)


# ---------------------------------------------------------------------------
# Wrapper
# ---------------------------------------------------------------------------
def _fold_conv_bn(w, b, gamma, beta, rmean, rvar):
    """Fold eval-mode BatchNorm1d + conv bias into the conv weight.

    w: (Cout, Cin, k) PyTorch layout, b: (Cout,)
    Returns (k*Cin, Cout) tap-major im2col weight and (Cout,) folded bias.
    """
    scale = gamma / jnp.sqrt(rvar + BN_EPS)
    w_s = (w * scale[:, None, None]).astype(jnp.float32)
    k, cin, cout = w.shape[2], w.shape[1], w.shape[0]
    w_im = jnp.transpose(w_s, (2, 1, 0)).reshape(k * cin, cout)
    bias = ((b - rmean) * scale + beta).astype(jnp.float32)
    return w_im, bias


@functools.partial(jax.jit, static_argnames=("batch_tile",))
def dual_feature_temporal_conv_forward(skeleton_feat, hand_feat, lgt, params,
                                       batch_tile=2):
    """Eval-mode forward of DualFeatureTemporalConv (conv_type=2).

    skeleton_feat: (B, skeleton_input_size, T)   hand_feat: (B, hand_feature_size, T)
    lgt: (B,) int32 sequence lengths.
    Returns the module's output dict.
    """
    B, cs_in, T = skeleton_feat.shape
    ch_in = hand_feat.shape[1]

    sk, ha, fu, fc = params["skeleton"], params["hand"], params["fusion"], params["fc"]
    w1s, b1s = _fold_conv_bn(sk["w1"], sk["b1"], sk["g1"], sk["beta1"], sk["rm1"], sk["rv1"])
    w2s, b2s = _fold_conv_bn(sk["w2"], sk["b2"], sk["g2"], sk["beta2"], sk["rm2"], sk["rv2"])
    w1h, b1h = _fold_conv_bn(ha["w1"], ha["b1"], ha["g1"], ha["beta1"], ha["rm1"], ha["rv1"])
    w2h, b2h = _fold_conv_bn(ha["w2"], ha["b2"], ha["g2"], ha["beta2"], ha["rm2"], ha["rv2"])
    wf, bfu = _fold_conv_bn(fu["w"], fu["b"], fu["g"], fu["beta"], fu["rm"], fu["rv"])
    wfc = jnp.transpose(fc["w"]).astype(jnp.float32)          # (CF, NC)
    bfc = fc["b"].astype(jnp.float32)

    chs, chh, cf, nc = w1s.shape[1], w1h.shape[1], wf.shape[1], wfc.shape[1]

    # Pack all per-channel bias vectors into one small operand.
    maxc = max(chs, chh, cf, nc)
    pad_row = lambda v: jnp.pad(v, (0, maxc - v.shape[0]))
    bias_pack = jnp.stack([pad_row(b1s), pad_row(b2s), pad_row(b1h),
                           pad_row(b2h), pad_row(bfu), pad_row(bfc)], axis=0)

    # NCL -> NLC once: channels land on TPU lanes; no zero-padding pass
    # (all convs are 'valid').
    skel_nlc = jnp.transpose(skeleton_feat, (0, 2, 1)).astype(jnp.float32)
    hand_nlc = jnp.transpose(hand_feat, (0, 2, 1)).astype(jnp.float32)

    # Static time-length bookkeeping for K5 -> P2 -> K5 -> P2.
    t1 = T - (K - 1)
    t2 = t1 // 2
    t3 = t2 - (K - 1)
    t4 = t3 // 2

    bt = max(1, min(batch_tile, B))
    while B % bt:
        bt -= 1
    grid = (B // bt,)

    outs = pl.pallas_call(
        _dual_temporal_conv_kernel,
        out_shape=(
            jax.ShapeDtypeStruct((B, t4, chs), jnp.float32),
            jax.ShapeDtypeStruct((B, t4, chh), jnp.float32),
            jax.ShapeDtypeStruct((B, t4, cf), jnp.float32),
            jax.ShapeDtypeStruct((B, t4, nc), jnp.float32),
        ),
        grid_spec=pltpu.PrefetchScalarGridSpec(
            num_scalar_prefetch=0,
            grid=grid,
            in_specs=[
                pl.BlockSpec((bt, T, cs_in), lambda i: (i, 0, 0)),
                pl.BlockSpec((bt, T, ch_in), lambda i: (i, 0, 0)),
                pl.BlockSpec((K * cs_in, chs), lambda i: (0, 0)),
                pl.BlockSpec((K * chs, chs), lambda i: (0, 0)),
                pl.BlockSpec((K * ch_in, chh), lambda i: (0, 0)),
                pl.BlockSpec((K * chh, chh), lambda i: (0, 0)),
                pl.BlockSpec((chs + chh, cf), lambda i: (0, 0)),
                pl.BlockSpec((cf, nc), lambda i: (0, 0)),
                pl.BlockSpec((6, maxc), lambda i: (0, 0)),
            ],
            out_specs=[
                pl.BlockSpec((bt, t4, chs), lambda i: (i, 0, 0)),
                pl.BlockSpec((bt, t4, chh), lambda i: (i, 0, 0)),
                pl.BlockSpec((bt, t4, cf), lambda i: (i, 0, 0)),
                pl.BlockSpec((bt, t4, nc), lambda i: (i, 0, 0)),
            ],
            scratch_shapes=[
                pltpu.VMEM((t1, chs), jnp.float32),
                pltpu.VMEM((t1, chh), jnp.float32),
            ],
        ),
        compiler_params=pltpu.CompilerParams(
            dimension_semantics=("parallel",)),
    )(skel_nlc, hand_nlc, w1s, w2s, w1h, w2h, wf, wfc, bias_pack)

    skel_o, hand_o, fused_o, logits_o = outs

    # update_lgt for conv_type=2 (K5 -> P2 -> K5 -> P2)
    feat_len = lgt
    for ks in CONV_PATTERN:
        if ks[0] == "P":
            feat_len = feat_len // int(ks[1])
        else:
            feat_len = feat_len - (int(ks[1]) - 1)

    # Both branches share conv_type, so their time lengths always match and the
    # PyTorch F.pad alignment branch is statically dead here.
    return {
        "visual_feat": jnp.swapaxes(fused_o, 0, 1),     # (T', B, fusion_hidden)
        "conv_logits": jnp.swapaxes(logits_o, 0, 1),    # (T', B, num_classes)
        "feat_len": feat_len,
        "skeleton_feat": jnp.swapaxes(skel_o, 0, 1),    # (T', B, skeleton_hidden)
        "hand_feat": jnp.swapaxes(hand_o, 0, 1),        # (T', B, hand_hidden)
    }


# ---------------------------------------------------------------------------
# Pure-JAX eval-mode reference (mirrors the PyTorch module op-by-op)
# ---------------------------------------------------------------------------
def _reference_forward(skeleton_feat, hand_feat, lgt, params):
    def conv1d_valid(x, w, b):
        y = jax.lax.conv_general_dilated(
            x, w, window_strides=(1,), padding=[(0, 0)],
            dimension_numbers=("NCH", "OIH", "NCH"))
        return y + b[None, :, None]

    def bn(x, g, beta, rm, rv):
        inv = 1.0 / jnp.sqrt(rv + BN_EPS)
        return (x - rm[None, :, None]) * inv[None, :, None] * g[None, :, None] \
            + beta[None, :, None]

    def pool2(x):
        t2 = x.shape[2] // 2
        return jnp.maximum(x[:, :, 0:2 * t2:2], x[:, :, 1:2 * t2:2])

    def branch(x, p):
        x = jnp.maximum(bn(conv1d_valid(x, p["w1"], p["b1"]),
                           p["g1"], p["beta1"], p["rm1"], p["rv1"]), 0.0)
        x = pool2(x)
        x = jnp.maximum(bn(conv1d_valid(x, p["w2"], p["b2"]),
                           p["g2"], p["beta2"], p["rm2"], p["rv2"]), 0.0)
        return pool2(x)

    s = branch(skeleton_feat.astype(jnp.float32), params["skeleton"])
    h = branch(hand_feat.astype(jnp.float32), params["hand"])
    comb = jnp.concatenate([s, h], axis=1)
    fu = params["fusion"]
    f = jnp.maximum(bn(conv1d_valid(comb, fu["w"], fu["b"]),
                       fu["g"], fu["beta"], fu["rm"], fu["rv"]), 0.0)
    fc = params["fc"]
    logits = jnp.einsum("nf,bft->bnt", fc["w"], f) + fc["b"][None, :, None]

    feat_len = lgt
    for ks in CONV_PATTERN:
        feat_len = feat_len // int(ks[1]) if ks[0] == "P" else feat_len - (int(ks[1]) - 1)

    return {
        "visual_feat": jnp.transpose(f, (2, 0, 1)),
        "conv_logits": jnp.transpose(logits, (2, 0, 1)),
        "feat_len": feat_len,
        "skeleton_feat": jnp.transpose(s, (2, 0, 1)),
        "hand_feat": jnp.transpose(h, (2, 0, 1)),
    }


if __name__ == "__main__":
    B, T = 4, 64
    CS_IN, CH_IN = 48, 16                  # skeleton_input_size (C*J), hand_feature_size
    CHS, CHH, CF, NC = 128, 64, 192, 32    # module-default hidden sizes, small classifier

    key = jax.random.PRNGKey(0)
    keys = iter(jax.random.split(key, 64))

    def nrm(shape, scale=1.0):
        return scale * jax.random.normal(next(keys), shape, dtype=jnp.float32)

    def bn_params(c):
        return dict(g=1.0 + 0.1 * nrm((c,)), beta=0.1 * nrm((c,)),
                    rm=0.05 * nrm((c,)), rv=jnp.abs(1.0 + 0.1 * nrm((c,))))

    def conv_block(cin, cout, k):
        p = dict(w=nrm((cout, cin, k), 0.05), b=0.05 * nrm((cout,)))
        p.update(bn_params(cout))
        return p

    sk1 = conv_block(CS_IN, CHS, K)
    sk2 = conv_block(CHS, CHS, K)
    ha1 = conv_block(CH_IN, CHH, K)
    ha2 = conv_block(CHH, CHH, K)
    fuc = conv_block(CHS + CHH, CF, 1)

    params = {
        "skeleton": dict(w1=sk1["w"], b1=sk1["b"], g1=sk1["g"], beta1=sk1["beta"],
                         rm1=sk1["rm"], rv1=sk1["rv"],
                         w2=sk2["w"], b2=sk2["b"], g2=sk2["g"], beta2=sk2["beta"],
                         rm2=sk2["rm"], rv2=sk2["rv"]),
        "hand": dict(w1=ha1["w"], b1=ha1["b"], g1=ha1["g"], beta1=ha1["beta"],
                     rm1=ha1["rm"], rv1=ha1["rv"],
                     w2=ha2["w"], b2=ha2["b"], g2=ha2["g"], beta2=ha2["beta"],
                     rm2=ha2["rm"], rv2=ha2["rv"]),
        "fusion": dict(w=fuc["w"], b=fuc["b"], g=fuc["g"], beta=fuc["beta"],
                       rm=fuc["rm"], rv=fuc["rv"]),
        "fc": dict(w=nrm((NC, CF), 0.05), b=0.05 * nrm((NC,))),
    }

    skeleton_feat = nrm((B, CS_IN, T))
    hand_feat = nrm((B, CH_IN, T))
    lgt = jnp.array([T, T - 4, T - 12, T], dtype=jnp.int32)

    out = dual_feature_temporal_conv_forward(skeleton_feat, hand_feat, lgt,
                                             params, batch_tile=2)
    out = jax.block_until_ready(out)

    ref = _reference_forward(skeleton_feat, hand_feat, lgt, params)

    for name in ("visual_feat", "conv_logits", "skeleton_feat", "hand_feat"):
        a, r = out[name], ref[name]
        assert a.shape == r.shape, (name, a.shape, r.shape)
        err = float(jnp.max(jnp.abs(a - r)))
        assert jnp.allclose(a, r, atol=1e-3, rtol=1e-3), (name, err)
    assert jnp.array_equal(out["feat_len"], ref["feat_len"])
    print("KERNEL_OK")
</pallas_src>

<mosaic_0001>
module attributes {stable_mosaic.version = 11 : i64} {
  func.func @_dual_temporal_conv_kernel(%arg0: i32, %arg1: memref<2x64x48xf32, #tpu.memory_space<vmem>>, %arg2: memref<2x64x16xf32, #tpu.memory_space<vmem>>, %arg3: memref<240x128xf32, #tpu.memory_space<vmem>>, %arg4: memref<640x128xf32, #tpu.memory_space<vmem>>, %arg5: memref<80x64xf32, #tpu.memory_space<vmem>>, %arg6: memref<320x64xf32, #tpu.memory_space<vmem>>, %arg7: memref<192x192xf32, #tpu.memory_space<vmem>>, %arg8: memref<192x32xf32, #tpu.memory_space<vmem>>, %arg9: memref<6x192xf32, #tpu.memory_space<vmem>>, %arg10: memref<2x13x128xf32, #tpu.memory_space<vmem>>, %arg11: memref<2x13x64xf32, #tpu.memory_space<vmem>>, %arg12: memref<2x13x192xf32, #tpu.memory_space<vmem>>, %arg13: memref<2x13x32xf32, #tpu.memory_space<vmem>>, %arg14: memref<60x128xf32, #tpu.memory_space<vmem>>, %arg15: memref<60x64xf32, #tpu.memory_space<vmem>>) attributes {dimension_semantics = [#tpu.dimension_semantics<parallel>], iteration_bounds = array<i64: 2>, scalar_prefetch = 0 : i64, scratch_operands = 2 : i64, tpu.core_type = #tpu.core_type<tc>, window_params = [{transform_indices = @transform_0, window_bounds = array<i64: 2, 64, 48>}, {transform_indices = @transform_1, window_bounds = array<i64: 2, 64, 16>}, {pipeline_mode = #tpu.pipeline_mode<synchronous>, transform_indices = @transform_2, window_bounds = array<i64: 240, 128>}, {pipeline_mode = #tpu.pipeline_mode<synchronous>, transform_indices = @transform_3, window_bounds = array<i64: 640, 128>}, {pipeline_mode = #tpu.pipeline_mode<synchronous>, transform_indices = @transform_4, window_bounds = array<i64: 80, 64>}, {pipeline_mode = #tpu.pipeline_mode<synchronous>, transform_indices = @transform_5, window_bounds = array<i64: 320, 64>}, {pipeline_mode = #tpu.pipeline_mode<synchronous>, transform_indices = @transform_6, window_bounds = array<i64: 192, 192>}, {pipeline_mode = #tpu.pipeline_mode<synchronous>, transform_indices = @transform_7, window_bounds = array<i64: 192, 32>}, {pipeline_mode = #tpu.pipeline_mode<synchronous>, transform_indices = @transform_8, window_bounds = array<i64: 6, 192>}, {transform_indices = @transform_9, window_bounds = array<i64: 2, 13, 128>}, {transform_indices = @transform_10, window_bounds = array<i64: 2, 13, 64>}, {transform_indices = @transform_11, window_bounds = array<i64: 2, 13, 192>}, {transform_indices = @transform_12, window_bounds = array<i64: 2, 13, 32>}]} {
    %c0 = arith.constant 0 : index
    %c0_0 = arith.constant 0 : index
    %0 = vector.load %arg9[%c0, %c0_0] : memref<6x192xf32, #tpu.memory_space<vmem>>, vector<1x128xf32>
    %c1 = arith.constant 1 : index
    %c0_1 = arith.constant 0 : index
    %1 = vector.load %arg9[%c1, %c0_1] : memref<6x192xf32, #tpu.memory_space<vmem>>, vector<1x128xf32>
    %c2 = arith.constant 2 : index
    %c0_2 = arith.constant 0 : index
    %2 = vector.load %arg9[%c2, %c0_2] : memref<6x192xf32, #tpu.memory_space<vmem>>, vector<1x64xf32>
    %c3 = arith.constant 3 : index
    %c0_3 = arith.constant 0 : index
    %3 = vector.load %arg9[%c3, %c0_3] : memref<6x192xf32, #tpu.memory_space<vmem>>, vector<1x64xf32>
    %c4 = arith.constant 4 : index
    %c0_4 = arith.constant 0 : index
    %4 = vector.load %arg9[%c4, %c0_4] : memref<6x192xf32, #tpu.memory_space<vmem>>, vector<1x192xf32>
    %c5 = arith.constant 5 : index
    %c0_5 = arith.constant 0 : index
    %5 = vector.load %arg9[%c5, %c0_5] : memref<6x192xf32, #tpu.memory_space<vmem>>, vector<1x32xf32>
    %c0_6 = arith.constant 0 : index
    %c0_7 = arith.constant 0 : index
    %c0_8 = arith.constant 0 : index
    %6 = vector.load %arg1[%c0_6, %c0_7, %c0_8] : memref<2x64x48xf32, #tpu.memory_space<vmem>>, vector<1x64x48xf32>
    %7 = vector.shape_cast %6 : vector<1x64x48xf32> to vector<64x48xf32>
    %8 = vector.extract_strided_slice %7 {offsets = [0, 0], sizes = [60, 48], strides = [1, 1]} : vector<64x48xf32> to vector<60x48xf32>
    %c0_9 = arith.constant 0 : index
    %c0_10 = arith.constant 0 : index
    %9 = vector.load %arg3[%c0_9, %c0_10] : memref<240x128xf32, #tpu.memory_space<vmem>>, vector<48x128xf32>
    %cst = arith.constant dense<0.000000e+00> : vector<60x128xf32>
    %10 = tpu.matmul %8, %9, %cst {dimension_numbers = #tpu.dot_dimension_numbers<[1], [0], [0], [1], [0, 0, 1, 1], [], []>} : vector<60x48xf32>, vector<48x128xf32>, vector<60x128xf32> -> vector<60x128xf32>
    %11 = vector.extract_strided_slice %7 {offsets = [1, 0], sizes = [60, 48], strides = [1, 1]} : vector<64x48xf32> to vector<60x48xf32>
    %c48 = arith.constant 48 : index
    %c0_11 = arith.constant 0 : index
    %12 = vector.load %arg3[%c48, %c0_11] : memref<240x128xf32, #tpu.memory_space<vmem>>, vector<48x128xf32>
    %cst_12 = arith.constant dense<0.000000e+00> : vector<60x128xf32>
    %13 = tpu.matmul %11, %12, %cst_12 {dimension_numbers = #tpu.dot_dimension_numbers<[1], [0], [0], [1], [0, 0, 1, 1], [], []>} : vector<60x48xf32>, vector<48x128xf32>, vector<60x128xf32> -> vector<60x128xf32>
    %14 = arith.addf %10, %13 : vector<60x128xf32>
    %15 = vector.extract_strided_slice %7 {offsets = [2, 0], sizes = [60, 48], strides = [1, 1]} : vector<64x48xf32> to vector<60x48xf32>
    %c96 = arith.constant 96 : index
    %c0_13 = arith.constant 0 : index
    %16 = vector.load %arg3[%c96, %c0_13] : memref<240x128xf32, #tpu.memory_space<vmem>>, vector<48x128xf32>
    %cst_14 = arith.constant dense<0.000000e+00> : vector<60x128xf32>
    %17 = tpu.matmul %15, %16, %cst_14 {dimension_numbers = #tpu.dot_dimension_numbers<[1], [0], [0], [1], [0, 0, 1, 1], [], []>} : vector<60x48xf32>, vector<48x128xf32>, vector<60x128xf32> -> vector<60x128xf32>
    %18 = arith.addf %14, %17 : vector<60x128xf32>
    %19 = vector.extract_strided_slice %7 {offsets = [3, 0], sizes = [60, 48], strides = [1, 1]} : vector<64x48xf32> to vector<60x48xf32>
    %c144 = arith.constant 144 : index
    %c0_15 = arith.constant 0 : index
    %20 = vector.load %arg3[%c144, %c0_15] : memref<240x128xf32, #tpu.memory_space<vmem>>, vector<48x128xf32>
    %cst_16 = arith.constant dense<0.000000e+00> : vector<60x128xf32>
    %21 = tpu.matmul %19, %20, %cst_16 {dimension_numbers = #tpu.dot_dimension_numbers<[1], [0], [0], [1], [0, 0, 1, 1], [], []>} : vector<60x48xf32>, vector<48x128xf32>, vector<60x128xf32> -> vector<60x128xf32>
    %22 = arith.addf %18, %21 : vector<60x128xf32>
    %23 = vector.extract_strided_slice %7 {offsets = [4, 0], sizes = [60, 48], strides = [1, 1]} : vector<64x48xf32> to vector<60x48xf32>
    %c192 = arith.constant 192 : index
    %c0_17 = arith.constant 0 : index
    %24 = vector.load %arg3[%c192, %c0_17] : memref<240x128xf32, #tpu.memory_space<vmem>>, vector<48x128xf32>
    %cst_18 = arith.constant dense<0.000000e+00> : vector<60x128xf32>
    %25 = tpu.matmul %23, %24, %cst_18 {dimension_numbers = #tpu.dot_dimension_numbers<[1], [0], [0], [1], [0, 0, 1, 1], [], []>} : vector<60x48xf32>, vector<48x128xf32>, vector<60x128xf32> -> vector<60x128xf32>
    %26 = arith.addf %22, %25 : vector<60x128xf32>
    %27 = vector.broadcast %0 : vector<1x128xf32> to vector<60x128xf32>
    %28 = arith.addf %26, %27 : vector<60x128xf32>
    %cst_19 = arith.constant 0.000000e+00 : f32
    %29 = vector.broadcast %cst_19 : f32 to vector<60x128xf32>
    %30 = arith.maximumf %28, %29 : vector<60x128xf32>
    %c0_20 = arith.constant 0 : index
    %c0_21 = arith.constant 0 : index
    %31 = vector.load %arg14[%c0_20, %c0_21] : memref<60x128xf32, #tpu.memory_space<vmem>>, vector<60x128xf32>
    tpu.vector_store %arg14[%c0_20, %c0_21], %30 {strides = array<i32>} : memref<60x128xf32, #tpu.memory_space<vmem>>, vector<60x128xf32>,
    %c0_22 = arith.constant 0 : index
    %c0_23 = arith.constant 0 : index
    %32 = tpu.strided_load %arg14[%c0_22, %c0_23] {strides = array<i32: 2, 1>} : memref<60x128xf32, #tpu.memory_space<vmem>>, vector<30x128xf32>
    %c1_24 = arith.constant 1 : index
    %c0_25 = arith.constant 0 : index
    %33 = tpu.strided_load %arg14[%c1_24, %c0_25] {strides = array<i32: 2, 1>} : memref<60x128xf32, #tpu.memory_space<vmem>>, vector<30x128xf32>
    %34 = arith.maximumf %32, %33 : vector<30x128xf32>
    %35 = vector.extract_strided_slice %34 {offsets = [0, 0], sizes = [26, 128], strides = [1, 1]} : vector<30x128xf32> to vector<26x128xf32>
    %36 = vector.extract_strided_slice %34 {offsets = [1, 0], sizes = [26, 128], strides = [1, 1]} : vector<30x128xf32> to vector<26x128xf32>
    %37 = vector.extract_strided_slice %34 {offsets = [2, 0], sizes = [26, 128], strides = [1, 1]} : vector<30x128xf32> to vector<26x128xf32>
    %38 = vector.extract_strided_slice %34 {offsets = [3, 0], sizes = [26, 128], strides = [1, 1]} : vector<30x128xf32> to vector<26x128xf32>
    %39 = vector.extract_strided_slice %34 {offsets = [4, 0], sizes = [26, 128], strides = [1, 1]} : vector<30x128xf32> to vector<26x128xf32>
    %40 = tpu.concatenate %35, %36, %37, %38, %39 in 1 : vector<26x128xf32>, vector<26x128xf32>, vector<26x128xf32>, vector<26x128xf32>, vector<26x128xf32> -> vector<26x640xf32>
    %c0_26 = arith.constant 0 : index
    %c0_27 = arith.constant 0 : index
    %41 = vector.load %arg4[%c0_26, %c0_27] : memref<640x128xf32, #tpu.memory_space<vmem>>, vector<640x128xf32>
    %cst_28 = arith.constant dense<0.000000e+00> : vector<26x128xf32>
    %42 = tpu.matmul %40, %41, %cst_28 {dimension_numbers = #tpu.dot_dimension_numbers<[1], [0], [0], [1], [0, 0, 1, 1], [], []>} : vector<26x640xf32>, vector<640x128xf32>, vector<26x128xf32> -> vector<26x128xf32>
    %43 = vector.broadcast %1 : vector<1x128xf32> to vector<26x128xf32>
    %44 = arith.addf %42, %43 : vector<26x128xf32>
    %cst_29 = arith.constant 0.000000e+00 : f32
    %45 = vector.broadcast %cst_29 : f32 to vector<26x128xf32>
    %46 = arith.maximumf %44, %45 : vector<26x128xf32>
    %c0_30 = arith.constant 0 : index
    %c0_31 = arith.constant 0 : index
    %47 = vector.load %arg14[%c0_30, %c0_31] : memref<60x128xf32, #tpu.memory_space<vmem>>, vector<26x128xf32>
    tpu.vector_store %arg14[%c0_30, %c0_31], %46 {strides = array<i32>} : memref<60x128xf32, #tpu.memory_space<vmem>>, vector<26x128xf32>,
    %c0_32 = arith.constant 0 : index
    %c0_33 = arith.constant 0 : index
    %48 = tpu.strided_load %arg14[%c0_32, %c0_33] {strides = array<i32: 2, 1>} : memref<60x128xf32, #tpu.memory_space<vmem>>, vector<13x128xf32>
    %c1_34 = arith.constant 1 : index
    %c0_35 = arith.constant 0 : index
    %49 = tpu.strided_load %arg14[%c1_34, %c0_35] {strides = array<i32: 2, 1>} : memref<60x128xf32, #tpu.memory_space<vmem>>, vector<13x128xf32>
    %50 = arith.maximumf %48, %49 : vector<13x128xf32>
    %c0_36 = arith.constant 0 : index
    %c0_37 = arith.constant 0 : index
    %c0_38 = arith.constant 0 : index
    %51 = vector.load %arg2[%c0_36, %c0_37, %c0_38] : memref<2x64x16xf32, #tpu.memory_space<vmem>>, vector<1x64x16xf32>
    %52 = vector.shape_cast %51 : vector<1x64x16xf32> to vector<64x16xf32>
    %53 = vector.extract_strided_slice %52 {offsets = [0, 0], sizes = [60, 16], strides = [1, 1]} : vector<64x16xf32> to vector<60x16xf32>
    %c0_39 = arith.constant 0 : index
    %c0_40 = arith.constant 0 : index
    %54 = vector.load %arg5[%c0_39, %c0_40] : memref<80x64xf32, #tpu.memory_space<vmem>>, vector<16x64xf32>
    %cst_41 = arith.constant dense<0.000000e+00> : vector<60x64xf32>
    %55 = tpu.matmul %53, %54, %cst_41 {dimension_numbers = #tpu.dot_dimension_numbers<[1], [0], [0], [1], [0, 0, 1, 1], [], []>} : vector<60x16xf32>, vector<16x64xf32>, vector<60x64xf32> -> vector<60x64xf32>
    %56 = vector.extract_strided_slice %52 {offsets = [1, 0], sizes = [60, 16], strides = [1, 1]} : vector<64x16xf32> to vector<60x16xf32>
    %c16 = arith.constant 16 : index
    %c0_42 = arith.constant 0 : index
    %57 = vector.load %arg5[%c16, %c0_42] : memref<80x64xf32, #tpu.memory_space<vmem>>, vector<16x64xf32>
    %cst_43 = arith.constant dense<0.000000e+00> : vector<60x64xf32>
    %58 = tpu.matmul %56, %57, %cst_43 {dimension_numbers = #tpu.dot_dimension_numbers<[1], [0], [0], [1], [0, 0, 1, 1], [], []>} : vector<60x16xf32>, vector<16x64xf32>, vector<60x64xf32> -> vector<60x64xf32>
    %59 = arith.addf %55, %58 : vector<60x64xf32>
    %60 = vector.extract_strided_slice %52 {offsets = [2, 0], sizes = [60, 16], strides = [1, 1]} : vector<64x16xf32> to vector<60x16xf32>
    %c32 = arith.constant 32 : index
    %c0_44 = arith.constant 0 : index
    %61 = vector.load %arg5[%c32, %c0_44] : memref<80x64xf32, #tpu.memory_space<vmem>>, vector<16x64xf32>
    %cst_45 = arith.constant dense<0.000000e+00> : vector<60x64xf32>
    %62 = tpu.matmul %60, %61, %cst_45 {dimension_numbers = #tpu.dot_dimension_numbers<[1], [0], [0], [1], [0, 0, 1, 1], [], []>} : vector<60x16xf32>, vector<16x64xf32>, vector<60x64xf32> -> vector<60x64xf32>
    %63 = arith.addf %59, %62 : vector<60x64xf32>
    %64 = vector.extract_strided_slice %52 {offsets = [3, 0], sizes = [60, 16], strides = [1, 1]} : vector<64x16xf32> to vector<60x16xf32>
    %c48_46 = arith.constant 48 : index
    %c0_47 = arith.constant 0 : index
    %65 = vector.load %arg5[%c48_46, %c0_47] : memref<80x64xf32, #tpu.memory_space<vmem>>, vector<16x64xf32>
    %cst_48 = arith.constant dense<0.000000e+00> : vector<60x64xf32>
    %66 = tpu.matmul %64, %65, %cst_48 {dimension_numbers = #tpu.dot_dimension_numbers<[1], [0], [0], [1], [0, 0, 1, 1], [], []>} : vector<60x16xf32>, vector<16x64xf32>, vector<60x64xf32> -> vector<60x64xf32>
    %67 = arith.addf %63, %66 : vector<60x64xf32>
    %68 = vector.extract_strided_slice %52 {offsets = [4, 0], sizes = [60, 16], strides = [1, 1]} : vector<64x16xf32> to vector<60x16xf32>
    %c64 = arith.constant 64 : index
    %c0_49 = arith.constant 0 : index
    %69 = vector.load %arg5[%c64, %c0_49] : memref<80x64xf32, #tpu.memory_space<vmem>>, vector<16x64xf32>
    %cst_50 = arith.constant dense<0.000000e+00> : vector<60x64xf32>
    %70 = tpu.matmul %68, %69, %cst_50 {dimension_numbers = #tpu.dot_dimension_numbers<[1], [0], [0], [1], [0, 0, 1, 1], [], []>} : vector<60x16xf32>, vector<16x64xf32>, vector<60x64xf32> -> vector<60x64xf32>
    %71 = arith.addf %67, %70 : vector<60x64xf32>
    %72 = vector.broadcast %2 : vector<1x64xf32> to vector<60x64xf32>
    %73 = arith.addf %71, %72 : vector<60x64xf32>
    %cst_51 = arith.constant 0.000000e+00 : f32
    %74 = vector.broadcast %cst_51 : f32 to vector<60x64xf32>
    %75 = arith.maximumf %73, %74 : vector<60x64xf32>
    %c0_52 = arith.constant 0 : index
    %c0_53 = arith.constant 0 : index
    %76 = vector.load %arg15[%c0_52, %c0_53] : memref<60x64xf32, #tpu.memory_space<vmem>>, vector<60x64xf32>
    tpu.vector_store %arg15[%c0_52, %c0_53], %75 {strides = array<i32>} : memref<60x64xf32, #tpu.memory_space<vmem>>, vector<60x64xf32>,
    %c0_54 = arith.constant 0 : index
    %c0_55 = arith.constant 0 : index
    %77 = tpu.strided_load %arg15[%c0_54, %c0_55] {strides = array<i32: 2, 1>} : memref<60x64xf32, #tpu.memory_space<vmem>>, vector<30x64xf32>
    %c1_56 = arith.constant 1 : index
    %c0_57 = arith.constant 0 : index
    %78 = tpu.strided_load %arg15[%c1_56, %c0_57] {strides = array<i32: 2, 1>} : memref<60x64xf32, #tpu.memory_space<vmem>>, vector<30x64xf32>
    %79 = arith.maximumf %77, %78 : vector<30x64xf32>
    %80 = vector.extract_strided_slice %79 {offsets = [0, 0], sizes = [26, 64], strides = [1, 1]} : vector<30x64xf32> to vector<26x64xf32>
    %c0_58 = arith.constant 0 : index
    %c0_59 = arith.constant 0 : index
    %81 = vector.load %arg6[%c0_58, %c0_59] : memref<320x64xf32, #tpu.memory_space<vmem>>, vector<64x64xf32>
    %cst_60 = arith.constant dense<0.000000e+00> : vector<26x64xf32>
    %82 = tpu.matmul %80, %81, %cst_60 {dimension_numbers = #tpu.dot_dimension_numbers<[1], [0], [0], [1], [0, 0, 1, 1], [], []>} : vector<26x64xf32>, vector<64x64xf32>, vector<26x64xf32> -> vector<26x64xf32>
    %83 = vector.extract_strided_slice %79 {offsets = [1, 0], sizes = [26, 64], strides = [1, 1]} : vector<30x64xf32> to vector<26x64xf32>
    %c64_61 = arith.constant 64 : index
    %c0_62 = arith.constant 0 : index
    %84 = vector.load %arg6[%c64_61, %c0_62] : memref<320x64xf32, #tpu.memory_space<vmem>>, vector<64x64xf32>
    %cst_63 = arith.constant dense<0.000000e+00> : vector<26x64xf32>
    %85 = tpu.matmul %83, %84, %cst_63 {dimension_numbers = #tpu.dot_dimension_numbers<[1], [0], [0], [1], [0, 0, 1, 1], [], []>} : vector<26x64xf32>, vector<64x64xf32>, vector<26x64xf32> -> vector<26x64xf32>
    %86 = arith.addf %82, %85 : vector<26x64xf32>
    %87 = vector.extract_strided_slice %79 {offsets = [2, 0], sizes = [26, 64], strides = [1, 1]} : vector<30x64xf32> to vector<26x64xf32>
    %c128 = arith.constant 128 : index
    %c0_64 = arith.constant 0 : index
    %88 = vector.load %arg6[%c128, %c0_64] : memref<320x64xf32, #tpu.memory_space<vmem>>, vector<64x64xf32>
    %cst_65 = arith.constant dense<0.000000e+00> : vector<26x64xf32>
    %89 = tpu.matmul %87, %88, %cst_65 {dimension_numbers = #tpu.dot_dimension_numbers<[1], [0], [0], [1], [0, 0, 1, 1], [], []>} : vector<26x64xf32>, vector<64x64xf32>, vector<26x64xf32> -> vector<26x64xf32>
    %90 = arith.addf %86, %89 : vector<26x64xf32>
    %91 = vector.extract_strided_slice %79 {offsets = [3, 0], sizes = [26, 64], strides = [1, 1]} : vector<30x64xf32> to vector<26x64xf32>
    %c192_66 = arith.constant 192 : index
    %c0_67 = arith.constant 0 : index
    %92 = vector.load %arg6[%c192_66, %c0_67] : memref<320x64xf32, #tpu.memory_space<vmem>>, vector<64x64xf32>
    %cst_68 = arith.constant dense<0.000000e+00> : vector<26x64xf32>
    %93 = tpu.matmul %91, %92, %cst_68 {dimension_numbers = #tpu.dot_dimension_numbers<[1], [0], [0], [1], [0, 0, 1, 1], [], []>} : vector<26x64xf32>, vector<64x64xf32>, vector<26x64xf32> -> vector<26x64xf32>
    %94 = arith.addf %90, %93 : vector<26x64xf32>
    %95 = vector.extract_strided_slice %79 {offsets = [4, 0], sizes = [26, 64], strides = [1, 1]} : vector<30x64xf32> to vector<26x64xf32>
    %c256 = arith.constant 256 : index
    %c0_69 = arith.constant 0 : index
    %96 = vector.load %arg6[%c256, %c0_69] : memref<320x64xf32, #tpu.memory_space<vmem>>, vector<64x64xf32>
    %cst_70 = arith.constant dense<0.000000e+00> : vector<26x64xf32>
    %97 = tpu.matmul %95, %96, %cst_70 {dimension_numbers = #tpu.dot_dimension_numbers<[1], [0], [0], [1], [0, 0, 1, 1], [], []>} : vector<26x64xf32>, vector<64x64xf32>, vector<26x64xf32> -> vector<26x64xf32>
    %98 = arith.addf %94, %97 : vector<26x64xf32>
    %99 = vector.broadcast %3 : vector<1x64xf32> to vector<26x64xf32>
    %100 = arith.addf %98, %99 : vector<26x64xf32>
    %cst_71 = arith.constant 0.000000e+00 : f32
    %101 = vector.broadcast %cst_71 : f32 to vector<26x64xf32>
    %102 = arith.maximumf %100, %101 : vector<26x64xf32>
    %c0_72 = arith.constant 0 : index
    %c0_73 = arith.constant 0 : index
    %103 = vector.load %arg15[%c0_72, %c0_73] : memref<60x64xf32, #tpu.memory_space<vmem>>, vector<26x64xf32>
    tpu.vector_store %arg15[%c0_72, %c0_73], %102 {strides = array<i32>} : memref<60x64xf32, #tpu.memory_space<vmem>>, vector<26x64xf32>,
    %c0_74 = arith.constant 0 : index
    %c0_75 = arith.constant 0 : index
    %104 = tpu.strided_load %arg15[%c0_74, %c0_75] {strides = array<i32: 2, 1>} : memref<60x64xf32, #tpu.memory_space<vmem>>, vector<13x64xf32>
    %c1_76 = arith.constant 1 : index
    %c0_77 = arith.constant 0 : index
    %105 = tpu.strided_load %arg15[%c1_76, %c0_77] {strides = array<i32: 2, 1>} : memref<60x64xf32, #tpu.memory_space<vmem>>, vector<13x64xf32>
    %106 = arith.maximumf %104, %105 : vector<13x64xf32>
    %c0_78 = arith.constant 0 : index
    %c0_79 = arith.constant 0 : index
    %c0_80 = arith.constant 0 : index
    %107 = vector.load %arg10[%c0_78, %c0_79, %c0_80] : memref<2x13x128xf32, #tpu.memory_space<vmem>>, vector<1x13x128xf32>
    %108 = vector.shape_cast %107 : vector<1x13x128xf32> to vector<13x128xf32>
    %109 = vector.shape_cast %50 : vector<13x128xf32> to vector<1x13x128xf32>
    tpu.vector_store %arg10[%c0_78, %c0_79, %c0_80], %109 {strides = array<i32>} : memref<2x13x128xf32, #tpu.memory_space<vmem>>, vector<1x13x128xf32>,
    %c0_81 = arith.constant 0 : index
    %c0_82 = arith.constant 0 : index
    %c0_83 = arith.constant 0 : index
    %110 = vector.load %arg11[%c0_81, %c0_82, %c0_83] : memref<2x13x64xf32, #tpu.memory_space<vmem>>, vector<1x13x64xf32>
    %111 = vector.shape_cast %110 : vector<1x13x64xf32> to vector<13x64xf32>
    %112 = vector.shape_cast %106 : vector<13x64xf32> to vector<1x13x64xf32>
    tpu.vector_store %arg11[%c0_81, %c0_82, %c0_83], %112 {strides = array<i32>} : memref<2x13x64xf32, #tpu.memory_space<vmem>>, vector<1x13x64xf32>,
    %c0_84 = arith.constant 0 : index
    %c0_85 = arith.constant 0 : index
    %113 = vector.load %arg7[%c0_84, %c0_85] : memref<192x192xf32, #tpu.memory_space<vmem>>, vector<128x192xf32>
    %cst_86 = arith.constant dense<0.000000e+00> : vector<13x192xf32>
    %114 = tpu.matmul %50, %113, %cst_86 {dimension_numbers = #tpu.dot_dimension_numbers<[1], [0], [0], [1], [0, 0, 1, 1], [], []>} : vector<13x128xf32>, vector<128x192xf32>, vector<13x192xf32> -> vector<13x192xf32>
    %c128_87 = arith.constant 128 : index
    %c0_88 = arith.constant 0 : index
    %115 = vector.load %arg7[%c128_87, %c0_88] : memref<192x192xf32, #tpu.memory_space<vmem>>, vector<64x192xf32>
    %cst_89 = arith.constant dense<0.000000e+00> : vector<13x192xf32>
    %116 = tpu.matmul %106, %115, %cst_89 {dimension_numbers = #tpu.dot_dimension_numbers<[1], [0], [0], [1], [0, 0, 1, 1], [], []>} : vector<13x64xf32>, vector<64x192xf32>, vector<13x192xf32> -> vector<13x192xf32>
    %117 = arith.addf %114, %116 : vector<13x192xf32>
    %118 = vector.broadcast %4 : vector<1x192xf32> to vector<13x192xf32>
    %119 = arith.addf %117, %118 : vector<13x192xf32>
    %cst_90 = arith.constant 0.000000e+00 : f32
    %120 = vector.broadcast %cst_90 : f32 to vector<13x192xf32>
    %121 = arith.maximumf %119, %120 : vector<13x192xf32>
    %c0_91 = arith.constant 0 : index
    %c0_92 = arith.constant 0 : index
    %c0_93 = arith.constant 0 : index
    %122 = vector.load %arg12[%c0_91, %c0_92, %c0_93] : memref<2x13x192xf32, #tpu.memory_space<vmem>>, vector<1x13x192xf32>
    %123 = vector.shape_cast %122 : vector<1x13x192xf32> to vector<13x192xf32>
    %124 = vector.shape_cast %121 : vector<13x192xf32> to vector<1x13x192xf32>
    tpu.vector_store %arg12[%c0_91, %c0_92, %c0_93], %124 {strides = array<i32>} : memref<2x13x192xf32, #tpu.memory_space<vmem>>, vector<1x13x192xf32>,
    %c0_94 = arith.constant 0 : index
    %c0_95 = arith.constant 0 : index
    %125 = vector.load %arg8[%c0_94, %c0_95] : memref<192x32xf32, #tpu.memory_space<vmem>>, vector<192x32xf32>
    %cst_96 = arith.constant dense<0.000000e+00> : vector<13x32xf32>
    %126 = tpu.matmul %121, %125, %cst_96 {dimension_numbers = #tpu.dot_dimension_numbers<[1], [0], [0], [1], [0, 0, 1, 1], [], []>} : vector<13x192xf32>, vector<192x32xf32>, vector<13x32xf32> -> vector<13x32xf32>
    %127 = vector.broadcast %5 : vector<1x32xf32> to vector<13x32xf32>
    %128 = arith.addf %126, %127 : vector<13x32xf32>
    %c0_97 = arith.constant 0 : index
    %c0_98 = arith.constant 0 : index
    %c0_99 = arith.constant 0 : index
    %129 = vector.load %arg13[%c0_97, %c0_98, %c0_99] : memref<2x13x32xf32, #tpu.memory_space<vmem>>, vector<1x13x32xf32>
    %130 = vector.shape_cast %129 : vector<1x13x32xf32> to vector<13x32xf32>
    %131 = vector.shape_cast %128 : vector<13x32xf32> to vector<1x13x32xf32>
    tpu.vector_store %arg13[%c0_97, %c0_98, %c0_99], %131 {strides = array<i32>} : memref<2x13x32xf32, #tpu.memory_space<vmem>>, vector<1x13x32xf32>,
    %c1_100 = arith.constant 1 : index
    %c0_101 = arith.constant 0 : index
    %c0_102 = arith.constant 0 : index
    %132 = vector.load %arg1[%c1_100, %c0_101, %c0_102] : memref<2x64x48xf32, #tpu.memory_space<vmem>>, vector<1x64x48xf32>
    %133 = vector.shape_cast %132 : vector<1x64x48xf32> to vector<64x48xf32>
    %134 = vector.extract_strided_slice %133 {offsets = [0, 0], sizes = [60, 48], strides = [1, 1]} : vector<64x48xf32> to vector<60x48xf32>
    %c0_103 = arith.constant 0 : index
    %c0_104 = arith.constant 0 : index
    %135 = vector.load %arg3[%c0_103, %c0_104] : memref<240x128xf32, #tpu.memory_space<vmem>>, vector<48x128xf32>
    %cst_105 = arith.constant dense<0.000000e+00> : vector<60x128xf32>
    %136 = tpu.matmul %134, %135, %cst_105 {dimension_numbers = #tpu.dot_dimension_numbers<[1], [0], [0], [1], [0, 0, 1, 1], [], []>} : vector<60x48xf32>, vector<48x128xf32>, vector<60x128xf32> -> vector<60x128xf32>
    %137 = vector.extract_strided_slice %133 {offsets = [1, 0], sizes = [60, 48], strides = [1, 1]} : vector<64x48xf32> to vector<60x48xf32>
    %c48_106 = arith.constant 48 : index
    %c0_107 = arith.constant 0 : index
    %138 = vector.load %arg3[%c48_106, %c0_107] : memref<240x128xf32, #tpu.memory_space<vmem>>, vector<48x128xf32>
    %cst_108 = arith.constant dense<0.000000e+00> : vector<60x128xf32>
    %139 = tpu.matmul %137, %138, %cst_108 {dimension_numbers = #tpu.dot_dimension_numbers<[1], [0], [0], [1], [0, 0, 1, 1], [], []>} : vector<60x48xf32>, vector<48x128xf32>, vector<60x128xf32> -> vector<60x128xf32>
    %140 = arith.addf %136, %139 : vector<60x128xf32>
    %141 = vector.extract_strided_slice %133 {offsets = [2, 0], sizes = [60, 48], strides = [1, 1]} : vector<64x48xf32> to vector<60x48xf32>
    %c96_109 = arith.constant 96 : index
    %c0_110 = arith.constant 0 : index
    %142 = vector.load %arg3[%c96_109, %c0_110] : memref<240x128xf32, #tpu.memory_space<vmem>>, vector<48x128xf32>
    %cst_111 = arith.constant dense<0.000000e+00> : vector<60x128xf32>
    %143 = tpu.matmul %141, %142, %cst_111 {dimension_numbers = #tpu.dot_dimension_numbers<[1], [0], [0], [1], [0, 0, 1, 1], [], []>} : vector<60x48xf32>, vector<48x128xf32>, vector<60x128xf32> -> vector<60x128xf32>
    %144 = arith.addf %140, %143 : vector<60x128xf32>
    %145 = vector.extract_strided_slice %133 {offsets = [3, 0], sizes = [60, 48], strides = [1, 1]} : vector<64x48xf32> to vector<60x48xf32>
    %c144_112 = arith.constant 144 : index
    %c0_113 = arith.constant 0 : index
    %146 = vector.load %arg3[%c144_112, %c0_113] : memref<240x128xf32, #tpu.memory_space<vmem>>, vector<48x128xf32>
    %cst_114 = arith.constant dense<0.000000e+00> : vector<60x128xf32>
    %147 = tpu.matmul %145, %146, %cst_114 {dimension_numbers = #tpu.dot_dimension_numbers<[1], [0], [0], [1], [0, 0, 1, 1], [], []>} : vector<60x48xf32>, vector<48x128xf32>, vector<60x128xf32> -> vector<60x128xf32>
    %148 = arith.addf %144, %147 : vector<60x128xf32>
    %149 = vector.extract_strided_slice %133 {offsets = [4, 0], sizes = [60, 48], strides = [1, 1]} : vector<64x48xf32> to vector<60x48xf32>
    %c192_115 = arith.constant 192 : index
    %c0_116 = arith.constant 0 : index
    %150 = vector.load %arg3[%c192_115, %c0_116] : memref<240x128xf32, #tpu.memory_space<vmem>>, vector<48x128xf32>
    %cst_117 = arith.constant dense<0.000000e+00> : vector<60x128xf32>
    %151 = tpu.matmul %149, %150, %cst_117 {dimension_numbers = #tpu.dot_dimension_numbers<[1], [0], [0], [1], [0, 0, 1, 1], [], []>} : vector<60x48xf32>, vector<48x128xf32>, vector<60x128xf32> -> vector<60x128xf32>
    %152 = arith.addf %148, %151 : vector<60x128xf32>
    %153 = vector.broadcast %0 : vector<1x128xf32> to vector<60x128xf32>
    %154 = arith.addf %152, %153 : vector<60x128xf32>
    %cst_118 = arith.constant 0.000000e+00 : f32
    %155 = vector.broadcast %cst_118 : f32 to vector<60x128xf32>
    %156 = arith.maximumf %154, %155 : vector<60x128xf32>
    %c0_119 = arith.constant 0 : index
    %c0_120 = arith.constant 0 : index
    %157 = vector.load %arg14[%c0_119, %c0_120] : memref<60x128xf32, #tpu.memory_space<vmem>>, vector<60x128xf32>
    tpu.vector_store %arg14[%c0_119, %c0_120], %156 {strides = array<i32>} : memref<60x128xf32, #tpu.memory_space<vmem>>, vector<60x128xf32>,
    %c0_121 = arith.constant 0 : index
    %c0_122 = arith.constant 0 : index
    %158 = tpu.strided_load %arg14[%c0_121, %c0_122] {strides = array<i32: 2, 1>} : memref<60x128xf32, #tpu.memory_space<vmem>>, vector<30x128xf32>
    %c1_123 = arith.constant 1 : index
    %c0_124 = arith.constant 0 : index
    %159 = tpu.strided_load %arg14[%c1_123, %c0_124] {strides = array<i32: 2, 1>} : memref<60x128xf32, #tpu.memory_space<vmem>>, vector<30x128xf32>
    %160 = arith.maximumf %158, %159 : vector<30x128xf32>
    %161 = vector.extract_strided_slice %160 {offsets = [0, 0], sizes = [26, 128], strides = [1, 1]} : vector<30x128xf32> to vector<26x128xf32>
    %162 = vector.extract_strided_slice %160 {offsets = [1, 0], sizes = [26, 128], strides = [1, 1]} : vector<30x128xf32> to vector<26x128xf32>
    %163 = vector.extract_strided_slice %160 {offsets = [2, 0], sizes = [26, 128], strides = [1, 1]} : vector<30x128xf32> to vector<26x128xf32>
    %164 = vector.extract_strided_slice %160 {offsets = [3, 0], sizes = [26, 128], strides = [1, 1]} : vector<30x128xf32> to vector<26x128xf32>
    %165 = vector.extract_strided_slice %160 {offsets = [4, 0], sizes = [26, 128], strides = [1, 1]} : vector<30x128xf32> to vector<26x128xf32>
    %166 = tpu.concatenate %161, %162, %163, %164, %165 in 1 : vector<26x128xf32>, vector<26x128xf32>, vector<26x128xf32>, vector<26x128xf32>, vector<26x128xf32> -> vector<26x640xf32>
    %c0_125 = arith.constant 0 : index
    %c0_126 = arith.constant 0 : index
    %167 = vector.load %arg4[%c0_125, %c0_126] : memref<640x128xf32, #tpu.memory_space<vmem>>, vector<640x128xf32>
    %cst_127 = arith.constant dense<0.000000e+00> : vector<26x128xf32>
    %168 = tpu.matmul %166, %167, %cst_127 {dimension_numbers = #tpu.dot_dimension_numbers<[1], [0], [0], [1], [0, 0, 1, 1], [], []>} : vector<26x640xf32>, vector<640x128xf32>, vector<26x128xf32> -> vector<26x128xf32>
    %169 = vector.broadcast %1 : vector<1x128xf32> to vector<26x128xf32>
    %170 = arith.addf %168, %169 : vector<26x128xf32>
    %cst_128 = arith.constant 0.000000e+00 : f32
    %171 = vector.broadcast %cst_128 : f32 to vector<26x128xf32>
    %172 = arith.maximumf %170, %171 : vector<26x128xf32>
    %c0_129 = arith.constant 0 : index
    %c0_130 = arith.constant 0 : index
    %173 = vector.load %arg14[%c0_129, %c0_130] : memref<60x128xf32, #tpu.memory_space<vmem>>, vector<26x128xf32>
    tpu.vector_store %arg14[%c0_129, %c0_130], %172 {strides = array<i32>} : memref<60x128xf32, #tpu.memory_space<vmem>>, vector<26x128xf32>,
    %c0_131 = arith.constant 0 : index
    %c0_132 = arith.constant 0 : index
    %174 = tpu.strided_load %arg14[%c0_131, %c0_132] {strides = array<i32: 2, 1>} : memref<60x128xf32, #tpu.memory_space<vmem>>, vector<13x128xf32>
    %c1_133 = arith.constant 1 : index
    %c0_134 = arith.constant 0 : index
    %175 = tpu.strided_load %arg14[%c1_133, %c0_134] {strides = array<i32: 2, 1>} : memref<60x128xf32, #tpu.memory_space<vmem>>, vector<13x128xf32>
    %176 = arith.maximumf %174, %175 : vector<13x128xf32>
    %c1_135 = arith.constant 1 : index
    %c0_136 = arith.constant 0 : index
    %c0_137 = arith.constant 0 : index
    %177 = vector.load %arg2[%c1_135, %c0_136, %c0_137] : memref<2x64x16xf32, #tpu.memory_space<vmem>>, vector<1x64x16xf32>
    %178 = vector.shape_cast %177 : vector<1x64x16xf32> to vector<64x16xf32>
    %179 = vector.extract_strided_slice %178 {offsets = [0, 0], sizes = [60, 16], strides = [1, 1]} : vector<64x16xf32> to vector<60x16xf32>
    %c0_138 = arith.constant 0 : index
    %c0_139 = arith.constant 0 : index
    %180 = vector.load %arg5[%c0_138, %c0_139] : memref<80x64xf32, #tpu.memory_space<vmem>>, vector<16x64xf32>
    %cst_140 = arith.constant dense<0.000000e+00> : vector<60x64xf32>
    %181 = tpu.matmul %179, %180, %cst_140 {dimension_numbers = #tpu.dot_dimension_numbers<[1], [0], [0], [1], [0, 0, 1, 1], [], []>} : vector<60x16xf32>, vector<16x64xf32>, vector<60x64xf32> -> vector<60x64xf32>
    %182 = vector.extract_strided_slice %178 {offsets = [1, 0], sizes = [60, 16], strides = [1, 1]} : vector<64x16xf32> to vector<60x16xf32>
    %c16_141 = arith.constant 16 : index
    %c0_142 = arith.constant 0 : index
    %183 = vector.load %arg5[%c16_141, %c0_142] : memref<80x64xf32, #tpu.memory_space<vmem>>, vector<16x64xf32>
    %cst_143 = arith.constant dense<0.000000e+00> : vector<60x64xf32>
    %184 = tpu.matmul %182, %183, %cst_143 {dimension_numbers = #tpu.dot_dimension_numbers<[1], [0], [0], [1], [0, 0, 1, 1], [], []>} : vector<60x16xf32>, vector<16x64xf32>, vector<60x64xf32> -> vector<60x64xf32>
    %185 = arith.addf %181, %184 : vector<60x64xf32>
    %186 = vector.extract_strided_slice %178 {offsets = [2, 0], sizes = [60, 16], strides = [1, 1]} : vector<64x16xf32> to vector<60x16xf32>
    %c32_144 = arith.constant 32 : index
    %c0_145 = arith.constant 0 : index
    %187 = vector.load %arg5[%c32_144, %c0_145] : memref<80x64xf32, #tpu.memory_space<vmem>>, vector<16x64xf32>
    %cst_146 = arith.constant dense<0.000000e+00> : vector<60x64xf32>
    %188 = tpu.matmul %186, %187, %cst_146 {dimension_numbers = #tpu.dot_dimension_numbers<[1], [0], [0], [1], [0, 0, 1, 1], [], []>} : vector<60x16xf32>, vector<16x64xf32>, vector<60x64xf32> -> vector<60x64xf32>
    %189 = arith.addf %185, %188 : vector<60x64xf32>
    %190 = vector.extract_strided_slice %178 {offsets = [3, 0], sizes = [60, 16], strides = [1, 1]} : vector<64x16xf32> to vector<60x16xf32>
    %c48_147 = arith.constant 48 : index
    %c0_148 = arith.constant 0 : index
    %191 = vector.load %arg5[%c48_147, %c0_148] : memref<80x64xf32, #tpu.memory_space<vmem>>, vector<16x64xf32>
    %cst_149 = arith.constant dense<0.000000e+00> : vector<60x64xf32>
    %192 = tpu.matmul %190, %191, %cst_149 {dimension_numbers = #tpu.dot_dimension_numbers<[1], [0], [0], [1], [0, 0, 1, 1], [], []>} : vector<60x16xf32>, vector<16x64xf32>, vector<60x64xf32> -> vector<60x64xf32>
    %193 = arith.addf %189, %192 : vector<60x64xf32>
    %194 = vector.extract_strided_slice %178 {offsets = [4, 0], sizes = [60, 16], strides = [1, 1]} : vector<64x16xf32> to vector<60x16xf32>
    %c64_150 = arith.constant 64 : index
    %c0_151 = arith.constant 0 : index
    %195 = vector.load %arg5[%c64_150, %c0_151] : memref<80x64xf32, #tpu.memory_space<vmem>>, vector<16x64xf32>
    %cst_152 = arith.constant dense<0.000000e+00> : vector<60x64xf32>
    %196 = tpu.matmul %194, %195, %cst_152 {dimension_numbers = #tpu.dot_dimension_numbers<[1], [0], [0], [1], [0, 0, 1, 1], [], []>} : vector<60x16xf32>, vector<16x64xf32>, vector<60x64xf32> -> vector<60x64xf32>
    %197 = arith.addf %193, %196 : vector<60x64xf32>
    %198 = vector.broadcast %2 : vector<1x64xf32> to vector<60x64xf32>
    %199 = arith.addf %197, %198 : vector<60x64xf32>
    %cst_153 = arith.constant 0.000000e+00 : f32
    %200 = vector.broadcast %cst_153 : f32 to vector<60x64xf32>
    %201 = arith.maximumf %199, %200 : vector<60x64xf32>
    %c0_154 = arith.constant 0 : index
    %c0_155 = arith.constant 0 : index
    %202 = vector.load %arg15[%c0_154, %c0_155] : memref<60x64xf32, #tpu.memory_space<vmem>>, vector<60x64xf32>
    tpu.vector_store %arg15[%c0_154, %c0_155], %201 {strides = array<i32>} : memref<60x64xf32, #tpu.memory_space<vmem>>, vector<60x64xf32>,
    %c0_156 = arith.constant 0 : index
    %c0_157 = arith.constant 0 : index
    %203 = tpu.strided_load %arg15[%c0_156, %c0_157] {strides = array<i32: 2, 1>} : memref<60x64xf32, #tpu.memory_space<vmem>>, vector<30x64xf32>
    %c1_158 = arith.constant 1 : index
    %c0_159 = arith.constant 0 : index
    %204 = tpu.strided_load %arg15[%c1_158, %c0_159] {strides = array<i32: 2, 1>} : memref<60x64xf32, #tpu.memory_space<vmem>>, vector<30x64xf32>
    %205 = arith.maximumf %203, %204 : vector<30x64xf32>
    %206 = vector.extract_strided_slice %205 {offsets = [0, 0], sizes = [26, 64], strides = [1, 1]} : vector<30x64xf32> to vector<26x64xf32>
    %c0_160 = arith.constant 0 : index
    %c0_161 = arith.constant 0 : index
    %207 = vector.load %arg6[%c0_160, %c0_161] : memref<320x64xf32, #tpu.memory_space<vmem>>, vector<64x64xf32>
    %cst_162 = arith.constant dense<0.000000e+00> : vector<26x64xf32>
    %208 = tpu.matmul %206, %207, %cst_162 {dimension_numbers = #tpu.dot_dimension_numbers<[1], [0], [0], [1], [0, 0, 1, 1], [], []>} : vector<26x64xf32>, vector<64x64xf32>, vector<26x64xf32> -> vector<26x64xf32>
    %209 = vector.extract_strided_slice %205 {offsets = [1, 0], sizes = [26, 64], strides = [1, 1]} : vector<30x64xf32> to vector<26x64xf32>
    %c64_163 = arith.constant 64 : index
    %c0_164 = arith.constant 0 : index
    %210 = vector.load %arg6[%c64_163, %c0_164] : memref<320x64xf32, #tpu.memory_space<vmem>>, vector<64x64xf32>
    %cst_165 = arith.constant dense<0.000000e+00> : vector<26x64xf32>
    %211 = tpu.matmul %209, %210, %cst_165 {dimension_numbers = #tpu.dot_dimension_numbers<[1], [0], [0], [1], [0, 0, 1, 1], [], []>} : vector<26x64xf32>, vector<64x64xf32>, vector<26x64xf32> -> vector<26x64xf32>
    %212 = arith.addf %208, %211 : vector<26x64xf32>
    %213 = vector.extract_strided_slice %205 {offsets = [2, 0], sizes = [26, 64], strides = [1, 1]} : vector<30x64xf32> to vector<26x64xf32>
    %c128_166 = arith.constant 128 : index
    %c0_167 = arith.constant 0 : index
    %214 = vector.load %arg6[%c128_166, %c0_167] : memref<320x64xf32, #tpu.memory_space<vmem>>, vector<64x64xf32>
    %cst_168 = arith.constant dense<0.000000e+00> : vector<26x64xf32>
    %215 = tpu.matmul %213, %214, %cst_168 {dimension_numbers = #tpu.dot_dimension_numbers<[1], [0], [0], [1], [0, 0, 1, 1], [], []>} : vector<26x64xf32>, vector<64x64xf32>, vector<26x64xf32> -> vector<26x64xf32>
    %216 = arith.addf %212, %215 : vector<26x64xf32>
    %217 = vector.extract_strided_slice %205 {offsets = [3, 0], sizes = [26, 64], strides = [1, 1]} : vector<30x64xf32> to vector<26x64xf32>
    %c192_169 = arith.constant 192 : index
    %c0_170 = arith.constant 0 : index
    %218 = vector.load %arg6[%c192_169, %c0_170] : memref<320x64xf32, #tpu.memory_space<vmem>>, vector<64x64xf32>
    %cst_171 = arith.constant dense<0.000000e+00> : vector<26x64xf32>
    %219 = tpu.matmul %217, %218, %cst_171 {dimension_numbers = #tpu.dot_dimension_numbers<[1], [0], [0], [1], [0, 0, 1, 1], [], []>} : vector<26x64xf32>, vector<64x64xf32>, vector<26x64xf32> -> vector<26x64xf32>
    %220 = arith.addf %216, %219 : vector<26x64xf32>
    %221 = vector.extract_strided_slice %205 {offsets = [4, 0], sizes = [26, 64], strides = [1, 1]} : vector<30x64xf32> to vector<26x64xf32>
    %c256_172 = arith.constant 256 : index
    %c0_173 = arith.constant 0 : index
    %222 = vector.load %arg6[%c256_172, %c0_173] : memref<320x64xf32, #tpu.memory_space<vmem>>, vector<64x64xf32>
    %cst_174 = arith.constant dense<0.000000e+00> : vector<26x64xf32>
    %223 = tpu.matmul %221, %222, %cst_174 {dimension_numbers = #tpu.dot_dimension_numbers<[1], [0], [0], [1], [0, 0, 1, 1], [], []>} : vector<26x64xf32>, vector<64x64xf32>, vector<26x64xf32> -> vector<26x64xf32>
    %224 = arith.addf %220, %223 : vector<26x64xf32>
    %225 = vector.broadcast %3 : vector<1x64xf32> to vector<26x64xf32>
    %226 = arith.addf %224, %225 : vector<26x64xf32>
    %cst_175 = arith.constant 0.000000e+00 : f32
    %227 = vector.broadcast %cst_175 : f32 to vector<26x64xf32>
    %228 = arith.maximumf %226, %227 : vector<26x64xf32>
    %c0_176 = arith.constant 0 : index
    %c0_177 = arith.constant 0 : index
    %229 = vector.load %arg15[%c0_176, %c0_177] : memref<60x64xf32, #tpu.memory_space<vmem>>, vector<26x64xf32>
    tpu.vector_store %arg15[%c0_176, %c0_177], %228 {strides = array<i32>} : memref<60x64xf32, #tpu.memory_space<vmem>>, vector<26x64xf32>,
    %c0_178 = arith.constant 0 : index
    %c0_179 = arith.constant 0 : index
    %230 = tpu.strided_load %arg15[%c0_178, %c0_179] {strides = array<i32: 2, 1>} : memref<60x64xf32, #tpu.memory_space<vmem>>, vector<13x64xf32>
    %c1_180 = arith.constant 1 : index
    %c0_181 = arith.constant 0 : index
    %231 = tpu.strided_load %arg15[%c1_180, %c0_181] {strides = array<i32: 2, 1>} : memref<60x64xf32, #tpu.memory_space<vmem>>, vector<13x64xf32>
    %232 = arith.maximumf %230, %231 : vector<13x64xf32>
    %c1_182 = arith.constant 1 : index
    %c0_183 = arith.constant 0 : index
    %c0_184 = arith.constant 0 : index
    %233 = vector.load %arg10[%c1_182, %c0_183, %c0_184] : memref<2x13x128xf32, #tpu.memory_space<vmem>>, vector<1x13x128xf32>
    %234 = vector.shape_cast %233 : vector<1x13x128xf32> to vector<13x128xf32>
    %235 = vector.shape_cast %176 : vector<13x128xf32> to vector<1x13x128xf32>
    tpu.vector_store %arg10[%c1_182, %c0_183, %c0_184], %235 {strides = array<i32>} : memref<2x13x128xf32, #tpu.memory_space<vmem>>, vector<1x13x128xf32>,
    %c1_185 = arith.constant 1 : index
    %c0_186 = arith.constant 0 : index
    %c0_187 = arith.constant 0 : index
    %236 = vector.load %arg11[%c1_185, %c0_186, %c0_187] : memref<2x13x64xf32, #tpu.memory_space<vmem>>, vector<1x13x64xf32>
    %237 = vector.shape_cast %236 : vector<1x13x64xf32> to vector<13x64xf32>
    %238 = vector.shape_cast %232 : vector<13x64xf32> to vector<1x13x64xf32>
    tpu.vector_store %arg11[%c1_185, %c0_186, %c0_187], %238 {strides = array<i32>} : memref<2x13x64xf32, #tpu.memory_space<vmem>>, vector<1x13x64xf32>,
    %c0_188 = arith.constant 0 : index
    %c0_189 = arith.constant 0 : index
    %239 = vector.load %arg7[%c0_188, %c0_189] : memref<192x192xf32, #tpu.memory_space<vmem>>, vector<128x192xf32>
    %cst_190 = arith.constant dense<0.000000e+00> : vector<13x192xf32>
    %240 = tpu.matmul %176, %239, %cst_190 {dimension_numbers = #tpu.dot_dimension_numbers<[1], [0], [0], [1], [0, 0, 1, 1], [], []>} : vector<13x128xf32>, vector<128x192xf32>, vector<13x192xf32> -> vector<13x192xf32>
    %c128_191 = arith.constant 128 : index
    %c0_192 = arith.constant 0 : index
    %241 = vector.load %arg7[%c128_191, %c0_192] : memref<192x192xf32, #tpu.memory_space<vmem>>, vector<64x192xf32>
    %cst_193 = arith.constant dense<0.000000e+00> : vector<13x192xf32>
    %242 = tpu.matmul %232, %241, %cst_193 {dimension_numbers = #tpu.dot_dimension_numbers<[1], [0], [0], [1], [0, 0, 1, 1], [], []>} : vector<13x64xf32>, vector<64x192xf32>, vector<13x192xf32> -> vector<13x192xf32>
    %243 = arith.addf %240, %242 : vector<13x192xf32>
    %244 = vector.broadcast %4 : vector<1x192xf32> to vector<13x192xf32>
    %245 = arith.addf %243, %244 : vector<13x192xf32>
    %cst_194 = arith.constant 0.000000e+00 : f32
    %246 = vector.broadcast %cst_194 : f32 to vector<13x192xf32>
    %247 = arith.maximumf %245, %246 : vector<13x192xf32>
    %c1_195 = arith.constant 1 : index
    %c0_196 = arith.constant 0 : index
    %c0_197 = arith.constant 0 : index
    %248 = vector.load %arg12[%c1_195, %c0_196, %c0_197] : memref<2x13x192xf32, #tpu.memory_space<vmem>>, vector<1x13x192xf32>
    %249 = vector.shape_cast %248 : vector<1x13x192xf32> to vector<13x192xf32>
    %250 = vector.shape_cast %247 : vector<13x192xf32> to vector<1x13x192xf32>
    tpu.vector_store %arg12[%c1_195, %c0_196, %c0_197], %250 {strides = array<i32>} : memref<2x13x192xf32, #tpu.memory_space<vmem>>, vector<1x13x192xf32>,
    %c0_198 = arith.constant 0 : index
    %c0_199 = arith.constant 0 : index
    %251 = vector.load %arg8[%c0_198, %c0_199] : memref<192x32xf32, #tpu.memory_space<vmem>>, vector<192x32xf32>
    %cst_200 = arith.constant dense<0.000000e+00> : vector<13x32xf32>
    %252 = tpu.matmul %247, %251, %cst_200 {dimension_numbers = #tpu.dot_dimension_numbers<[1], [0], [0], [1], [0, 0, 1, 1], [], []>} : vector<13x192xf32>, vector<192x32xf32>, vector<13x32xf32> -> vector<13x32xf32>
    %253 = vector.broadcast %5 : vector<1x32xf32> to vector<13x32xf32>
    %254 = arith.addf %252, %253 : vector<13x32xf32>
    %c1_201 = arith.constant 1 : index
    %c0_202 = arith.constant 0 : index
    %c0_203 = arith.constant 0 : index
    %255 = vector.load %arg13[%c1_201, %c0_202, %c0_203] : memref<2x13x32xf32, #tpu.memory_space<vmem>>, vector<1x13x32xf32>
    %256 = vector.shape_cast %255 : vector<1x13x32xf32> to vector<13x32xf32>
    %257 = vector.shape_cast %254 : vector<13x32xf32> to vector<1x13x32xf32>
    tpu.vector_store %arg13[%c1_201, %c0_202, %c0_203], %257 {strides = array<i32>} : memref<2x13x32xf32, #tpu.memory_space<vmem>>, vector<1x13x32xf32>,
    return
  }
  func.func @transform_0(%arg0: i32) -> (i32, i32, i32) {
    %c0_i32 = arith.constant 0 : i32
    %c0_i32_0 = arith.constant 0 : i32
    %c0_i32_1 = arith.constant 0 : i32
    return %arg0, %c0_i32, %c0_i32_0 : i32, i32, i32
  }
  func.func @transform_1(%arg0: i32) -> (i32, i32, i32) {
    %c0_i32 = arith.constant 0 : i32
    %c0_i32_0 = arith.constant 0 : i32
    %c0_i32_1 = arith.constant 0 : i32
    return %arg0, %c0_i32, %c0_i32_0 : i32, i32, i32
  }
  func.func @transform_2(%arg0: i32) -> (i32, i32) {
    %c0_i32 = arith.constant 0 : i32
    %c0_i32_0 = arith.constant 0 : i32
    %c0_i32_1 = arith.constant 0 : i32
    return %c0_i32, %c0_i32_0 : i32, i32
  }
  func.func @transform_3(%arg0: i32) -> (i32, i32) {
    %c0_i32 = arith.constant 0 : i32
    %c0_i32_0 = arith.constant 0 : i32
    %c0_i32_1 = arith.constant 0 : i32
    return %c0_i32, %c0_i32_0 : i32, i32
  }
  func.func @transform_4(%arg0: i32) -> (i32, i32) {
    %c0_i32 = arith.constant 0 : i32
    %c0_i32_0 = arith.constant 0 : i32
    %c0_i32_1 = arith.constant 0 : i32
    return %c0_i32, %c0_i32_0 : i32, i32
  }
  func.func @transform_5(%arg0: i32) -> (i32, i32) {
    %c0_i32 = arith.constant 0 : i32
    %c0_i32_0 = arith.constant 0 : i32
    %c0_i32_1 = arith.constant 0 : i32
    return %c0_i32, %c0_i32_0 : i32, i32
  }
  func.func @transform_6(%arg0: i32) -> (i32, i32) {
    %c0_i32 = arith.constant 0 : i32
    %c0_i32_0 = arith.constant 0 : i32
    %c0_i32_1 = arith.constant 0 : i32
    return %c0_i32, %c0_i32_0 : i32, i32
  }
  func.func @transform_7(%arg0: i32) -> (i32, i32) {
    %c0_i32 = arith.constant 0 : i32
    %c0_i32_0 = arith.constant 0 : i32
    %c0_i32_1 = arith.constant 0 : i32
    return %c0_i32, %c0_i32_0 : i32, i32
  }
  func.func @transform_8(%arg0: i32) -> (i32, i32) {
    %c0_i32 = arith.constant 0 : i32
    %c0_i32_0 = arith.constant 0 : i32
    %c0_i32_1 = arith.constant 0 : i32
    return %c0_i32, %c0_i32_0 : i32, i32
  }
  func.func @transform_9(%arg0: i32) -> (i32, i32, i32) {
    %c0_i32 = arith.constant 0 : i32
    %c0_i32_0 = arith.constant 0 : i32
    %c0_i32_1 = arith.constant 0 : i32
    return %arg0, %c0_i32, %c0_i32_0 : i32, i32, i32
  }
  func.func @transform_10(%arg0: i32) -> (i32, i32, i32) {
    %c0_i32 = arith.constant 0 : i32
    %c0_i32_0 = arith.constant 0 : i32
    %c0_i32_1 = arith.constant 0 : i32
    return %arg0, %c0_i32, %c0_i32_0 : i32, i32, i32
  }
  func.func @transform_11(%arg0: i32) -> (i32, i32, i32) {
    %c0_i32 = arith.constant 0 : i32
    %c0_i32_0 = arith.constant 0 : i32
    %c0_i32_1 = arith.constant 0 : i32
    return %arg0, %c0_i32, %c0_i32_0 : i32, i32, i32
  }
  func.func @transform_12(%arg0: i32) -> (i32, i32, i32) {
    %c0_i32 = arith.constant 0 : i32
    %c0_i32_0 = arith.constant 0 : i32
    %c0_i32_1 = arith.constant 0 : i32
    return %arg0, %c0_i32, %c0_i32_0 : i32, i32, i32
  }
}

</mosaic_0001>

<llo_original>
// kernel: dual_feature_temporal_conv_forward.1
$region0: #{dual_feature_temporal_conv_forward.1}
  #allocation0 [shape = 'u32[]', space=smem, size = 0x4, offset = 0x4, fixed_abs, tag = 'smem constant byte address 0x4 - core index']
  #allocation1 [shape = 'u32[144,128]{1,0:T(1,128)}', space=vmem, size = 0x12000, scoped, tag = 'internal scratch']
  #allocation2 [shape = 'f32[60,128]{1,0:T(8,128)}', space=vmem, size = 0x8000, scoped, tag = 'scratch operand']
  #allocation3 [shape = 'f32[60,64]{1,0:T(8,128)}', space=vmem, size = 0x8000, scoped, tag = 'scratch operand']
  %s0 = inlined_call_operand.vmem [shape: f32[4,64,48], index: 0, kind: input, shape index: {}]
  %s1 = inlined_call_operand.vmem [shape: f32[4,64,16], index: 1, kind: input, shape index: {}]
  %s2 = inlined_call_operand.vmem [shape: f32[240,128], index: 2, kind: input, shape index: {}]
  %s3 = inlined_call_operand.vmem [shape: f32[640,128], index: 3, kind: input, shape index: {}]
  %s4 = inlined_call_operand.vmem [shape: f32[80,64], index: 4, kind: input, shape index: {}]
  %s5 = inlined_call_operand.vmem [shape: f32[320,64], index: 5, kind: input, shape index: {}]
  %s6 = inlined_call_operand.vmem [shape: f32[192,192], index: 6, kind: input, shape index: {}]
  %s7 = inlined_call_operand.vmem [shape: f32[192,32], index: 7, kind: input, shape index: {}]
  %s8 = inlined_call_operand.vmem [shape: f32[6,192], index: 8, kind: input, shape index: {}]
  %s9 = inlined_call_operand.vmem [shape: f32[4,13,128], index: 9, kind: output, shape index: {0}]
  %s10 = inlined_call_operand.vmem [shape: f32[4,13,64], index: 10, kind: output, shape index: {1}]
  %s11 = inlined_call_operand.vmem [shape: f32[4,13,192], index: 11, kind: output, shape index: {2}]
  %s12 = inlined_call_operand.vmem [shape: f32[4,13,32], index: 12, kind: output, shape index: {3}]
  %13 = xla_tuple %s9, %s10, %s11, %s12
  %s14 = sld [smem:[#allocation0]]
  $region93: #{dual_feature_temporal_conv_forward.1} parent=0
    _
  %s16 = ssub.s32 1, %s14
  %s17 = scalar_select 0, %s16, %s14
  loop: start=0, step=1, limit=4
  $region2: #{dual_feature_temporal_conv_forward.1} parent=0 // loop_pre_header
    _
  $region3: #{dual_feature_temporal_conv_forward.1} parent=0 // loop_header
    %s19 = sphi 0, %s23
    %p20 = scmp.ge.s32.totalorder %s19, 4
    %s29 = sphi 0, %s31
    %s32 = sphi 0, %s29
    %s33 = sphi 0, %s32
    %s49 = sphi 0, %s33
    %s55 = sphi 0, %s57
    %s58 = sphi 0, %s55
    %s59 = sphi 0, %s58
    %s75 = sphi 0, %s59
    %s79 = sphi 0, %s79
    %s81 = sphi 0, %s79
    %s82 = sphi 0, %s81
    %s96 = sphi 0, %s82
    %s100 = sphi 0, %s100
    %s102 = sphi 0, %s100
    %s103 = sphi 0, %s102
    %s117 = sphi 0, %s103
    %s121 = sphi 0, %s121
    %s123 = sphi 0, %s121
    %s124 = sphi 0, %s123
    %s138 = sphi 0, %s124
    %s142 = sphi 0, %s142
    %s144 = sphi 0, %s142
    %s145 = sphi 0, %s144
    %s159 = sphi 0, %s145
    %s163 = sphi 0, %s163
    %s165 = sphi 0, %s163
    %s166 = sphi 0, %s165
    %s180 = sphi 0, %s166
    %s184 = sphi 0, %s184
    %s186 = sphi 0, %s184
    %s187 = sphi 0, %s186
    %s201 = sphi 0, %s187
    %s205 = sphi 0, %s205
    %s207 = sphi 0, %s205
    %s208 = sphi 0, %s207
    %s222 = sphi 0, %s208
    %s228 = sphi 0, %s230
    %s231 = sphi 0, %s228
    %s232 = sphi 0, %s231
    %s248 = sphi 0, %s232
    %s254 = sphi 0, %s256
    %s257 = sphi 0, %s254
    %s258 = sphi 0, %s257
    %s274 = sphi 0, %s258
    %s280 = sphi 0, %s282
    %s283 = sphi 0, %s280
    %s284 = sphi 0, %s283
    %s300 = sphi 0, %s284
    %s306 = sphi 0, %s308
    %s309 = sphi 0, %s306
    %s310 = sphi 0, %s309
    %s326 = sphi 0, %s310
  $region4: #{dual_feature_temporal_conv_forward.1} parent=0 // loop_header_branch
    %22 = sbr.rel (%p20) target = $region8
  $region5: #{dual_feature_temporal_conv_forward.1} parent=0 // loop_body
    %s24 = ssub.s32 %s19, 1
    %s25 = ssub.s32 %s19, 2
    %s26 = sadd.s32 %s19, 1
    %s27 = ssub.s32 %s19, %s26
    %p28 = scmp.eq.s32.totalorder %s27, 0
    %s30 = sadd.s32 %s29, 1
    %s31 = scalar_select %p28, %s29, %s30
    %p34 = pneg %p28
    %p35 = scmp.eq.s32.totalorder %s19, 1
    %p36 = por %p34, %p35
    %p37 = scmp.ne.s32.totalorder %s29, %s32
    %p38 = scmp.eq.s32.totalorder %s19, 0
    %p39 = por %p37, %p38
    %p40 = scmp.ne.s32.totalorder %s29, %s32
    %p41 = scmp.eq.s32.totalorder %s24, 1
    %p42 = por %p40, %p41
    %p43 = scmp.ne.s32.totalorder %s32, %s33
    %p44 = scmp.eq.s32.totalorder %s24, 0
    %p45 = por %p43, %p44
    %p46 = scmp.ne.s32.totalorder %s32, %s33
    %p47 = scmp.eq.s32.totalorder %s25, 1
    %p48 = por %p46, %p47
    %p50 = scmp.ne.s32.totalorder %s33, %s49
    %p51 = scmp.eq.s32.totalorder %s25, 0
    %p52 = por %p50, %p51
    %s53 = ssub.s32 %s19, %s26
    %p54 = scmp.eq.s32.totalorder %s53, 0
    %s56 = sadd.s32 %s55, 1
    %s57 = scalar_select %p54, %s55, %s56
    %p60 = pneg %p54
    %p61 = scmp.eq.s32.totalorder %s19, 1
    %p62 = por %p60, %p61
    %p63 = scmp.ne.s32.totalorder %s55, %s58
    %p64 = scmp.eq.s32.totalorder %s19, 0
    %p65 = por %p63, %p64
    %p66 = scmp.ne.s32.totalorder %s55, %s58
    %p67 = scmp.eq.s32.totalorder %s24, 1
    %p68 = por %p66, %p67
    %p69 = scmp.ne.s32.totalorder %s58, %s59
    %p70 = scmp.eq.s32.totalorder %s24, 0
    %p71 = por %p69, %p70
    %p72 = scmp.ne.s32.totalorder %s58, %s59
    %p73 = scmp.eq.s32.totalorder %s25, 1
    %p74 = por %p72, %p73
    %p76 = scmp.ne.s32.totalorder %s59, %s75
    %p77 = scmp.eq.s32.totalorder %s25, 0
    %p78 = por %p76, %p77
    %s80 = sadd.s32 %s79, 1
    %p83 = scmp.eq.s32.totalorder %s19, 1
    %p84 = scmp.ne.s32.totalorder %s79, %s81
    %p85 = scmp.eq.s32.totalorder %s19, 0
    %p86 = por %p84, %p85
    %p87 = scmp.ne.s32.totalorder %s79, %s81
    %p88 = scmp.eq.s32.totalorder %s24, 1
    %p89 = por %p87, %p88
    %p90 = scmp.ne.s32.totalorder %s81, %s82
    %p91 = scmp.eq.s32.totalorder %s24, 0
    %p92 = por %p90, %p91
    %p93 = scmp.ne.s32.totalorder %s81, %s82
    %p94 = scmp.eq.s32.totalorder %s25, 1
    %p95 = por %p93, %p94
    %p97 = scmp.ne.s32.totalorder %s82, %s96
    %p98 = scmp.eq.s32.totalorder %s25, 0
    %p99 = por %p97, %p98
    %s101 = sadd.s32 %s100, 1
    %p104 = scmp.eq.s32.totalorder %s19, 1
    %p105 = scmp.ne.s32.totalorder %s100, %s102
    %p106 = scmp.eq.s32.totalorder %s19, 0
    %p107 = por %p105, %p106
    %p108 = scmp.ne.s32.totalorder %s100, %s102
    %p109 = scmp.eq.s32.totalorder %s24, 1
    %p110 = por %p108, %p109
    %p111 = scmp.ne.s32.totalorder %s102, %s103
    %p112 = scmp.eq.s32.totalorder %s24, 0
    %p113 = por %p111, %p112
    %p114 = scmp.ne.s32.totalorder %s102, %s103
    %p115 = scmp.eq.s32.totalorder %s25, 1
    %p116 = por %p114, %p115
    %p118 = scmp.ne.s32.totalorder %s103, %s117
    %p119 = scmp.eq.s32.totalorder %s25, 0
    %p120 = por %p118, %p119
    %s122 = sadd.s32 %s121, 1
    %p125 = scmp.eq.s32.totalorder %s19, 1
    %p126 = scmp.ne.s32.totalorder %s121, %s123
    %p127 = scmp.eq.s32.totalorder %s19, 0
    %p128 = por %p126, %p127
    %p129 = scmp.ne.s32.totalorder %s121, %s123
    %p130 = scmp.eq.s32.totalorder %s24, 1
    %p131 = por %p129, %p130
    %p132 = scmp.ne.s32.totalorder %s123, %s124
    %p133 = scmp.eq.s32.totalorder %s24, 0
    %p134 = por %p132, %p133
    %p135 = scmp.ne.s32.totalorder %s123, %s124
    %p136 = scmp.eq.s32.totalorder %s25, 1
    %p137 = por %p135, %p136
    %p139 = scmp.ne.s32.totalorder %s124, %s138
    %p140 = scmp.eq.s32.totalorder %s25, 0
    %p141 = por %p139, %p140
    %s143 = sadd.s32 %s142, 1
    %p146 = scmp.eq.s32.totalorder %s19, 1
    %p147 = scmp.ne.s32.totalorder %s142, %s144
    %p148 = scmp.eq.s32.totalorder %s19, 0
    %p149 = por %p147, %p148
    %p150 = scmp.ne.s32.totalorder %s142, %s144
    %p151 = scmp.eq.s32.totalorder %s24, 1
    %p152 = por %p150, %p151
    %p153 = scmp.ne.s32.totalorder %s144, %s145
    %p154 = scmp.eq.s32.totalorder %s24, 0
    %p155 = por %p153, %p154
    %p156 = scmp.ne.s32.totalorder %s144, %s145
    %p157 = scmp.eq.s32.totalorder %s25, 1
    %p158 = por %p156, %p157
    %p160 = scmp.ne.s32.totalorder %s145, %s159
    %p161 = scmp.eq.s32.totalorder %s25, 0
    %p162 = por %p160, %p161
    %s164 = sadd.s32 %s163, 1
    %p167 = scmp.eq.s32.totalorder %s19, 1
    %p168 = scmp.ne.s32.totalorder %s163, %s165
    %p169 = scmp.eq.s32.totalorder %s19, 0
    %p170 = por %p168, %p169
    %p171 = scmp.ne.s32.totalorder %s163, %s165
    %p172 = scmp.eq.s32.totalorder %s24, 1
    %p173 = por %p171, %p172
    %p174 = scmp.ne.s32.totalorder %s165, %s166
    %p175 = scmp.eq.s32.totalorder %s24, 0
    %p176 = por %p174, %p175
    %p177 = scmp.ne.s32.totalorder %s165, %s166
    %p178 = scmp.eq.s32.totalorder %s25, 1
    %p179 = por %p177, %p178
    %p181 = scmp.ne.s32.totalorder %s166, %s180
    %p182 = scmp.eq.s32.totalorder %s25, 0
    %p183 = por %p181, %p182
    %s185 = sadd.s32 %s184, 1
    %p188 = scmp.eq.s32.totalorder %s19, 1
    %p189 = scmp.ne.s32.totalorder %s184, %s186
    %p190 = scmp.eq.s32.totalorder %s19, 0
    %p191 = por %p189, %p190
    %p192 = scmp.ne.s32.totalorder %s184, %s186
    %p193 = scmp.eq.s32.totalorder %s24, 1
    %p194 = por %p192, %p193
    %p195 = scmp.ne.s32.totalorder %s186, %s187
    %p196 = scmp.eq.s32.totalorder %s24, 0
    %p197 = por %p195, %p196
    %p198 = scmp.ne.s32.totalorder %s186, %s187
    %p199 = scmp.eq.s32.totalorder %s25, 1
    %p200 = por %p198, %p199
    %p202 = scmp.ne.s32.totalorder %s187, %s201
    %p203 = scmp.eq.s32.totalorder %s25, 0
    %p204 = por %p202, %p203
    %s206 = sadd.s32 %s205, 1
    %p209 = scmp.eq.s32.totalorder %s19, 1
    %p210 = scmp.ne.s32.totalorder %s205, %s207
    %p211 = scmp.eq.s32.totalorder %s19, 0
    %p212 = por %p210, %p211
    %p213 = scmp.ne.s32.totalorder %s205, %s207
    %p214 = scmp.eq.s32.totalorder %s24, 1
    %p215 = por %p213, %p214
    %p216 = scmp.ne.s32.totalorder %s207, %s208
    %p217 = scmp.eq.s32.totalorder %s24, 0
    %p218 = por %p216, %p217
    %p219 = scmp.ne.s32.totalorder %s207, %s208
    %p220 = scmp.eq.s32.totalorder %s25, 1
    %p221 = por %p219, %p220
    %p223 = scmp.ne.s32.totalorder %s208, %s222
    %p224 = scmp.eq.s32.totalorder %s25, 0
    %p225 = por %p223, %p224
    %s226 = ssub.s32 %s19, %s26
    %p227 = scmp.eq.s32.totalorder %s226, 0
    %s229 = sadd.s32 %s228, 1
    %s230 = scalar_select %p227, %s228, %s229
    %p233 = pneg %p227
    %p234 = scmp.eq.s32.totalorder %s19, 1
    %p235 = por %p233, %p234
    %p236 = scmp.ne.s32.totalorder %s228, %s231
    %p237 = scmp.eq.s32.totalorder %s19, 0
    %p238 = por %p236, %p237
    %p239 = scmp.ne.s32.totalorder %s228, %s231
    %p240 = scmp.eq.s32.totalorder %s24, 1
    %p241 = por %p239, %p240
    %p242 = scmp.ne.s32.totalorder %s231, %s232
    %p243 = scmp.eq.s32.totalorder %s24, 0
    %p244 = por %p242, %p243
    %p245 = scmp.ne.s32.totalorder %s231, %s232
    %p246 = scmp.eq.s32.totalorder %s25, 1
    %p247 = por %p245, %p246
    %p249 = scmp.ne.s32.totalorder %s232, %s248
    %p250 = scmp.eq.s32.totalorder %s25, 0
    %p251 = por %p249, %p250
    %s252 = ssub.s32 %s19, %s26
    %p253 = scmp.eq.s32.totalorder %s252, 0
    %s255 = sadd.s32 %s254, 1
    %s256 = scalar_select %p253, %s254, %s255
    %p259 = pneg %p253
    %p260 = scmp.eq.s32.totalorder %s19, 1
    %p261 = por %p259, %p260
    %p262 = scmp.ne.s32.totalorder %s254, %s257
    %p263 = scmp.eq.s32.totalorder %s19, 0
    %p264 = por %p262, %p263
    %p265 = scmp.ne.s32.totalorder %s254, %s257
    %p266 = scmp.eq.s32.totalorder %s24, 1
    %p267 = por %p265, %p266
    %p268 = scmp.ne.s32.totalorder %s257, %s258
    %p269 = scmp.eq.s32.totalorder %s24, 0
    %p270 = por %p268, %p269
    %p271 = scmp.ne.s32.totalorder %s257, %s258
    %p272 = scmp.eq.s32.totalorder %s25, 1
    %p273 = por %p271, %p272
    %p275 = scmp.ne.s32.totalorder %s258, %s274
    %p276 = scmp.eq.s32.totalorder %s25, 0
    %p277 = por %p275, %p276
    %s278 = ssub.s32 %s19, %s26
    %p279 = scmp.eq.s32.totalorder %s278, 0
    %s281 = sadd.s32 %s280, 1
    %s282 = scalar_select %p279, %s280, %s281
    %p285 = pneg %p279
    %p286 = scmp.eq.s32.totalorder %s19, 1
    %p287 = por %p285, %p286
    %p288 = scmp.ne.s32.totalorder %s280, %s283
    %p289 = scmp.eq.s32.totalorder %s19, 0
    %p290 = por %p288, %p289
    %p291 = scmp.ne.s32.totalorder %s280, %s283
    %p292 = scmp.eq.s32.totalorder %s24, 1
    %p293 = por %p291, %p292
    %p294 = scmp.ne.s32.totalorder %s283, %s284
    %p295 = scmp.eq.s32.totalorder %s24, 0
    %p296 = por %p294, %p295
    %p297 = scmp.ne.s32.totalorder %s283, %s284
    %p298 = scmp.eq.s32.totalorder %s25, 1
    %p299 = por %p297, %p298
    %p301 = scmp.ne.s32.totalorder %s284, %s300
    %p302 = scmp.eq.s32.totalorder %s25, 0
    %p303 = por %p301, %p302
    %s304 = ssub.s32 %s19, %s26
    %p305 = scmp.eq.s32.totalorder %s304, 0
    %s307 = sadd.s32 %s306, 1
    %s308 = scalar_select %p305, %s306, %s307
    %p311 = pneg %p305
    %p312 = scmp.eq.s32.totalorder %s19, 1
    %p313 = por %p311, %p312
    %p314 = scmp.ne.s32.totalorder %s306, %s309
    %p315 = scmp.eq.s32.totalorder %s19, 0
    %p316 = por %p314, %p315
    %p317 = scmp.ne.s32.totalorder %s306, %s309
    %p318 = scmp.eq.s32.totalorder %s24, 1
    %p319 = por %p317, %p318
    %p320 = scmp.ne.s32.totalorder %s309, %s310
    %p321 = scmp.eq.s32.totalorder %s24, 0
    %p322 = por %p320, %p321
    %p323 = scmp.ne.s32.totalorder %s309, %s310
    %p324 = scmp.eq.s32.totalorder %s25, 1
    %p325 = por %p323, %p324
    %p327 = scmp.ne.s32.totalorder %s310, %s326
    %p328 = scmp.eq.s32.totalorder %s25, 0
    %p329 = por %p327, %p328
    %p330 = scmp.le.s32.totalorder 1, %s19
    %p331 = scmp.lt.s32.totalorder %s19, 3
    %p332 = pnand %p330, %p331
    %p333 = pneg %p332
    // Predicated region
    $region9: #{dual_feature_temporal_conv_forward.1} parent=5 // pred_check
      _
    $region10: #{dual_feature_temporal_conv_forward.1} parent=5 // pred_check_branch
      %335 = sbr.rel (%p332) target = $region12
    $region11: #{dual_feature_temporal_conv_forward.1} parent=5 // pred_region
      %s336 = ssub.s32 %s19, 1
      // Predicated region
      $region13: #{dual_feature_temporal_conv_forward.1} parent=11 // pred_check
        %p337 = pneg %p92
      $region14: #{dual_feature_temporal_conv_forward.1} parent=11 // pred_check_branch
        %339 = sbr.rel (%p337) target = $region16
      $region15: #{dual_feature_temporal_conv_forward.1} parent=11 // pred_region
        _
      $region16: #{dual_feature_temporal_conv_forward.1} parent=11 // pred_fallthru
        _
      // Predicated region
      $region17: #{dual_feature_temporal_conv_forward.1} parent=11 // pred_check
        %p340 = pneg %p113
      $region18: #{dual_feature_temporal_conv_forward.1} parent=11 // pred_check_branch
        %342 = sbr.rel (%p340) target = $region20
      $region19: #{dual_feature_temporal_conv_forward.1} parent=11 // pred_region
        _
      $region20: #{dual_feature_temporal_conv_forward.1} parent=11 // pred_fallthru
        _
      // Predicated region
      $region21: #{dual_feature_temporal_conv_forward.1} parent=11 // pred_check
        %p343 = pneg %p134
      $region22: #{dual_feature_temporal_conv_forward.1} parent=11 // pred_check_branch
        %345 = sbr.rel (%p343) target = $region24
      $region23: #{dual_feature_temporal_conv_forward.1} parent=11 // pred_region
        _
      $region24: #{dual_feature_temporal_conv_forward.1} parent=11 // pred_fallthru
        _
      // Predicated region
      $region25: #{dual_feature_temporal_conv_forward.1} parent=11 // pred_check
        %p346 = pneg %p155
      $region26: #{dual_feature_temporal_conv_forward.1} parent=11 // pred_check_branch
        %348 = sbr.rel (%p346) target = $region28
      $region27: #{dual_feature_temporal_conv_forward.1} parent=11 // pred_region
        _
      $region28: #{dual_feature_temporal_conv_forward.1} parent=11 // pred_fallthru
        _
      // Predicated region
      $region29: #{dual_feature_temporal_conv_forward.1} parent=11 // pred_check
        %p349 = pneg %p176
      $region30: #{dual_feature_temporal_conv_forward.1} parent=11 // pred_check_branch
        %351 = sbr.rel (%p349) target = $region32
      $region31: #{dual_feature_temporal_conv_forward.1} parent=11 // pred_region
        _
      $region32: #{dual_feature_temporal_conv_forward.1} parent=11 // pred_fallthru
        _
      // Predicated region
      $region33: #{dual_feature_temporal_conv_forward.1} parent=11 // pred_check
        %p352 = pneg %p197
      $region34: #{dual_feature_temporal_conv_forward.1} parent=11 // pred_check_branch
        %354 = sbr.rel (%p352) target = $region36
      $region35: #{dual_feature_temporal_conv_forward.1} parent=11 // pred_region
        _
      $region36: #{dual_feature_temporal_conv_forward.1} parent=11 // pred_fallthru
        _
      // Predicated region
      $region37: #{dual_feature_temporal_conv_forward.1} parent=11 // pred_check
        %p355 = pneg %p218
      $region38: #{dual_feature_temporal_conv_forward.1} parent=11 // pred_check_branch
        %357 = sbr.rel (%p355) target = $region40
      $region39: #{dual_feature_temporal_conv_forward.1} parent=11 // pred_region
        _
      $region40: #{dual_feature_temporal_conv_forward.1} parent=11 // pred_fallthru
        _
    $region12: #{dual_feature_temporal_conv_forward.1} parent=5 // pred_fallthru
      _
    %p358 = scmp.lt.s32.totalorder %s19, 2
    // Predicated region
    $region41: #{dual_feature_temporal_conv_forward.1} parent=5 // pred_check
      %p359 = pneg %p358
    $region42: #{dual_feature_temporal_conv_forward.1} parent=5 // pred_check_branch
      %361 = sbr.rel (%p359) target = $region44
    $region43: #{dual_feature_temporal_conv_forward.1} parent=5 // pred_region
      // Predicated region
      $region45: #{dual_feature_temporal_conv_forward.1} parent=43 // pred_check
        %p362 = pneg %p39
      $region46: #{dual_feature_temporal_conv_forward.1} parent=43 // pred_check_branch
        %364 = sbr.rel (%p362) target = $region48
      $region47: #{dual_feature_temporal_conv_forward.1} parent=43 // pred_region
        %s365 = smul.u32 2, %s19
        %p366 = scmp.lt.s32.totalorder %s365, 3
        %s367 = scalar_select %p366, %s365, 3
        %s368 = smul.addr %s367, 8
        %s369 = smul.addr %s368, 8
        %s370 = scalar_lea.vmem %s0, %s369
        %s371 = smul.u32 2, %s19
      $region48: #{dual_feature_temporal_conv_forward.1} parent=43 // pred_fallthru
        _
      // Predicated region
      $region49: #{dual_feature_temporal_conv_forward.1} parent=43 // pred_check
        %p372 = pneg %p65
      $region50: #{dual_feature_temporal_conv_forward.1} parent=43 // pred_check_branch
        %374 = sbr.rel (%p372) target = $region52
      $region51: #{dual_feature_temporal_conv_forward.1} parent=43 // pred_region
        %s375 = smul.u32 2, %s19
        %p376 = scmp.lt.s32.totalorder %s375, 3
        %s377 = scalar_select %p376, %s375, 3
        %s378 = smul.addr %s377, 8
        %s379 = smul.addr %s378, 8
        %s380 = scalar_lea.vmem %s1, %s379
        %s381 = smul.u32 2, %s19
      $region52: #{dual_feature_temporal_conv_forward.1} parent=43 // pred_fallthru
        _
    $region44: #{dual_feature_temporal_conv_forward.1} parent=5 // pred_fallthru
      _
    %p382 = scmp.le.s32.totalorder 1, %s19
    %p383 = scmp.lt.s32.totalorder %s19, 3
    %p384 = pnand %p382, %p383
    %p385 = pneg %p384
    // Predicated region
    $region53: #{dual_feature_temporal_conv_forward.1} parent=5 // pred_check
      _
    $region54: #{dual_feature_temporal_conv_forward.1} parent=5 // pred_check_branch
      %387 = sbr.rel (%p384) target = $region56
    $region55: #{dual_feature_temporal_conv_forward.1} parent=5 // pred_region
      %s388 = ssub.s32 %s19, 1
      %s389 = smul.u32 2, %s24
      %p390 = scmp.lt.s32.totalorder %s389, 3
      %s391 = scalar_select %p390, %s389, 3
      %s392 = smul.addr %s391, 8
      %s393 = smul.addr %s392, 8
      %s394 = scalar_lea.vmem %s0, %s393
      %p395 = pneg %p45
      %p396 = pneg %p42
      %s397 = smul.u32 2, %s24
      %p398 = scmp.lt.s32.totalorder %s397, 3
      %s399 = scalar_select %p398, %s397, 3
      %s400 = smul.addr %s399, 8
      %s401 = smul.addr %s400, 8
      %s402 = scalar_lea.vmem %s1, %s401
      %p403 = pneg %p71
      %p404 = pneg %p68
      %p405 = pneg %p92
      %p406 = pneg %p89
      %p407 = pneg %p113
      %p408 = pneg %p110
      %p409 = pneg %p134
      %p410 = pneg %p131
      %p411 = pneg %p155
      %p412 = pneg %p152
      %p413 = pneg %p176
      %p414 = pneg %p173
      %p415 = pneg %p197
      %p416 = pneg %p194
      %p417 = pneg %p218
      %p418 = pneg %p215
      %p419 = pneg %p244
      %p420 = pneg %p241
      %s421 = smul.u32 2, %s24
      %p422 = scmp.lt.s32.totalorder %s421, 3
      %s423 = scalar_select %p422, %s421, 3
      %s424 = smul.addr %s423, 2
      %s425 = smul.addr %s424, 8
      %s426 = scalar_lea.vmem %s9, %s425
      %p427 = pneg %p270
      %p428 = pneg %p267
      %s429 = smul.u32 2, %s24
      %p430 = scmp.lt.s32.totalorder %s429, 3
      %s431 = scalar_select %p430, %s429, 3
      %s432 = smul.addr %s431, 2
      %s433 = smul.addr %s432, 8
      %s434 = scalar_lea.vmem %s10, %s433
      %p435 = pneg %p296
      %p436 = pneg %p293
      %s437 = smul.u32 2, %s24
      %p438 = scmp.lt.s32.totalorder %s437, 3
      %s439 = scalar_select %p438, %s437, 3
      %s440 = smul.addr %s439, 4
      %s441 = smul.addr %s440, 8
      %s442 = scalar_lea.vmem %s11, %s441
      %p443 = pneg %p322
      %p444 = pneg %p319
      %s445 = smul.u32 2, %s24
      %p446 = scmp.lt.s32.totalorder %s445, 3
      %s447 = scalar_select %p446, %s445, 3
      %s448 = smul.addr %s447, 2
      %s449 = smul.addr %s448, 8
      %s450 = scalar_lea.vmem %s12, %s449
      %s451 = smul.u32 2, %s24
      %p452 = scmp.lt.s32.totalorder %s451, 3
      %s453 = scalar_select %p452, %s451, 3
      %s454 = smul.addr %s453, 8
      %s455 = smul.addr %s454, 8
      %s456 = scalar_lea.vmem %s0, %s455
      %s457 = smul.u32 2, %s24
      %s458 = smul.u32 2, %s24
      %p459 = scmp.lt.s32.totalorder %s458, 3
      %s460 = scalar_select %p459, %s458, 3
      %s461 = smul.addr %s460, 8
      %s462 = smul.addr %s461, 8
      %s463 = scalar_lea.vmem %s1, %s462
      %s464 = smul.u32 2, %s24
      %s465 = smul.u32 2, %s24
      %p466 = scmp.lt.s32.totalorder %s465, 3
      %s467 = scalar_select %p466, %s465, 3
      %s468 = smul.addr %s467, 2
      %s469 = smul.addr %s468, 8
      %s470 = scalar_lea.vmem %s9, %s469
      %s471 = smul.u32 2, %s24
      %s472 = smul.u32 2, %s24
      %p473 = scmp.lt.s32.totalorder %s472, 3
      %s474 = scalar_select %p473, %s472, 3
      %s475 = smul.addr %s474, 2
      %s476 = smul.addr %s475, 8
      %s477 = scalar_lea.vmem %s10, %s476
      %s478 = smul.u32 2, %s24
      %s479 = smul.u32 2, %s24
      %p480 = scmp.lt.s32.totalorder %s479, 3
      %s481 = scalar_select %p480, %s479, 3
      %s482 = smul.addr %s481, 4
      %s483 = smul.addr %s482, 8
      %s484 = scalar_lea.vmem %s11, %s483
      %s485 = smul.u32 2, %s24
      %s486 = smul.u32 2, %s24
      %p487 = scmp.lt.s32.totalorder %s486, 3
      %s488 = scalar_select %p487, %s486, 3
      %s489 = smul.addr %s488, 2
      %s490 = smul.addr %s489, 8
      %s491 = scalar_lea.vmem %s12, %s490
      %s492 = smul.u32 2, %s24
      %v493 = vld [vmem:[%s8] ss:$0 sm:$0xff]
      %v494 = vld [vmem:[%s8 + $0x1] ss:$0 sm:$0xff]
      %v495 = vld [vmem:[%s8 + $0x2] ss:$0 sm:$0xff]
      %v496 = vld [vmem:[%s8 + $0x3] ss:$0 sm:$0xff]
      %s497 = scalar_lea.vmem %s8, 4
      %v498 = vld [vmem:[%s497] ss:$8 sm:$0x3]
      %v499 = vld [vmem:[%s8 + $0x5] ss:$0 sm:$0xff]
      %v500 = vld [vmem:[%s456] sm:$0xff]
      %v501 = vld [vmem:[%s456 + $0x8] sm:$0xff]
      %v502 = vld [vmem:[%s456 + $0x10] sm:$0xff]
      %v503 = vld [vmem:[%s456 + $0x18] sm:$0xff]
      %v504 = vld [vmem:[%s456 + $0x20] sm:$0xff]
      %v505 = vld [vmem:[%s456 + $0x28] sm:$0xff]
      %v506 = vld [vmem:[%s456 + $0x30] sm:$0xff]
      %v507 = vld [vmem:[%s456 + $0x38] sm:$0xff]
      %v508 = vld [vmem:[%s2] sm:$0xff]
      %v509 = vld [vmem:[%s2 + $0x8] sm:$0xff]
      %v510 = vld [vmem:[%s2 + $0x10] sm:$0xff]
      %v511 = vld [vmem:[%s2 + $0x18] sm:$0xff]
      %v512 = vld [vmem:[%s2 + $0x20] sm:$0xff]
      %v513 = vld [vmem:[%s2 + $0x28] sm:$0xff]
      %v514 = vld [vmem:[%s2 + $0x30] sm:$0xff]
      %v515 = vld [vmem:[%s2 + $0x38] sm:$0xff]
      %v516 = vld [vmem:[%s2 + $0x40] sm:$0xff]
      %v517 = vld [vmem:[%s2 + $0x48] sm:$0xff]
      %v518 = vld [vmem:[%s2 + $0x50] sm:$0xff]
      %v519 = vld [vmem:[%s2 + $0x58] sm:$0xff]
      %vm528 = vcmask 1046528
      %v529 = vrot.slane %v500, 1
      %v530 = vrot.slane %v501, 1
      %v531 = vsel %vm528, %v529, %v530
      %v532 = vrot.slane %v502, 1
      %v533 = vsel %vm528, %v530, %v532
      %v534 = vrot.slane %v503, 1
      %v535 = vsel %vm528, %v532, %v534
      %v536 = vrot.slane %v504, 1
      %v537 = vsel %vm528, %v534, %v536
      %v538 = vrot.slane %v505, 1
      %v539 = vsel %vm528, %v536, %v538
      %v540 = vrot.slane %v506, 1
      %v541 = vsel %vm528, %v538, %v540
      %v542 = vrot.slane %v507, 1
      %v543 = vsel %vm528, %v540, %v542
      %vm544 = vcmask 392192
      %v545 = vsel %vm544, %v531, 0
      %v547 = vsel %vm544, %v533, 0
      %v549 = vsel %vm544, %v535, 0
      %v551 = vsel %vm544, %v537, 0
      %v553 = vsel %vm544, %v539, 0
      %v555 = vsel %vm544, %v541, 0
      %v557 = vsel %vm544, %v543, 0
      %v559 = vsel %vm544, %v542, 0
      %561 = vmatprep.subr.mxu0 0.0
      %562 = vmatpush1.msra.mxu0 %v514
      %563 = vmatprep.subr.mxu0 0.0
      %564 = vmatpush1.msra.mxu0 %v515
      %565 = vmatprep.subr.mxu0 0.0
      %566 = vmatpush1.msra.mxu0 %v516
      %567 = vmatprep.subr.mxu0 0.0
      %568 = vmatpush1.msra.mxu0 %v517
      %569 = vmatprep.subr.mxu0 0.0
      %570 = vmatpush1.msra.mxu0 %v518
      %571 = vmatprep.subr.mxu0 0.0
      %572 = vmatpush1.msra.mxu0 %v519
      %573 = vmatprep.subr.mxu0 0.0
      %574 = vmatpush1.msra.mxu0 0.0
      %575 = vmatprep.subr.mxu0 0.0
      %576 = vmatpush1.msra.mxu0 0.0
      %577 = vmatprep.subr.mxu0 0.0
      %578 = vmatpush1.msra.mxu0 0.0
      %579 = vmatprep.subr.mxu0 0.0
      %580 = vmatpush1.msra.mxu0 0.0
      %581 = vmatprep.subr.mxu0 0.0
      %582 = vmatpush1.msra.mxu0 0.0
      %583 = vmatprep.subr.mxu0 0.0
      %584 = vmatpush1.msra.mxu0 0.0
      %585 = vmatprep.subr.mxu0 0.0
      %586 = vmatpush1.msra.mxu0 0.0
      %587 = vmatprep.subr.mxu0 0.0
      %588 = vmatpush1.msra.mxu0 0.0
      %589 = vmatprep.subr.mxu0 0.0
      %590 = vmatpush1.msra.mxu0 0.0
      %591 = vmatprep.subr.mxu0 0.0
      %592 = vmatpush1.msra.mxu0 0.0
      %593 = vmatprep.subr.mxu0 0.0
      %594 = vmatpush1.msra.mxu0 0.0
      %595 = vmatprep.subr.mxu0 0.0
      %596 = vmatpush1.msra.mxu0 0.0
      %597 = vmatprep.subr.mxu0 0.0
      %598 = vmatpush1.msra.mxu0 0.0
      %599 = vmatprep.subr.mxu0 0.0
      %600 = vmatpush1.msra.mxu0 0.0
      %601 = vmatprep.subr.mxu0 0.0
      %602 = vmatpush1.msra.mxu0 0.0
      %603 = vmatprep.subr.mxu0 0.0
      %604 = vmatpush1.msra.mxu0 0.0
      %605 = vmatprep.subr.mxu0 0.0
      %606 = vmatpush1.msra.mxu0 0.0
      %607 = vmatprep.subr.mxu0 0.0
      %608 = vmatpush1.msra.mxu0 0.0
      %609 = vmatprep.subr.mxu0 0.0
      %610 = vmatpush1.msra.mxu0 0.0
      %611 = vmatprep.subr.mxu0 0.0
      %612 = vmatpush1.msra.mxu0 0.0
      %613 = vmatprep.subr.mxu0 0.0
      %614 = vmatpush1.msra.mxu0 0.0
      %615 = vmatprep.subr.mxu0 0.0
      %616 = vmatpush1.msra.mxu0 0.0
      %617 = vmatprep.subr.mxu0 0.0
      %618 = vmatpush1.msra.mxu0 0.0
      %619 = vmatprep.subr.mxu0 0.0
      %620 = vmatpush1.msra.mxu0 0.0
      %621 = vmatprep.subr.mxu0 0.0
      %622 = vmatpush1.msra.mxu0 0.0
      %623 = vmatprep.subr.mxu0 0.0
      %624 = vmatpush1.msra.mxu0 0.0
      %625 = vmatprep.mubr.f32.mxu0 0.0
      %626 = vmatmul.mubr.f32.gmra.mrb[0].mxu0 %v545
      %v627 = vpop.f32.mrb[0].mxu0
      %v628 = vadd.f32 0.0, %v627
      %v629 = vpop.f32.mrb[0].mxu0
      %630 = vmatprep.mubr.f32.mxu0 0.0
      %631 = vmatmul.mubr.f32.gmra.mrb[0].mxu0 %v547
      %v632 = vpop.f32.mrb[0].mxu0
      %v633 = vadd.f32 0.0, %v632
      %v634 = vpop.f32.mrb[0].mxu0
      %635 = vmatprep.mubr.f32.mxu0 0.0
      %636 = vmatmul.mubr.f32.gmra.mrb[0].mxu0 %v549
      %v637 = vpop.f32.mrb[0].mxu0
      %v638 = vadd.f32 0.0, %v637
      %v639 = vpop.f32.mrb[0].mxu0
      %640 = vmatprep.mubr.f32.mxu0 0.0
      %641 = vmatmul.mubr.f32.gmra.mrb[0].mxu0 %v551
      %v642 = vpop.f32.mrb[0].mxu0
      %v643 = vadd.f32 0.0, %v642
      %v644 = vpop.f32.mrb[0].mxu0
      %645 = vmatprep.mubr.f32.mxu0 0.0
      %646 = vmatmul.mubr.f32.gmra.mrb[0].mxu0 %v553
      %v647 = vpop.f32.mrb[0].mxu0
      %v648 = vadd.f32 0.0, %v647
      %v649 = vpop.f32.mrb[0].mxu0
      %650 = vmatprep.mubr.f32.mxu0 0.0
      %651 = vmatmul.mubr.f32.gmra.mrb[0].mxu0 %v555
      %v652 = vpop.f32.mrb[0].mxu0
      %v653 = vadd.f32 0.0, %v652
      %v654 = vpop.f32.mrb[0].mxu0
      %655 = vmatprep.mubr.f32.mxu0 0.0
      %656 = vmatmul.mubr.f32.gmra.mrb[0].mxu0 %v557
      %v657 = vpop.f32.mrb[0].mxu0
      %v658 = vadd.f32 0.0, %v657
      %v659 = vpop.f32.mrb[0].mxu0
      %660 = vmatprep.mubr.f32.mxu0 0.0
      %661 = vmatmul.mubr.f32.gmra.mrb[0].mxu0 %v559
      %v662 = vpop.f32.mrb[0].mxu0
      %v663 = vadd.f32 0.0, %v662
      %v664 = vpop.f32.mrb[0].mxu0
      %665 = vdwg.mxu0
      %v666 = vsel %vm544, %v500, 0
      %v668 = vsel %vm544, %v501, 0
      %v670 = vsel %vm544, %v502, 0
      %v672 = vsel %vm544, %v503, 0
      %v674 = vsel %vm544, %v504, 0
      %v676 = vsel %vm544, %v505, 0
      %v678 = vsel %vm544, %v506, 0
      %v680 = vsel %vm544, %v507, 0
      %682 = vmatprep.subr.mxu0 0.0
      %683 = vmatpush1.msra.mxu0 %v508
      %684 = vmatprep.subr.mxu0 0.0
      %685 = vmatpush1.msra.mxu0 %v509
      %686 = vmatprep.subr.mxu0 0.0
      %687 = vmatpush1.msra.mxu0 %v510
      %688 = vmatprep.subr.mxu0 0.0
      %689 = vmatpush1.msra.mxu0 %v511
      %690 = vmatprep.subr.mxu0 0.0
      %691 = vmatpush1.msra.mxu0 %v512
      %692 = vmatprep.subr.mxu0 0.0
      %693 = vmatpush1.msra.mxu0 %v513
      %694 = vmatprep.subr.mxu0 0.0
      %695 = vmatpush1.msra.mxu0 0.0
      %696 = vmatprep.subr.mxu0 0.0
      %697 = vmatpush1.msra.mxu0 0.0
      %698 = vmatprep.subr.mxu0 0.0
      %699 = vmatpush1.msra.mxu0 0.0
      %700 = vmatprep.subr.mxu0 0.0
      %701 = vmatpush1.msra.mxu0 0.0
      %702 = vmatprep.subr.mxu0 0.0
      %703 = vmatpush1.msra.mxu0 0.0
      %704 = vmatprep.subr.mxu0 0.0
      %705 = vmatpush1.msra.mxu0 0.0
      %706 = vmatprep.subr.mxu0 0.0
      %707 = vmatpush1.msra.mxu0 0.0
      %708 = vmatprep.subr.mxu0 0.0
      %709 = vmatpush1.msra.mxu0 0.0
      %710 = vmatprep.subr.mxu0 0.0
      %711 = vmatpush1.msra.mxu0 0.0
      %712 = vmatprep.subr.mxu0 0.0
      %713 = vmatpush1.msra.mxu0 0.0
      %714 = vmatprep.subr.mxu0 0.0
      %715 = vmatpush1.msra.mxu0 0.0
      %716 = vmatprep.subr.mxu0 0.0
      %717 = vmatpush1.msra.mxu0 0.0
      %718 = vmatprep.subr.mxu0 0.0
      %719 = vmatpush1.msra.mxu0 0.0
      %720 = vmatprep.subr.mxu0 0.0
      %721 = vmatpush1.msra.mxu0 0.0
      %722 = vmatprep.subr.mxu0 0.0
      %723 = vmatpush1.msra.mxu0 0.0
      %724 = vmatprep.subr.mxu0 0.0
      %725 = vmatpush1.msra.mxu0 0.0
      %726 = vmatprep.subr.mxu0 0.0
      %727 = vmatpush1.msra.mxu0 0.0
      %728 = vmatprep.subr.mxu0 0.0
      %729 = vmatpush1.msra.mxu0 0.0
      %730 = vmatprep.subr.mxu0 0.0
      %731 = vmatpush1.msra.mxu0 0.0
      %732 = vmatprep.subr.mxu0 0.0
      %733 = vmatpush1.msra.mxu0 0.0
      %734 = vmatprep.subr.mxu0 0.0
      %735 = vmatpush1.msra.mxu0 0.0
      %736 = vmatprep.subr.mxu0 0.0
      %737 = vmatpush1.msra.mxu0 0.0
      %738 = vmatprep.subr.mxu0 0.0
      %739 = vmatpush1.msra.mxu0 0.0
      %740 = vmatprep.subr.mxu0 0.0
      %741 = vmatpush1.msra.mxu0 0.0
      %742 = vmatprep.subr.mxu0 0.0
      %743 = vmatpush1.msra.mxu0 0.0
      %744 = vmatprep.subr.mxu0 0.0
      %745 = vmatpush1.msra.mxu0 0.0
      %746 = vmatprep.mubr.f32.mxu0 0.0
      %747 = vmatmul.mubr.f32.gmra.mrb[0].mxu0 %v666
      %v748 = vpop.f32.mrb[0].mxu0
      %v749 = vadd.f32 %v628, %v748
      %v750 = vpop.f32.mrb[0].mxu0
      %751 = vmatprep.mubr.f32.mxu0 0.0
      %752 = vmatmul.mubr.f32.gmra.mrb[0].mxu0 %v668
      %v753 = vpop.f32.mrb[0].mxu0
      %v754 = vadd.f32 %v633, %v753
      %v755 = vpop.f32.mrb[0].mxu0
      %756 = vmatprep.mubr.f32.mxu0 0.0
      %757 = vmatmul.mubr.f32.gmra.mrb[0].mxu0 %v670
      %v758 = vpop.f32.mrb[0].mxu0
      %v759 = vadd.f32 %v638, %v758
      %v760 = vpop.f32.mrb[0].mxu0
      %761 = vmatprep.mubr.f32.mxu0 0.0
      %762 = vmatmul.mubr.f32.gmra.mrb[0].mxu0 %v672
      %v763 = vpop.f32.mrb[0].mxu0
      %v764 = vadd.f32 %v643, %v763
      %v765 = vpop.f32.mrb[0].mxu0
      %766 = vmatprep.mubr.f32.mxu0 0.0
      %767 = vmatmul.mubr.f32.gmra.mrb[0].mxu0 %v674
      %v768 = vpop.f32.mrb[0].mxu0
      %v769 = vadd.f32 %v648, %v768
      %v770 = vpop.f32.mrb[0].mxu0
      %771 = vmatprep.mubr.f32.mxu0 0.0
      %772 = vmatmul.mubr.f32.gmra.mrb[0].mxu0 %v676
      %v773 = vpop.f32.mrb[0].mxu0
      %v774 = vadd.f32 %v653, %v773
      %v775 = vpop.f32.mrb[0].mxu0
      %776 = vmatprep.mubr.f32.mxu0 0.0
      %777 = vmatmul.mubr.f32.gmra.mrb[0].mxu0 %v678
      %v778 = vpop.f32.mrb[0].mxu0
      %v779 = vadd.f32 %v658, %v778
      %v780 = vpop.f32.mrb[0].mxu0
      %781 = vmatprep.mubr.f32.mxu0 0.0
      %782 = vmatmul.mubr.f32.gmra.mrb[0].mxu0 %v680
      %v783 = vpop.f32.mrb[0].mxu0
      %v784 = vadd.f32 %v663, %v783
      %v785 = vpop.f32.mrb[0].mxu0
      %786 = vdwg.mxu0
      %v787 = vld [vmem:[%s2 + $0x60] sm:$0xff]
      %v788 = vld [vmem:[%s2 + $0x68] sm:$0xff]
      %v789 = vld [vmem:[%s2 + $0x70] sm:$0xff]
      %v790 = vld [vmem:[%s2 + $0x78] sm:$0xff]
      %v791 = vld [vmem:[%s2 + $0x80] sm:$0xff]
      %v792 = vld [vmem:[%s2 + $0x88] sm:$0xff]
      %vm793 = vcmask 1045504
      %v794 = vrot.slane %v500, 2
      %v795 = vrot.slane %v501, 2
      %v796 = vsel %vm793, %v794, %v795
      %v797 = vrot.slane %v502, 2
      %v798 = vsel %vm793, %v795, %v797
      %v799 = vrot.slane %v503, 2
      %v800 = vsel %vm793, %v797, %v799
      %v801 = vrot.slane %v504, 2
      %v802 = vsel %vm793, %v799, %v801
      %v803 = vrot.slane %v505, 2
      %v804 = vsel %vm793, %v801, %v803
      %v805 = vrot.slane %v506, 2
      %v806 = vsel %vm793, %v803, %v805
      %v807 = vrot.slane %v507, 2
      %v808 = vsel %vm793, %v805, %v807
      %v809 = vsel %vm544, %v796, 0
      %v811 = vsel %vm544, %v798, 0
      %v813 = vsel %vm544, %v800, 0
      %v815 = vsel %vm544, %v802, 0
      %v817 = vsel %vm544, %v804, 0
      %v819 = vsel %vm544, %v806, 0
      %v821 = vsel %vm544, %v808, 0
      %v823 = vsel %vm544, %v807, 0
      %825 = vmatprep.subr.mxu0 0.0
      %826 = vmatpush1.msra.mxu0 %v787
      %827 = vmatprep.subr.mxu0 0.0
      %828 = vmatpush1.msra.mxu0 %v788
      %829 = vmatprep.subr.mxu0 0.0
      %830 = vmatpush1.msra.mxu0 %v789
      %831 = vmatprep.subr.mxu0 0.0
      %832 = vmatpush1.msra.mxu0 %v790
      %833 = vmatprep.subr.mxu0 0.0
      %834 = vmatpush1.msra.mxu0 %v791
      %835 = vmatprep.subr.mxu0 0.0
      %836 = vmatpush1.msra.mxu0 %v792
      %837 = vmatprep.subr.mxu0 0.0
      %838 = vmatpush1.msra.mxu0 0.0
      %839 = vmatprep.subr.mxu0 0.0
      %840 = vmatpush1.msra.mxu0 0.0
      %841 = vmatprep.subr.mxu0 0.0
      %842 = vmatpush1.msra.mxu0 0.0
      %843 = vmatprep.subr.mxu0 0.0
      %844 = vmatpush1.msra.mxu0 0.0
      %845 = vmatprep.subr.mxu0 0.0
      %846 = vmatpush1.msra.mxu0 0.0
      %847 = vmatprep.subr.mxu0 0.0
      %848 = vmatpush1.msra.mxu0 0.0
      %849 = vmatprep.subr.mxu0 0.0
      %850 = vmatpush1.msra.mxu0 0.0
      %851 = vmatprep.subr.mxu0 0.0
      %852 = vmatpush1.msra.mxu0 0.0
      %853 = vmatprep.subr.mxu0 0.0
      %854 = vmatpush1.msra.mxu0 0.0
      %855 = vmatprep.subr.mxu0 0.0
      %856 = vmatpush1.msra.mxu0 0.0
      %857 = vmatprep.subr.mxu0 0.0
      %858 = vmatpush1.msra.mxu0 0.0
      %859 = vmatprep.subr.mxu0 0.0
      %860 = vmatpush1.msra.mxu0 0.0
      %861 = vmatprep.subr.mxu0 0.0
      %862 = vmatpush1.msra.mxu0 0.0
      %863 = vmatprep.subr.mxu0 0.0
      %864 = vmatpush1.msra.mxu0 0.0
      %865 = vmatprep.subr.mxu0 0.0
      %866 = vmatpush1.msra.mxu0 0.0
      %867 = vmatprep.subr.mxu0 0.0
      %868 = vmatpush1.msra.mxu0 0.0
      %869 = vmatprep.subr.mxu0 0.0
      %870 = vmatpush1.msra.mxu0 0.0
      %871 = vmatprep.subr.mxu0 0.0
      %872 = vmatpush1.msra.mxu0 0.0
      %873 = vmatprep.subr.mxu0 0.0
      %874 = vmatpush1.msra.mxu0 0.0
      %875 = vmatprep.subr.mxu0 0.0
      %876 = vmatpush1.msra.mxu0 0.0
      %877 = vmatprep.subr.mxu0 0.0
      %878 = vmatpush1.msra.mxu0 0.0
      %879 = vmatprep.subr.mxu0 0.0
      %880 = vmatpush1.msra.mxu0 0.0
      %881 = vmatprep.subr.mxu0 0.0
      %882 = vmatpush1.msra.mxu0 0.0
      %883 = vmatprep.subr.mxu0 0.0
      %884 = vmatpush1.msra.mxu0 0.0
      %885 = vmatprep.subr.mxu0 0.0
      %886 = vmatpush1.msra.mxu0 0.0
      %887 = vmatprep.subr.mxu0 0.0
      %888 = vmatpush1.msra.mxu0 0.0
      %889 = vmatprep.mubr.f32.mxu0 0.0
      %890 = vmatmul.mubr.f32.gmra.mrb[0].mxu0 %v809
      %v891 = vpop.f32.mrb[0].mxu0
      %v892 = vadd.f32 0.0, %v891
      %v893 = vpop.f32.mrb[0].mxu0
      %894 = vmatprep.mubr.f32.mxu0 0.0
      %895 = vmatmul.mubr.f32.gmra.mrb[0].mxu0 %v811
      %v896 = vpop.f32.mrb[0].mxu0
      %v897 = vadd.f32 0.0, %v896
      %v898 = vpop.f32.mrb[0].mxu0
      %899 = vmatprep.mubr.f32.mxu0 0.0
      %900 = vmatmul.mubr.f32.gmra.mrb[0].mxu0 %v813
      %v901 = vpop.f32.mrb[0].mxu0
      %v902 = vadd.f32 0.0, %v901
      %v903 = vpop.f32.mrb[0].mxu0
      %904 = vmatprep.mubr.f32.mxu0 0.0
      %905 = vmatmul.mubr.f32.gmra.mrb[0].mxu0 %v815
      %v906 = vpop.f32.mrb[0].mxu0
      %v907 = vadd.f32 0.0, %v906
      %v908 = vpop.f32.mrb[0].mxu0
      %909 = vmatprep.mubr.f32.mxu0 0.0
      %910 = vmatmul.mubr.f32.gmra.mrb[0].mxu0 %v817
      %v911 = vpop.f32.mrb[0].mxu0
      %v912 = vadd.f32 0.0, %v911
      %v913 = vpop.f32.mrb[0].mxu0
      %914 = vmatprep.mubr.f32.mxu0 0.0
      %915 = vmatmul.mubr.f32.gmra.mrb[0].mxu0 %v819
      %v916 = vpop.f32.mrb[0].mxu0
      %v917 = vadd.f32 0.0, %v916
      %v918 = vpop.f32.mrb[0].mxu0
      %919 = vmatprep.mubr.f32.mxu0 0.0
      %920 = vmatmul.mubr.f32.gmra.mrb[0].mxu0 %v821
      %v921 = vpop.f32.mrb[0].mxu0
      %v922 = vadd.f32 0.0, %v921
      %v923 = vpop.f32.mrb[0].mxu0
      %924 = vmatprep.mubr.f32.mxu0 0.0
      %925 = vmatmul.mubr.f32.gmra.mrb[0].mxu0 %v823
      %v926 = vpop.f32.mrb[0].mxu0
      %v927 = vadd.f32 0.0, %v926
      %v928 = vpop.f32.mrb[0].mxu0
      %929 = vdwg.mxu0
      %v930 = vadd.f32 %v749, %v892
      %v931 = vadd.f32 %v754, %v897
      %v932 = vadd.f32 %v759, %v902
      %v933 = vadd.f32 %v764, %v907
      %v934 = vadd.f32 %v769, %v912
      %v935 = vadd.f32 %v774, %v917
      %v936 = vadd.f32 %v779, %v922
      %v937 = vadd.f32 %v784, %v927
      %v938 = vld [vmem:[%s2 + $0x90] sm:$0xff]
      %v939 = vld [vmem:[%s2 + $0x98] sm:$0xff]
      %v940 = vld [vmem:[%s2 + $0xa0] sm:$0xff]
      %v941 = vld [vmem:[%s2 + $0xa8] sm:$0xff]
      %v942 = vld [vmem:[%s2 + $0xb0] sm:$0xff]
      %v943 = vld [vmem:[%s2 + $0xb8] sm:$0xff]
      %vm944 = vcmask 1044480
      %v945 = vrot.slane %v500, 3
      %v946 = vrot.slane %v501, 3
      %v947 = vsel %vm944, %v945, %v946
      %v948 = vrot.slane %v502, 3
      %v949 = vsel %vm944, %v946, %v948
      %v950 = vrot.slane %v503, 3
      %v951 = vsel %vm944, %v948, %v950
      %v952 = vrot.slane %v504, 3
      %v953 = vsel %vm944, %v950, %v952
      %v954 = vrot.slane %v505, 3
      %v955 = vsel %vm944, %v952, %v954
      %v956 = vrot.slane %v506, 3
      %v957 = vsel %vm944, %v954, %v956
      %v958 = vrot.slane %v507, 3
      %v959 = vsel %vm944, %v956, %v958
      %v960 = vsel %vm544, %v947, 0
      %v962 = vsel %vm544, %v949, 0
      %v964 = vsel %vm544, %v951, 0
      %v966 = vsel %vm544, %v953, 0
      %v968 = vsel %vm544, %v955, 0
      %v970 = vsel %vm544, %v957, 0
      %v972 = vsel %vm544, %v959, 0
      %v974 = vsel %vm544, %v958, 0
      %976 = vmatprep.subr.mxu0 0.0
      %977 = vmatpush1.msra.mxu0 %v938
      %978 = vmatprep.subr.mxu0 0.0
      %979 = vmatpush1.msra.mxu0 %v939
      %980 = vmatprep.subr.mxu0 0.0
      %981 = vmatpush1.msra.mxu0 %v940
      %982 = vmatprep.subr.mxu0 0.0
      %983 = vmatpush1.msra.mxu0 %v941
      %984 = vmatprep.subr.mxu0 0.0
      %985 = vmatpush1.msra.mxu0 %v942
      %986 = vmatprep.subr.mxu0 0.0
      %987 = vmatpush1.msra.mxu0 %v943
      %988 = vmatprep.subr.mxu0 0.0
      %989 = vmatpush1.msra.mxu0 0.0
      %990 = vmatprep.subr.mxu0 0.0
      %991 = vmatpush1.msra.mxu0 0.0
      %992 = vmatprep.subr.mxu0 0.0
      %993 = vmatpush1.msra.mxu0 0.0
      %994 = vmatprep.subr.mxu0 0.0
      %995 = vmatpush1.msra.mxu0 0.0
      %996 = vmatprep.subr.mxu0 0.0
      %997 = vmatpush1.msra.mxu0 0.0
      %998 = vmatprep.subr.mxu0 0.0
      %999 = vmatpush1.msra.mxu0 0.0
      %1000 = vmatprep.subr.mxu0 0.0
      %1001 = vmatpush1.msra.mxu0 0.0
      %1002 = vmatprep.subr.mxu0 0.0
      %1003 = vmatpush1.msra.mxu0 0.0
      %1004 = vmatprep.subr.mxu0 0.0
      %1005 = vmatpush1.msra.mxu0 0.0
      %1006 = vmatprep.subr.mxu0 0.0
      %1007 = vmatpush1.msra.mxu0 0.0
      %1008 = vmatprep.subr.mxu0 0.0
      %1009 = vmatpush1.msra.mxu0 0.0
      %1010 = vmatprep.subr.mxu0 0.0
      %1011 = vmatpush1.msra.mxu0 0.0
      %1012 = vmatprep.subr.mxu0 0.0
      %1013 = vmatpush1.msra.mxu0 0.0
      %1014 = vmatprep.subr.mxu0 0.0
      %1015 = vmatpush1.msra.mxu0 0.0
      %1016 = vmatprep.subr.mxu0 0.0
      %1017 = vmatpush1.msra.mxu0 0.0
      %1018 = vmatprep.subr.mxu0 0.0
      %1019 = vmatpush1.msra.mxu0 0.0
      %1020 = vmatprep.subr.mxu0 0.0
      %1021 = vmatpush1.msra.mxu0 0.0
      %1022 = vmatprep.subr.mxu0 0.0
      %1023 = vmatpush1.msra.mxu0 0.0
      %1024 = vmatprep.subr.mxu0 0.0
      %1025 = vmatpush1.msra.mxu0 0.0
      %1026 = vmatprep.subr.mxu0 0.0
      %1027 = vmatpush1.msra.mxu0 0.0
      %1028 = vmatprep.subr.mxu0 0.0
      %1029 = vmatpush1.msra.mxu0 0.0
      %1030 = vmatprep.subr.mxu0 0.0
      %1031 = vmatpush1.msra.mxu0 0.0
      %1032 = vmatprep.subr.mxu0 0.0
      %1033 = vmatpush1.msra.mxu0 0.0
      %1034 = vmatprep.subr.mxu0 0.0
      %1035 = vmatpush1.msra.mxu0 0.0
      %1036 = vmatprep.subr.mxu0 0.0
      %1037 = vmatpush1.msra.mxu0 0.0
      %1038 = vmatprep.subr.mxu0 0.0
      %1039 = vmatpush1.msra.mxu0 0.0
      %1040 = vmatprep.mubr.f32.mxu0 0.0
      %1041 = vmatmul.mubr.f32.gmra.mrb[0].mxu0 %v960
      %v1042 = vpop.f32.mrb[0].mxu0
      %v1043 = vadd.f32 0.0, %v1042
      %v1044 = vpop.f32.mrb[0].mxu0
      %1045 = vmatprep.mubr.f32.mxu0 0.0
      %1046 = vmatmul.mubr.f32.gmra.mrb[0].mxu0 %v962
      %v1047 = vpop.f32.mrb[0].mxu0
      %v1048 = vadd.f32 0.0, %v1047
      %v1049 = vpop.f32.mrb[0].mxu0
      %1050 = vmatprep.mubr.f32.mxu0 0.0
      %1051 = vmatmul.mubr.f32.gmra.mrb[0].mxu0 %v964
      %v1052 = vpop.f32.mrb[0].mxu0
      %v1053 = vadd.f32 0.0, %v1052
      %v1054 = vpop.f32.mrb[0].mxu0
      %1055 = vmatprep.mubr.f32.mxu0 0.0
      %1056 = vmatmul.mubr.f32.gmra.mrb[0].mxu0 %v966
      %v1057 = vpop.f32.mrb[0].mxu0
      %v1058 = vadd.f32 0.0, %v1057
      %v1059 = vpop.f32.mrb[0].mxu0
      %1060 = vmatprep.mubr.f32.mxu0 0.0
      %1061 = vmatmul.mubr.f32.gmra.mrb[0].mxu0 %v968
      %v1062 = vpop.f32.mrb[0].mxu0
      %v1063 = vadd.f32 0.0, %v1062
      %v1064 = vpop.f32.mrb[0].mxu0
      %1065 = vmatprep.mubr.f32.mxu0 0.0
      %1066 = vmatmul.mubr.f32.gmra.mrb[0].mxu0 %v970
      %v1067 = vpop.f32.mrb[0].mxu0
      %v1068 = vadd.f32 0.0, %v1067
      %v1069 = vpop.f32.mrb[0].mxu0
      %1070 = vmatprep.mubr.f32.mxu0 0.0
      %1071 = vmatmul.mubr.f32.gmra.mrb[0].mxu0 %v972
      %v1072 = vpop.f32.mrb[0].mxu0
      %v1073 = vadd.f32 0.0, %v1072
      %v1074 = vpop.f32.mrb[0].mxu0
      %1075 = vmatprep.mubr.f32.mxu0 0.0
      %1076 = vmatmul.mubr.f32.gmra.mrb[0].mxu0 %v974
      %v1077 = vpop.f32.mrb[0].mxu0
      %v1078 = vadd.f32 0.0, %v1077
      %v1079 = vpop.f32.mrb[0].mxu0
      %1080 = vdwg.mxu0
      %v1081 = vadd.f32 %v930, %v1043
      %v1082 = vadd.f32 %v931, %v1048
      %v1083 = vadd.f32 %v932, %v1053
      %v1084 = vadd.f32 %v933, %v1058
      %v1085 = vadd.f32 %v934, %v1063
      %v1086 = vadd.f32 %v935, %v1068
      %v1087 = vadd.f32 %v936, %v1073
      %v1088 = vadd.f32 %v937, %v1078
      %v1089 = vld [vmem:[%s2 + $0xc0] sm:$0xff]
      %v1090 = vld [vmem:[%s2 + $0xc8] sm:$0xff]
      %v1091 = vld [vmem:[%s2 + $0xd0] sm:$0xff]
      %v1092 = vld [vmem:[%s2 + $0xd8] sm:$0xff]
      %v1093 = vld [vmem:[%s2 + $0xe0] sm:$0xff]
      %v1094 = vld [vmem:[%s2 + $0xe8] sm:$0xff]
      %vm1095 = vcmask 1043456
      %v1096 = vrot.slane %v500, 4
      %v1097 = vrot.slane %v501, 4
      %v1098 = vsel %vm1095, %v1096, %v1097
      %v1099 = vrot.slane %v502, 4
      %v1100 = vsel %vm1095, %v1097, %v1099
      %v1101 = vrot.slane %v503, 4
      %v1102 = vsel %vm1095, %v1099, %v1101
      %v1103 = vrot.slane %v504, 4
      %v1104 = vsel %vm1095, %v1101, %v1103
      %v1105 = vrot.slane %v505, 4
      %v1106 = vsel %vm1095, %v1103, %v1105
      %v1107 = vrot.slane %v506, 4
      %v1108 = vsel %vm1095, %v1105, %v1107
      %v1109 = vrot.slane %v507, 4
      %v1110 = vsel %vm1095, %v1107, %v1109
      %v1111 = vsel %vm544, %v1098, 0
      %v1113 = vsel %vm544, %v1100, 0
      %v1115 = vsel %vm544, %v1102, 0
      %v1117 = vsel %vm544, %v1104, 0
      %v1119 = vsel %vm544, %v1106, 0
      %v1121 = vsel %vm544, %v1108, 0
      %v1123 = vsel %vm544, %v1110, 0
      %v1125 = vsel %vm544, %v1109, 0
      %1127 = vmatprep.subr.mxu0 0.0
      %1128 = vmatpush1.msra.mxu0 %v1089
      %1129 = vmatprep.subr.mxu0 0.0
      %1130 = vmatpush1.msra.mxu0 %v1090
      %1131 = vmatprep.subr.mxu0 0.0
      %1132 = vmatpush1.msra.mxu0 %v1091
      %1133 = vmatprep.subr.mxu0 0.0
      %1134 = vmatpush1.msra.mxu0 %v1092
      %1135 = vmatprep.subr.mxu0 0.0
      %1136 = vmatpush1.msra.mxu0 %v1093
      %1137 = vmatprep.subr.mxu0 0.0
      %1138 = vmatpush1.msra.mxu0 %v1094
      %1139 = vmatprep.subr.mxu0 0.0
      %1140 = vmatpush1.msra.mxu0 0.0
      %1141 = vmatprep.subr.mxu0 0.0
      %1142 = vmatpush1.msra.mxu0 0.0
      %1143 = vmatprep.subr.mxu0 0.0
      %1144 = vmatpush1.msra.mxu0 0.0
      %1145 = vmatprep.subr.mxu0 0.0
      %1146 = vmatpush1.msra.mxu0 0.0
      %1147 = vmatprep.subr.mxu0 0.0
      %1148 = vmatpush1.msra.mxu0 0.0
      %1149 = vmatprep.subr.mxu0 0.0
      %1150 = vmatpush1.msra.mxu0 0.0
      %1151 = vmatprep.subr.mxu0 0.0
      %1152 = vmatpush1.msra.mxu0 0.0
      %1153 = vmatprep.subr.mxu0 0.0
      %1154 = vmatpush1.msra.mxu0 0.0
      %1155 = vmatprep.subr.mxu0 0.0
      %1156 = vmatpush1.msra.mxu0 0.0
      %1157 = vmatprep.subr.mxu0 0.0
      %1158 = vmatpush1.msra.mxu0 0.0
      %1159 = vmatprep.subr.mxu0 0.0
      %1160 = vmatpush1.msra.mxu0 0.0
      %1161 = vmatprep.subr.mxu0 0.0
      %1162 = vmatpush1.msra.mxu0 0.0
      %1163 = vmatprep.subr.mxu0 0.0
      %1164 = vmatpush1.msra.mxu0 0.0
      %1165 = vmatprep.subr.mxu0 0.0
      %1166 = vmatpush1.msra.mxu0 0.0
      %1167 = vmatprep.subr.mxu0 0.0
      %1168 = vmatpush1.msra.mxu0 0.0
      %1169 = vmatprep.subr.mxu0 0.0
      %1170 = vmatpush1.msra.mxu0 0.0
      %1171 = vmatprep.subr.mxu0 0.0
      %1172 = vmatpush1.msra.mxu0 0.0
      %1173 = vmatprep.subr.mxu0 0.0
      %1174 = vmatpush1.msra.mxu0 0.0
      %1175 = vmatprep.subr.mxu0 0.0
      %1176 = vmatpush1.msra.mxu0 0.0
      %1177 = vmatprep.subr.mxu0 0.0
      %1178 = vmatpush1.msra.mxu0 0.0
      %1179 = vmatprep.subr.mxu0 0.0
      %1180 = vmatpush1.msra.mxu0 0.0
      %1181 = vmatprep.subr.mxu0 0.0
      %1182 = vmatpush1.msra.mxu0 0.0
      %1183 = vmatprep.subr.mxu0 0.0
      %1184 = vmatpush1.msra.mxu0 0.0
      %1185 = vmatprep.subr.mxu0 0.0
      %1186 = vmatpush1.msra.mxu0 0.0
      %1187 = vmatprep.subr.mxu0 0.0
      %1188 = vmatpush1.msra.mxu0 0.0
      %1189 = vmatprep.subr.mxu0 0.0
      %1190 = vmatpush1.msra.mxu0 0.0
      %1191 = vmatprep.mubr.f32.mxu0 0.0
      %1192 = vmatmul.mubr.f32.gmra.mrb[0].mxu0 %v1111
      %v1193 = vpop.f32.mrb[0].mxu0
      %v1194 = vadd.f32 0.0, %v1193
      %v1195 = vpop.f32.mrb[0].mxu0
      %1196 = vmatprep.mubr.f32.mxu0 0.0
      %1197 = vmatmul.mubr.f32.gmra.mrb[0].mxu0 %v1113
      %v1198 = vpop.f32.mrb[0].mxu0
      %v1199 = vadd.f32 0.0, %v1198
      %v1200 = vpop.f32.mrb[0].mxu0
      %1201 = vmatprep.mubr.f32.mxu0 0.0
      %1202 = vmatmul.mubr.f32.gmra.mrb[0].mxu0 %v1115
      %v1203 = vpop.f32.mrb[0].mxu0
      %v1204 = vadd.f32 0.0, %v1203
      %v1205 = vpop.f32.mrb[0].mxu0
      %1206 = vmatprep.mubr.f32.mxu0 0.0
      %1207 = vmatmul.mubr.f32.gmra.mrb[0].mxu0 %v1117
      %v1208 = vpop.f32.mrb[0].mxu0
      %v1209 = vadd.f32 0.0, %v1208
      %v1210 = vpop.f32.mrb[0].mxu0
      %1211 = vmatprep.mubr.f32.mxu0 0.0
      %1212 = vmatmul.mubr.f32.gmra.mrb[0].mxu0 %v1119
      %v1213 = vpop.f32.mrb[0].mxu0
      %v1214 = vadd.f32 0.0, %v1213
      %v1215 = vpop.f32.mrb[0].mxu0
      %1216 = vmatprep.mubr.f32.mxu0 0.0
      %1217 = vmatmul.mubr.f32.gmra.mrb[0].mxu0 %v1121
      %v1218 = vpop.f32.mrb[0].mxu0
      %v1219 = vadd.f32 0.0, %v1218
      %v1220 = vpop.f32.mrb[0].mxu0
      %1221 = vmatprep.mubr.f32.mxu0 0.0
      %1222 = vmatmul.mubr.f32.gmra.mrb[0].mxu0 %v1123
      %v1223 = vpop.f32.mrb[0].mxu0
      %v1224 = vadd.f32 0.0, %v1223
      %v1225 = vpop.f32.mrb[0].mxu0
      %1226 = vmatprep.mubr.f32.mxu0 0.0
      %1227 = vmatmul.mubr.f32.gmra.mrb[0].mxu0 %v1125
      %v1228 = vpop.f32.mrb[0].mxu0
      %v1229 = vadd.f32 0.0, %v1228
      %v1230 = vpop.f32.mrb[0].mxu0
      %1231 = vdwg.mxu0
      %v1232 = vadd.f32 %v1081, %v1194
      %v1233 = vadd.f32 %v1082, %v1199
      %v1234 = vadd.f32 %v1083, %v1204
      %v1235 = vadd.f32 %v1084, %v1209
      %v1236 = vadd.f32 %v1085, %v1214
      %v1237 = vadd.f32 %v1086, %v1219
      %v1238 = vadd.f32 %v1087, %v1224
      %v1239 = vadd.f32 %v1088, %v1229
      %v1240 = vadd.f32 %v1232, %v493
      %v1241 = vadd.f32 %v1233, %v493
      %v1242 = vadd.f32 %v1234, %v493
      %v1243 = vadd.f32 %v1235, %v493
      %v1244 = vadd.f32 %v1236, %v493
      %v1245 = vadd.f32 %v1237, %v493
      %v1246 = vadd.f32 %v1238, %v493
      %v1247 = vadd.f32 %v1239, %v493
      %v1248 = vmax.f32 %v1240, 0.0
      %v1249 = vmax.f32 %v1241, 0.0
      %v1250 = vmax.f32 %v1242, 0.0
      %v1251 = vmax.f32 %v1243, 0.0
      %v1252 = vmax.f32 %v1244, 0.0
      %v1253 = vmax.f32 %v1245, 0.0
      %v1254 = vmax.f32 %v1246, 0.0
      %v1255 = vmax.f32 %v1247, 0.0
      %1256 = vst [vmem:[#allocation2] sm:$0xff] %v1248
      %1257 = vst [vmem:[#allocation2 + $0x8] sm:$0xff] %v1249
      %1258 = vst [vmem:[#allocation2 + $0x10] sm:$0xff] %v1250
      %1259 = vst [vmem:[#allocation2 + $0x18] sm:$0xff] %v1251
      %1260 = vst [vmem:[#allocation2 + $0x20] sm:$0xff] %v1252
      %1261 = vst [vmem:[#allocation2 + $0x28] sm:$0xff] %v1253
      %1262 = vst [vmem:[#allocation2 + $0x30] sm:$0xff] %v1254
      %1263 = vst [vmem:[#allocation2 + $0x38] sm:$0xf] %v1255
      %v1264 = vld [vmem:[#allocation2] ss:$2 sm:$0xff]
      %s1265 = scalar_lea.vmem [#allocation2], 16
      %v1266 = vld [vmem:[%s1265] ss:$2 sm:$0xff]
      %s1267 = scalar_lea.vmem [#allocation2], 32
      %v1268 = vld [vmem:[%s1267] ss:$2 sm:$0xff]
      %s1269 = scalar_lea.vmem [#allocation2], 48
      %v1270 = vld [vmem:[%s1269] ss:$2 sm:$0x3f]
      %s1271 = scalar_lea.vmem [#allocation2], 1
      %v1272 = vld [vmem:[%s1271] ss:$2 sm:$0xff]
      %s1273 = scalar_lea.vmem [#allocation2], 17
      %v1274 = vld [vmem:[%s1273] ss:$2 sm:$0xff]
      %s1275 = scalar_lea.vmem [#allocation2], 33
      %v1276 = vld [vmem:[%s1275] ss:$2 sm:$0xff]
      %s1277 = scalar_lea.vmem [#allocation2], 49
      %v1278 = vld [vmem:[%s1277] ss:$2 sm:$0x3f]
      %v1279 = vmax.f32 %v1264, %v1272
      %v1280 = vmax.f32 %v1266, %v1274
      %v1281 = vmax.f32 %v1268, %v1276
      %v1282 = vmax.f32 %v1270, %v1278
      %v1287 = vrot.slane %v1279, 1
      %v1288 = vrot.slane %v1280, 1
      %v1289 = vsel %vm528, %v1287, %v1288
      %v1290 = vrot.slane %v1281, 1
      %v1291 = vsel %vm528, %v1288, %v1290
      %v1292 = vrot.slane %v1282, 1
      %v1293 = vsel %vm528, %v1290, %v1292
      %v1298 = vrot.slane %v1279, 2
      %v1299 = vrot.slane %v1280, 2
      %v1300 = vsel %vm793, %v1298, %v1299
      %v1301 = vrot.slane %v1281, 2
      %v1302 = vsel %vm793, %v1299, %v1301
      %v1303 = vrot.slane %v1282, 2
      %v1304 = vsel %vm793, %v1301, %v1303
      %v1309 = vrot.slane %v1279, 3
      %v1310 = vrot.slane %v1280, 3
      %v1311 = vsel %vm944, %v1309, %v1310
      %v1312 = vrot.slane %v1281, 3
      %v1313 = vsel %vm944, %v1310, %v1312
      %v1314 = vrot.slane %v1282, 3
      %v1315 = vsel %vm944, %v1312, %v1314
      %v1320 = vrot.slane %v1279, 4
      %v1321 = vrot.slane %v1280, 4
      %v1322 = vsel %vm1095, %v1320, %v1321
      %v1323 = vrot.slane %v1281, 4
      %v1324 = vsel %vm1095, %v1321, %v1323
      %v1325 = vrot.slane %v1282, 4
      %v1326 = vsel %vm1095, %v1323, %v1325
      %v1331 = vld [vmem:[%s3] sm:$0xff]
      %v1332 = vld [vmem:[%s3 + $0x8] sm:$0xff]
      %v1333 = vld [vmem:[%s3 + $0x10] sm:$0xff]
      %v1334 = vld [vmem:[%s3 + $0x18] sm:$0xff]
      %v1335 = vld [vmem:[%s3 + $0x20] sm:$0xff]
      %v1336 = vld [vmem:[%s3 + $0x28] sm:$0xff]
      %v1337 = vld [vmem:[%s3 + $0x30] sm:$0xff]
      %v1338 = vld [vmem:[%s3 + $0x38] sm:$0xff]
      %v1339 = vld [vmem:[%s3 + $0x40] sm:$0xff]
      %v1340 = vld [vmem:[%s3 + $0x48] sm:$0xff]
      %v1341 = vld [vmem:[%s3 + $0x50] sm:$0xff]
      %v1342 = vld [vmem:[%s3 + $0x58] sm:$0xff]
      %v1343 = vld [vmem:[%s3 + $0x60] sm:$0xff]
      %v1344 = vld [vmem:[%s3 + $0x68] sm:$0xff]
      %v1345 = vld [vmem:[%s3 + $0x70] sm:$0xff]
      %v1346 = vld [vmem:[%s3 + $0x78] sm:$0xff]
      %v1347 = vld [vmem:[%s3 + $0x80] sm:$0xff]
      %v1348 = vld [vmem:[%s3 + $0x88] sm:$0xff]
      %v1349 = vld [vmem:[%s3 + $0x90] sm:$0xff]
      %v1350 = vld [vmem:[%s3 + $0x98] sm:$0xff]
      %v1351 = vld [vmem:[%s3 + $0xa0] sm:$0xff]
      %v1352 = vld [vmem:[%s3 + $0xa8] sm:$0xff]
      %v1353 = vld [vmem:[%s3 + $0xb0] sm:$0xff]
      %v1354 = vld [vmem:[%s3 + $0xb8] sm:$0xff]
      %v1355 = vld [vmem:[%s3 + $0xc0] sm:$0xff]
      %v1356 = vld [vmem:[%s3 + $0xc8] sm:$0xff]
      %v1357 = vld [vmem:[%s3 + $0xd0] sm:$0xff]
      %v1358 = vld [vmem:[%s3 + $0xd8] sm:$0xff]
      %v1359 = vld [vmem:[%s3 + $0xe0] sm:$0xff]
      %v1360 = vld [vmem:[%s3 + $0xe8] sm:$0xff]
      %v1361 = vld [vmem:[%s3 + $0xf0] sm:$0xff]
      %v1362 = vld [vmem:[%s3 + $0xf8] sm:$0xff]
      %v1363 = vld [vmem:[%s3 + $0x100] sm:$0xff]
      %v1364 = vld [vmem:[%s3 + $0x108] sm:$0xff]
      %v1365 = vld [vmem:[%s3 + $0x110] sm:$0xff]
      %v1366 = vld [vmem:[%s3 + $0x118] sm:$0xff]
      %v1367 = vld [vmem:[%s3 + $0x120] sm:$0xff]
      %v1368 = vld [vmem:[%s3 + $0x128] sm:$0xff]
      %v1369 = vld [vmem:[%s3 + $0x130] sm:$0xff]
      %v1370 = vld [vmem:[%s3 + $0x138] sm:$0xff]
      %v1371 = vld [vmem:[%s3 + $0x140] sm:$0xff]
      %v1372 = vld [vmem:[%s3 + $0x148] sm:$0xff]
      %v1373 = vld [vmem:[%s3 + $0x150] sm:$0xff]
      %v1374 = vld [vmem:[%s3 + $0x158] sm:$0xff]
      %v1375 = vld [vmem:[%s3 + $0x160] sm:$0xff]
      %v1376 = vld [vmem:[%s3 + $0x168] sm:$0xff]
      %v1377 = vld [vmem:[%s3 + $0x170] sm:$0xff]
      %v1378 = vld [vmem:[%s3 + $0x178] sm:$0xff]
      %v1379 = vld [vmem:[%s3 + $0x180] sm:$0xff]
      %v1380 = vld [vmem:[%s3 + $0x188] sm:$0xff]
      %v1381 = vld [vmem:[%s3 + $0x190] sm:$0xff]
      %v1382 = vld [vmem:[%s3 + $0x198] sm:$0xff]
      %v1383 = vld [vmem:[%s3 + $0x1a0] sm:$0xff]
      %v1384 = vld [vmem:[%s3 + $0x1a8] sm:$0xff]
      %v1385 = vld [vmem:[%s3 + $0x1b0] sm:$0xff]
      %v1386 = vld [vmem:[%s3 + $0x1b8] sm:$0xff]
      %v1387 = vld [vmem:[%s3 + $0x1c0] sm:$0xff]
      %v1388 = vld [vmem:[%s3 + $0x1c8] sm:$0xff]
      %v1389 = vld [vmem:[%s3 + $0x1d0] sm:$0xff]
      %v1390 = vld [vmem:[%s3 + $0x1d8] sm:$0xff]
      %v1391 = vld [vmem:[%s3 + $0x1e0] sm:$0xff]
      %v1392 = vld [vmem:[%s3 + $0x1e8] sm:$0xff]
      %v1393 = vld [vmem:[%s3 + $0x1f0] sm:$0xff]
      %v1394 = vld [vmem:[%s3 + $0x1f8] sm:$0xff]
      %v1395 = vld [vmem:[%s3 + $0x200] sm:$0xff]
      %v1396 = vld [vmem:[%s3 + $0x208] sm:$0xff]
      %v1397 = vld [vmem:[%s3 + $0x210] sm:$0xff]
      %v1398 = vld [vmem:[%s3 + $0x218] sm:$0xff]
      %v1399 = vld [vmem:[%s3 + $0x220] sm:$0xff]
      %v1400 = vld [vmem:[%s3 + $0x228] sm:$0xff]
      %v1401 = vld [vmem:[%s3 + $0x230] sm:$0xff]
      %v1402 = vld [vmem:[%s3 + $0x238] sm:$0xff]
      %v1403 = vld [vmem:[%s3 + $0x240] sm:$0xff]
      %v1404 = vld [vmem:[%s3 + $0x248] sm:$0xff]
      %v1405 = vld [vmem:[%s3 + $0x250] sm:$0xff]
      %v1406 = vld [vmem:[%s3 + $0x258] sm:$0xff]
      %v1407 = vld [vmem:[%s3 + $0x260] sm:$0xff]
      %v1408 = vld [vmem:[%s3 + $0x268] sm:$0xff]
      %v1409 = vld [vmem:[%s3 + $0x270] sm:$0xff]
      %v1410 = vld [vmem:[%s3 + $0x278] sm:$0xff]
      %1411 = vmatprep.subr.mxu0 0.0
      %1412 = vmatpush1.msra.mxu0 %v1331
      %1413 = vmatprep.subr.mxu0 0.0
      %1414 = vmatpush1.msra.mxu0 %v1332
      %1415 = vmatprep.subr.mxu0 0.0
      %1416 = vmatpush1.msra.mxu0 %v1333
      %1417 = vmatprep.subr.mxu0 0.0
      %1418 = vmatpush1.msra.mxu0 %v1334
      %1419 = vmatprep.subr.mxu0 0.0
      %1420 = vmatpush1.msra.mxu0 %v1335
      %1421 = vmatprep.subr.mxu0 0.0
      %1422 = vmatpush1.msra.mxu0 %v1336
      %1423 = vmatprep.subr.mxu0 0.0
      %1424 = vmatpush1.msra.mxu0 %v1337
      %1425 = vmatprep.subr.mxu0 0.0
      %1426 = vmatpush1.msra.mxu0 %v1338
      %1427 = vmatprep.subr.mxu0 0.0
      %1428 = vmatpush1.msra.mxu0 %v1339
      %1429 = vmatprep.subr.mxu0 0.0
      %1430 = vmatpush1.msra.mxu0 %v1340
      %1431 = vmatprep.subr.mxu0 0.0
      %1432 = vmatpush1.msra.mxu0 %v1341
      %1433 = vmatprep.subr.mxu0 0.0
      %1434 = vmatpush1.msra.mxu0 %v1342
      %1435 = vmatprep.subr.mxu0 0.0
      %1436 = vmatpush1.msra.mxu0 %v1343
      %1437 = vmatprep.subr.mxu0 0.0
      %1438 = vmatpush1.msra.mxu0 %v1344
      %1439 = vmatprep.subr.mxu0 0.0
      %1440 = vmatpush1.msra.mxu0 %v1345
      %1441 = vmatprep.subr.mxu0 0.0
      %1442 = vmatpush1.msra.mxu0 %v1346
      %1443 = vmatprep.subr.mxu0 0.0
      %1444 = vmatpush1.msra.mxu0 %v1347
      %1445 = vmatprep.subr.mxu0 0.0
      %1446 = vmatpush1.msra.mxu0 %v1348
      %1447 = vmatprep.subr.mxu0 0.0
      %1448 = vmatpush1.msra.mxu0 %v1349
      %1449 = vmatprep.subr.mxu0 0.0
      %1450 = vmatpush1.msra.mxu0 %v1350
      %1451 = vmatprep.subr.mxu0 0.0
      %1452 = vmatpush1.msra.mxu0 %v1351
      %1453 = vmatprep.subr.mxu0 0.0
      %1454 = vmatpush1.msra.mxu0 %v1352
      %1455 = vmatprep.subr.mxu0 0.0
      %1456 = vmatpush1.msra.mxu0 %v1353
      %1457 = vmatprep.subr.mxu0 0.0
      %1458 = vmatpush1.msra.mxu0 %v1354
      %1459 = vmatprep.subr.mxu0 0.0
      %1460 = vmatpush1.msra.mxu0 %v1355
      %1461 = vmatprep.subr.mxu0 0.0
      %1462 = vmatpush1.msra.mxu0 %v1356
      %1463 = vmatprep.subr.mxu0 0.0
      %1464 = vmatpush1.msra.mxu0 %v1357
      %1465 = vmatprep.subr.mxu0 0.0
      %1466 = vmatpush1.msra.mxu0 %v1358
      %1467 = vmatprep.subr.mxu0 0.0
      %1468 = vmatpush1.msra.mxu0 %v1359
      %1469 = vmatprep.subr.mxu0 0.0
      %1470 = vmatpush1.msra.mxu0 %v1360
      %1471 = vmatprep.subr.mxu0 0.0
      %1472 = vmatpush1.msra.mxu0 %v1361
      %1473 = vmatprep.subr.mxu0 0.0
      %1474 = vmatpush1.msra.mxu0 %v1362
      %1475 = vmatprep.mubr.f32.mxu0 %v1289
      %1476 = vmatmul.mubr.f32.gmra.mrb[0].mxu0 %v1279
      %v1477 = vpop.f32.mrb[0].mxu0
      %v1478 = vadd.f32 %v494, %v1477
      %v1479 = vpop.f32.mrb[0].mxu0
      %1480 = vmatprep.mubr.f32.mxu0 %v1291
      %1481 = vmatmul.mubr.f32.gmra.mrb[0].mxu0 %v1280
      %v1482 = vpop.f32.mrb[0].mxu0
      %v1483 = vadd.f32 %v494, %v1482
      %v1484 = vpop.f32.mrb[0].mxu0
      %1485 = vmatprep.mubr.f32.mxu0 %v1293
      %1486 = vmatmul.mubr.f32.gmra.mrb[0].mxu0 %v1281
      %v1487 = vpop.f32.mrb[0].mxu0
      %v1488 = vadd.f32 %v494, %v1487
      %v1489 = vpop.f32.mrb[0].mxu0
      %1490 = vmatprep.mubr.f32.mxu0 %v1292
      %1491 = vmatmul.mubr.f32.gmra.mrb[0].mxu0 %v1282
      %v1492 = vpop.f32.mrb[0].mxu0
      %v1493 = vadd.f32 %v494, %v1492
      %v1494 = vpop.f32.mrb[0].mxu0
      %1495 = vdwg.mxu0
      %1496 = vmatprep.subr.mxu0 0.0
      %1497 = vmatpush1.msra.mxu0 %v1363
      %1498 = vmatprep.subr.mxu0 0.0
      %1499 = vmatpush1.msra.mxu0 %v1364
      %1500 = vmatprep.subr.mxu0 0.0
      %1501 = vmatpush1.msra.mxu0 %v1365
      %1502 = vmatprep.subr.mxu0 0.0
      %1503 = vmatpush1.msra.mxu0 %v1366
      %1504 = vmatprep.subr.mxu0 0.0
      %1505 = vmatpush1.msra.mxu0 %v1367
      %1506 = vmatprep.subr.mxu0 0.0
      %1507 = vmatpush1.msra.mxu0 %v1368
      %1508 = vmatprep.subr.mxu0 0.0
      %1509 = vmatpush1.msra.mxu0 %v1369
      %1510 = vmatprep.subr.mxu0 0.0
      %1511 = vmatpush1.msra.mxu0 %v1370
      %1512 = vmatprep.subr.mxu0 0.0
      %1513 = vmatpush1.msra.mxu0 %v1371
      %1514 = vmatprep.subr.mxu0 0.0
      %1515 = vmatpush1.msra.mxu0 %v1372
      %1516 = vmatprep.subr.mxu0 0.0
      %1517 = vmatpush1.msra.mxu0 %v1373
      %1518 = vmatprep.subr.mxu0 0.0
      %1519 = vmatpush1.msra.mxu0 %v1374
      %1520 = vmatprep.subr.mxu0 0.0
      %1521 = vmatpush1.msra.mxu0 %v1375
      %1522 = vmatprep.subr.mxu0 0.0
      %1523 = vmatpush1.msra.mxu0 %v1376
      %1524 = vmatprep.subr.mxu0 0.0
      %1525 = vmatpush1.msra.mxu0 %v1377
      %1526 = vmatprep.subr.mxu0 0.0
      %1527 = vmatpush1.msra.mxu0 %v1378
      %1528 = vmatprep.subr.mxu0 0.0
      %1529 = vmatpush1.msra.mxu0 %v1379
      %1530 = vmatprep.subr.mxu0 0.0
      %1531 = vmatpush1.msra.mxu0 %v1380
      %1532 = vmatprep.subr.mxu0 0.0
      %1533 = vmatpush1.msra.mxu0 %v1381
      %1534 = vmatprep.subr.mxu0 0.0
      %1535 = vmatpush1.msra.mxu0 %v1382
      %1536 = vmatprep.subr.mxu0 0.0
      %1537 = vmatpush1.msra.mxu0 %v1383
      %1538 = vmatprep.subr.mxu0 0.0
      %1539 = vmatpush1.msra.mxu0 %v1384
      %1540 = vmatprep.subr.mxu0 0.0
      %1541 = vmatpush1.msra.mxu0 %v1385
      %1542 = vmatprep.subr.mxu0 0.0
      %1543 = vmatpush1.msra.mxu0 %v1386
      %1544 = vmatprep.subr.mxu0 0.0
      %1545 = vmatpush1.msra.mxu0 %v1387
      %1546 = vmatprep.subr.mxu0 0.0
      %1547 = vmatpush1.msra.mxu0 %v1388
      %1548 = vmatprep.subr.mxu0 0.0
      %1549 = vmatpush1.msra.mxu0 %v1389
      %1550 = vmatprep.subr.mxu0 0.0
      %1551 = vmatpush1.msra.mxu0 %v1390
      %1552 = vmatprep.subr.mxu0 0.0
      %1553 = vmatpush1.msra.mxu0 %v1391
      %1554 = vmatprep.subr.mxu0 0.0
      %1555 = vmatpush1.msra.mxu0 %v1392
      %1556 = vmatprep.subr.mxu0 0.0
      %1557 = vmatpush1.msra.mxu0 %v1393
      %1558 = vmatprep.subr.mxu0 0.0
      %1559 = vmatpush1.msra.mxu0 %v1394
      %1560 = vmatprep.mubr.f32.mxu0 %v1311
      %1561 = vmatmul.mubr.f32.gmra.mrb[0].mxu0 %v1300
      %v1562 = vpop.f32.mrb[0].mxu0
      %v1563 = vadd.f32 %v1478, %v1562
      %v1564 = vpop.f32.mrb[0].mxu0
      %1565 = vmatprep.mubr.f32.mxu0 %v1313
      %1566 = vmatmul.mubr.f32.gmra.mrb[0].mxu0 %v1302
      %v1567 = vpop.f32.mrb[0].mxu0
      %v1568 = vadd.f32 %v1483, %v1567
      %v1569 = vpop.f32.mrb[0].mxu0
      %1570 = vmatprep.mubr.f32.mxu0 %v1315
      %1571 = vmatmul.mubr.f32.gmra.mrb[0].mxu0 %v1304
      %v1572 = vpop.f32.mrb[0].mxu0
      %v1573 = vadd.f32 %v1488, %v1572
      %v1574 = vpop.f32.mrb[0].mxu0
      %1575 = vmatprep.mubr.f32.mxu0 %v1314
      %1576 = vmatmul.mubr.f32.gmra.mrb[0].mxu0 %v1303
      %v1577 = vpop.f32.mrb[0].mxu0
      %v1578 = vadd.f32 %v1493, %v1577
      %v1579 = vpop.f32.mrb[0].mxu0
      %1580 = vdwg.mxu0
      %1581 = vmatprep.subr.mxu0 0.0
      %1582 = vmatpush1.msra.mxu0 %v1395
      %1583 = vmatprep.subr.mxu0 0.0
      %1584 = vmatpush1.msra.mxu0 %v1396
      %1585 = vmatprep.subr.mxu0 0.0
      %1586 = vmatpush1.msra.mxu0 %v1397
      %1587 = vmatprep.subr.mxu0 0.0
      %1588 = vmatpush1.msra.mxu0 %v1398
      %1589 = vmatprep.subr.mxu0 0.0
      %1590 = vmatpush1.msra.mxu0 %v1399
      %1591 = vmatprep.subr.mxu0 0.0
      %1592 = vmatpush1.msra.mxu0 %v1400
      %1593 = vmatprep.subr.mxu0 0.0
      %1594 = vmatpush1.msra.mxu0 %v1401
      %1595 = vmatprep.subr.mxu0 0.0
      %1596 = vmatpush1.msra.mxu0 %v1402
      %1597 = vmatprep.subr.mxu0 0.0
      %1598 = vmatpush1.msra.mxu0 %v1403
      %1599 = vmatprep.subr.mxu0 0.0
      %1600 = vmatpush1.msra.mxu0 %v1404
      %1601 = vmatprep.subr.mxu0 0.0
      %1602 = vmatpush1.msra.mxu0 %v1405
      %1603 = vmatprep.subr.mxu0 0.0
      %1604 = vmatpush1.msra.mxu0 %v1406
      %1605 = vmatprep.subr.mxu0 0.0
      %1606 = vmatpush1.msra.mxu0 %v1407
      %1607 = vmatprep.subr.mxu0 0.0
      %1608 = vmatpush1.msra.mxu0 %v1408
      %1609 = vmatprep.subr.mxu0 0.0
      %1610 = vmatpush1.msra.mxu0 %v1409
      %1611 = vmatprep.subr.mxu0 0.0
      %1612 = vmatpush1.msra.mxu0 %v1410
      %1613 = vmatprep.subr.mxu0 0.0
      %1614 = vmatpush1.msra.mxu0 0.0
      %1615 = vmatprep.subr.mxu0 0.0
      %1616 = vmatpush1.msra.mxu0 0.0
      %1617 = vmatprep.subr.mxu0 0.0
      %1618 = vmatpush1.msra.mxu0 0.0
      %1619 = vmatprep.subr.mxu0 0.0
      %1620 = vmatpush1.msra.mxu0 0.0
      %1621 = vmatprep.subr.mxu0 0.0
      %1622 = vmatpush1.msra.mxu0 0.0
      %1623 = vmatprep.subr.mxu0 0.0
      %1624 = vmatpush1.msra.mxu0 0.0
      %1625 = vmatprep.subr.mxu0 0.0
      %1626 = vmatpush1.msra.mxu0 0.0
      %1627 = vmatprep.subr.mxu0 0.0
      %1628 = vmatpush1.msra.mxu0 0.0
      %1629 = vmatprep.subr.mxu0 0.0
      %1630 = vmatpush1.msra.mxu0 0.0
      %1631 = vmatprep.subr.mxu0 0.0
      %1632 = vmatpush1.msra.mxu0 0.0
      %1633 = vmatprep.subr.mxu0 0.0
      %1634 = vmatpush1.msra.mxu0 0.0
      %1635 = vmatprep.subr.mxu0 0.0
      %1636 = vmatpush1.msra.mxu0 0.0
      %1637 = vmatprep.subr.mxu0 0.0
      %1638 = vmatpush1.msra.mxu0 0.0
      %1639 = vmatprep.subr.mxu0 0.0
      %1640 = vmatpush1.msra.mxu0 0.0
      %1641 = vmatprep.subr.mxu0 0.0
      %1642 = vmatpush1.msra.mxu0 0.0
      %1643 = vmatprep.subr.mxu0 0.0
      %1644 = vmatpush1.msra.mxu0 0.0
      %1645 = vmatprep.mubr.f32.mxu0 0.0
      %1646 = vmatmul.mubr.f32.gmra.mrb[0].mxu0 %v1322
      %v1647 = vpop.f32.mrb[0].mxu0
      %v1648 = vadd.f32 %v1563, %v1647
      %v1649 = vpop.f32.mrb[0].mxu0
      %1650 = vmatprep.mubr.f32.mxu0 0.0
      %1651 = vmatmul.mubr.f32.gmra.mrb[0].mxu0 %v1324
      %v1652 = vpop.f32.mrb[0].mxu0
      %v1653 = vadd.f32 %v1568, %v1652
      %v1654 = vpop.f32.mrb[0].mxu0
      %1655 = vmatprep.mubr.f32.mxu0 0.0
      %1656 = vmatmul.mubr.f32.gmra.mrb[0].mxu0 %v1326
      %v1657 = vpop.f32.mrb[0].mxu0
      %v1658 = vadd.f32 %v1573, %v1657
      %v1659 = vpop.f32.mrb[0].mxu0
      %1660 = vmatprep.mubr.f32.mxu0 0.0
      %1661 = vmatmul.mubr.f32.gmra.mrb[0].mxu0 %v1325
      %v1662 = vpop.f32.mrb[0].mxu0
      %v1663 = vadd.f32 %v1578, %v1662
      %v1664 = vpop.f32.mrb[0].mxu0
      %1665 = vdwg.mxu0
      %v1666 = vmax.f32 %v1648, 0.0
      %v1667 = vmax.f32 %v1653, 0.0
      %v1668 = vmax.f32 %v1658, 0.0
      %v1669 = vmax.f32 %v1663, 0.0
      %1670 = vst [vmem:[#allocation2] sm:$0xff] %v1666
      %1671 = vst [vmem:[#allocation2 + $0x8] sm:$0xff] %v1667
      %1672 = vst [vmem:[#allocation2 + $0x10] sm:$0xff] %v1668
      %1673 = vst [vmem:[#allocation2 + $0x18] sm:$0x3] %v1669
      %v1674 = vld [vmem:[#allocation2] ss:$2 sm:$0xff]
      %s1675 = scalar_lea.vmem [#allocation2], 16
      %v1676 = vld [vmem:[%s1675] ss:$2 sm:$0x1f]
      %v1677 = vld [vmem:[%s1271] ss:$2 sm:$0xff]
      %v1678 = vld [vmem:[%s1273] ss:$2 sm:$0x1f]
      %v1679 = vmax.f32 %v1674, %v1677
      %v1680 = vmax.f32 %v1676, %v1678
      %v1681 = vld [vmem:[%s463] sm:$0xff]
      %v1682 = vld [vmem:[%s463 + $0x8] sm:$0xff]
      %v1683 = vld [vmem:[%s463 + $0x10] sm:$0xff]
      %v1684 = vld [vmem:[%s463 + $0x18] sm:$0xff]
      %v1685 = vld [vmem:[%s463 + $0x20] sm:$0xff]
      %v1686 = vld [vmem:[%s463 + $0x28] sm:$0xff]
      %v1687 = vld [vmem:[%s463 + $0x30] sm:$0xff]
      %v1688 = vld [vmem:[%s463 + $0x38] sm:$0xff]
      %v1689 = vld [vmem:[%s4] sm:$0xff]
      %v1690 = vld [vmem:[%s4 + $0x8] sm:$0xff]
      %v1691 = vld [vmem:[%s4 + $0x10] sm:$0xff]
      %v1692 = vld [vmem:[%s4 + $0x18] sm:$0xff]
      %v1701 = vrot.slane %v1681, 1
      %v1702 = vrot.slane %v1682, 1
      %v1703 = vsel %vm528, %v1701, %v1702
      %v1704 = vrot.slane %v1683, 1
      %v1705 = vsel %vm528, %v1702, %v1704
      %v1706 = vrot.slane %v1684, 1
      %v1707 = vsel %vm528, %v1704, %v1706
      %v1708 = vrot.slane %v1685, 1
      %v1709 = vsel %vm528, %v1706, %v1708
      %v1710 = vrot.slane %v1686, 1
      %v1711 = vsel %vm528, %v1708, %v1710
      %v1712 = vrot.slane %v1687, 1
      %v1713 = vsel %vm528, %v1710, %v1712
      %v1714 = vrot.slane %v1688, 1
      %v1715 = vsel %vm528, %v1712, %v1714
      %vm1716 = vcmask 130048
      %v1717 = vsel %vm1716, %v1703, 0
      %v1719 = vsel %vm1716, %v1705, 0
      %v1721 = vsel %vm1716, %v1707, 0
      %v1723 = vsel %vm1716, %v1709, 0
      %v1725 = vsel %vm1716, %v1711, 0
      %v1727 = vsel %vm1716, %v1713, 0
      %v1729 = vsel %vm1716, %v1715, 0
      %v1731 = vsel %vm1716, %v1714, 0
      %1733 = vmatprep.subr.mxu0 0.0
      %1734 = vmatpush1.msra.mxu0 %v1691
      %1735 = vmatprep.subr.mxu0 0.0
      %1736 = vmatpush1.msra.mxu0 %v1692
      %1737 = vmatprep.subr.mxu0 0.0
      %1738 = vmatpush1.msra.mxu0 0.0
      %1739 = vmatprep.subr.mxu0 0.0
      %1740 = vmatpush1.msra.mxu0 0.0
      %1741 = vmatprep.subr.mxu0 0.0
      %1742 = vmatpush1.msra.mxu0 0.0
      %1743 = vmatprep.subr.mxu0 0.0
      %1744 = vmatpush1.msra.mxu0 0.0
      %1745 = vmatprep.subr.mxu0 0.0
      %1746 = vmatpush1.msra.mxu0 0.0
      %1747 = vmatprep.subr.mxu0 0.0
      %1748 = vmatpush1.msra.mxu0 0.0
      %1749 = vmatprep.subr.mxu0 0.0
      %1750 = vmatpush1.msra.mxu0 0.0
      %1751 = vmatprep.subr.mxu0 0.0
      %1752 = vmatpush1.msra.mxu0 0.0
      %1753 = vmatprep.subr.mxu0 0.0
      %1754 = vmatpush1.msra.mxu0 0.0
      %1755 = vmatprep.subr.mxu0 0.0
      %1756 = vmatpush1.msra.mxu0 0.0
      %1757 = vmatprep.subr.mxu0 0.0
      %1758 = vmatpush1.msra.mxu0 0.0
      %1759 = vmatprep.subr.mxu0 0.0
      %1760 = vmatpush1.msra.mxu0 0.0
      %1761 = vmatprep.subr.mxu0 0.0
      %1762 = vmatpush1.msra.mxu0 0.0
      %1763 = vmatprep.subr.mxu0 0.0
      %1764 = vmatpush1.msra.mxu0 0.0
      %1765 = vmatprep.subr.mxu0 0.0
      %1766 = vmatpush1.msra.mxu0 0.0
      %1767 = vmatprep.subr.mxu0 0.0
      %1768 = vmatpush1.msra.mxu0 0.0
      %1769 = vmatprep.subr.mxu0 0.0
      %1770 = vmatpush1.msra.mxu0 0.0
      %1771 = vmatprep.subr.mxu0 0.0
      %1772 = vmatpush1.msra.mxu0 0.0
      %1773 = vmatprep.subr.mxu0 0.0
      %1774 = vmatpush1.msra.mxu0 0.0
      %1775 = vmatprep.subr.mxu0 0.0
      %1776 = vmatpush1.msra.mxu0 0.0
      %1777 = vmatprep.subr.mxu0 0.0
      %1778 = vmatpush1.msra.mxu0 0.0
      %1779 = vmatprep.subr.mxu0 0.0
      %1780 = vmatpush1.msra.mxu0 0.0
      %1781 = vmatprep.subr.mxu0 0.0
      %1782 = vmatpush1.msra.mxu0 0.0
      %1783 = vmatprep.subr.mxu0 0.0
      %1784 = vmatpush1.msra.mxu0 0.0
      %1785 = vmatprep.subr.mxu0 0.0
      %1786 = vmatpush1.msra.mxu0 0.0
      %1787 = vmatprep.subr.mxu0 0.0
      %1788 = vmatpush1.msra.mxu0 0.0
      %1789 = vmatprep.subr.mxu0 0.0
      %1790 = vmatpush1.msra.mxu0 0.0
      %1791 = vmatprep.subr.mxu0 0.0
      %1792 = vmatpush1.msra.mxu0 0.0
      %1793 = vmatprep.subr.mxu0 0.0
      %1794 = vmatpush1.msra.mxu0 0.0
      %1795 = vmatprep.subr.mxu0 0.0
      %1796 = vmatpush1.msra.mxu0 0.0
      %1797 = vmatprep.mubr.f32.mxu0 0.0
      %1798 = vmatmul.mubr.f32.gmra.mrb[0].mxu0 %v1717
      %v1799 = vpop.f32.mrb[0].mxu0
      %v1800 = vadd.f32 0.0, %v1799
      %v1801 = vpop.f32.mrb[0].mxu0
      %1802 = vmatprep.mubr.f32.mxu0 0.0
      %1803 = vmatmul.mubr.f32.gmra.mrb[0].mxu0 %v1719
      %v1804 = vpop.f32.mrb[0].mxu0
      %v1805 = vadd.f32 0.0, %v1804
      %v1806 = vpop.f32.mrb[0].mxu0
      %1807 = vmatprep.mubr.f32.mxu0 0.0
      %1808 = vmatmul.mubr.f32.gmra.mrb[0].mxu0 %v1721
      %v1809 = vpop.f32.mrb[0].mxu0
      %v1810 = vadd.f32 0.0, %v1809
      %v1811 = vpop.f32.mrb[0].mxu0
      %1812 = vmatprep.mubr.f32.mxu0 0.0
      %1813 = vmatmul.mubr.f32.gmra.mrb[0].mxu0 %v1723
      %v1814 = vpop.f32.mrb[0].mxu0
      %v1815 = vadd.f32 0.0, %v1814
      %v1816 = vpop.f32.mrb[0].mxu0
      %1817 = vmatprep.mubr.f32.mxu0 0.0
      %1818 = vmatmul.mubr.f32.gmra.mrb[0].mxu0 %v1725
      %v1819 = vpop.f32.mrb[0].mxu0
      %v1820 = vadd.f32 0.0, %v1819
      %v1821 = vpop.f32.mrb[0].mxu0
      %1822 = vmatprep.mubr.f32.mxu0 0.0
      %1823 = vmatmul.mubr.f32.gmra.mrb[0].mxu0 %v1727
      %v1824 = vpop.f32.mrb[0].mxu0
      %v1825 = vadd.f32 0.0, %v1824
      %v1826 = vpop.f32.mrb[0].mxu0
      %1827 = vmatprep.mubr.f32.mxu0 0.0
      %1828 = vmatmul.mubr.f32.gmra.mrb[0].mxu0 %v1729
      %v1829 = vpop.f32.mrb[0].mxu0
      %v1830 = vadd.f32 0.0, %v1829
      %v1831 = vpop.f32.mrb[0].mxu0
      %1832 = vmatprep.mubr.f32.mxu0 0.0
      %1833 = vmatmul.mubr.f32.gmra.mrb[0].mxu0 %v1731
      %v1834 = vpop.f32.mrb[0].mxu0
      %v1835 = vadd.f32 0.0, %v1834
      %v1836 = vpop.f32.mrb[0].mxu0
      %1837 = vdwg.mxu0
      %v1838 = vsel %vm1716, %v1681, 0
      %v1840 = vsel %vm1716, %v1682, 0
      %v1842 = vsel %vm1716, %v1683, 0
      %v1844 = vsel %vm1716, %v1684, 0
      %v1846 = vsel %vm1716, %v1685, 0
      %v1848 = vsel %vm1716, %v1686, 0
      %v1850 = vsel %vm1716, %v1687, 0
      %v1852 = vsel %vm1716, %v1688, 0
      %1854 = vmatprep.subr.mxu0 0.0
      %1855 = vmatpush1.msra.mxu0 %v1689
      %1856 = vmatprep.subr.mxu0 0.0
      %1857 = vmatpush1.msra.mxu0 %v1690
      %1858 = vmatprep.subr.mxu0 0.0
      %1859 = vmatpush1.msra.mxu0 0.0
      %1860 = vmatprep.subr.mxu0 0.0
      %1861 = vmatpush1.msra.mxu0 0.0
      %1862 = vmatprep.subr.mxu0 0.0
      %1863 = vmatpush1.msra.mxu0 0.0
      %1864 = vmatprep.subr.mxu0 0.0
      %1865 = vmatpush1.msra.mxu0 0.0
      %1866 = vmatprep.subr.mxu0 0.0
      %1867 = vmatpush1.msra.mxu0 0.0
      %1868 = vmatprep.subr.mxu0 0.0
      %1869 = vmatpush1.msra.mxu0 0.0
      %1870 = vmatprep.subr.mxu0 0.0
      %1871 = vmatpush1.msra.mxu0 0.0
      %1872 = vmatprep.subr.mxu0 0.0
      %1873 = vmatpush1.msra.mxu0 0.0
      %1874 = vmatprep.subr.mxu0 0.0
      %1875 = vmatpush1.msra.mxu0 0.0
      %1876 = vmatprep.subr.mxu0 0.0
      %1877 = vmatpush1.msra.mxu0 0.0
      %1878 = vmatprep.subr.mxu0 0.0
      %1879 = vmatpush1.msra.mxu0 0.0
      %1880 = vmatprep.subr.mxu0 0.0
      %1881 = vmatpush1.msra.mxu0 0.0
      %1882 = vmatprep.subr.mxu0 0.0
      %1883 = vmatpush1.msra.mxu0 0.0
      %1884 = vmatprep.subr.mxu0 0.0
      %1885 = vmatpush1.msra.mxu0 0.0
      %1886 = vmatprep.subr.mxu0 0.0
      %1887 = vmatpush1.msra.mxu0 0.0
      %1888 = vmatprep.subr.mxu0 0.0
      %1889 = vmatpush1.msra.mxu0 0.0
      %1890 = vmatprep.subr.mxu0 0.0
      %1891 = vmatpush1.msra.mxu0 0.0
      %1892 = vmatprep.subr.mxu0 0.0
      %1893 = vmatpush1.msra.mxu0 0.0
      %1894 = vmatprep.subr.mxu0 0.0
      %1895 = vmatpush1.msra.mxu0 0.0
      %1896 = vmatprep.subr.mxu0 0.0
      %1897 = vmatpush1.msra.mxu0 0.0
      %1898 = vmatprep.subr.mxu0 0.0
      %1899 = vmatpush1.msra.mxu0 0.0
      %1900 = vmatprep.subr.mxu0 0.0
      %1901 = vmatpush1.msra.mxu0 0.0
      %1902 = vmatprep.subr.mxu0 0.0
      %1903 = vmatpush1.msra.mxu0 0.0
      %1904 = vmatprep.subr.mxu0 0.0
      %1905 = vmatpush1.msra.mxu0 0.0
      %1906 = vmatprep.subr.mxu0 0.0
      %1907 = vmatpush1.msra.mxu0 0.0
      %1908 = vmatprep.subr.mxu0 0.0
      %1909 = vmatpush1.msra.mxu0 0.0
      %1910 = vmatprep.subr.mxu0 0.0
      %1911 = vmatpush1.msra.mxu0 0.0
      %1912 = vmatprep.subr.mxu0 0.0
      %1913 = vmatpush1.msra.mxu0 0.0
      %1914 = vmatprep.subr.mxu0 0.0
      %1915 = vmatpush1.msra.mxu0 0.0
      %1916 = vmatprep.subr.mxu0 0.0
      %1917 = vmatpush1.msra.mxu0 0.0
      %1918 = vmatprep.mubr.f32.mxu0 0.0
      %1919 = vmatmul.mubr.f32.gmra.mrb[0].mxu0 %v1838
      %v1920 = vpop.f32.mrb[0].mxu0
      %v1921 = vadd.f32 %v1800, %v1920
      %v1922 = vpop.f32.mrb[0].mxu0
      %1923 = vmatprep.mubr.f32.mxu0 0.0
      %1924 = vmatmul.mubr.f32.gmra.mrb[0].mxu0 %v1840
      %v1925 = vpop.f32.mrb[0].mxu0
      %v1926 = vadd.f32 %v1805, %v1925
      %v1927 = vpop.f32.mrb[0].mxu0
      %1928 = vmatprep.mubr.f32.mxu0 0.0
      %1929 = vmatmul.mubr.f32.gmra.mrb[0].mxu0 %v1842
      %v1930 = vpop.f32.mrb[0].mxu0
      %v1931 = vadd.f32 %v1810, %v1930
      %v1932 = vpop.f32.mrb[0].mxu0
      %1933 = vmatprep.mubr.f32.mxu0 0.0
      %1934 = vmatmul.mubr.f32.gmra.mrb[0].mxu0 %v1844
      %v1935 = vpop.f32.mrb[0].mxu0
      %v1936 = vadd.f32 %v1815, %v1935
      %v1937 = vpop.f32.mrb[0].mxu0
      %1938 = vmatprep.mubr.f32.mxu0 0.0
      %1939 = vmatmul.mubr.f32.gmra.mrb[0].mxu0 %v1846
      %v1940 = vpop.f32.mrb[0].mxu0
      %v1941 = vadd.f32 %v1820, %v1940
      %v1942 = vpop.f32.mrb[0].mxu0
      %1943 = vmatprep.mubr.f32.mxu0 0.0
      %1944 = vmatmul.mubr.f32.gmra.mrb[0].mxu0 %v1848
      %v1945 = vpop.f32.mrb[0].mxu0
      %v1946 = vadd.f32 %v1825, %v1945
      %v1947 = vpop.f32.mrb[0].mxu0
      %1948 = vmatprep.mubr.f32.mxu0 0.0
      %1949 = vmatmul.mubr.f32.gmra.mrb[0].mxu0 %v1850
      %v1950 = vpop.f32.mrb[0].mxu0
      %v1951 = vadd.f32 %v1830, %v1950
      %v1952 = vpop.f32.mrb[0].mxu0
      %1953 = vmatprep.mubr.f32.mxu0 0.0
      %1954 = vmatmul.mubr.f32.gmra.mrb[0].mxu0 %v1852
      %v1955 = vpop.f32.mrb[0].mxu0
      %v1956 = vadd.f32 %v1835, %v1955
      %v1957 = vpop.f32.mrb[0].mxu0
      %1958 = vdwg.mxu0
      %v1959 = vld [vmem:[%s4 + $0x20] sm:$0xff]
      %v1960 = vld [vmem:[%s4 + $0x28] sm:$0xff]
      %v1961 = vrot.slane %v1681, 2
      %v1962 = vrot.slane %v1682, 2
      %v1963 = vsel %vm793, %v1961, %v1962
      %v1964 = vrot.slane %v1683, 2
      %v1965 = vsel %vm793, %v1962, %v1964
      %v1966 = vrot.slane %v1684, 2
      %v1967 = vsel %vm793, %v1964, %v1966
      %v1968 = vrot.slane %v1685, 2
      %v1969 = vsel %vm793, %v1966, %v1968
      %v1970 = vrot.slane %v1686, 2
      %v1971 = vsel %vm793, %v1968, %v1970
      %v1972 = vrot.slane %v1687, 2
      %v1973 = vsel %vm793, %v1970, %v1972
      %v1974 = vrot.slane %v1688, 2
      %v1975 = vsel %vm793, %v1972, %v1974
      %v1976 = vsel %vm1716, %v1963, 0
      %v1978 = vsel %vm1716, %v1965, 0
      %v1980 = vsel %vm1716, %v1967, 0
      %v1982 = vsel %vm1716, %v1969, 0
      %v1984 = vsel %vm1716, %v1971, 0
      %v1986 = vsel %vm1716, %v1973, 0
      %v1988 = vsel %vm1716, %v1975, 0
      %v1990 = vsel %vm1716, %v1974, 0
      %1992 = vmatprep.subr.mxu0 0.0
      %1993 = vmatpush1.msra.mxu0 %v1959
      %1994 = vmatprep.subr.mxu0 0.0
      %1995 = vmatpush1.msra.mxu0 %v1960
      %1996 = vmatprep.subr.mxu0 0.0
      %1997 = vmatpush1.msra.mxu0 0.0
      %1998 = vmatprep.subr.mxu0 0.0
      %1999 = vmatpush1.msra.mxu0 0.0
      %2000 = vmatprep.subr.mxu0 0.0
      %2001 = vmatpush1.msra.mxu0 0.0
      %2002 = vmatprep.subr.mxu0 0.0
      %2003 = vmatpush1.msra.mxu0 0.0
      %2004 = vmatprep.subr.mxu0 0.0
      %2005 = vmatpush1.msra.mxu0 0.0
      %2006 = vmatprep.subr.mxu0 0.0
      %2007 = vmatpush1.msra.mxu0 0.0
      %2008 = vmatprep.subr.mxu0 0.0
      %2009 = vmatpush1.msra.mxu0 0.0
      %2010 = vmatprep.subr.mxu0 0.0
      %2011 = vmatpush1.msra.mxu0 0.0
      %2012 = vmatprep.subr.mxu0 0.0
      %2013 = vmatpush1.msra.mxu0 0.0
      %2014 = vmatprep.subr.mxu0 0.0
      %2015 = vmatpush1.msra.mxu0 0.0
      %2016 = vmatprep.subr.mxu0 0.0
      %2017 = vmatpush1.msra.mxu0 0.0
      %2018 = vmatprep.subr.mxu0 0.0
      %2019 = vmatpush1.msra.mxu0 0.0
      %2020 = vmatprep.subr.mxu0 0.0
      %2021 = vmatpush1.msra.mxu0 0.0
      %2022 = vmatprep.subr.mxu0 0.0
      %2023 = vmatpush1.msra.mxu0 0.0
      %2024 = vmatprep.subr.mxu0 0.0
      %2025 = vmatpush1.msra.mxu0 0.0
      %2026 = vmatprep.subr.mxu0 0.0
      %2027 = vmatpush1.msra.mxu0 0.0
      %2028 = vmatprep.subr.mxu0 0.0
      %2029 = vmatpush1.msra.mxu0 0.0
      %2030 = vmatprep.subr.mxu0 0.0
      %2031 = vmatpush1.msra.mxu0 0.0
      %2032 = vmatprep.subr.mxu0 0.0
      %2033 = vmatpush1.msra.mxu0 0.0
      %2034 = vmatprep.subr.mxu0 0.0
      %2035 = vmatpush1.msra.mxu0 0.0
      %2036 = vmatprep.subr.mxu0 0.0
      %2037 = vmatpush1.msra.mxu0 0.0
      %2038 = vmatprep.subr.mxu0 0.0
      %2039 = vmatpush1.msra.mxu0 0.0
      %2040 = vmatprep.subr.mxu0 0.0
      %2041 = vmatpush1.msra.mxu0 0.0
      %2042 = vmatprep.subr.mxu0 0.0
      %2043 = vmatpush1.msra.mxu0 0.0
      %2044 = vmatprep.subr.mxu0 0.0
      %2045 = vmatpush1.msra.mxu0 0.0
      %2046 = vmatprep.subr.mxu0 0.0
      %2047 = vmatpush1.msra.mxu0 0.0
      %2048 = vmatprep.subr.mxu0 0.0
      %2049 = vmatpush1.msra.mxu0 0.0
      %2050 = vmatprep.subr.mxu0 0.0
      %2051 = vmatpush1.msra.mxu0 0.0
      %2052 = vmatprep.subr.mxu0 0.0
      %2053 = vmatpush1.msra.mxu0 0.0
      %2054 = vmatprep.subr.mxu0 0.0
      %2055 = vmatpush1.msra.mxu0 0.0
      %2056 = vmatprep.mubr.f32.mxu0 0.0
      %2057 = vmatmul.mubr.f32.gmra.mrb[0].mxu0 %v1976
      %v2058 = vpop.f32.mrb[0].mxu0
      %v2059 = vadd.f32 0.0, %v2058
      %v2060 = vpop.f32.mrb[0].mxu0
      %2061 = vmatprep.mubr.f32.mxu0 0.0
      %2062 = vmatmul.mubr.f32.gmra.mrb[0].mxu0 %v1978
      %v2063 = vpop.f32.mrb[0].mxu0
      %v2064 = vadd.f32 0.0, %v2063
      %v2065 = vpop.f32.mrb[0].mxu0
      %2066 = vmatprep.mubr.f32.mxu0 0.0
      %2067 = vmatmul.mubr.f32.gmra.mrb[0].mxu0 %v1980
      %v2068 = vpop.f32.mrb[0].mxu0
      %v2069 = vadd.f32 0.0, %v2068
      %v2070 = vpop.f32.mrb[0].mxu0
      %2071 = vmatprep.mubr.f32.mxu0 0.0
      %2072 = vmatmul.mubr.f32.gmra.mrb[0].mxu0 %v1982
      %v2073 = vpop.f32.mrb[0].mxu0
      %v2074 = vadd.f32 0.0, %v2073
      %v2075 = vpop.f32.mrb[0].mxu0
      %2076 = vmatprep.mubr.f32.mxu0 0.0
      %2077 = vmatmul.mubr.f32.gmra.mrb[0].mxu0 %v1984
      %v2078 = vpop.f32.mrb[0].mxu0
      %v2079 = vadd.f32 0.0, %v2078
      %v2080 = vpop.f32.mrb[0].mxu0
      %2081 = vmatprep.mubr.f32.mxu0 0.0
      %2082 = vmatmul.mubr.f32.gmra.mrb[0].mxu0 %v1986
      %v2083 = vpop.f32.mrb[0].mxu0
      %v2084 = vadd.f32 0.0, %v2083
      %v2085 = vpop.f32.mrb[0].mxu0
      %2086 = vmatprep.mubr.f32.mxu0 0.0
      %2087 = vmatmul.mubr.f32.gmra.mrb[0].mxu0 %v1988
      %v2088 = vpop.f32.mrb[0].mxu0
      %v2089 = vadd.f32 0.0, %v2088
      %v2090 = vpop.f32.mrb[0].mxu0
      %2091 = vmatprep.mubr.f32.mxu0 0.0
      %2092 = vmatmul.mubr.f32.gmra.mrb[0].mxu0 %v1990
      %v2093 = vpop.f32.mrb[0].mxu0
      %v2094 = vadd.f32 0.0, %v2093
      %v2095 = vpop.f32.mrb[0].mxu0
      %2096 = vdwg.mxu0
      %v2097 = vadd.f32 %v1921, %v2059
      %v2098 = vadd.f32 %v1926, %v2064
      %v2099 = vadd.f32 %v1931, %v2069
      %v2100 = vadd.f32 %v1936, %v2074
      %v2101 = vadd.f32 %v1941, %v2079
      %v2102 = vadd.f32 %v1946, %v2084
      %v2103 = vadd.f32 %v1951, %v2089
      %v2104 = vadd.f32 %v1956, %v2094
      %v2105 = vld [vmem:[%s4 + $0x30] sm:$0xff]
      %v2106 = vld [vmem:[%s4 + $0x38] sm:$0xff]
      %v2107 = vrot.slane %v1681, 3
      %v2108 = vrot.slane %v1682, 3
      %v2109 = vsel %vm944, %v2107, %v2108
      %v2110 = vrot.slane %v1683, 3
      %v2111 = vsel %vm944, %v2108, %v2110
      %v2112 = vrot.slane %v1684, 3
      %v2113 = vsel %vm944, %v2110, %v2112
      %v2114 = vrot.slane %v1685, 3
      %v2115 = vsel %vm944, %v2112, %v2114
      %v2116 = vrot.slane %v1686, 3
      %v2117 = vsel %vm944, %v2114, %v2116
      %v2118 = vrot.slane %v1687, 3
      %v2119 = vsel %vm944, %v2116, %v2118
      %v2120 = vrot.slane %v1688, 3
      %v2121 = vsel %vm944, %v2118, %v2120
      %v2122 = vsel %vm1716, %v2109, 0
      %v2124 = vsel %vm1716, %v2111, 0
      %v2126 = vsel %vm1716, %v2113, 0
      %v2128 = vsel %vm1716, %v2115, 0
      %v2130 = vsel %vm1716, %v2117, 0
      %v2132 = vsel %vm1716, %v2119, 0
      %v2134 = vsel %vm1716, %v2121, 0
      %v2136 = vsel %vm1716, %v2120, 0
      %2138 = vmatprep.subr.mxu0 0.0
      %2139 = vmatpush1.msra.mxu0 %v2105
      %2140 = vmatprep.subr.mxu0 0.0
      %2141 = vmatpush1.msra.mxu0 %v2106
      %2142 = vmatprep.subr.mxu0 0.0
      %2143 = vmatpush1.msra.mxu0 0.0
      %2144 = vmatprep.subr.mxu0 0.0
      %2145 = vmatpush1.msra.mxu0 0.0
      %2146 = vmatprep.subr.mxu0 0.0
      %2147 = vmatpush1.msra.mxu0 0.0
      %2148 = vmatprep.subr.mxu0 0.0
      %2149 = vmatpush1.msra.mxu0 0.0
      %2150 = vmatprep.subr.mxu0 0.0
      %2151 = vmatpush1.msra.mxu0 0.0
      %2152 = vmatprep.subr.mxu0 0.0
      %2153 = vmatpush1.msra.mxu0 0.0
      %2154 = vmatprep.subr.mxu0 0.0
      %2155 = vmatpush1.msra.mxu0 0.0
      %2156 = vmatprep.subr.mxu0 0.0
      %2157 = vmatpush1.msra.mxu0 0.0
      %2158 = vmatprep.subr.mxu0 0.0
      %2159 = vmatpush1.msra.mxu0 0.0
      %2160 = vmatprep.subr.mxu0 0.0
      %2161 = vmatpush1.msra.mxu0 0.0
      %2162 = vmatprep.subr.mxu0 0.0
      %2163 = vmatpush1.msra.mxu0 0.0
      %2164 = vmatprep.subr.mxu0 0.0
      %2165 = vmatpush1.msra.mxu0 0.0
      %2166 = vmatprep.subr.mxu0 0.0
      %2167 = vmatpush1.msra.mxu0 0.0
      %2168 = vmatprep.subr.mxu0 0.0
      %2169 = vmatpush1.msra.mxu0 0.0
      %2170 = vmatprep.subr.mxu0 0.0
      %2171 = vmatpush1.msra.mxu0 0.0
      %2172 = vmatprep.subr.mxu0 0.0
      %2173 = vmatpush1.msra.mxu0 0.0
      %2174 = vmatprep.subr.mxu0 0.0
      %2175 = vmatpush1.msra.mxu0 0.0
      %2176 = vmatprep.subr.mxu0 0.0
      %2177 = vmatpush1.msra.mxu0 0.0
      %2178 = vmatprep.subr.mxu0 0.0
      %2179 = vmatpush1.msra.mxu0 0.0
      %2180 = vmatprep.subr.mxu0 0.0
      %2181 = vmatpush1.msra.mxu0 0.0
      %2182 = vmatprep.subr.mxu0 0.0
      %2183 = vmatpush1.msra.mxu0 0.0
      %2184 = vmatprep.subr.mxu0 0.0
      %2185 = vmatpush1.msra.mxu0 0.0
      %2186 = vmatprep.subr.mxu0 0.0
      %2187 = vmatpush1.msra.mxu0 0.0
      %2188 = vmatprep.subr.mxu0 0.0
      %2189 = vmatpush1.msra.mxu0 0.0
      %2190 = vmatprep.subr.mxu0 0.0
      %2191 = vmatpush1.msra.mxu0 0.0
      %2192 = vmatprep.subr.mxu0 0.0
      %2193 = vmatpush1.msra.mxu0 0.0
      %2194 = vmatprep.subr.mxu0 0.0
      %2195 = vmatpush1.msra.mxu0 0.0
      %2196 = vmatprep.subr.mxu0 0.0
      %2197 = vmatpush1.msra.mxu0 0.0
      %2198 = vmatprep.subr.mxu0 0.0
      %2199 = vmatpush1.msra.mxu0 0.0
      %2200 = vmatprep.subr.mxu0 0.0
      %2201 = vmatpush1.msra.mxu0 0.0
      %2202 = vmatprep.mubr.f32.mxu0 0.0
      %2203 = vmatmul.mubr.f32.gmra.mrb[0].mxu0 %v2122
      %v2204 = vpop.f32.mrb[0].mxu0
      %v2205 = vadd.f32 0.0, %v2204
      %v2206 = vpop.f32.mrb[0].mxu0
      %2207 = vmatprep.mubr.f32.mxu0 0.0
      %2208 = vmatmul.mubr.f32.gmra.mrb[0].mxu0 %v2124
      %v2209 = vpop.f32.mrb[0].mxu0
      %v2210 = vadd.f32 0.0, %v2209
      %v2211 = vpop.f32.mrb[0].mxu0
      %2212 = vmatprep.mubr.f32.mxu0 0.0
      %2213 = vmatmul.mubr.f32.gmra.mrb[0].mxu0 %v2126
      %v2214 = vpop.f32.mrb[0].mxu0
      %v2215 = vadd.f32 0.0, %v2214
      %v2216 = vpop.f32.mrb[0].mxu0
      %2217 = vmatprep.mubr.f32.mxu0 0.0
      %2218 = vmatmul.mubr.f32.gmra.mrb[0].mxu0 %v2128
      %v2219 = vpop.f32.mrb[0].mxu0
      %v2220 = vadd.f32 0.0, %v2219
      %v2221 = vpop.f32.mrb[0].mxu0
      %2222 = vmatprep.mubr.f32.mxu0 0.0
      %2223 = vmatmul.mubr.f32.gmra.mrb[0].mxu0 %v2130
      %v2224 = vpop.f32.mrb[0].mxu0
      %v2225 = vadd.f32 0.0, %v2224
      %v2226 = vpop.f32.mrb[0].mxu0
      %2227 = vmatprep.mubr.f32.mxu0 0.0
      %2228 = vmatmul.mubr.f32.gmra.mrb[0].mxu0 %v2132
      %v2229 = vpop.f32.mrb[0].mxu0
      %v2230 = vadd.f32 0.0, %v2229
      %v2231 = vpop.f32.mrb[0].mxu0
      %2232 = vmatprep.mubr.f32.mxu0 0.0
      %2233 = vmatmul.mubr.f32.gmra.mrb[0].mxu0 %v2134
      %v2234 = vpop.f32.mrb[0].mxu0
      %v2235 = vadd.f32 0.0, %v2234
      %v2236 = vpop.f32.mrb[0].mxu0
      %2237 = vmatprep.mubr.f32.mxu0 0.0
      %2238 = vmatmul.mubr.f32.gmra.mrb[0].mxu0 %v2136
      %v2239 = vpop.f32.mrb[0].mxu0
      %v2240 = vadd.f32 0.0, %v2239
      %v2241 = vpop.f32.mrb[0].mxu0
      %2242 = vdwg.mxu0
      %v2243 = vadd.f32 %v2097, %v2205
      %v2244 = vadd.f32 %v2098, %v2210
      %v2245 = vadd.f32 %v2099, %v2215
      %v2246 = vadd.f32 %v2100, %v2220
      %v2247 = vadd.f32 %v2101, %v2225
      %v2248 = vadd.f32 %v2102, %v2230
      %v2249 = vadd.f32 %v2103, %v2235
      %v2250 = vadd.f32 %v2104, %v2240
      %v2251 = vld [vmem:[%s4 + $0x40] sm:$0xff]
      %v2252 = vld [vmem:[%s4 + $0x48] sm:$0xff]
      %v2253 = vrot.slane %v1681, 4
      %v2254 = vrot.slane %v1682, 4
      %v2255 = vsel %vm1095, %v2253, %v2254
      %v2256 = vrot.slane %v1683, 4
      %v2257 = vsel %vm1095, %v2254, %v2256
      %v2258 = vrot.slane %v1684, 4
      %v2259 = vsel %vm1095, %v2256, %v2258
      %v2260 = vrot.slane %v1685, 4
      %v2261 = vsel %vm1095, %v2258, %v2260
      %v2262 = vrot.slane %v1686, 4
      %v2263 = vsel %vm1095, %v2260, %v2262
      %v2264 = vrot.slane %v1687, 4
      %v2265 = vsel %vm1095, %v2262, %v2264
      %v2266 = vrot.slane %v1688, 4
      %v2267 = vsel %vm1095, %v2264, %v2266
      %v2268 = vsel %vm1716, %v2255, 0
      %v2270 = vsel %vm1716, %v2257, 0
      %v2272 = vsel %vm1716, %v2259, 0
      %v2274 = vsel %vm1716, %v2261, 0
      %v2276 = vsel %vm1716, %v2263, 0
      %v2278 = vsel %vm1716, %v2265, 0
      %v2280 = vsel %vm1716, %v2267, 0
      %v2282 = vsel %vm1716, %v2266, 0
      %2284 = vmatprep.subr.mxu0 0.0
      %2285 = vmatpush1.msra.mxu0 %v2251
      %2286 = vmatprep.subr.mxu0 0.0
      %2287 = vmatpush1.msra.mxu0 %v2252
      %2288 = vmatprep.subr.mxu0 0.0
      %2289 = vmatpush1.msra.mxu0 0.0
      %2290 = vmatprep.subr.mxu0 0.0
      %2291 = vmatpush1.msra.mxu0 0.0
      %2292 = vmatprep.subr.mxu0 0.0
      %2293 = vmatpush1.msra.mxu0 0.0
      %2294 = vmatprep.subr.mxu0 0.0
      %2295 = vmatpush1.msra.mxu0 0.0
      %2296 = vmatprep.subr.mxu0 0.0
      %2297 = vmatpush1.msra.mxu0 0.0
      %2298 = vmatprep.subr.mxu0 0.0
      %2299 = vmatpush1.msra.mxu0 0.0
      %2300 = vmatprep.subr.mxu0 0.0
      %2301 = vmatpush1.msra.mxu0 0.0
      %2302 = vmatprep.subr.mxu0 0.0
      %2303 = vmatpush1.msra.mxu0 0.0
      %2304 = vmatprep.subr.mxu0 0.0
      %2305 = vmatpush1.msra.mxu0 0.0
      %2306 = vmatprep.subr.mxu0 0.0
      %2307 = vmatpush1.msra.mxu0 0.0
      %2308 = vmatprep.subr.mxu0 0.0
      %2309 = vmatpush1.msra.mxu0 0.0
      %2310 = vmatprep.subr.mxu0 0.0
      %2311 = vmatpush1.msra.mxu0 0.0
      %2312 = vmatprep.subr.mxu0 0.0
      %2313 = vmatpush1.msra.mxu0 0.0
      %2314 = vmatprep.subr.mxu0 0.0
      %2315 = vmatpush1.msra.mxu0 0.0
      %2316 = vmatprep.subr.mxu0 0.0
      %2317 = vmatpush1.msra.mxu0 0.0
      %2318 = vmatprep.subr.mxu0 0.0
      %2319 = vmatpush1.msra.mxu0 0.0
      %2320 = vmatprep.subr.mxu0 0.0
      %2321 = vmatpush1.msra.mxu0 0.0
      %2322 = vmatprep.subr.mxu0 0.0
      %2323 = vmatpush1.msra.mxu0 0.0
      %2324 = vmatprep.subr.mxu0 0.0
      %2325 = vmatpush1.msra.mxu0 0.0
      %2326 = vmatprep.subr.mxu0 0.0
      %2327 = vmatpush1.msra.mxu0 0.0
      %2328 = vmatprep.subr.mxu0 0.0
      %2329 = vmatpush1.msra.mxu0 0.0
      %2330 = vmatprep.subr.mxu0 0.0
      %2331 = vmatpush1.msra.mxu0 0.0
      %2332 = vmatprep.subr.mxu0 0.0
      %2333 = vmatpush1.msra.mxu0 0.0
      %2334 = vmatprep.subr.mxu0 0.0
      %2335 = vmatpush1.msra.mxu0 0.0
      %2336 = vmatprep.subr.mxu0 0.0
      %2337 = vmatpush1.msra.mxu0 0.0
      %2338 = vmatprep.subr.mxu0 0.0
      %2339 = vmatpush1.msra.mxu0 0.0
      %2340 = vmatprep.subr.mxu0 0.0
      %2341 = vmatpush1.msra.mxu0 0.0
      %2342 = vmatprep.subr.mxu0 0.0
      %2343 = vmatpush1.msra.mxu0 0.0
      %2344 = vmatprep.subr.mxu0 0.0
      %2345 = vmatpush1.msra.mxu0 0.0
      %2346 = vmatprep.subr.mxu0 0.0
      %2347 = vmatpush1.msra.mxu0 0.0
      %2348 = vmatprep.mubr.f32.mxu0 0.0
      %2349 = vmatmul.mubr.f32.gmra.mrb[0].mxu0 %v2268
      %v2350 = vpop.f32.mrb[0].mxu0
      %v2351 = vadd.f32 0.0, %v2350
      %v2352 = vpop.f32.mrb[0].mxu0
      %2353 = vmatprep.mubr.f32.mxu0 0.0
      %2354 = vmatmul.mubr.f32.gmra.mrb[0].mxu0 %v2270
      %v2355 = vpop.f32.mrb[0].mxu0
      %v2356 = vadd.f32 0.0, %v2355
      %v2357 = vpop.f32.mrb[0].mxu0
      %2358 = vmatprep.mubr.f32.mxu0 0.0
      %2359 = vmatmul.mubr.f32.gmra.mrb[0].mxu0 %v2272
      %v2360 = vpop.f32.mrb[0].mxu0
      %v2361 = vadd.f32 0.0, %v2360
      %v2362 = vpop.f32.mrb[0].mxu0
      %2363 = vmatprep.mubr.f32.mxu0 0.0
      %2364 = vmatmul.mubr.f32.gmra.mrb[0].mxu0 %v2274
      %v2365 = vpop.f32.mrb[0].mxu0
      %v2366 = vadd.f32 0.0, %v2365
      %v2367 = vpop.f32.mrb[0].mxu0
      %2368 = vmatprep.mubr.f32.mxu0 0.0
      %2369 = vmatmul.mubr.f32.gmra.mrb[0].mxu0 %v2276
      %v2370 = vpop.f32.mrb[0].mxu0
      %v2371 = vadd.f32 0.0, %v2370
      %v2372 = vpop.f32.mrb[0].mxu0
      %2373 = vmatprep.mubr.f32.mxu0 0.0
      %2374 = vmatmul.mubr.f32.gmra.mrb[0].mxu0 %v2278
      %v2375 = vpop.f32.mrb[0].mxu0
      %v2376 = vadd.f32 0.0, %v2375
      %v2377 = vpop.f32.mrb[0].mxu0
      %2378 = vmatprep.mubr.f32.mxu0 0.0
      %2379 = vmatmul.mubr.f32.gmra.mrb[0].mxu0 %v2280
      %v2380 = vpop.f32.mrb[0].mxu0
      %v2381 = vadd.f32 0.0, %v2380
      %v2382 = vpop.f32.mrb[0].mxu0
      %2383 = vmatprep.mubr.f32.mxu0 0.0
      %2384 = vmatmul.mubr.f32.gmra.mrb[0].mxu0 %v2282
      %v2385 = vpop.f32.mrb[0].mxu0
      %v2386 = vadd.f32 0.0, %v2385
      %v2387 = vpop.f32.mrb[0].mxu0
      %2388 = vdwg.mxu0
      %v2389 = vadd.f32 %v2243, %v2351
      %v2390 = vadd.f32 %v2244, %v2356
      %v2391 = vadd.f32 %v2245, %v2361
      %v2392 = vadd.f32 %v2246, %v2366
      %v2393 = vadd.f32 %v2247, %v2371
      %v2394 = vadd.f32 %v2248, %v2376
      %v2395 = vadd.f32 %v2249, %v2381
      %v2396 = vadd.f32 %v2250, %v2386
      %v2397 = vadd.f32 %v2389, %v495
      %v2398 = vadd.f32 %v2390, %v495
      %v2399 = vadd.f32 %v2391, %v495
      %v2400 = vadd.f32 %v2392, %v495
      %v2401 = vadd.f32 %v2393, %v495
      %v2402 = vadd.f32 %v2394, %v495
      %v2403 = vadd.f32 %v2395, %v495
      %v2404 = vadd.f32 %v2396, %v495
      %v2405 = vmax.f32 %v2397, 0.0
      %v2406 = vmax.f32 %v2398, 0.0
      %v2407 = vmax.f32 %v2399, 0.0
      %v2408 = vmax.f32 %v2400, 0.0
      %v2409 = vmax.f32 %v2401, 0.0
      %v2410 = vmax.f32 %v2402, 0.0
      %v2411 = vmax.f32 %v2403, 0.0
      %v2412 = vmax.f32 %v2404, 0.0
      %vm2413 = vcmask 523264
      %2414 = vst.msk [vmem:[#allocation3] sm:$0xff] %vm2413, %v2405
      %2415 = vst.msk [vmem:[#allocation3 + $0x8] sm:$0xff] %vm2413, %v2406
      %2416 = vst.msk [vmem:[#allocation3 + $0x10] sm:$0xff] %vm2413, %v2407
      %2417 = vst.msk [vmem:[#allocation3 + $0x18] sm:$0xff] %vm2413, %v2408
      %2418 = vst.msk [vmem:[#allocation3 + $0x20] sm:$0xff] %vm2413, %v2409
      %2419 = vst.msk [vmem:[#allocation3 + $0x28] sm:$0xff] %vm2413, %v2410
      %2420 = vst.msk [vmem:[#allocation3 + $0x30] sm:$0xff] %vm2413, %v2411
      %vm2421 = vcmask 519168
      %2422 = vst.msk [vmem:[#allocation3 + $0x38] sm:$0xf] %vm2421, %v2412
      %v2423 = vld [vmem:[#allocation3] ss:$2 sm:$0xff]
      %s2424 = scalar_lea.vmem [#allocation3], 16
      %v2425 = vld [vmem:[%s2424] ss:$2 sm:$0xff]
      %s2426 = scalar_lea.vmem [#allocation3], 32
      %v2427 = vld [vmem:[%s2426] ss:$2 sm:$0xff]
      %s2428 = scalar_lea.vmem [#allocation3], 48
      %v2429 = vld [vmem:[%s2428] ss:$2 sm:$0x3f]
      %s2430 = scalar_lea.vmem [#allocation3], 1
      %v2431 = vld [vmem:[%s2430] ss:$2 sm:$0xff]
      %s2432 = scalar_lea.vmem [#allocation3], 17
      %v2433 = vld [vmem:[%s2432] ss:$2 sm:$0xff]
      %s2434 = scalar_lea.vmem [#allocation3], 33
      %v2435 = vld [vmem:[%s2434] ss:$2 sm:$0xff]
      %s2436 = scalar_lea.vmem [#allocation3], 49
      %v2437 = vld [vmem:[%s2436] ss:$2 sm:$0x3f]
      %v2438 = vmax.f32 %v2423, %v2431
      %v2439 = vmax.f32 %v2425, %v2433
      %v2440 = vmax.f32 %v2427, %v2435
      %v2441 = vmax.f32 %v2429, %v2437
      %v2442 = vld [vmem:[%s5] sm:$0xff]
      %v2443 = vld [vmem:[%s5 + $0x8] sm:$0xff]
      %v2444 = vld [vmem:[%s5 + $0x10] sm:$0xff]
      %v2445 = vld [vmem:[%s5 + $0x18] sm:$0xff]
      %v2446 = vld [vmem:[%s5 + $0x20] sm:$0xff]
      %v2447 = vld [vmem:[%s5 + $0x28] sm:$0xff]
      %v2448 = vld [vmem:[%s5 + $0x30] sm:$0xff]
      %v2449 = vld [vmem:[%s5 + $0x38] sm:$0xff]
      %v2450 = vld [vmem:[%s5 + $0x40] sm:$0xff]
      %v2451 = vld [vmem:[%s5 + $0x48] sm:$0xff]
      %v2452 = vld [vmem:[%s5 + $0x50] sm:$0xff]
      %v2453 = vld [vmem:[%s5 + $0x58] sm:$0xff]
      %v2454 = vld [vmem:[%s5 + $0x60] sm:$0xff]
      %v2455 = vld [vmem:[%s5 + $0x68] sm:$0xff]
      %v2456 = vld [vmem:[%s5 + $0x70] sm:$0xff]
      %v2457 = vld [vmem:[%s5 + $0x78] sm:$0xff]
      %v2462 = vrot.slane %v2438, 1
      %v2463 = vrot.slane %v2439, 1
      %v2464 = vsel %vm528, %v2462, %v2463
      %v2465 = vrot.slane %v2440, 1
      %v2466 = vsel %vm528, %v2463, %v2465
      %v2467 = vrot.slane %v2441, 1
      %v2468 = vsel %vm528, %v2465, %v2467
      %v2469 = vsel %vm2413, %v2464, 0
      %v2471 = vsel %vm2413, %v2466, 0
      %v2473 = vsel %vm2413, %v2468, 0
      %v2475 = vsel %vm2413, %v2467, 0
      %2477 = vmatprep.subr.mxu0 0.0
      %2478 = vmatpush1.msra.mxu0 %v2450
      %2479 = vmatprep.subr.mxu0 0.0
      %2480 = vmatpush1.msra.mxu0 %v2451
      %2481 = vmatprep.subr.mxu0 0.0
      %2482 = vmatpush1.msra.mxu0 %v2452
      %2483 = vmatprep.subr.mxu0 0.0
      %2484 = vmatpush1.msra.mxu0 %v2453
      %2485 = vmatprep.subr.mxu0 0.0
      %2486 = vmatpush1.msra.mxu0 %v2454
      %2487 = vmatprep.subr.mxu0 0.0
      %2488 = vmatpush1.msra.mxu0 %v2455
      %2489 = vmatprep.subr.mxu0 0.0
      %2490 = vmatpush1.msra.mxu0 %v2456
      %2491 = vmatprep.subr.mxu0 0.0
      %2492 = vmatpush1.msra.mxu0 %v2457
      %2493 = vmatprep.subr.mxu0 0.0
      %2494 = vmatpush1.msra.mxu0 0.0
      %2495 = vmatprep.subr.mxu0 0.0
      %2496 = vmatpush1.msra.mxu0 0.0
      %2497 = vmatprep.subr.mxu0 0.0
      %2498 = vmatpush1.msra.mxu0 0.0
      %2499 = vmatprep.subr.mxu0 0.0
      %2500 = vmatpush1.msra.mxu0 0.0
      %2501 = vmatprep.subr.mxu0 0.0
      %2502 = vmatpush1.msra.mxu0 0.0
      %2503 = vmatprep.subr.mxu0 0.0
      %2504 = vmatpush1.msra.mxu0 0.0
      %2505 = vmatprep.subr.mxu0 0.0
      %2506 = vmatpush1.msra.mxu0 0.0
      %2507 = vmatprep.subr.mxu0 0.0
      %2508 = vmatpush1.msra.mxu0 0.0
      %2509 = vmatprep.subr.mxu0 0.0
      %2510 = vmatpush1.msra.mxu0 0.0
      %2511 = vmatprep.subr.mxu0 0.0
      %2512 = vmatpush1.msra.mxu0 0.0
      %2513 = vmatprep.subr.mxu0 0.0
      %2514 = vmatpush1.msra.mxu0 0.0
      %2515 = vmatprep.subr.mxu0 0.0
      %2516 = vmatpush1.msra.mxu0 0.0
      %2517 = vmatprep.subr.mxu0 0.0
      %2518 = vmatpush1.msra.mxu0 0.0
      %2519 = vmatprep.subr.mxu0 0.0
      %2520 = vmatpush1.msra.mxu0 0.0
      %2521 = vmatprep.subr.mxu0 0.0
      %2522 = vmatpush1.msra.mxu0 0.0
      %2523 = vmatprep.subr.mxu0 0.0
      %2524 = vmatpush1.msra.mxu0 0.0
      %2525 = vmatprep.subr.mxu0 0.0
      %2526 = vmatpush1.msra.mxu0 0.0
      %2527 = vmatprep.subr.mxu0 0.0
      %2528 = vmatpush1.msra.mxu0 0.0
      %2529 = vmatprep.subr.mxu0 0.0
      %2530 = vmatpush1.msra.mxu0 0.0
      %2531 = vmatprep.subr.mxu0 0.0
      %2532 = vmatpush1.msra.mxu0 0.0
      %2533 = vmatprep.subr.mxu0 0.0
      %2534 = vmatpush1.msra.mxu0 0.0
      %2535 = vmatprep.subr.mxu0 0.0
      %2536 = vmatpush1.msra.mxu0 0.0
      %2537 = vmatprep.subr.mxu0 0.0
      %2538 = vmatpush1.msra.mxu0 0.0
      %2539 = vmatprep.subr.mxu0 0.0
      %2540 = vmatpush1.msra.mxu0 0.0
      %2541 = vmatprep.mubr.f32.mxu0 0.0
      %2542 = vmatmul.mubr.f32.gmra.mrb[0].mxu0 %v2469
      %v2543 = vpop.f32.mrb[0].mxu0
      %v2544 = vadd.f32 0.0, %v2543
      %v2545 = vpop.f32.mrb[0].mxu0
      %2546 = vmatprep.mubr.f32.mxu0 0.0
      %2547 = vmatmul.mubr.f32.gmra.mrb[0].mxu0 %v2471
      %v2548 = vpop.f32.mrb[0].mxu0
      %v2549 = vadd.f32 0.0, %v2548
      %v2550 = vpop.f32.mrb[0].mxu0
      %2551 = vmatprep.mubr.f32.mxu0 0.0
      %2552 = vmatmul.mubr.f32.gmra.mrb[0].mxu0 %v2473
      %v2553 = vpop.f32.mrb[0].mxu0
      %v2554 = vadd.f32 0.0, %v2553
      %v2555 = vpop.f32.mrb[0].mxu0
      %2556 = vmatprep.mubr.f32.mxu0 0.0
      %2557 = vmatmul.mubr.f32.gmra.mrb[0].mxu0 %v2475
      %v2558 = vpop.f32.mrb[0].mxu0
      %v2559 = vadd.f32 0.0, %v2558
      %v2560 = vpop.f32.mrb[0].mxu0
      %2561 = vdwg.mxu0
      %v2562 = vsel %vm2413, %v2438, 0
      %v2564 = vsel %vm2413, %v2439, 0
      %v2566 = vsel %vm2413, %v2440, 0
      %v2568 = vsel %vm2413, %v2441, 0
      %2570 = vmatprep.subr.mxu0 0.0
      %2571 = vmatpush1.msra.mxu0 %v2442
      %2572 = vmatprep.subr.mxu0 0.0
      %2573 = vmatpush1.msra.mxu0 %v2443
      %2574 = vmatprep.subr.mxu0 0.0
      %2575 = vmatpush1.msra.mxu0 %v2444
      %2576 = vmatprep.subr.mxu0 0.0
      %2577 = vmatpush1.msra.mxu0 %v2445
      %2578 = vmatprep.subr.mxu0 0.0
      %2579 = vmatpush1.msra.mxu0 %v2446
      %2580 = vmatprep.subr.mxu0 0.0
      %2581 = vmatpush1.msra.mxu0 %v2447
      %2582 = vmatprep.subr.mxu0 0.0
      %2583 = vmatpush1.msra.mxu0 %v2448
      %2584 = vmatprep.subr.mxu0 0.0
      %2585 = vmatpush1.msra.mxu0 %v2449
      %2586 = vmatprep.subr.mxu0 0.0
      %2587 = vmatpush1.msra.mxu0 0.0
      %2588 = vmatprep.subr.mxu0 0.0
      %2589 = vmatpush1.msra.mxu0 0.0
      %2590 = vmatprep.subr.mxu0 0.0
      %2591 = vmatpush1.msra.mxu0 0.0
      %2592 = vmatprep.subr.mxu0 0.0
      %2593 = vmatpush1.msra.mxu0 0.0
      %2594 = vmatprep.subr.mxu0 0.0
      %2595 = vmatpush1.msra.mxu0 0.0
      %2596 = vmatprep.subr.mxu0 0.0
      %2597 = vmatpush1.msra.mxu0 0.0
      %2598 = vmatprep.subr.mxu0 0.0
      %2599 = vmatpush1.msra.mxu0 0.0
      %2600 = vmatprep.subr.mxu0 0.0
      %2601 = vmatpush1.msra.mxu0 0.0
      %2602 = vmatprep.subr.mxu0 0.0
      %2603 = vmatpush1.msra.mxu0 0.0
      %2604 = vmatprep.subr.mxu0 0.0
      %2605 = vmatpush1.msra.mxu0 0.0
      %2606 = vmatprep.subr.mxu0 0.0
      %2607 = vmatpush1.msra.mxu0 0.0
      %2608 = vmatprep.subr.mxu0 0.0
      %2609 = vmatpush1.msra.mxu0 0.0
      %2610 = vmatprep.subr.mxu0 0.0
      %2611 = vmatpush1.msra.mxu0 0.0
      %2612 = vmatprep.subr.mxu0 0.0
      %2613 = vmatpush1.msra.mxu0 0.0
      %2614 = vmatprep.subr.mxu0 0.0
      %2615 = vmatpush1.msra.mxu0 0.0
      %2616 = vmatprep.subr.mxu0 0.0
      %2617 = vmatpush1.msra.mxu0 0.0
      %2618 = vmatprep.subr.mxu0 0.0
      %2619 = vmatpush1.msra.mxu0 0.0
      %2620 = vmatprep.subr.mxu0 0.0
      %2621 = vmatpush1.msra.mxu0 0.0
      %2622 = vmatprep.subr.mxu0 0.0
      %2623 = vmatpush1.msra.mxu0 0.0
      %2624 = vmatprep.subr.mxu0 0.0
      %2625 = vmatpush1.msra.mxu0 0.0
      %2626 = vmatprep.subr.mxu0 0.0
      %2627 = vmatpush1.msra.mxu0 0.0
      %2628 = vmatprep.subr.mxu0 0.0
      %2629 = vmatpush1.msra.mxu0 0.0
      %2630 = vmatprep.subr.mxu0 0.0
      %2631 = vmatpush1.msra.mxu0 0.0
      %2632 = vmatprep.subr.mxu0 0.0
      %2633 = vmatpush1.msra.mxu0 0.0
      %2634 = vmatprep.mubr.f32.mxu0 0.0
      %2635 = vmatmul.mubr.f32.gmra.mrb[0].mxu0 %v2562
      %v2636 = vpop.f32.mrb[0].mxu0
      %v2637 = vadd.f32 %v2544, %v2636
      %v2638 = vpop.f32.mrb[0].mxu0
      %2639 = vmatprep.mubr.f32.mxu0 0.0
      %2640 = vmatmul.mubr.f32.gmra.mrb[0].mxu0 %v2564
      %v2641 = vpop.f32.mrb[0].mxu0
      %v2642 = vadd.f32 %v2549, %v2641
      %v2643 = vpop.f32.mrb[0].mxu0
      %2644 = vmatprep.mubr.f32.mxu0 0.0
      %2645 = vmatmul.mubr.f32.gmra.mrb[0].mxu0 %v2566
      %v2646 = vpop.f32.mrb[0].mxu0
      %v2647 = vadd.f32 %v2554, %v2646
      %v2648 = vpop.f32.mrb[0].mxu0
      %2649 = vmatprep.mubr.f32.mxu0 0.0
      %2650 = vmatmul.mubr.f32.gmra.mrb[0].mxu0 %v2568
      %v2651 = vpop.f32.mrb[0].mxu0
      %v2652 = vadd.f32 %v2559, %v2651
      %v2653 = vpop.f32.mrb[0].mxu0
      %2654 = vdwg.mxu0
      %v2655 = vld [vmem:[%s5 + $0x80] sm:$0xff]
      %v2656 = vld [vmem:[%s5 + $0x88] sm:$0xff]
      %v2657 = vld [vmem:[%s5 + $0x90] sm:$0xff]
      %v2658 = vld [vmem:[%s5 + $0x98] sm:$0xff]
      %v2659 = vld [vmem:[%s5 + $0xa0] sm:$0xff]
      %v2660 = vld [vmem:[%s5 + $0xa8] sm:$0xff]
      %v2661 = vld [vmem:[%s5 + $0xb0] sm:$0xff]
      %v2662 = vld [vmem:[%s5 + $0xb8] sm:$0xff]
      %v2663 = vrot.slane %v2438, 2
      %v2664 = vrot.slane %v2439, 2
      %v2665 = vsel %vm793, %v2663, %v2664
      %v2666 = vrot.slane %v2440, 2
      %v2667 = vsel %vm793, %v2664, %v2666
      %v2668 = vrot.slane %v2441, 2
      %v2669 = vsel %vm793, %v2666, %v2668
      %v2670 = vsel %vm2413, %v2665, 0
      %v2672 = vsel %vm2413, %v2667, 0
      %v2674 = vsel %vm2413, %v2669, 0
      %v2676 = vsel %vm2413, %v2668, 0
      %2678 = vmatprep.subr.mxu0 0.0
      %2679 = vmatpush1.msra.mxu0 %v2655
      %2680 = vmatprep.subr.mxu0 0.0
      %2681 = vmatpush1.msra.mxu0 %v2656
      %2682 = vmatprep.subr.mxu0 0.0
      %2683 = vmatpush1.msra.mxu0 %v2657
      %2684 = vmatprep.subr.mxu0 0.0
      %2685 = vmatpush1.msra.mxu0 %v2658
      %2686 = vmatprep.subr.mxu0 0.0
      %2687 = vmatpush1.msra.mxu0 %v2659
      %2688 = vmatprep.subr.mxu0 0.0
      %2689 = vmatpush1.msra.mxu0 %v2660
      %2690 = vmatprep.subr.mxu0 0.0
      %2691 = vmatpush1.msra.mxu0 %v2661
      %2692 = vmatprep.subr.mxu0 0.0
      %2693 = vmatpush1.msra.mxu0 %v2662
      %2694 = vmatprep.subr.mxu0 0.0
      %2695 = vmatpush1.msra.mxu0 0.0
      %2696 = vmatprep.subr.mxu0 0.0
      %2697 = vmatpush1.msra.mxu0 0.0
      %2698 = vmatprep.subr.mxu0 0.0
      %2699 = vmatpush1.msra.mxu0 0.0
      %2700 = vmatprep.subr.mxu0 0.0
      %2701 = vmatpush1.msra.mxu0 0.0
      %2702 = vmatprep.subr.mxu0 0.0
      %2703 = vmatpush1.msra.mxu0 0.0
      %2704 = vmatprep.subr.mxu0 0.0
      %2705 = vmatpush1.msra.mxu0 0.0
      %2706 = vmatprep.subr.mxu0 0.0
      %2707 = vmatpush1.msra.mxu0 0.0
      %2708 = vmatprep.subr.mxu0 0.0
      %2709 = vmatpush1.msra.mxu0 0.0
      %2710 = vmatprep.subr.mxu0 0.0
      %2711 = vmatpush1.msra.mxu0 0.0
      %2712 = vmatprep.subr.mxu0 0.0
      %2713 = vmatpush1.msra.mxu0 0.0
      %2714 = vmatprep.subr.mxu0 0.0
      %2715 = vmatpush1.msra.mxu0 0.0
      %2716 = vmatprep.subr.mxu0 0.0
      %2717 = vmatpush1.msra.mxu0 0.0
      %2718 = vmatprep.subr.mxu0 0.0
      %2719 = vmatpush1.msra.mxu0 0.0
      %2720 = vmatprep.subr.mxu0 0.0
      %2721 = vmatpush1.msra.mxu0 0.0
      %2722 = vmatprep.subr.mxu0 0.0
      %2723 = vmatpush1.msra.mxu0 0.0
      %2724 = vmatprep.subr.mxu0 0.0
      %2725 = vmatpush1.msra.mxu0 0.0
      %2726 = vmatprep.subr.mxu0 0.0
      %2727 = vmatpush1.msra.mxu0 0.0
      %2728 = vmatprep.subr.mxu0 0.0
      %2729 = vmatpush1.msra.mxu0 0.0
      %2730 = vmatprep.subr.mxu0 0.0
      %2731 = vmatpush1.msra.mxu0 0.0
      %2732 = vmatprep.subr.mxu0 0.0
      %2733 = vmatpush1.msra.mxu0 0.0
      %2734 = vmatprep.subr.mxu0 0.0
      %2735 = vmatpush1.msra.mxu0 0.0
      %2736 = vmatprep.subr.mxu0 0.0
      %2737 = vmatpush1.msra.mxu0 0.0
      %2738 = vmatprep.subr.mxu0 0.0
      %2739 = vmatpush1.msra.mxu0 0.0
      %2740 = vmatprep.subr.mxu0 0.0
      %2741 = vmatpush1.msra.mxu0 0.0
      %2742 = vmatprep.mubr.f32.mxu0 0.0
      %2743 = vmatmul.mubr.f32.gmra.mrb[0].mxu0 %v2670
      %v2744 = vpop.f32.mrb[0].mxu0
      %v2745 = vadd.f32 0.0, %v2744
      %v2746 = vpop.f32.mrb[0].mxu0
      %2747 = vmatprep.mubr.f32.mxu0 0.0
      %2748 = vmatmul.mubr.f32.gmra.mrb[0].mxu0 %v2672
      %v2749 = vpop.f32.mrb[0].mxu0
      %v2750 = vadd.f32 0.0, %v2749
      %v2751 = vpop.f32.mrb[0].mxu0
      %2752 = vmatprep.mubr.f32.mxu0 0.0
      %2753 = vmatmul.mubr.f32.gmra.mrb[0].mxu0 %v2674
      %v2754 = vpop.f32.mrb[0].mxu0
      %v2755 = vadd.f32 0.0, %v2754
      %v2756 = vpop.f32.mrb[0].mxu0
      %2757 = vmatprep.mubr.f32.mxu0 0.0
      %2758 = vmatmul.mubr.f32.gmra.mrb[0].mxu0 %v2676
      %v2759 = vpop.f32.mrb[0].mxu0
      %v2760 = vadd.f32 0.0, %v2759
      %v2761 = vpop.f32.mrb[0].mxu0
      %2762 = vdwg.mxu0
      %v2763 = vadd.f32 %v2637, %v2745
      %v2764 = vadd.f32 %v2642, %v2750
      %v2765 = vadd.f32 %v2647, %v2755
      %v2766 = vadd.f32 %v2652, %v2760
      %v2767 = vld [vmem:[%s5 + $0xc0] sm:$0xff]
      %v2768 = vld [vmem:[%s5 + $0xc8] sm:$0xff]
      %v2769 = vld [vmem:[%s5 + $0xd0] sm:$0xff]
      %v2770 = vld [vmem:[%s5 + $0xd8] sm:$0xff]
      %v2771 = vld [vmem:[%s5 + $0xe0] sm:$0xff]
      %v2772 = vld [vmem:[%s5 + $0xe8] sm:$0xff]
      %v2773 = vld [vmem:[%s5 + $0xf0] sm:$0xff]
      %v2774 = vld [vmem:[%s5 + $0xf8] sm:$0xff]
      %v2775 = vrot.slane %v2438, 3
      %v2776 = vrot.slane %v2439, 3
      %v2777 = vsel %vm944, %v2775, %v2776
      %v2778 = vrot.slane %v2440, 3
      %v2779 = vsel %vm944, %v2776, %v2778
      %v2780 = vrot.slane %v2441, 3
      %v2781 = vsel %vm944, %v2778, %v2780
      %v2782 = vsel %vm2413, %v2777, 0
      %v2784 = vsel %vm2413, %v2779, 0
      %v2786 = vsel %vm2413, %v2781, 0
      %v2788 = vsel %vm2413, %v2780, 0
      %2790 = vmatprep.subr.mxu0 0.0
      %2791 = vmatpush1.msra.mxu0 %v2767
      %2792 = vmatprep.subr.mxu0 0.0
      %2793 = vmatpush1.msra.mxu0 %v2768
      %2794 = vmatprep.subr.mxu0 0.0
      %2795 = vmatpush1.msra.mxu0 %v2769
      %2796 = vmatprep.subr.mxu0 0.0
      %2797 = vmatpush1.msra.mxu0 %v2770
      %2798 = vmatprep.subr.mxu0 0.0
      %2799 = vmatpush1.msra.mxu0 %v2771
      %2800 = vmatprep.subr.mxu0 0.0
      %2801 = vmatpush1.msra.mxu0 %v2772
      %2802 = vmatprep.subr.mxu0 0.0
      %2803 = vmatpush1.msra.mxu0 %v2773
      %2804 = vmatprep.subr.mxu0 0.0
      %2805 = vmatpush1.msra.mxu0 %v2774
      %2806 = vmatprep.subr.mxu0 0.0
      %2807 = vmatpush1.msra.mxu0 0.0
      %2808 = vmatprep.subr.mxu0 0.0
      %2809 = vmatpush1.msra.mxu0 0.0
      %2810 = vmatprep.subr.mxu0 0.0
      %2811 = vmatpush1.msra.mxu0 0.0
      %2812 = vmatprep.subr.mxu0 0.0
      %2813 = vmatpush1.msra.mxu0 0.0
      %2814 = vmatprep.subr.mxu0 0.0
      %2815 = vmatpush1.msra.mxu0 0.0
      %2816 = vmatprep.subr.mxu0 0.0
      %2817 = vmatpush1.msra.mxu0 0.0
      %2818 = vmatprep.subr.mxu0 0.0
      %2819 = vmatpush1.msra.mxu0 0.0
      %2820 = vmatprep.subr.mxu0 0.0
      %2821 = vmatpush1.msra.mxu0 0.0
      %2822 = vmatprep.subr.mxu0 0.0
      %2823 = vmatpush1.msra.mxu0 0.0
      %2824 = vmatprep.subr.mxu0 0.0
      %2825 = vmatpush1.msra.mxu0 0.0
      %2826 = vmatprep.subr.mxu0 0.0
      %2827 = vmatpush1.msra.mxu0 0.0
      %2828 = vmatprep.subr.mxu0 0.0
      %2829 = vmatpush1.msra.mxu0 0.0
      %2830 = vmatprep.subr.mxu0 0.0
      %2831 = vmatpush1.msra.mxu0 0.0
      %2832 = vmatprep.subr.mxu0 0.0
      %2833 = vmatpush1.msra.mxu0 0.0
      %2834 = vmatprep.subr.mxu0 0.0
      %2835 = vmatpush1.msra.mxu0 0.0
      %2836 = vmatprep.subr.mxu0 0.0
      %2837 = vmatpush1.msra.mxu0 0.0
      %2838 = vmatprep.subr.mxu0 0.0
      %2839 = vmatpush1.msra.mxu0 0.0
      %2840 = vmatprep.subr.mxu0 0.0
      %2841 = vmatpush1.msra.mxu0 0.0
      %2842 = vmatprep.subr.mxu0 0.0
      %2843 = vmatpush1.msra.mxu0 0.0
      %2844 = vmatprep.subr.mxu0 0.0
      %2845 = vmatpush1.msra.mxu0 0.0
      %2846 = vmatprep.subr.mxu0 0.0
      %2847 = vmatpush1.msra.mxu0 0.0
      %2848 = vmatprep.subr.mxu0 0.0
      %2849 = vmatpush1.msra.mxu0 0.0
      %2850 = vmatprep.subr.mxu0 0.0
      %2851 = vmatpush1.msra.mxu0 0.0
      %2852 = vmatprep.subr.mxu0 0.0
      %2853 = vmatpush1.msra.mxu0 0.0
      %2854 = vmatprep.mubr.f32.mxu0 0.0
      %2855 = vmatmul.mubr.f32.gmra.mrb[0].mxu0 %v2782
      %v2856 = vpop.f32.mrb[0].mxu0
      %v2857 = vadd.f32 0.0, %v2856
      %v2858 = vpop.f32.mrb[0].mxu0
      %2859 = vmatprep.mubr.f32.mxu0 0.0
      %2860 = vmatmul.mubr.f32.gmra.mrb[0].mxu0 %v2784
      %v2861 = vpop.f32.mrb[0].mxu0
      %v2862 = vadd.f32 0.0, %v2861
      %v2863 = vpop.f32.mrb[0].mxu0
      %2864 = vmatprep.mubr.f32.mxu0 0.0
      %2865 = vmatmul.mubr.f32.gmra.mrb[0].mxu0 %v2786
      %v2866 = vpop.f32.mrb[0].mxu0
      %v2867 = vadd.f32 0.0, %v2866
      %v2868 = vpop.f32.mrb[0].mxu0
      %2869 = vmatprep.mubr.f32.mxu0 0.0
      %2870 = vmatmul.mubr.f32.gmra.mrb[0].mxu0 %v2788
      %v2871 = vpop.f32.mrb[0].mxu0
      %v2872 = vadd.f32 0.0, %v2871
      %v2873 = vpop.f32.mrb[0].mxu0
      %2874 = vdwg.mxu0
      %v2875 = vadd.f32 %v2763, %v2857
      %v2876 = vadd.f32 %v2764, %v2862
      %v2877 = vadd.f32 %v2765, %v2867
      %v2878 = vadd.f32 %v2766, %v2872
      %v2879 = vld [vmem:[%s5 + $0x100] sm:$0xff]
      %v2880 = vld [vmem:[%s5 + $0x108] sm:$0xff]
      %v2881 = vld [vmem:[%s5 + $0x110] sm:$0xff]
      %v2882 = vld [vmem:[%s5 + $0x118] sm:$0xff]
      %v2883 = vld [vmem:[%s5 + $0x120] sm:$0xff]
      %v2884 = vld [vmem:[%s5 + $0x128] sm:$0xff]
      %v2885 = vld [vmem:[%s5 + $0x130] sm:$0xff]
      %v2886 = vld [vmem:[%s5 + $0x138] sm:$0xff]
      %v2887 = vrot.slane %v2438, 4
      %v2888 = vrot.slane %v2439, 4
      %v2889 = vsel %vm1095, %v2887, %v2888
      %v2890 = vrot.slane %v2440, 4
      %v2891 = vsel %vm1095, %v2888, %v2890
      %v2892 = vrot.slane %v2441, 4
      %v2893 = vsel %vm1095, %v2890, %v2892
      %v2894 = vsel %vm2413, %v2889, 0
      %v2896 = vsel %vm2413, %v2891, 0
      %v2898 = vsel %vm2413, %v2893, 0
      %v2900 = vsel %vm2413, %v2892, 0
      %2902 = vmatprep.subr.mxu0 0.0
      %2903 = vmatpush1.msra.mxu0 %v2879
      %2904 = vmatprep.subr.mxu0 0.0
      %2905 = vmatpush1.msra.mxu0 %v2880
      %2906 = vmatprep.subr.mxu0 0.0
      %2907 = vmatpush1.msra.mxu0 %v2881
      %2908 = vmatprep.subr.mxu0 0.0
      %2909 = vmatpush1.msra.mxu0 %v2882
      %2910 = vmatprep.subr.mxu0 0.0
      %2911 = vmatpush1.msra.mxu0 %v2883
      %2912 = vmatprep.subr.mxu0 0.0
      %2913 = vmatpush1.msra.mxu0 %v2884
      %2914 = vmatprep.subr.mxu0 0.0
      %2915 = vmatpush1.msra.mxu0 %v2885
      %2916 = vmatprep.subr.mxu0 0.0
      %2917 = vmatpush1.msra.mxu0 %v2886
      %2918 = vmatprep.subr.mxu0 0.0
      %2919 = vmatpush1.msra.mxu0 0.0
      %2920 = vmatprep.subr.mxu0 0.0
      %2921 = vmatpush1.msra.mxu0 0.0
      %2922 = vmatprep.subr.mxu0 0.0
      %2923 = vmatpush1.msra.mxu0 0.0
      %2924 = vmatprep.subr.mxu0 0.0
      %2925 = vmatpush1.msra.mxu0 0.0
      %2926 = vmatprep.subr.mxu0 0.0
      %2927 = vmatpush1.msra.mxu0 0.0
      %2928 = vmatprep.subr.mxu0 0.0
      %2929 = vmatpush1.msra.mxu0 0.0
      %2930 = vmatprep.subr.mxu0 0.0
      %2931 = vmatpush1.msra.mxu0 0.0
      %2932 = vmatprep.subr.mxu0 0.0
      %2933 = vmatpush1.msra.mxu0 0.0
      %2934 = vmatprep.subr.mxu0 0.0
      %2935 = vmatpush1.msra.mxu0 0.0
      %2936 = vmatprep.subr.mxu0 0.0
      %2937 = vmatpush1.msra.mxu0 0.0
      %2938 = vmatprep.subr.mxu0 0.0
      %2939 = vmatpush1.msra.mxu0 0.0
      %2940 = vmatprep.subr.mxu0 0.0
      %2941 = vmatpush1.msra.mxu0 0.0
      %2942 = vmatprep.subr.mxu0 0.0
      %2943 = vmatpush1.msra.mxu0 0.0
      %2944 = vmatprep.subr.mxu0 0.0
      %2945 = vmatpush1.msra.mxu0 0.0
      %2946 = vmatprep.subr.mxu0 0.0
      %2947 = vmatpush1.msra.mxu0 0.0
      %2948 = vmatprep.subr.mxu0 0.0
      %2949 = vmatpush1.msra.mxu0 0.0
      %2950 = vmatprep.subr.mxu0 0.0
      %2951 = vmatpush1.msra.mxu0 0.0
      %2952 = vmatprep.subr.mxu0 0.0
      %2953 = vmatpush1.msra.mxu0 0.0
      %2954 = vmatprep.subr.mxu0 0.0
      %2955 = vmatpush1.msra.mxu0 0.0
      %2956 = vmatprep.subr.mxu0 0.0
      %2957 = vmatpush1.msra.mxu0 0.0
      %2958 = vmatprep.subr.mxu0 0.0
      %2959 = vmatpush1.msra.mxu0 0.0
      %2960 = vmatprep.subr.mxu0 0.0
      %2961 = vmatpush1.msra.mxu0 0.0
      %2962 = vmatprep.subr.mxu0 0.0
      %2963 = vmatpush1.msra.mxu0 0.0
      %2964 = vmatprep.subr.mxu0 0.0
      %2965 = vmatpush1.msra.mxu0 0.0
      %2966 = vmatprep.mubr.f32.mxu0 0.0
      %2967 = vmatmul.mubr.f32.gmra.mrb[0].mxu0 %v2894
      %v2968 = vpop.f32.mrb[0].mxu0
      %v2969 = vadd.f32 0.0, %v2968
      %v2970 = vpop.f32.mrb[0].mxu0
      %2971 = vmatprep.mubr.f32.mxu0 0.0
      %2972 = vmatmul.mubr.f32.gmra.mrb[0].mxu0 %v2896
      %v2973 = vpop.f32.mrb[0].mxu0
      %v2974 = vadd.f32 0.0, %v2973
      %v2975 = vpop.f32.mrb[0].mxu0
      %2976 = vmatprep.mubr.f32.mxu0 0.0
      %2977 = vmatmul.mubr.f32.gmra.mrb[0].mxu0 %v2898
      %v2978 = vpop.f32.mrb[0].mxu0
      %v2979 = vadd.f32 0.0, %v2978
      %v2980 = vpop.f32.mrb[0].mxu0
      %2981 = vmatprep.mubr.f32.mxu0 0.0
      %2982 = vmatmul.mubr.f32.gmra.mrb[0].mxu0 %v2900
      %v2983 = vpop.f32.mrb[0].mxu0
      %v2984 = vadd.f32 0.0, %v2983
      %v2985 = vpop.f32.mrb[0].mxu0
      %2986 = vdwg.mxu0
      %v2987 = vadd.f32 %v2875, %v2969
      %v2988 = vadd.f32 %v2876, %v2974
      %v2989 = vadd.f32 %v2877, %v2979
      %v2990 = vadd.f32 %v2878, %v2984
      %v2991 = vadd.f32 %v2987, %v496
      %v2992 = vadd.f32 %v2988, %v496
      %v2993 = vadd.f32 %v2989, %v496
      %v2994 = vadd.f32 %v2990, %v496
      %v2995 = vmax.f32 %v2991, 0.0
      %v2996 = vmax.f32 %v2992, 0.0
      %v2997 = vmax.f32 %v2993, 0.0
      %v2998 = vmax.f32 %v2994, 0.0
      %2999 = vst.msk [vmem:[#allocation3] sm:$0xff] %vm2413, %v2995
      %3000 = vst.msk [vmem:[#allocation3 + $0x8] sm:$0xff] %vm2413, %v2996
      %3001 = vst.msk [vmem:[#allocation3 + $0x10] sm:$0xff] %vm2413, %v2997
      %vm3002 = vcmask 517120
      %3003 = vst.msk [vmem:[#allocation3 + $0x18] sm:$0x3] %vm3002, %v2998
      %v3004 = vld [vmem:[#allocation3] ss:$2 sm:$0xff]
      %v3005 = vld [vmem:[%s2424] ss:$2 sm:$0x1f]
      %v3006 = vld [vmem:[%s2430] ss:$2 sm:$0xff]
      %v3007 = vld [vmem:[%s2432] ss:$2 sm:$0x1f]
      %v3008 = vmax.f32 %v3004, %v3006
      %v3009 = vmax.f32 %v3005, %v3007
      %3010 = vst [vmem:[%s470] sm:$0xff] %v1679
      %3011 = vst [vmem:[%s470 + $0x8] sm:$0x1f] %v1680
      %3012 = vst.msk [vmem:[%s477] sm:$0xff] %vm2413, %v3008
      %vm3013 = vcmask 520192
      %3014 = vst.msk [vmem:[%s477 + $0x8] sm:$0x1f] %vm3013, %v3009
      %v3015 = vld [vmem:[%s6] sm:$0xff]
      %v3016 = vld [vmem:[%s6 + $0x8] sm:$0xff]
      %v3017 = vld [vmem:[%s6 + $0x10] sm:$0xff]
      %v3018 = vld [vmem:[%s6 + $0x18] sm:$0xff]
      %v3019 = vld [vmem:[%s6 + $0x20] sm:$0xff]
      %v3020 = vld [vmem:[%s6 + $0x28] sm:$0xff]
      %v3021 = vld [vmem:[%s6 + $0x30] sm:$0xff]
      %v3022 = vld [vmem:[%s6 + $0x38] sm:$0xff]
      %v3023 = vld [vmem:[%s6 + $0x40] sm:$0xff]
      %v3024 = vld [vmem:[%s6 + $0x48] sm:$0xff]
      %v3025 = vld [vmem:[%s6 + $0x50] sm:$0xff]
      %v3026 = vld [vmem:[%s6 + $0x58] sm:$0xff]
      %v3027 = vld [vmem:[%s6 + $0x60] sm:$0xff]
      %v3028 = vld [vmem:[%s6 + $0x68] sm:$0xff]
      %v3029 = vld [vmem:[%s6 + $0x70] sm:$0xff]
      %v3030 = vld [vmem:[%s6 + $0x78] sm:$0xff]
      %v3031 = vld [vmem:[%s6 + $0x80] sm:$0xff]
      %v3032 = vld [vmem:[%s6 + $0x88] sm:$0xff]
      %v3033 = vld [vmem:[%s6 + $0x90] sm:$0xff]
      %v3034 = vld [vmem:[%s6 + $0x98] sm:$0xff]
      %v3035 = vld [vmem:[%s6 + $0xa0] sm:$0xff]
      %v3036 = vld [vmem:[%s6 + $0xa8] sm:$0xff]
      %v3037 = vld [vmem:[%s6 + $0xb0] sm:$0xff]
      %v3038 = vld [vmem:[%s6 + $0xb8] sm:$0xff]
      %v3039 = vld [vmem:[%s6 + $0xc0] sm:$0xff]
      %v3040 = vld [vmem:[%s6 + $0xc8] sm:$0xff]
      %v3041 = vld [vmem:[%s6 + $0xd0] sm:$0xff]
      %v3042 = vld [vmem:[%s6 + $0xd8] sm:$0xff]
      %v3043 = vld [vmem:[%s6 + $0xe0] sm:$0xff]
      %v3044 = vld [vmem:[%s6 + $0xe8] sm:$0xff]
      %v3045 = vld [vmem:[%s6 + $0xf0] sm:$0xff]
      %v3046 = vld [vmem:[%s6 + $0xf8] sm:$0xff]
      %v3047 = vld [vmem:[%s6 + $0x100] sm:$0xff]
      %v3048 = vld [vmem:[%s6 + $0x108] sm:$0xff]
      %v3049 = vld [vmem:[%s6 + $0x110] sm:$0xff]
      %v3050 = vld [vmem:[%s6 + $0x118] sm:$0xff]
      %v3051 = vld [vmem:[%s6 + $0x120] sm:$0xff]
      %v3052 = vld [vmem:[%s6 + $0x128] sm:$0xff]
      %v3053 = vld [vmem:[%s6 + $0x130] sm:$0xff]
      %v3054 = vld [vmem:[%s6 + $0x138] sm:$0xff]
      %v3055 = vld [vmem:[%s6 + $0x140] sm:$0xff]
      %v3056 = vld [vmem:[%s6 + $0x148] sm:$0xff]
      %v3057 = vld [vmem:[%s6 + $0x150] sm:$0xff]
      %v3058 = vld [vmem:[%s6 + $0x158] sm:$0xff]
      %v3059 = vld [vmem:[%s6 + $0x160] sm:$0xff]
      %v3060 = vld [vmem:[%s6 + $0x168] sm:$0xff]
      %v3061 = vld [vmem:[%s6 + $0x170] sm:$0xff]
      %v3062 = vld [vmem:[%s6 + $0x178] sm:$0xff]
      %v3064 = vsel %vm2413, %v3008, 0
      %v3067 = vsel %vm2413, %v3009, 0
      %3069 = vmatprep.subr.mxu0 %v3048
      %3070 = vmatpush1.msra.mxu0 %v3047
      %3071 = vmatprep.subr.mxu0 %v3050
      %3072 = vmatpush1.msra.mxu0 %v3049
      %3073 = vmatprep.subr.mxu0 %v3052
      %3074 = vmatpush1.msra.mxu0 %v3051
      %3075 = vmatprep.subr.mxu0 %v3054
      %3076 = vmatpush1.msra.mxu0 %v3053
      %3077 = vmatprep.subr.mxu0 %v3056
      %3078 = vmatpush1.msra.mxu0 %v3055
      %3079 = vmatprep.subr.mxu0 %v3058
      %3080 = vmatpush1.msra.mxu0 %v3057
      %3081 = vmatprep.subr.mxu0 %v3060
      %3082 = vmatpush1.msra.mxu0 %v3059
      %3083 = vmatprep.subr.mxu0 %v3062
      %3084 = vmatpush1.msra.mxu0 %v3061
      %3085 = vmatprep.subr.mxu0 0.0
      %3086 = vmatpush1.msra.mxu0 0.0
      %3087 = vmatprep.subr.mxu0 0.0
      %3088 = vmatpush1.msra.mxu0 0.0
      %3089 = vmatprep.subr.mxu0 0.0
      %3090 = vmatpush1.msra.mxu0 0.0
      %3091 = vmatprep.subr.mxu0 0.0
      %3092 = vmatpush1.msra.mxu0 0.0
      %3093 = vmatprep.subr.mxu0 0.0
      %3094 = vmatpush1.msra.mxu0 0.0
      %3095 = vmatprep.subr.mxu0 0.0
      %3096 = vmatpush1.msra.mxu0 0.0
      %3097 = vmatprep.subr.mxu0 0.0
      %3098 = vmatpush1.msra.mxu0 0.0
      %3099 = vmatprep.subr.mxu0 0.0
      %3100 = vmatpush1.msra.mxu0 0.0
      %3101 = vmatprep.subr.mxu0 0.0
      %3102 = vmatpush1.msra.mxu0 0.0
      %3103 = vmatprep.subr.mxu0 0.0
      %3104 = vmatpush1.msra.mxu0 0.0
      %3105 = vmatprep.subr.mxu0 0.0
      %3106 = vmatpush1.msra.mxu0 0.0
      %3107 = vmatprep.subr.mxu0 0.0
      %3108 = vmatpush1.msra.mxu0 0.0
      %3109 = vmatprep.subr.mxu0 0.0
      %3110 = vmatpush1.msra.mxu0 0.0
      %3111 = vmatprep.subr.mxu0 0.0
      %3112 = vmatpush1.msra.mxu0 0.0
      %3113 = vmatprep.subr.mxu0 0.0
      %3114 = vmatpush1.msra.mxu0 0.0
      %3115 = vmatprep.subr.mxu0 0.0
      %3116 = vmatpush1.msra.mxu0 0.0
      %3117 = vmatprep.subr.mxu0 0.0
      %3118 = vmatpush1.msra.mxu0 0.0
      %3119 = vmatprep.subr.mxu0 0.0
      %3120 = vmatpush1.msra.mxu0 0.0
      %3121 = vmatprep.subr.mxu0 0.0
      %3122 = vmatpush1.msra.mxu0 0.0
      %3123 = vmatprep.subr.mxu0 0.0
      %3124 = vmatpush1.msra.mxu0 0.0
      %3125 = vmatprep.subr.mxu0 0.0
      %3126 = vmatpush1.msra.mxu0 0.0
      %3127 = vmatprep.subr.mxu0 0.0
      %3128 = vmatpush1.msra.mxu0 0.0
      %3129 = vmatprep.subr.mxu0 0.0
      %3130 = vmatpush1.msra.mxu0 0.0
      %3131 = vmatprep.subr.mxu0 0.0
      %3132 = vmatpush1.msra.mxu0 0.0
      %3133 = vmatprep.mubr.f32.mxu0 0.0
      %3134 = vmatmul.mubr.f32.gmra.mrb[0].mxu0 %v3064
      %v3135 = vpop.f32.mrb[0].mxu0
      %v3136 = vadd.f32 0.0, %v3135
      %v3137 = vpop.f32.mrb[0].mxu0
      %v3138 = vadd.f32 0.0, %v3137
      %3139 = vmatprep.mubr.f32.mxu0 0.0
      %3140 = vmatmul.mubr.f32.gmra.mrb[0].mxu0 %v3067
      %v3141 = vpop.f32.mrb[0].mxu0
      %v3142 = vadd.f32 0.0, %v3141
      %v3143 = vpop.f32.mrb[0].mxu0
      %v3144 = vadd.f32 0.0, %v3143
      %3145 = vdwg.mxu0
      %3146 = vmatprep.subr.mxu0 %v3016
      %3147 = vmatpush1.msra.mxu0 %v3015
      %3148 = vmatprep.subr.mxu0 %v3018
      %3149 = vmatpush1.msra.mxu0 %v3017
      %3150 = vmatprep.subr.mxu0 %v3020
      %3151 = vmatpush1.msra.mxu0 %v3019
      %3152 = vmatprep.subr.mxu0 %v3022
      %3153 = vmatpush1.msra.mxu0 %v3021
      %3154 = vmatprep.subr.mxu0 %v3024
      %3155 = vmatpush1.msra.mxu0 %v3023
      %3156 = vmatprep.subr.mxu0 %v3026
      %3157 = vmatpush1.msra.mxu0 %v3025
      %3158 = vmatprep.subr.mxu0 %v3028
      %3159 = vmatpush1.msra.mxu0 %v3027
      %3160 = vmatprep.subr.mxu0 %v3030
      %3161 = vmatpush1.msra.mxu0 %v3029
      %3162 = vmatprep.subr.mxu0 %v3032
      %3163 = vmatpush1.msra.mxu0 %v3031
      %3164 = vmatprep.subr.mxu0 %v3034
      %3165 = vmatpush1.msra.mxu0 %v3033
      %3166 = vmatprep.subr.mxu0 %v3036
      %3167 = vmatpush1.msra.mxu0 %v3035
      %3168 = vmatprep.subr.mxu0 %v3038
      %3169 = vmatpush1.msra.mxu0 %v3037
      %3170 = vmatprep.subr.mxu0 %v3040
      %3171 = vmatpush1.msra.mxu0 %v3039
      %3172 = vmatprep.subr.mxu0 %v3042
      %3173 = vmatpush1.msra.mxu0 %v3041
      %3174 = vmatprep.subr.mxu0 %v3044
      %3175 = vmatpush1.msra.mxu0 %v3043
      %3176 = vmatprep.subr.mxu0 %v3046
      %3177 = vmatpush1.msra.mxu0 %v3045
      %3178 = vmatprep.subr.mxu0 0.0
      %3179 = vmatpush1.msra.mxu0 0.0
      %3180 = vmatprep.subr.mxu0 0.0
      %3181 = vmatpush1.msra.mxu0 0.0
      %3182 = vmatprep.subr.mxu0 0.0
      %3183 = vmatpush1.msra.mxu0 0.0
      %3184 = vmatprep.subr.mxu0 0.0
      %3185 = vmatpush1.msra.mxu0 0.0
      %3186 = vmatprep.subr.mxu0 0.0
      %3187 = vmatpush1.msra.mxu0 0.0
      %3188 = vmatprep.subr.mxu0 0.0
      %3189 = vmatpush1.msra.mxu0 0.0
      %3190 = vmatprep.subr.mxu0 0.0
      %3191 = vmatpush1.msra.mxu0 0.0
      %3192 = vmatprep.subr.mxu0 0.0
      %3193 = vmatpush1.msra.mxu0 0.0
      %3194 = vmatprep.subr.mxu0 0.0
      %3195 = vmatpush1.msra.mxu0 0.0
      %3196 = vmatprep.subr.mxu0 0.0
      %3197 = vmatpush1.msra.mxu0 0.0
      %3198 = vmatprep.subr.mxu0 0.0
      %3199 = vmatpush1.msra.mxu0 0.0
      %3200 = vmatprep.subr.mxu0 0.0
      %3201 = vmatpush1.msra.mxu0 0.0
      %3202 = vmatprep.subr.mxu0 0.0
      %3203 = vmatpush1.msra.mxu0 0.0
      %3204 = vmatprep.subr.mxu0 0.0
      %3205 = vmatpush1.msra.mxu0 0.0
      %3206 = vmatprep.subr.mxu0 0.0
      %3207 = vmatpush1.msra.mxu0 0.0
      %3208 = vmatprep.subr.mxu0 0.0
      %3209 = vmatpush1.msra.mxu0 0.0
      %3210 = vmatprep.mubr.f32.mxu0 0.0
      %3211 = vmatmul.mubr.f32.gmra.mrb[0].mxu0 %v1679
      %v3212 = vpop.f32.mrb[0].mxu0
      %v3213 = vadd.f32 %v3136, %v3212
      %v3214 = vpop.f32.mrb[0].mxu0
      %v3215 = vadd.f32 %v3138, %v3214
      %3216 = vmatprep.mubr.f32.mxu0 0.0
      %3217 = vmatmul.mubr.f32.gmra.mrb[0].mxu0 %v1680
      %v3218 = vpop.f32.mrb[0].mxu0
      %v3219 = vadd.f32 %v3142, %v3218
      %v3220 = vpop.f32.mrb[0].mxu0
      %v3221 = vadd.f32 %v3144, %v3220
      %3222 = vdwg.mxu0
      %v3224 = vlaneseq
      %v3225 = vshrl.u32 %v3224, 7
      %v3226 = vsub.s32 0, %v3225
      %v3227 = vrot.slane %v498, %v3226
      %v3228 = vlaneseq
      %v3229 = vshrl.u32 %v3228, 7
      %v3230 = vsub.s32 1, %v3229
      %v3231 = vrot.slane %v498, %v3230
      %v3234 = vadd.f32 %v3213, %v3227
      %v3235 = vadd.f32 %v3215, %v3231
      %v3236 = vadd.f32 %v3219, %v3227
      %v3237 = vadd.f32 %v3221, %v3231
      %v3238 = vmax.f32 %v3234, 0.0
      %v3239 = vmax.f32 %v3235, 0.0
      %v3240 = vmax.f32 %v3236, 0.0
      %v3241 = vmax.f32 %v3237, 0.0
      %3242 = vst [vmem:[%s484] sm:$0xff] %v3238
      %3243 = vst.msk [vmem:[%s484 + $0x8] sm:$0xff] %vm2413, %v3239
      %3244 = vst [vmem:[%s484 + $0x10] sm:$0x1f] %v3240
      %3245 = vst.msk [vmem:[%s484 + $0x18] sm:$0x1f] %vm3013, %v3241
      %v3246 = vld [vmem:[%s7] sm:$0xff]
      %v3247 = vld [vmem:[%s7 + $0x8] sm:$0xff]
      %v3248 = vld [vmem:[%s7 + $0x10] sm:$0xff]
      %v3249 = vld [vmem:[%s7 + $0x18] sm:$0xff]
      %v3250 = vld [vmem:[%s7 + $0x20] sm:$0xff]
      %v3251 = vld [vmem:[%s7 + $0x28] sm:$0xff]
      %v3252 = vld [vmem:[%s7 + $0x30] sm:$0xff]
      %v3253 = vld [vmem:[%s7 + $0x38] sm:$0xff]
      %v3254 = vld [vmem:[%s7 + $0x40] sm:$0xff]
      %v3255 = vld [vmem:[%s7 + $0x48] sm:$0xff]
      %v3256 = vld [vmem:[%s7 + $0x50] sm:$0xff]
      %v3257 = vld [vmem:[%s7 + $0x58] sm:$0xff]
      %v3258 = vld [vmem:[%s7 + $0x60] sm:$0xff]
      %v3259 = vld [vmem:[%s7 + $0x68] sm:$0xff]
      %v3260 = vld [vmem:[%s7 + $0x70] sm:$0xff]
      %v3261 = vld [vmem:[%s7 + $0x78] sm:$0xff]
      %v3262 = vld [vmem:[%s7 + $0x80] sm:$0xff]
      %v3263 = vld [vmem:[%s7 + $0x88] sm:$0xff]
      %v3264 = vld [vmem:[%s7 + $0x90] sm:$0xff]
      %v3265 = vld [vmem:[%s7 + $0x98] sm:$0xff]
      %v3266 = vld [vmem:[%s7 + $0xa0] sm:$0xff]
      %v3267 = vld [vmem:[%s7 + $0xa8] sm:$0xff]
      %v3268 = vld [vmem:[%s7 + $0xb0] sm:$0xff]
      %v3269 = vld [vmem:[%s7 + $0xb8] sm:$0xff]
      %v3271 = vsel %vm2413, %v3239, 0
      %v3274 = vsel %vm2413, %v3241, 0
      %3276 = vmatprep.subr.mxu0 0.0
      %3277 = vmatpush1.msra.mxu0 %v3246
      %3278 = vmatprep.subr.mxu0 0.0
      %3279 = vmatpush1.msra.mxu0 %v3247
      %3280 = vmatprep.subr.mxu0 0.0
      %3281 = vmatpush1.msra.mxu0 %v3248
      %3282 = vmatprep.subr.mxu0 0.0
      %3283 = vmatpush1.msra.mxu0 %v3249
      %3284 = vmatprep.subr.mxu0 0.0
      %3285 = vmatpush1.msra.mxu0 %v3250
      %3286 = vmatprep.subr.mxu0 0.0
      %3287 = vmatpush1.msra.mxu0 %v3251
      %3288 = vmatprep.subr.mxu0 0.0
      %3289 = vmatpush1.msra.mxu0 %v3252
      %3290 = vmatprep.subr.mxu0 0.0
      %3291 = vmatpush1.msra.mxu0 %v3253
      %3292 = vmatprep.subr.mxu0 0.0
      %3293 = vmatpush1.msra.mxu0 %v3254
      %3294 = vmatprep.subr.mxu0 0.0
      %3295 = vmatpush1.msra.mxu0 %v3255
      %3296 = vmatprep.subr.mxu0 0.0
      %3297 = vmatpush1.msra.mxu0 %v3256
      %3298 = vmatprep.subr.mxu0 0.0
      %3299 = vmatpush1.msra.mxu0 %v3257
      %3300 = vmatprep.subr.mxu0 0.0
      %3301 = vmatpush1.msra.mxu0 %v3258
      %3302 = vmatprep.subr.mxu0 0.0
      %3303 = vmatpush1.msra.mxu0 %v3259
      %3304 = vmatprep.subr.mxu0 0.0
      %3305 = vmatpush1.msra.mxu0 %v3260
      %3306 = vmatprep.subr.mxu0 0.0
      %3307 = vmatpush1.msra.mxu0 %v3261
      %3308 = vmatprep.subr.mxu0 0.0
      %3309 = vmatpush1.msra.mxu0 %v3262
      %3310 = vmatprep.subr.mxu0 0.0
      %3311 = vmatpush1.msra.mxu0 %v3263
      %3312 = vmatprep.subr.mxu0 0.0
      %3313 = vmatpush1.msra.mxu0 %v3264
      %3314 = vmatprep.subr.mxu0 0.0
      %3315 = vmatpush1.msra.mxu0 %v3265
      %3316 = vmatprep.subr.mxu0 0.0
      %3317 = vmatpush1.msra.mxu0 %v3266
      %3318 = vmatprep.subr.mxu0 0.0
      %3319 = vmatpush1.msra.mxu0 %v3267
      %3320 = vmatprep.subr.mxu0 0.0
      %3321 = vmatpush1.msra.mxu0 %v3268
      %3322 = vmatprep.subr.mxu0 0.0
      %3323 = vmatpush1.msra.mxu0 %v3269
      %3324 = vmatprep.subr.mxu0 0.0
      %3325 = vmatpush1.msra.mxu0 0.0
      %3326 = vmatprep.subr.mxu0 0.0
      %3327 = vmatpush1.msra.mxu0 0.0
      %3328 = vmatprep.subr.mxu0 0.0
      %3329 = vmatpush1.msra.mxu0 0.0
      %3330 = vmatprep.subr.mxu0 0.0
      %3331 = vmatpush1.msra.mxu0 0.0
      %3332 = vmatprep.subr.mxu0 0.0
      %3333 = vmatpush1.msra.mxu0 0.0
      %3334 = vmatprep.subr.mxu0 0.0
      %3335 = vmatpush1.msra.mxu0 0.0
      %3336 = vmatprep.subr.mxu0 0.0
      %3337 = vmatpush1.msra.mxu0 0.0
      %3338 = vmatprep.subr.mxu0 0.0
      %3339 = vmatpush1.msra.mxu0 0.0
      %3340 = vmatprep.mubr.f32.mxu0 %v3271
      %3341 = vmatmul.mubr.f32.gmra.mrb[0].mxu0 %v3238
      %v3342 = vpop.f32.mrb[0].mxu0
      %v3343 = vadd.f32 %v499, %v3342
      %v3344 = vpop.f32.mrb[0].mxu0
      %3345 = vmatprep.mubr.f32.mxu0 %v3274
      %3346 = vmatmul.mubr.f32.gmra.mrb[0].mxu0 %v3240
      %v3347 = vpop.f32.mrb[0].mxu0
      %v3348 = vadd.f32 %v499, %v3347
      %v3349 = vpop.f32.mrb[0].mxu0
      %3350 = vdwg.mxu0
      %vm3351 = vcmask 261120
      %3352 = vst.msk [vmem:[%s491] sm:$0xff] %vm3351, %v3343
      %vm3353 = vcmask 258048
      %3354 = vst.msk [vmem:[%s491 + $0x8] sm:$0x1f] %vm3353, %v3348
      %s3355 = scalar_lea.vmem %s456, 64
      %v3356 = vld [vmem:[%s3355] sm:$0xff]
      %v3357 = vld [vmem:[%s3355 + $0x8] sm:$0xff]
      %v3358 = vld [vmem:[%s3355 + $0x10] sm:$0xff]
      %v3359 = vld [vmem:[%s3355 + $0x18] sm:$0xff]
      %v3360 = vld [vmem:[%s3355 + $0x20] sm:$0xff]
      %v3361 = vld [vmem:[%s3355 + $0x28] sm:$0xff]
      %v3362 = vld [vmem:[%s3355 + $0x30] sm:$0xff]
      %v3363 = vld [vmem:[%s3355 + $0x38] sm:$0xff]
      %v3364 = vld [vmem:[%s2] sm:$0xff]
      %v3365 = vld [vmem:[%s2 + $0x8] sm:$0xff]
      %v3366 = vld [vmem:[%s2 + $0x10] sm:$0xff]
      %v3367 = vld [vmem:[%s2 + $0x18] sm:$0xff]
      %v3368 = vld [vmem:[%s2 + $0x20] sm:$0xff]
      %v3369 = vld [vmem:[%s2 + $0x28] sm:$0xff]
      %v3370 = vld [vmem:[%s2 + $0x30] sm:$0xff]
      %v3371 = vld [vmem:[%s2 + $0x38] sm:$0xff]
      %v3372 = vld [vmem:[%s2 + $0x40] sm:$0xff]
      %v3373 = vld [vmem:[%s2 + $0x48] sm:$0xff]
      %v3374 = vld [vmem:[%s2 + $0x50] sm:$0xff]
      %v3375 = vld [vmem:[%s2 + $0x58] sm:$0xff]
      %v3384 = vrot.slane %v3356, 1
      %v3385 = vrot.slane %v3357, 1
      %v3386 = vsel %vm528, %v3384, %v3385
      %v3387 = vrot.slane %v3358, 1
      %v3388 = vsel %vm528, %v3385, %v3387
      %v3389 = vrot.slane %v3359, 1
      %v3390 = vsel %vm528, %v3387, %v3389
      %v3391 = vrot.slane %v3360, 1
      %v3392 = vsel %vm528, %v3389, %v3391
      %v3393 = vrot.slane %v3361, 1
      %v3394 = vsel %vm528, %v3391, %v3393
      %v3395 = vrot.slane %v3362, 1
      %v3396 = vsel %vm528, %v3393, %v3395
      %v3397 = vrot.slane %v3363, 1
      %v3398 = vsel %vm528, %v3395, %v3397
      %v3399 = vsel %vm544, %v3386, 0
      %v3401 = vsel %vm544, %v3388, 0
      %v3403 = vsel %vm544, %v3390, 0
      %v3405 = vsel %vm544, %v3392, 0
      %v3407 = vsel %vm544, %v3394, 0
      %v3409 = vsel %vm544, %v3396, 0
      %v3411 = vsel %vm544, %v3398, 0
      %v3413 = vsel %vm544, %v3397, 0
      %3415 = vmatprep.subr.mxu0 0.0
      %3416 = vmatpush1.msra.mxu0 %v3370
      %3417 = vmatprep.subr.mxu0 0.0
      %3418 = vmatpush1.msra.mxu0 %v3371
      %3419 = vmatprep.subr.mxu0 0.0
      %3420 = vmatpush1.msra.mxu0 %v3372
      %3421 = vmatprep.subr.mxu0 0.0
      %3422 = vmatpush1.msra.mxu0 %v3373
      %3423 = vmatprep.subr.mxu0 0.0
      %3424 = vmatpush1.msra.mxu0 %v3374
      %3425 = vmatprep.subr.mxu0 0.0
      %3426 = vmatpush1.msra.mxu0 %v3375
      %3427 = vmatprep.subr.mxu0 0.0
      %3428 = vmatpush1.msra.mxu0 0.0
      %3429 = vmatprep.subr.mxu0 0.0
      %3430 = vmatpush1.msra.mxu0 0.0
      %3431 = vmatprep.subr.mxu0 0.0
      %3432 = vmatpush1.msra.mxu0 0.0
      %3433 = vmatprep.subr.mxu0 0.0
      %3434 = vmatpush1.msra.mxu0 0.0
      %3435 = vmatprep.subr.mxu0 0.0
      %3436 = vmatpush1.msra.mxu0 0.0
      %3437 = vmatprep.subr.mxu0 0.0
      %3438 = vmatpush1.msra.mxu0 0.0
      %3439 = vmatprep.subr.mxu0 0.0
      %3440 = vmatpush1.msra.mxu0 0.0
      %3441 = vmatprep.subr.mxu0 0.0
      %3442 = vmatpush1.msra.mxu0 0.0
      %3443 = vmatprep.subr.mxu0 0.0
      %3444 = vmatpush1.msra.mxu0 0.0
      %3445 = vmatprep.subr.mxu0 0.0
      %3446 = vmatpush1.msra.mxu0 0.0
      %3447 = vmatprep.subr.mxu0 0.0
      %3448 = vmatpush1.msra.mxu0 0.0
      %3449 = vmatprep.subr.mxu0 0.0
      %3450 = vmatpush1.msra.mxu0 0.0
      %3451 = vmatprep.subr.mxu0 0.0
      %3452 = vmatpush1.msra.mxu0 0.0
      %3453 = vmatprep.subr.mxu0 0.0
      %3454 = vmatpush1.msra.mxu0 0.0
      %3455 = vmatprep.subr.mxu0 0.0
      %3456 = vmatpush1.msra.mxu0 0.0
      %3457 = vmatprep.subr.mxu0 0.0
      %3458 = vmatpush1.msra.mxu0 0.0
      %3459 = vmatprep.subr.mxu0 0.0
      %3460 = vmatpush1.msra.mxu0 0.0
      %3461 = vmatprep.subr.mxu0 0.0
      %3462 = vmatpush1.msra.mxu0 0.0
      %3463 = vmatprep.subr.mxu0 0.0
      %3464 = vmatpush1.msra.mxu0 0.0
      %3465 = vmatprep.subr.mxu0 0.0
      %3466 = vmatpush1.msra.mxu0 0.0
      %3467 = vmatprep.subr.mxu0 0.0
      %3468 = vmatpush1.msra.mxu0 0.0
      %3469 = vmatprep.subr.mxu0 0.0
      %3470 = vmatpush1.msra.mxu0 0.0
      %3471 = vmatprep.subr.mxu0 0.0
      %3472 = vmatpush1.msra.mxu0 0.0
      %3473 = vmatprep.subr.mxu0 0.0
      %3474 = vmatpush1.msra.mxu0 0.0
      %3475 = vmatprep.subr.mxu0 0.0
      %3476 = vmatpush1.msra.mxu0 0.0
      %3477 = vmatprep.subr.mxu0 0.0
      %3478 = vmatpush1.msra.mxu0 0.0
      %3479 = vmatprep.mubr.f32.mxu0 0.0
      %3480 = vmatmul.mubr.f32.gmra.mrb[0].mxu0 %v3399
      %v3481 = vpop.f32.mrb[0].mxu0
      %v3482 = vadd.f32 0.0, %v3481
      %v3483 = vpop.f32.mrb[0].mxu0
      %3484 = vmatprep.mubr.f32.mxu0 0.0
      %3485 = vmatmul.mubr.f32.gmra.mrb[0].mxu0 %v3401
      %v3486 = vpop.f32.mrb[0].mxu0
      %v3487 = vadd.f32 0.0, %v3486
      %v3488 = vpop.f32.mrb[0].mxu0
      %3489 = vmatprep.mubr.f32.mxu0 0.0
      %3490 = vmatmul.mubr.f32.gmra.mrb[0].mxu0 %v3403
      %v3491 = vpop.f32.mrb[0].mxu0
      %v3492 = vadd.f32 0.0, %v3491
      %v3493 = vpop.f32.mrb[0].mxu0
      %3494 = vmatprep.mubr.f32.mxu0 0.0
      %3495 = vmatmul.mubr.f32.gmra.mrb[0].mxu0 %v3405
      %v3496 = vpop.f32.mrb[0].mxu0
      %v3497 = vadd.f32 0.0, %v3496
      %v3498 = vpop.f32.mrb[0].mxu0
      %3499 = vmatprep.mubr.f32.mxu0 0.0
      %3500 = vmatmul.mubr.f32.gmra.mrb[0].mxu0 %v3407
      %v3501 = vpop.f32.mrb[0].mxu0
      %v3502 = vadd.f32 0.0, %v3501
      %v3503 = vpop.f32.mrb[0].mxu0
      %3504 = vmatprep.mubr.f32.mxu0 0.0
      %3505 = vmatmul.mubr.f32.gmra.mrb[0].mxu0 %v3409
      %v3506 = vpop.f32.mrb[0].mxu0
      %v3507 = vadd.f32 0.0, %v3506
      %v3508 = vpop.f32.mrb[0].mxu0
      %3509 = vmatprep.mubr.f32.mxu0 0.0
      %3510 = vmatmul.mubr.f32.gmra.mrb[0].mxu0 %v3411
      %v3511 = vpop.f32.mrb[0].mxu0
      %v3512 = vadd.f32 0.0, %v3511
      %v3513 = vpop.f32.mrb[0].mxu0
      %3514 = vmatprep.mubr.f32.mxu0 0.0
      %3515 = vmatmul.mubr.f32.gmra.mrb[0].mxu0 %v3413
      %v3516 = vpop.f32.mrb[0].mxu0
      %v3517 = vadd.f32 0.0, %v3516
      %v3518 = vpop.f32.mrb[0].mxu0
      %3519 = vdwg.mxu0
      %v3520 = vsel %vm544, %v3356, 0
      %v3522 = vsel %vm544, %v3357, 0
      %v3524 = vsel %vm544, %v3358, 0
      %v3526 = vsel %vm544, %v3359, 0
      %v3528 = vsel %vm544, %v3360, 0
      %v3530 = vsel %vm544, %v3361, 0
      %v3532 = vsel %vm544, %v3362, 0
      %v3534 = vsel %vm544, %v3363, 0
      %3536 = vmatprep.subr.mxu0 0.0
      %3537 = vmatpush1.msra.mxu0 %v3364
      %3538 = vmatprep.subr.mxu0 0.0
      %3539 = vmatpush1.msra.mxu0 %v3365
      %3540 = vmatprep.subr.mxu0 0.0
      %3541 = vmatpush1.msra.mxu0 %v3366
      %3542 = vmatprep.subr.mxu0 0.0
      %3543 = vmatpush1.msra.mxu0 %v3367
      %3544 = vmatprep.subr.mxu0 0.0
      %3545 = vmatpush1.msra.mxu0 %v3368
      %3546 = vmatprep.subr.mxu0 0.0
      %3547 = vmatpush1.msra.mxu0 %v3369
      %3548 = vmatprep.subr.mxu0 0.0
      %3549 = vmatpush1.msra.mxu0 0.0
      %3550 = vmatprep.subr.mxu0 0.0
      %3551 = vmatpush1.msra.mxu0 0.0
      %3552 = vmatprep.subr.mxu0 0.0
      %3553 = vmatpush1.msra.mxu0 0.0
      %3554 = vmatprep.subr.mxu0 0.0
      %3555 = vmatpush1.msra.mxu0 0.0
      %3556 = vmatprep.subr.mxu0 0.0
      %3557 = vmatpush1.msra.mxu0 0.0
      %3558 = vmatprep.subr.mxu0 0.0
      %3559 = vmatpush1.msra.mxu0 0.0
      %3560 = vmatprep.subr.mxu0 0.0
      %3561 = vmatpush1.msra.mxu0 0.0
      %3562 = vmatprep.subr.mxu0 0.0
      %3563 = vmatpush1.msra.mxu0 0.0
      %3564 = vmatprep.subr.mxu0 0.0
      %3565 = vmatpush1.msra.mxu0 0.0
      %3566 = vmatprep.subr.mxu0 0.0
      %3567 = vmatpush1.msra.mxu0 0.0
      %3568 = vmatprep.subr.mxu0 0.0
      %3569 = vmatpush1.msra.mxu0 0.0
      %3570 = vmatprep.subr.mxu0 0.0
      %3571 = vmatpush1.msra.mxu0 0.0
      %3572 = vmatprep.subr.mxu0 0.0
      %3573 = vmatpush1.msra.mxu0 0.0
      %3574 = vmatprep.subr.mxu0 0.0
      %3575 = vmatpush1.msra.mxu0 0.0
      %3576 = vmatprep.subr.mxu0 0.0
      %3577 = vmatpush1.msra.mxu0 0.0
      %3578 = vmatprep.subr.mxu0 0.0
      %3579 = vmatpush1.msra.mxu0 0.0
      %3580 = vmatprep.subr.mxu0 0.0
      %3581 = vmatpush1.msra.mxu0 0.0
      %3582 = vmatprep.subr.mxu0 0.0
      %3583 = vmatpush1.msra.mxu0 0.0
      %3584 = vmatprep.subr.mxu0 0.0
      %3585 = vmatpush1.msra.mxu0 0.0
      %3586 = vmatprep.subr.mxu0 0.0
      %3587 = vmatpush1.msra.mxu0 0.0
      %3588 = vmatprep.subr.mxu0 0.0
      %3589 = vmatpush1.msra.mxu0 0.0
      %3590 = vmatprep.subr.mxu0 0.0
      %3591 = vmatpush1.msra.mxu0 0.0
      %3592 = vmatprep.subr.mxu0 0.0
      %3593 = vmatpush1.msra.mxu0 0.0
      %3594 = vmatprep.subr.mxu0 0.0
      %3595 = vmatpush1.msra.mxu0 0.0
      %3596 = vmatprep.subr.mxu0 0.0
      %3597 = vmatpush1.msra.mxu0 0.0
      %3598 = vmatprep.subr.mxu0 0.0
      %3599 = vmatpush1.msra.mxu0 0.0
      %3600 = vmatprep.mubr.f32.mxu0 0.0
      %3601 = vmatmul.mubr.f32.gmra.mrb[0].mxu0 %v3520
      %v3602 = vpop.f32.mrb[0].mxu0
      %v3603 = vadd.f32 %v3482, %v3602
      %v3604 = vpop.f32.mrb[0].mxu0
      %3605 = vmatprep.mubr.f32.mxu0 0.0
      %3606 = vmatmul.mubr.f32.gmra.mrb[0].mxu0 %v3522
      %v3607 = vpop.f32.mrb[0].mxu0
      %v3608 = vadd.f32 %v3487, %v3607
      %v3609 = vpop.f32.mrb[0].mxu0
      %3610 = vmatprep.mubr.f32.mxu0 0.0
      %3611 = vmatmul.mubr.f32.gmra.mrb[0].mxu0 %v3524
      %v3612 = vpop.f32.mrb[0].mxu0
      %v3613 = vadd.f32 %v3492, %v3612
      %v3614 = vpop.f32.mrb[0].mxu0
      %3615 = vmatprep.mubr.f32.mxu0 0.0
      %3616 = vmatmul.mubr.f32.gmra.mrb[0].mxu0 %v3526
      %v3617 = vpop.f32.mrb[0].mxu0
      %v3618 = vadd.f32 %v3497, %v3617
      %v3619 = vpop.f32.mrb[0].mxu0
      %3620 = vmatprep.mubr.f32.mxu0 0.0
      %3621 = vmatmul.mubr.f32.gmra.mrb[0].mxu0 %v3528
      %v3622 = vpop.f32.mrb[0].mxu0
      %v3623 = vadd.f32 %v3502, %v3622
      %v3624 = vpop.f32.mrb[0].mxu0
      %3625 = vmatprep.mubr.f32.mxu0 0.0
      %3626 = vmatmul.mubr.f32.gmra.mrb[0].mxu0 %v3530
      %v3627 = vpop.f32.mrb[0].mxu0
      %v3628 = vadd.f32 %v3507, %v3627
      %v3629 = vpop.f32.mrb[0].mxu0
      %3630 = vmatprep.mubr.f32.mxu0 0.0
      %3631 = vmatmul.mubr.f32.gmra.mrb[0].mxu0 %v3532
      %v3632 = vpop.f32.mrb[0].mxu0
      %v3633 = vadd.f32 %v3512, %v3632
      %v3634 = vpop.f32.mrb[0].mxu0
      %3635 = vmatprep.mubr.f32.mxu0 0.0
      %3636 = vmatmul.mubr.f32.gmra.mrb[0].mxu0 %v3534
      %v3637 = vpop.f32.mrb[0].mxu0
      %v3638 = vadd.f32 %v3517, %v3637
      %v3639 = vpop.f32.mrb[0].mxu0
      %3640 = vdwg.mxu0
      %v3641 = vld [vmem:[%s2 + $0x60] sm:$0xff]
      %v3642 = vld [vmem:[%s2 + $0x68] sm:$0xff]
      %v3643 = vld [vmem:[%s2 + $0x70] sm:$0xff]
      %v3644 = vld [vmem:[%s2 + $0x78] sm:$0xff]
      %v3645 = vld [vmem:[%s2 + $0x80] sm:$0xff]
      %v3646 = vld [vmem:[%s2 + $0x88] sm:$0xff]
      %v3647 = vrot.slane %v3356, 2
      %v3648 = vrot.slane %v3357, 2
      %v3649 = vsel %vm793, %v3647, %v3648
      %v3650 = vrot.slane %v3358, 2
      %v3651 = vsel %vm793, %v3648, %v3650
      %v3652 = vrot.slane %v3359, 2
      %v3653 = vsel %vm793, %v3650, %v3652
      %v3654 = vrot.slane %v3360, 2
      %v3655 = vsel %vm793, %v3652, %v3654
      %v3656 = vrot.slane %v3361, 2
      %v3657 = vsel %vm793, %v3654, %v3656
      %v3658 = vrot.slane %v3362, 2
      %v3659 = vsel %vm793, %v3656, %v3658
      %v3660 = vrot.slane %v3363, 2
      %v3661 = vsel %vm793, %v3658, %v3660
      %v3662 = vsel %vm544, %v3649, 0
      %v3664 = vsel %vm544, %v3651, 0
      %v3666 = vsel %vm544, %v3653, 0
      %v3668 = vsel %vm544, %v3655, 0
      %v3670 = vsel %vm544, %v3657, 0
      %v3672 = vsel %vm544, %v3659, 0
      %v3674 = vsel %vm544, %v3661, 0
      %v3676 = vsel %vm544, %v3660, 0
      %3678 = vmatprep.subr.mxu0 0.0
      %3679 = vmatpush1.msra.mxu0 %v3641
      %3680 = vmatprep.subr.mxu0 0.0
      %3681 = vmatpush1.msra.mxu0 %v3642
      %3682 = vmatprep.subr.mxu0 0.0
      %3683 = vmatpush1.msra.mxu0 %v3643
      %3684 = vmatprep.subr.mxu0 0.0
      %3685 = vmatpush1.msra.mxu0 %v3644
      %3686 = vmatprep.subr.mxu0 0.0
      %3687 = vmatpush1.msra.mxu0 %v3645
      %3688 = vmatprep.subr.mxu0 0.0
      %3689 = vmatpush1.msra.mxu0 %v3646
      %3690 = vmatprep.subr.mxu0 0.0
      %3691 = vmatpush1.msra.mxu0 0.0
      %3692 = vmatprep.subr.mxu0 0.0
      %3693 = vmatpush1.msra.mxu0 0.0
      %3694 = vmatprep.subr.mxu0 0.0
      %3695 = vmatpush1.msra.mxu0 0.0
      %3696 = vmatprep.subr.mxu0 0.0
      %3697 = vmatpush1.msra.mxu0 0.0
      %3698 = vmatprep.subr.mxu0 0.0
      %3699 = vmatpush1.msra.mxu0 0.0
      %3700 = vmatprep.subr.mxu0 0.0
      %3701 = vmatpush1.msra.mxu0 0.0
      %3702 = vmatprep.subr.mxu0 0.0
      %3703 = vmatpush1.msra.mxu0 0.0
      %3704 = vmatprep.subr.mxu0 0.0
      %3705 = vmatpush1.msra.mxu0 0.0
      %3706 = vmatprep.subr.mxu0 0.0
      %3707 = vmatpush1.msra.mxu0 0.0
      %3708 = vmatprep.subr.mxu0 0.0
      %3709 = vmatpush1.msra.mxu0 0.0
      %3710 = vmatprep.subr.mxu0 0.0
      %3711 = vmatpush1.msra.mxu0 0.0
      %3712 = vmatprep.subr.mxu0 0.0
      %3713 = vmatpush1.msra.mxu0 0.0
      %3714 = vmatprep.subr.mxu0 0.0
      %3715 = vmatpush1.msra.mxu0 0.0
      %3716 = vmatprep.subr.mxu0 0.0
      %3717 = vmatpush1.msra.mxu0 0.0
      %3718 = vmatprep.subr.mxu0 0.0
      %3719 = vmatpush1.msra.mxu0 0.0
      %3720 = vmatprep.subr.mxu0 0.0
      %3721 = vmatpush1.msra.mxu0 0.0
      %3722 = vmatprep.subr.mxu0 0.0
      %3723 = vmatpush1.msra.mxu0 0.0
      %3724 = vmatprep.subr.mxu0 0.0
      %3725 = vmatpush1.msra.mxu0 0.0
      %3726 = vmatprep.subr.mxu0 0.0
      %3727 = vmatpush1.msra.mxu0 0.0
      %3728 = vmatprep.subr.mxu0 0.0
      %3729 = vmatpush1.msra.mxu0 0.0
      %3730 = vmatprep.subr.mxu0 0.0
      %3731 = vmatpush1.msra.mxu0 0.0
      %3732 = vmatprep.subr.mxu0 0.0
      %3733 = vmatpush1.msra.mxu0 0.0
      %3734 = vmatprep.subr.mxu0 0.0
      %3735 = vmatpush1.msra.mxu0 0.0
      %3736 = vmatprep.subr.mxu0 0.0
      %3737 = vmatpush1.msra.mxu0 0.0
      %3738 = vmatprep.subr.mxu0 0.0
      %3739 = vmatpush1.msra.mxu0 0.0
      %3740 = vmatprep.subr.mxu0 0.0
      %3741 = vmatpush1.msra.mxu0 0.0
      %3742 = vmatprep.mubr.f32.mxu0 0.0
      %3743 = vmatmul.mubr.f32.gmra.mrb[0].mxu0 %v3662
      %v3744 = vpop.f32.mrb[0].mxu0
      %v3745 = vadd.f32 0.0, %v3744
      %v3746 = vpop.f32.mrb[0].mxu0
      %3747 = vmatprep.mubr.f32.mxu0 0.0
      %3748 = vmatmul.mubr.f32.gmra.mrb[0].mxu0 %v3664
      %v3749 = vpop.f32.mrb[0].mxu0
      %v3750 = vadd.f32 0.0, %v3749
      %v3751 = vpop.f32.mrb[0].mxu0
      %3752 = vmatprep.mubr.f32.mxu0 0.0
      %3753 = vmatmul.mubr.f32.gmra.mrb[0].mxu0 %v3666
      %v3754 = vpop.f32.mrb[0].mxu0
      %v3755 = vadd.f32 0.0, %v3754
      %v3756 = vpop.f32.mrb[0].mxu0
      %3757 = vmatprep.mubr.f32.mxu0 0.0
      %3758 = vmatmul.mubr.f32.gmra.mrb[0].mxu0 %v3668
      %v3759 = vpop.f32.mrb[0].mxu0
      %v3760 = vadd.f32 0.0, %v3759
      %v3761 = vpop.f32.mrb[0].mxu0
      %3762 = vmatprep.mubr.f32.mxu0 0.0
      %3763 = vmatmul.mubr.f32.gmra.mrb[0].mxu0 %v3670
      %v3764 = vpop.f32.mrb[0].mxu0
      %v3765 = vadd.f32 0.0, %v3764
      %v3766 = vpop.f32.mrb[0].mxu0
      %3767 = vmatprep.mubr.f32.mxu0 0.0
      %3768 = vmatmul.mubr.f32.gmra.mrb[0].mxu0 %v3672
      %v3769 = vpop.f32.mrb[0].mxu0
      %v3770 = vadd.f32 0.0, %v3769
      %v3771 = vpop.f32.mrb[0].mxu0
      %3772 = vmatprep.mubr.f32.mxu0 0.0
      %3773 = vmatmul.mubr.f32.gmra.mrb[0].mxu0 %v3674
      %v3774 = vpop.f32.mrb[0].mxu0
      %v3775 = vadd.f32 0.0, %v3774
      %v3776 = vpop.f32.mrb[0].mxu0
      %3777 = vmatprep.mubr.f32.mxu0 0.0
      %3778 = vmatmul.mubr.f32.gmra.mrb[0].mxu0 %v3676
      %v3779 = vpop.f32.mrb[0].mxu0
      %v3780 = vadd.f32 0.0, %v3779
      %v3781 = vpop.f32.mrb[0].mxu0
      %3782 = vdwg.mxu0
      %v3783 = vadd.f32 %v3603, %v3745
      %v3784 = vadd.f32 %v3608, %v3750
      %v3785 = vadd.f32 %v3613, %v3755
      %v3786 = vadd.f32 %v3618, %v3760
      %v3787 = vadd.f32 %v3623, %v3765
      %v3788 = vadd.f32 %v3628, %v3770
      %v3789 = vadd.f32 %v3633, %v3775
      %v3790 = vadd.f32 %v3638, %v3780
      %v3791 = vld [vmem:[%s2 + $0x90] sm:$0xff]
      %v3792 = vld [vmem:[%s2 + $0x98] sm:$0xff]
      %v3793 = vld [vmem:[%s2 + $0xa0] sm:$0xff]
      %v3794 = vld [vmem:[%s2 + $0xa8] sm:$0xff]
      %v3795 = vld [vmem:[%s2 + $0xb0] sm:$0xff]
      %v3796 = vld [vmem:[%s2 + $0xb8] sm:$0xff]
      %v3797 = vrot.slane %v3356, 3
      %v3798 = vrot.slane %v3357, 3
      %v3799 = vsel %vm944, %v3797, %v3798
      %v3800 = vrot.slane %v3358, 3
      %v3801 = vsel %vm944, %v3798, %v3800
      %v3802 = vrot.slane %v3359, 3
      %v3803 = vsel %vm944, %v3800, %v3802
      %v3804 = vrot.slane %v3360, 3
      %v3805 = vsel %vm944, %v3802, %v3804
      %v3806 = vrot.slane %v3361, 3
      %v3807 = vsel %vm944, %v3804, %v3806
      %v3808 = vrot.slane %v3362, 3
      %v3809 = vsel %vm944, %v3806, %v3808
      %v3810 = vrot.slane %v3363, 3
      %v3811 = vsel %vm944, %v3808, %v3810
      %v3812 = vsel %vm544, %v3799, 0
      %v3814 = vsel %vm544, %v3801, 0
      %v3816 = vsel %vm544, %v3803, 0
      %v3818 = vsel %vm544, %v3805, 0
      %v3820 = vsel %vm544, %v3807, 0
      %v3822 = vsel %vm544, %v3809, 0
      %v3824 = vsel %vm544, %v3811, 0
      %v3826 = vsel %vm544, %v3810, 0
      %3828 = vmatprep.subr.mxu0 0.0
      %3829 = vmatpush1.msra.mxu0 %v3791
      %3830 = vmatprep.subr.mxu0 0.0
      %3831 = vmatpush1.msra.mxu0 %v3792
      %3832 = vmatprep.subr.mxu0 0.0
      %3833 = vmatpush1.msra.mxu0 %v3793
      %3834 = vmatprep.subr.mxu0 0.0
      %3835 = vmatpush1.msra.mxu0 %v3794
      %3836 = vmatprep.subr.mxu0 0.0
      %3837 = vmatpush1.msra.mxu0 %v3795
      %3838 = vmatprep.subr.mxu0 0.0
      %3839 = vmatpush1.msra.mxu0 %v3796
      %3840 = vmatprep.subr.mxu0 0.0
      %3841 = vmatpush1.msra.mxu0 0.0
      %3842 = vmatprep.subr.mxu0 0.0
      %3843 = vmatpush1.msra.mxu0 0.0
      %3844 = vmatprep.subr.mxu0 0.0
      %3845 = vmatpush1.msra.mxu0 0.0
      %3846 = vmatprep.subr.mxu0 0.0
      %3847 = vmatpush1.msra.mxu0 0.0
      %3848 = vmatprep.subr.mxu0 0.0
      %3849 = vmatpush1.msra.mxu0 0.0
      %3850 = vmatprep.subr.mxu0 0.0
      %3851 = vmatpush1.msra.mxu0 0.0
      %3852 = vmatprep.subr.mxu0 0.0
      %3853 = vmatpush1.msra.mxu0 0.0
      %3854 = vmatprep.subr.mxu0 0.0
      %3855 = vmatpush1.msra.mxu0 0.0
      %3856 = vmatprep.subr.mxu0 0.0
      %3857 = vmatpush1.msra.mxu0 0.0
      %3858 = vmatprep.subr.mxu0 0.0
      %3859 = vmatpush1.msra.mxu0 0.0
      %3860 = vmatprep.subr.mxu0 0.0
      %3861 = vmatpush1.msra.mxu0 0.0
      %3862 = vmatprep.subr.mxu0 0.0
      %3863 = vmatpush1.msra.mxu0 0.0
      %3864 = vmatprep.subr.mxu0 0.0
      %3865 = vmatpush1.msra.mxu0 0.0
      %3866 = vmatprep.subr.mxu0 0.0
      %3867 = vmatpush1.msra.mxu0 0.0
      %3868 = vmatprep.subr.mxu0 0.0
      %3869 = vmatpush1.msra.mxu0 0.0
      %3870 = vmatprep.subr.mxu0 0.0
      %3871 = vmatpush1.msra.mxu0 0.0
      %3872 = vmatprep.subr.mxu0 0.0
      %3873 = vmatpush1.msra.mxu0 0.0
      %3874 = vmatprep.subr.mxu0 0.0
      %3875 = vmatpush1.msra.mxu0 0.0
      %3876 = vmatprep.subr.mxu0 0.0
      %3877 = vmatpush1.msra.mxu0 0.0
      %3878 = vmatprep.subr.mxu0 0.0
      %3879 = vmatpush1.msra.mxu0 0.0
      %3880 = vmatprep.subr.mxu0 0.0
      %3881 = vmatpush1.msra.mxu0 0.0
      %3882 = vmatprep.subr.mxu0 0.0
      %3883 = vmatpush1.msra.mxu0 0.0
      %3884 = vmatprep.subr.mxu0 0.0
      %3885 = vmatpush1.msra.mxu0 0.0
      %3886 = vmatprep.subr.mxu0 0.0
      %3887 = vmatpush1.msra.mxu0 0.0
      %3888 = vmatprep.subr.mxu0 0.0
      %3889 = vmatpush1.msra.mxu0 0.0
      %3890 = vmatprep.subr.mxu0 0.0
      %3891 = vmatpush1.msra.mxu0 0.0
      %3892 = vmatprep.mubr.f32.mxu0 0.0
      %3893 = vmatmul.mubr.f32.gmra.mrb[0].mxu0 %v3812
      %v3894 = vpop.f32.mrb[0].mxu0
      %v3895 = vadd.f32 0.0, %v3894
      %v3896 = vpop.f32.mrb[0].mxu0
      %3897 = vmatprep.mubr.f32.mxu0 0.0
      %3898 = vmatmul.mubr.f32.gmra.mrb[0].mxu0 %v3814
      %v3899 = vpop.f32.mrb[0].mxu0
      %v3900 = vadd.f32 0.0, %v3899
      %v3901 = vpop.f32.mrb[0].mxu0
      %3902 = vmatprep.mubr.f32.mxu0 0.0
      %3903 = vmatmul.mubr.f32.gmra.mrb[0].mxu0 %v3816
      %v3904 = vpop.f32.mrb[0].mxu0
      %v3905 = vadd.f32 0.0, %v3904
      %v3906 = vpop.f32.mrb[0].mxu0
      %3907 = vmatprep.mubr.f32.mxu0 0.0
      %3908 = vmatmul.mubr.f32.gmra.mrb[0].mxu0 %v3818
      %v3909 = vpop.f32.mrb[0].mxu0
      %v3910 = vadd.f32 0.0, %v3909
      %v3911 = vpop.f32.mrb[0].mxu0
      %3912 = vmatprep.mubr.f32.mxu0 0.0
      %3913 = vmatmul.mubr.f32.gmra.mrb[0].mxu0 %v3820
      %v3914 = vpop.f32.mrb[0].mxu0
      %v3915 = vadd.f32 0.0, %v3914
      %v3916 = vpop.f32.mrb[0].mxu0
      %3917 = vmatprep.mubr.f32.mxu0 0.0
      %3918 = vmatmul.mubr.f32.gmra.mrb[0].mxu0 %v3822
      %v3919 = vpop.f32.mrb[0].mxu0
      %v3920 = vadd.f32 0.0, %v3919
      %v3921 = vpop.f32.mrb[0].mxu0
      %3922 = vmatprep.mubr.f32.mxu0 0.0
      %3923 = vmatmul.mubr.f32.gmra.mrb[0].mxu0 %v3824
      %v3924 = vpop.f32.mrb[0].mxu0
      %v3925 = vadd.f32 0.0, %v3924
      %v3926 = vpop.f32.mrb[0].mxu0
      %3927 = vmatprep.mubr.f32.mxu0 0.0
      %3928 = vmatmul.mubr.f32.gmra.mrb[0].mxu0 %v3826
      %v3929 = vpop.f32.mrb[0].mxu0
      %v3930 = vadd.f32 0.0, %v3929
      %v3931 = vpop.f32.mrb[0].mxu0
      %3932 = vdwg.mxu0
      %v3933 = vadd.f32 %v3783, %v3895
      %v3934 = vadd.f32 %v3784, %v3900
      %v3935 = vadd.f32 %v3785, %v3905
      %v3936 = vadd.f32 %v3786, %v3910
      %v3937 = vadd.f32 %v3787, %v3915
      %v3938 = vadd.f32 %v3788, %v3920
      %v3939 = vadd.f32 %v3789, %v3925
      %v3940 = vadd.f32 %v3790, %v3930
      %v3941 = vld [vmem:[%s2 + $0xc0] sm:$0xff]
      %v3942 = vld [vmem:[%s2 + $0xc8] sm:$0xff]
      %v3943 = vld [vmem:[%s2 + $0xd0] sm:$0xff]
      %v3944 = vld [vmem:[%s2 + $0xd8] sm:$0xff]
      %v3945 = vld [vmem:[%s2 + $0xe0] sm:$0xff]
      %v3946 = vld [vmem:[%s2 + $0xe8] sm:$0xff]
      %v3947 = vrot.slane %v3356, 4
      %v3948 = vrot.slane %v3357, 4
      %v3949 = vsel %vm1095, %v3947, %v3948
      %v3950 = vrot.slane %v3358, 4
      %v3951 = vsel %vm1095, %v3948, %v3950
      %v3952 = vrot.slane %v3359, 4
      %v3953 = vsel %vm1095, %v3950, %v3952
      %v3954 = vrot.slane %v3360, 4
      %v3955 = vsel %vm1095, %v3952, %v3954
      %v3956 = vrot.slane %v3361, 4
      %v3957 = vsel %vm1095, %v3954, %v3956
      %v3958 = vrot.slane %v3362, 4
      %v3959 = vsel %vm1095, %v3956, %v3958
      %v3960 = vrot.slane %v3363, 4
      %v3961 = vsel %vm1095, %v3958, %v3960
      %v3962 = vsel %vm544, %v3949, 0
      %v3964 = vsel %vm544, %v3951, 0
      %v3966 = vsel %vm544, %v3953, 0
      %v3968 = vsel %vm544, %v3955, 0
      %v3970 = vsel %vm544, %v3957, 0
      %v3972 = vsel %vm544, %v3959, 0
      %v3974 = vsel %vm544, %v3961, 0
      %v3976 = vsel %vm544, %v3960, 0
      %3978 = vmatprep.subr.mxu0 0.0
      %3979 = vmatpush1.msra.mxu0 %v3941
      %3980 = vmatprep.subr.mxu0 0.0
      %3981 = vmatpush1.msra.mxu0 %v3942
      %3982 = vmatprep.subr.mxu0 0.0
      %3983 = vmatpush1.msra.mxu0 %v3943
      %3984 = vmatprep.subr.mxu0 0.0
      %3985 = vmatpush1.msra.mxu0 %v3944
      %3986 = vmatprep.subr.mxu0 0.0
      %3987 = vmatpush1.msra.mxu0 %v3945
      %3988 = vmatprep.subr.mxu0 0.0
      %3989 = vmatpush1.msra.mxu0 %v3946
      %3990 = vmatprep.subr.mxu0 0.0
      %3991 = vmatpush1.msra.mxu0 0.0
      %3992 = vmatprep.subr.mxu0 0.0
      %3993 = vmatpush1.msra.mxu0 0.0
      %3994 = vmatprep.subr.mxu0 0.0
      %3995 = vmatpush1.msra.mxu0 0.0
      %3996 = vmatprep.subr.mxu0 0.0
      %3997 = vmatpush1.msra.mxu0 0.0
      %3998 = vmatprep.subr.mxu0 0.0
      %3999 = vmatpush1.msra.mxu0 0.0
      %4000 = vmatprep.subr.mxu0 0.0
      %4001 = vmatpush1.msra.mxu0 0.0
      %4002 = vmatprep.subr.mxu0 0.0
      %4003 = vmatpush1.msra.mxu0 0.0
      %4004 = vmatprep.subr.mxu0 0.0
      %4005 = vmatpush1.msra.mxu0 0.0
      %4006 = vmatprep.subr.mxu0 0.0
      %4007 = vmatpush1.msra.mxu0 0.0
      %4008 = vmatprep.subr.mxu0 0.0
      %4009 = vmatpush1.msra.mxu0 0.0
      %4010 = vmatprep.subr.mxu0 0.0
      %4011 = vmatpush1.msra.mxu0 0.0
      %4012 = vmatprep.subr.mxu0 0.0
      %4013 = vmatpush1.msra.mxu0 0.0
      %4014 = vmatprep.subr.mxu0 0.0
      %4015 = vmatpush1.msra.mxu0 0.0
      %4016 = vmatprep.subr.mxu0 0.0
      %4017 = vmatpush1.msra.mxu0 0.0
      %4018 = vmatprep.subr.mxu0 0.0
      %4019 = vmatpush1.msra.mxu0 0.0
      %4020 = vmatprep.subr.mxu0 0.0
      %4021 = vmatpush1.msra.mxu0 0.0
      %4022 = vmatprep.subr.mxu0 0.0
      %4023 = vmatpush1.msra.mxu0 0.0
      %4024 = vmatprep.subr.mxu0 0.0
      %4025 = vmatpush1.msra.mxu0 0.0
      %4026 = vmatprep.subr.mxu0 0.0
      %4027 = vmatpush1.msra.mxu0 0.0
      %4028 = vmatprep.subr.mxu0 0.0
      %4029 = vmatpush1.msra.mxu0 0.0
      %4030 = vmatprep.subr.mxu0 0.0
      %4031 = vmatpush1.msra.mxu0 0.0
      %4032 = vmatprep.subr.mxu0 0.0
      %4033 = vmatpush1.msra.mxu0 0.0
      %4034 = vmatprep.subr.mxu0 0.0
      %4035 = vmatpush1.msra.mxu0 0.0
      %4036 = vmatprep.subr.mxu0 0.0
      %4037 = vmatpush1.msra.mxu0 0.0
      %4038 = vmatprep.subr.mxu0 0.0
      %4039 = vmatpush1.msra.mxu0 0.0
      %4040 = vmatprep.subr.mxu0 0.0
      %4041 = vmatpush1.msra.mxu0 0.0
      %4042 = vmatprep.mubr.f32.mxu0 0.0
      %4043 = vmatmul.mubr.f32.gmra.mrb[0].mxu0 %v3962
      %v4044 = vpop.f32.mrb[0].mxu0
      %v4045 = vadd.f32 0.0, %v4044
      %v4046 = vpop.f32.mrb[0].mxu0
      %4047 = vmatprep.mubr.f32.mxu0 0.0
      %4048 = vmatmul.mubr.f32.gmra.mrb[0].mxu0 %v3964
      %v4049 = vpop.f32.mrb[0].mxu0
      %v4050 = vadd.f32 0.0, %v4049
      %v4051 = vpop.f32.mrb[0].mxu0
      %4052 = vmatprep.mubr.f32.mxu0 0.0
      %4053 = vmatmul.mubr.f32.gmra.mrb[0].mxu0 %v3966
      %v4054 = vpop.f32.mrb[0].mxu0
      %v4055 = vadd.f32 0.0, %v4054
      %v4056 = vpop.f32.mrb[0].mxu0
      %4057 = vmatprep.mubr.f32.mxu0 0.0
      %4058 = vmatmul.mubr.f32.gmra.mrb[0].mxu0 %v3968
      %v4059 = vpop.f32.mrb[0].mxu0
      %v4060 = vadd.f32 0.0, %v4059
      %v4061 = vpop.f32.mrb[0].mxu0
      %4062 = vmatprep.mubr.f32.mxu0 0.0
      %4063 = vmatmul.mubr.f32.gmra.mrb[0].mxu0 %v3970
      %v4064 = vpop.f32.mrb[0].mxu0
      %v4065 = vadd.f32 0.0, %v4064
      %v4066 = vpop.f32.mrb[0].mxu0
      %4067 = vmatprep.mubr.f32.mxu0 0.0
      %4068 = vmatmul.mubr.f32.gmra.mrb[0].mxu0 %v3972
      %v4069 = vpop.f32.mrb[0].mxu0
      %v4070 = vadd.f32 0.0, %v4069
      %v4071 = vpop.f32.mrb[0].mxu0
      %4072 = vmatprep.mubr.f32.mxu0 0.0
      %4073 = vmatmul.mubr.f32.gmra.mrb[0].mxu0 %v3974
      %v4074 = vpop.f32.mrb[0].mxu0
      %v4075 = vadd.f32 0.0, %v4074
      %v4076 = vpop.f32.mrb[0].mxu0
      %4077 = vmatprep.mubr.f32.mxu0 0.0
      %4078 = vmatmul.mubr.f32.gmra.mrb[0].mxu0 %v3976
      %v4079 = vpop.f32.mrb[0].mxu0
      %v4080 = vadd.f32 0.0, %v4079
      %v4081 = vpop.f32.mrb[0].mxu0
      %4082 = vdwg.mxu0
      %v4083 = vadd.f32 %v3933, %v4045
      %v4084 = vadd.f32 %v3934, %v4050
      %v4085 = vadd.f32 %v3935, %v4055
      %v4086 = vadd.f32 %v3936, %v4060
      %v4087 = vadd.f32 %v3937, %v4065
      %v4088 = vadd.f32 %v3938, %v4070
      %v4089 = vadd.f32 %v3939, %v4075
      %v4090 = vadd.f32 %v3940, %v4080
      %v4091 = vadd.f32 %v4083, %v493
      %v4092 = vadd.f32 %v4084, %v493
      %v4093 = vadd.f32 %v4085, %v493
      %v4094 = vadd.f32 %v4086, %v493
      %v4095 = vadd.f32 %v4087, %v493
      %v4096 = vadd.f32 %v4088, %v493
      %v4097 = vadd.f32 %v4089, %v493
      %v4098 = vadd.f32 %v4090, %v493
      %v4099 = vmax.f32 %v4091, 0.0
      %v4100 = vmax.f32 %v4092, 0.0
      %v4101 = vmax.f32 %v4093, 0.0
      %v4102 = vmax.f32 %v4094, 0.0
      %v4103 = vmax.f32 %v4095, 0.0
      %v4104 = vmax.f32 %v4096, 0.0
      %v4105 = vmax.f32 %v4097, 0.0
      %v4106 = vmax.f32 %v4098, 0.0
      %4107 = vst [vmem:[#allocation2] sm:$0xff] %v4099
      %4108 = vst [vmem:[#allocation2 + $0x8] sm:$0xff] %v4100
      %4109 = vst [vmem:[#allocation2 + $0x10] sm:$0xff] %v4101
      %4110 = vst [vmem:[#allocation2 + $0x18] sm:$0xff] %v4102
      %4111 = vst [vmem:[#allocation2 + $0x20] sm:$0xff] %v4103
      %4112 = vst [vmem:[#allocation2 + $0x28] sm:$0xff] %v4104
      %4113 = vst [vmem:[#allocation2 + $0x30] sm:$0xff] %v4105
      %4114 = vst [vmem:[#allocation2 + $0x38] sm:$0xf] %v4106
      %v4115 = vld [vmem:[#allocation2] ss:$2 sm:$0xff]
      %v4116 = vld [vmem:[%s1265] ss:$2 sm:$0xff]
      %v4117 = vld [vmem:[%s1267] ss:$2 sm:$0xff]
      %v4118 = vld [vmem:[%s1269] ss:$2 sm:$0x3f]
      %v4119 = vld [vmem:[%s1271] ss:$2 sm:$0xff]
      %v4120 = vld [vmem:[%s1273] ss:$2 sm:$0xff]
      %v4121 = vld [vmem:[%s1275] ss:$2 sm:$0xff]
      %v4122 = vld [vmem:[%s1277] ss:$2 sm:$0x3f]
      %v4123 = vmax.f32 %v4115, %v4119
      %v4124 = vmax.f32 %v4116, %v4120
      %v4125 = vmax.f32 %v4117, %v4121
      %v4126 = vmax.f32 %v4118, %v4122
      %v4131 = vrot.slane %v4123, 1
      %v4132 = vrot.slane %v4124, 1
      %v4133 = vsel %vm528, %v4131, %v4132
      %v4134 = vrot.slane %v4125, 1
      %v4135 = vsel %vm528, %v4132, %v4134
      %v4136 = vrot.slane %v4126, 1
      %v4137 = vsel %vm528, %v4134, %v4136
      %v4142 = vrot.slane %v4123, 2
      %v4143 = vrot.slane %v4124, 2
      %v4144 = vsel %vm793, %v4142, %v4143
      %v4145 = vrot.slane %v4125, 2
      %v4146 = vsel %vm793, %v4143, %v4145
      %v4147 = vrot.slane %v4126, 2
      %v4148 = vsel %vm793, %v4145, %v4147
      %v4153 = vrot.slane %v4123, 3
      %v4154 = vrot.slane %v4124, 3
      %v4155 = vsel %vm944, %v4153, %v4154
      %v4156 = vrot.slane %v4125, 3
      %v4157 = vsel %vm944, %v4154, %v4156
      %v4158 = vrot.slane %v4126, 3
      %v4159 = vsel %vm944, %v4156, %v4158
      %v4164 = vrot.slane %v4123, 4
      %v4165 = vrot.slane %v4124, 4
      %v4166 = vsel %vm1095, %v4164, %v4165
      %v4167 = vrot.slane %v4125, 4
      %v4168 = vsel %vm1095, %v4165, %v4167
      %v4169 = vrot.slane %v4126, 4
      %v4170 = vsel %vm1095, %v4167, %v4169
      %v4175 = vld [vmem:[%s3] sm:$0xff]
      %v4176 = vld [vmem:[%s3 + $0x8] sm:$0xff]
      %v4177 = vld [vmem:[%s3 + $0x10] sm:$0xff]
      %v4178 = vld [vmem:[%s3 + $0x18] sm:$0xff]
      %v4179 = vld [vmem:[%s3 + $0x20] sm:$0xff]
      %v4180 = vld [vmem:[%s3 + $0x28] sm:$0xff]
      %v4181 = vld [vmem:[%s3 + $0x30] sm:$0xff]
      %v4182 = vld [vmem:[%s3 + $0x38] sm:$0xff]
      %v4183 = vld [vmem:[%s3 + $0x40] sm:$0xff]
      %v4184 = vld [vmem:[%s3 + $0x48] sm:$0xff]
      %v4185 = vld [vmem:[%s3 + $0x50] sm:$0xff]
      %v4186 = vld [vmem:[%s3 + $0x58] sm:$0xff]
      %v4187 = vld [vmem:[%s3 + $0x60] sm:$0xff]
      %v4188 = vld [vmem:[%s3 + $0x68] sm:$0xff]
      %v4189 = vld [vmem:[%s3 + $0x70] sm:$0xff]
      %v4190 = vld [vmem:[%s3 + $0x78] sm:$0xff]
      %v4191 = vld [vmem:[%s3 + $0x80] sm:$0xff]
      %v4192 = vld [vmem:[%s3 + $0x88] sm:$0xff]
      %v4193 = vld [vmem:[%s3 + $0x90] sm:$0xff]
      %v4194 = vld [vmem:[%s3 + $0x98] sm:$0xff]
      %v4195 = vld [vmem:[%s3 + $0xa0] sm:$0xff]
      %v4196 = vld [vmem:[%s3 + $0xa8] sm:$0xff]
      %v4197 = vld [vmem:[%s3 + $0xb0] sm:$0xff]
      %v4198 = vld [vmem:[%s3 + $0xb8] sm:$0xff]
      %v4199 = vld [vmem:[%s3 + $0xc0] sm:$0xff]
      %v4200 = vld [vmem:[%s3 + $0xc8] sm:$0xff]
      %v4201 = vld [vmem:[%s3 + $0xd0] sm:$0xff]
      %v4202 = vld [vmem:[%s3 + $0xd8] sm:$0xff]
      %v4203 = vld [vmem:[%s3 + $0xe0] sm:$0xff]
      %v4204 = vld [vmem:[%s3 + $0xe8] sm:$0xff]
      %v4205 = vld [vmem:[%s3 + $0xf0] sm:$0xff]
      %v4206 = vld [vmem:[%s3 + $0xf8] sm:$0xff]
      %v4207 = vld [vmem:[%s3 + $0x100] sm:$0xff]
      %v4208 = vld [vmem:[%s3 + $0x108] sm:$0xff]
      %v4209 = vld [vmem:[%s3 + $0x110] sm:$0xff]
      %v4210 = vld [vmem:[%s3 + $0x118] sm:$0xff]
      %v4211 = vld [vmem:[%s3 + $0x120] sm:$0xff]
      %v4212 = vld [vmem:[%s3 + $0x128] sm:$0xff]
      %v4213 = vld [vmem:[%s3 + $0x130] sm:$0xff]
      %v4214 = vld [vmem:[%s3 + $0x138] sm:$0xff]
      %v4215 = vld [vmem:[%s3 + $0x140] sm:$0xff]
      %v4216 = vld [vmem:[%s3 + $0x148] sm:$0xff]
      %v4217 = vld [vmem:[%s3 + $0x150] sm:$0xff]
      %v4218 = vld [vmem:[%s3 + $0x158] sm:$0xff]
      %v4219 = vld [vmem:[%s3 + $0x160] sm:$0xff]
      %v4220 = vld [vmem:[%s3 + $0x168] sm:$0xff]
      %v4221 = vld [vmem:[%s3 + $0x170] sm:$0xff]
      %v4222 = vld [vmem:[%s3 + $0x178] sm:$0xff]
      %v4223 = vld [vmem:[%s3 + $0x180] sm:$0xff]
      %v4224 = vld [vmem:[%s3 + $0x188] sm:$0xff]
      %v4225 = vld [vmem:[%s3 + $0x190] sm:$0xff]
      %v4226 = vld [vmem:[%s3 + $0x198] sm:$0xff]
      %v4227 = vld [vmem:[%s3 + $0x1a0] sm:$0xff]
      %v4228 = vld [vmem:[%s3 + $0x1a8] sm:$0xff]
      %v4229 = vld [vmem:[%s3 + $0x1b0] sm:$0xff]
      %v4230 = vld [vmem:[%s3 + $0x1b8] sm:$0xff]
      %v4231 = vld [vmem:[%s3 + $0x1c0] sm:$0xff]
      %v4232 = vld [vmem:[%s3 + $0x1c8] sm:$0xff]
      %v4233 = vld [vmem:[%s3 + $0x1d0] sm:$0xff]
      %v4234 = vld [vmem:[%s3 + $0x1d8] sm:$0xff]
      %v4235 = vld [vmem:[%s3 + $0x1e0] sm:$0xff]
      %v4236 = vld [vmem:[%s3 + $0x1e8] sm:$0xff]
      %v4237 = vld [vmem:[%s3 + $0x1f0] sm:$0xff]
      %v4238 = vld [vmem:[%s3 + $0x1f8] sm:$0xff]
      %v4239 = vld [vmem:[%s3 + $0x200] sm:$0xff]
      %v4240 = vld [vmem:[%s3 + $0x208] sm:$0xff]
      %v4241 = vld [vmem:[%s3 + $0x210] sm:$0xff]
      %v4242 = vld [vmem:[%s3 + $0x218] sm:$0xff]
      %v4243 = vld [vmem:[%s3 + $0x220] sm:$0xff]
      %v4244 = vld [vmem:[%s3 + $0x228] sm:$0xff]
      %v4245 = vld [vmem:[%s3 + $0x230] sm:$0xff]
      %v4246 = vld [vmem:[%s3 + $0x238] sm:$0xff]
      %v4247 = vld [vmem:[%s3 + $0x240] sm:$0xff]
      %v4248 = vld [vmem:[%s3 + $0x248] sm:$0xff]
      %v4249 = vld [vmem:[%s3 + $0x250] sm:$0xff]
      %v4250 = vld [vmem:[%s3 + $0x258] sm:$0xff]
      %v4251 = vld [vmem:[%s3 + $0x260] sm:$0xff]
      %v4252 = vld [vmem:[%s3 + $0x268] sm:$0xff]
      %v4253 = vld [vmem:[%s3 + $0x270] sm:$0xff]
      %v4254 = vld [vmem:[%s3 + $0x278] sm:$0xff]
      %4255 = vmatprep.subr.mxu0 0.0
      %4256 = vmatpush1.msra.mxu0 %v4175
      %4257 = vmatprep.subr.mxu0 0.0
      %4258 = vmatpush1.msra.mxu0 %v4176
      %4259 = vmatprep.subr.mxu0 0.0
      %4260 = vmatpush1.msra.mxu0 %v4177
      %4261 = vmatprep.subr.mxu0 0.0
      %4262 = vmatpush1.msra.mxu0 %v4178
      %4263 = vmatprep.subr.mxu0 0.0
      %4264 = vmatpush1.msra.mxu0 %v4179
      %4265 = vmatprep.subr.mxu0 0.0
      %4266 = vmatpush1.msra.mxu0 %v4180
      %4267 = vmatprep.subr.mxu0 0.0
      %4268 = vmatpush1.msra.mxu0 %v4181
      %4269 = vmatprep.subr.mxu0 0.0
      %4270 = vmatpush1.msra.mxu0 %v4182
      %4271 = vmatprep.subr.mxu0 0.0
      %4272 = vmatpush1.msra.mxu0 %v4183
      %4273 = vmatprep.subr.mxu0 0.0
      %4274 = vmatpush1.msra.mxu0 %v4184
      %4275 = vmatprep.subr.mxu0 0.0
      %4276 = vmatpush1.msra.mxu0 %v4185
      %4277 = vmatprep.subr.mxu0 0.0
      %4278 = vmatpush1.msra.mxu0 %v4186
      %4279 = vmatprep.subr.mxu0 0.0
      %4280 = vmatpush1.msra.mxu0 %v4187
      %4281 = vmatprep.subr.mxu0 0.0
      %4282 = vmatpush1.msra.mxu0 %v4188
      %4283 = vmatprep.subr.mxu0 0.0
      %4284 = vmatpush1.msra.mxu0 %v4189
      %4285 = vmatprep.subr.mxu0 0.0
      %4286 = vmatpush1.msra.mxu0 %v4190
      %4287 = vmatprep.subr.mxu0 0.0
      %4288 = vmatpush1.msra.mxu0 %v4191
      %4289 = vmatprep.subr.mxu0 0.0
      %4290 = vmatpush1.msra.mxu0 %v4192
      %4291 = vmatprep.subr.mxu0 0.0
      %4292 = vmatpush1.msra.mxu0 %v4193
      %4293 = vmatprep.subr.mxu0 0.0
      %4294 = vmatpush1.msra.mxu0 %v4194
      %4295 = vmatprep.subr.mxu0 0.0
      %4296 = vmatpush1.msra.mxu0 %v4195
      %4297 = vmatprep.subr.mxu0 0.0
      %4298 = vmatpush1.msra.mxu0 %v4196
      %4299 = vmatprep.subr.mxu0 0.0
      %4300 = vmatpush1.msra.mxu0 %v4197
      %4301 = vmatprep.subr.mxu0 0.0
      %4302 = vmatpush1.msra.mxu0 %v4198
      %4303 = vmatprep.subr.mxu0 0.0
      %4304 = vmatpush1.msra.mxu0 %v4199
      %4305 = vmatprep.subr.mxu0 0.0
      %4306 = vmatpush1.msra.mxu0 %v4200
      %4307 = vmatprep.subr.mxu0 0.0
      %4308 = vmatpush1.msra.mxu0 %v4201
      %4309 = vmatprep.subr.mxu0 0.0
      %4310 = vmatpush1.msra.mxu0 %v4202
      %4311 = vmatprep.subr.mxu0 0.0
      %4312 = vmatpush1.msra.mxu0 %v4203
      %4313 = vmatprep.subr.mxu0 0.0
      %4314 = vmatpush1.msra.mxu0 %v4204
      %4315 = vmatprep.subr.mxu0 0.0
      %4316 = vmatpush1.msra.mxu0 %v4205
      %4317 = vmatprep.subr.mxu0 0.0
      %4318 = vmatpush1.msra.mxu0 %v4206
      %4319 = vmatprep.mubr.f32.mxu0 %v4133
      %4320 = vmatmul.mubr.f32.gmra.mrb[0].mxu0 %v4123
      %v4321 = vpop.f32.mrb[0].mxu0
      %v4322 = vadd.f32 %v494, %v4321
      %v4323 = vpop.f32.mrb[0].mxu0
      %4324 = vmatprep.mubr.f32.mxu0 %v4135
      %4325 = vmatmul.mubr.f32.gmra.mrb[0].mxu0 %v4124
      %v4326 = vpop.f32.mrb[0].mxu0
      %v4327 = vadd.f32 %v494, %v4326
      %v4328 = vpop.f32.mrb[0].mxu0
      %4329 = vmatprep.mubr.f32.mxu0 %v4137
      %4330 = vmatmul.mubr.f32.gmra.mrb[0].mxu0 %v4125
      %v4331 = vpop.f32.mrb[0].mxu0
      %v4332 = vadd.f32 %v494, %v4331
      %v4333 = vpop.f32.mrb[0].mxu0
      %4334 = vmatprep.mubr.f32.mxu0 %v4136
      %4335 = vmatmul.mubr.f32.gmra.mrb[0].mxu0 %v4126
      %v4336 = vpop.f32.mrb[0].mxu0
      %v4337 = vadd.f32 %v494, %v4336
      %v4338 = vpop.f32.mrb[0].mxu0
      %4339 = vdwg.mxu0
      %4340 = vmatprep.subr.mxu0 0.0
      %4341 = vmatpush1.msra.mxu0 %v4207
      %4342 = vmatprep.subr.mxu0 0.0
      %4343 = vmatpush1.msra.mxu0 %v4208
      %4344 = vmatprep.subr.mxu0 0.0
      %4345 = vmatpush1.msra.mxu0 %v4209
      %4346 = vmatprep.subr.mxu0 0.0
      %4347 = vmatpush1.msra.mxu0 %v4210
      %4348 = vmatprep.subr.mxu0 0.0
      %4349 = vmatpush1.msra.mxu0 %v4211
      %4350 = vmatprep.subr.mxu0 0.0
      %4351 = vmatpush1.msra.mxu0 %v4212
      %4352 = vmatprep.subr.mxu0 0.0
      %4353 = vmatpush1.msra.mxu0 %v4213
      %4354 = vmatprep.subr.mxu0 0.0
      %4355 = vmatpush1.msra.mxu0 %v4214
      %4356 = vmatprep.subr.mxu0 0.0
      %4357 = vmatpush1.msra.mxu0 %v4215
      %4358 = vmatprep.subr.mxu0 0.0
      %4359 = vmatpush1.msra.mxu0 %v4216
      %4360 = vmatprep.subr.mxu0 0.0
      %4361 = vmatpush1.msra.mxu0 %v4217
      %4362 = vmatprep.subr.mxu0 0.0
      %4363 = vmatpush1.msra.mxu0 %v4218
      %4364 = vmatprep.subr.mxu0 0.0
      %4365 = vmatpush1.msra.mxu0 %v4219
      %4366 = vmatprep.subr.mxu0 0.0
      %4367 = vmatpush1.msra.mxu0 %v4220
      %4368 = vmatprep.subr.mxu0 0.0
      %4369 = vmatpush1.msra.mxu0 %v4221
      %4370 = vmatprep.subr.mxu0 0.0
      %4371 = vmatpush1.msra.mxu0 %v4222
      %4372 = vmatprep.subr.mxu0 0.0
      %4373 = vmatpush1.msra.mxu0 %v4223
      %4374 = vmatprep.subr.mxu0 0.0
      %4375 = vmatpush1.msra.mxu0 %v4224
      %4376 = vmatprep.subr.mxu0 0.0
      %4377 = vmatpush1.msra.mxu0 %v4225
      %4378 = vmatprep.subr.mxu0 0.0
      %4379 = vmatpush1.msra.mxu0 %v4226
      %4380 = vmatprep.subr.mxu0 0.0
      %4381 = vmatpush1.msra.mxu0 %v4227
      %4382 = vmatprep.subr.mxu0 0.0
      %4383 = vmatpush1.msra.mxu0 %v4228
      %4384 = vmatprep.subr.mxu0 0.0
      %4385 = vmatpush1.msra.mxu0 %v4229
      %4386 = vmatprep.subr.mxu0 0.0
      %4387 = vmatpush1.msra.mxu0 %v4230
      %4388 = vmatprep.subr.mxu0 0.0
      %4389 = vmatpush1.msra.mxu0 %v4231
      %4390 = vmatprep.subr.mxu0 0.0
      %4391 = vmatpush1.msra.mxu0 %v4232
      %4392 = vmatprep.subr.mxu0 0.0
      %4393 = vmatpush1.msra.mxu0 %v4233
      %4394 = vmatprep.subr.mxu0 0.0
      %4395 = vmatpush1.msra.mxu0 %v4234
      %4396 = vmatprep.subr.mxu0 0.0
      %4397 = vmatpush1.msra.mxu0 %v4235
      %4398 = vmatprep.subr.mxu0 0.0
      %4399 = vmatpush1.msra.mxu0 %v4236
      %4400 = vmatprep.subr.mxu0 0.0
      %4401 = vmatpush1.msra.mxu0 %v4237
      %4402 = vmatprep.subr.mxu0 0.0
      %4403 = vmatpush1.msra.mxu0 %v4238
      %4404 = vmatprep.mubr.f32.mxu0 %v4155
      %4405 = vmatmul.mubr.f32.gmra.mrb[0].mxu0 %v4144
      %v4406 = vpop.f32.mrb[0].mxu0
      %v4407 = vadd.f32 %v4322, %v4406
      %v4408 = vpop.f32.mrb[0].mxu0
      %4409 = vmatprep.mubr.f32.mxu0 %v4157
      %4410 = vmatmul.mubr.f32.gmra.mrb[0].mxu0 %v4146
      %v4411 = vpop.f32.mrb[0].mxu0
      %v4412 = vadd.f32 %v4327, %v4411
      %v4413 = vpop.f32.mrb[0].mxu0
      %4414 = vmatprep.mubr.f32.mxu0 %v4159
      %4415 = vmatmul.mubr.f32.gmra.mrb[0].mxu0 %v4148
      %v4416 = vpop.f32.mrb[0].mxu0
      %v4417 = vadd.f32 %v4332, %v4416
      %v4418 = vpop.f32.mrb[0].mxu0
      %4419 = vmatprep.mubr.f32.mxu0 %v4158
      %4420 = vmatmul.mubr.f32.gmra.mrb[0].mxu0 %v4147
      %v4421 = vpop.f32.mrb[0].mxu0
      %v4422 = vadd.f32 %v4337, %v4421
      %v4423 = vpop.f32.mrb[0].mxu0
      %4424 = vdwg.mxu0
      %4425 = vmatprep.subr.mxu0 0.0
      %4426 = vmatpush1.msra.mxu0 %v4239
      %4427 = vmatprep.subr.mxu0 0.0
      %4428 = vmatpush1.msra.mxu0 %v4240
      %4429 = vmatprep.subr.mxu0 0.0
      %4430 = vmatpush1.msra.mxu0 %v4241
      %4431 = vmatprep.subr.mxu0 0.0
      %4432 = vmatpush1.msra.mxu0 %v4242
      %4433 = vmatprep.subr.mxu0 0.0
      %4434 = vmatpush1.msra.mxu0 %v4243
      %4435 = vmatprep.subr.mxu0 0.0
      %4436 = vmatpush1.msra.mxu0 %v4244
      %4437 = vmatprep.subr.mxu0 0.0
      %4438 = vmatpush1.msra.mxu0 %v4245
      %4439 = vmatprep.subr.mxu0 0.0
      %4440 = vmatpush1.msra.mxu0 %v4246
      %4441 = vmatprep.subr.mxu0 0.0
      %4442 = vmatpush1.msra.mxu0 %v4247
      %4443 = vmatprep.subr.mxu0 0.0
      %4444 = vmatpush1.msra.mxu0 %v4248
      %4445 = vmatprep.subr.mxu0 0.0
      %4446 = vmatpush1.msra.mxu0 %v4249
      %4447 = vmatprep.subr.mxu0 0.0
      %4448 = vmatpush1.msra.mxu0 %v4250
      %4449 = vmatprep.subr.mxu0 0.0
      %4450 = vmatpush1.msra.mxu0 %v4251
      %4451 = vmatprep.subr.mxu0 0.0
      %4452 = vmatpush1.msra.mxu0 %v4252
      %4453 = vmatprep.subr.mxu0 0.0
      %4454 = vmatpush1.msra.mxu0 %v4253
      %4455 = vmatprep.subr.mxu0 0.0
      %4456 = vmatpush1.msra.mxu0 %v4254
      %4457 = vmatprep.subr.mxu0 0.0
      %4458 = vmatpush1.msra.mxu0 0.0
      %4459 = vmatprep.subr.mxu0 0.0
      %4460 = vmatpush1.msra.mxu0 0.0
      %4461 = vmatprep.subr.mxu0 0.0
      %4462 = vmatpush1.msra.mxu0 0.0
      %4463 = vmatprep.subr.mxu0 0.0
      %4464 = vmatpush1.msra.mxu0 0.0
      %4465 = vmatprep.subr.mxu0 0.0
      %4466 = vmatpush1.msra.mxu0 0.0
      %4467 = vmatprep.subr.mxu0 0.0
      %4468 = vmatpush1.msra.mxu0 0.0
      %4469 = vmatprep.subr.mxu0 0.0
      %4470 = vmatpush1.msra.mxu0 0.0
      %4471 = vmatprep.subr.mxu0 0.0
      %4472 = vmatpush1.msra.mxu0 0.0
      %4473 = vmatprep.subr.mxu0 0.0
      %4474 = vmatpush1.msra.mxu0 0.0
      %4475 = vmatprep.subr.mxu0 0.0
      %4476 = vmatpush1.msra.mxu0 0.0
      %4477 = vmatprep.subr.mxu0 0.0
      %4478 = vmatpush1.msra.mxu0 0.0
      %4479 = vmatprep.subr.mxu0 0.0
      %4480 = vmatpush1.msra.mxu0 0.0
      %4481 = vmatprep.subr.mxu0 0.0
      %4482 = vmatpush1.msra.mxu0 0.0
      %4483 = vmatprep.subr.mxu0 0.0
      %4484 = vmatpush1.msra.mxu0 0.0
      %4485 = vmatprep.subr.mxu0 0.0
      %4486 = vmatpush1.msra.mxu0 0.0
      %4487 = vmatprep.subr.mxu0 0.0
      %4488 = vmatpush1.msra.mxu0 0.0
      %4489 = vmatprep.mubr.f32.mxu0 0.0
      %4490 = vmatmul.mubr.f32.gmra.mrb[0].mxu0 %v4166
      %v4491 = vpop.f32.mrb[0].mxu0
      %v4492 = vadd.f32 %v4407, %v4491
      %v4493 = vpop.f32.mrb[0].mxu0
      %4494 = vmatprep.mubr.f32.mxu0 0.0
      %4495 = vmatmul.mubr.f32.gmra.mrb[0].mxu0 %v4168
      %v4496 = vpop.f32.mrb[0].mxu0
      %v4497 = vadd.f32 %v4412, %v4496
      %v4498 = vpop.f32.mrb[0].mxu0
      %4499 = vmatprep.mubr.f32.mxu0 0.0
      %4500 = vmatmul.mubr.f32.gmra.mrb[0].mxu0 %v4170
      %v4501 = vpop.f32.mrb[0].mxu0
      %v4502 = vadd.f32 %v4417, %v4501
      %v4503 = vpop.f32.mrb[0].mxu0
      %4504 = vmatprep.mubr.f32.mxu0 0.0
      %4505 = vmatmul.mubr.f32.gmra.mrb[0].mxu0 %v4169
      %v4506 = vpop.f32.mrb[0].mxu0
      %v4507 = vadd.f32 %v4422, %v4506
      %v4508 = vpop.f32.mrb[0].mxu0
      %4509 = vdwg.mxu0
      %v4510 = vmax.f32 %v4492, 0.0
      %v4511 = vmax.f32 %v4497, 0.0
      %v4512 = vmax.f32 %v4502, 0.0
      %v4513 = vmax.f32 %v4507, 0.0
      %4514 = vst [vmem:[#allocation2] sm:$0xff] %v4510
      %4515 = vst [vmem:[#allocation2 + $0x8] sm:$0xff] %v4511
      %4516 = vst [vmem:[#allocation2 + $0x10] sm:$0xff] %v4512
      %4517 = vst [vmem:[#allocation2 + $0x18] sm:$0x3] %v4513
      %v4518 = vld [vmem:[#allocation2] ss:$2 sm:$0xff]
      %v4519 = vld [vmem:[%s1675] ss:$2 sm:$0x1f]
      %v4520 = vld [vmem:[%s1271] ss:$2 sm:$0xff]
      %v4521 = vld [vmem:[%s1273] ss:$2 sm:$0x1f]
      %v4522 = vmax.f32 %v4518, %v4520
      %v4523 = vmax.f32 %v4519, %v4521
      %s4524 = scalar_lea.vmem %s463, 64
      %v4525 = vld [vmem:[%s4524] sm:$0xff]
      %v4526 = vld [vmem:[%s4524 + $0x8] sm:$0xff]
      %v4527 = vld [vmem:[%s4524 + $0x10] sm:$0xff]
      %v4528 = vld [vmem:[%s4524 + $0x18] sm:$0xff]
      %v4529 = vld [vmem:[%s4524 + $0x20] sm:$0xff]
      %v4530 = vld [vmem:[%s4524 + $0x28] sm:$0xff]
      %v4531 = vld [vmem:[%s4524 + $0x30] sm:$0xff]
      %v4532 = vld [vmem:[%s4524 + $0x38] sm:$0xff]
      %v4533 = vld [vmem:[%s4] sm:$0xff]
      %v4534 = vld [vmem:[%s4 + $0x8] sm:$0xff]
      %v4535 = vld [vmem:[%s4 + $0x10] sm:$0xff]
      %v4536 = vld [vmem:[%s4 + $0x18] sm:$0xff]
      %v4545 = vrot.slane %v4525, 1
      %v4546 = vrot.slane %v4526, 1
      %v4547 = vsel %vm528, %v4545, %v4546
      %v4548 = vrot.slane %v4527, 1
      %v4549 = vsel %vm528, %v4546, %v4548
      %v4550 = vrot.slane %v4528, 1
      %v4551 = vsel %vm528, %v4548, %v4550
      %v4552 = vrot.slane %v4529, 1
      %v4553 = vsel %vm528, %v4550, %v4552
      %v4554 = vrot.slane %v4530, 1
      %v4555 = vsel %vm528, %v4552, %v4554
      %v4556 = vrot.slane %v4531, 1
      %v4557 = vsel %vm528, %v4554, %v4556
      %v4558 = vrot.slane %v4532, 1
      %v4559 = vsel %vm528, %v4556, %v4558
      %v4560 = vsel %vm1716, %v4547, 0
      %v4562 = vsel %vm1716, %v4549, 0
      %v4564 = vsel %vm1716, %v4551, 0
      %v4566 = vsel %vm1716, %v4553, 0
      %v4568 = vsel %vm1716, %v4555, 0
      %v4570 = vsel %vm1716, %v4557, 0
      %v4572 = vsel %vm1716, %v4559, 0
      %v4574 = vsel %vm1716, %v4558, 0
      %4576 = vmatprep.subr.mxu0 0.0
      %4577 = vmatpush1.msra.mxu0 %v4535
      %4578 = vmatprep.subr.mxu0 0.0
      %4579 = vmatpush1.msra.mxu0 %v4536
      %4580 = vmatprep.subr.mxu0 0.0
      %4581 = vmatpush1.msra.mxu0 0.0
      %4582 = vmatprep.subr.mxu0 0.0
      %4583 = vmatpush1.msra.mxu0 0.0
      %4584 = vmatprep.subr.mxu0 0.0
      %4585 = vmatpush1.msra.mxu0 0.0
      %4586 = vmatprep.subr.mxu0 0.0
      %4587 = vmatpush1.msra.mxu0 0.0
      %4588 = vmatprep.subr.mxu0 0.0
      %4589 = vmatpush1.msra.mxu0 0.0
      %4590 = vmatprep.subr.mxu0 0.0
      %4591 = vmatpush1.msra.mxu0 0.0
      %4592 = vmatprep.subr.mxu0 0.0
      %4593 = vmatpush1.msra.mxu0 0.0
      %4594 = vmatprep.subr.mxu0 0.0
      %4595 = vmatpush1.msra.mxu0 0.0
      %4596 = vmatprep.subr.mxu0 0.0
      %4597 = vmatpush1.msra.mxu0 0.0
      %4598 = vmatprep.subr.mxu0 0.0
      %4599 = vmatpush1.msra.mxu0 0.0
      %4600 = vmatprep.subr.mxu0 0.0
      %4601 = vmatpush1.msra.mxu0 0.0
      %4602 = vmatprep.subr.mxu0 0.0
      %4603 = vmatpush1.msra.mxu0 0.0
      %4604 = vmatprep.subr.mxu0 0.0
      %4605 = vmatpush1.msra.mxu0 0.0
      %4606 = vmatprep.subr.mxu0 0.0
      %4607 = vmatpush1.msra.mxu0 0.0
      %4608 = vmatprep.subr.mxu0 0.0
      %4609 = vmatpush1.msra.mxu0 0.0
      %4610 = vmatprep.subr.mxu0 0.0
      %4611 = vmatpush1.msra.mxu0 0.0
      %4612 = vmatprep.subr.mxu0 0.0
      %4613 = vmatpush1.msra.mxu0 0.0
      %4614 = vmatprep.subr.mxu0 0.0
      %4615 = vmatpush1.msra.mxu0 0.0
      %4616 = vmatprep.subr.mxu0 0.0
      %4617 = vmatpush1.msra.mxu0 0.0
      %4618 = vmatprep.subr.mxu0 0.0
      %4619 = vmatpush1.msra.mxu0 0.0
      %4620 = vmatprep.subr.mxu0 0.0
      %4621 = vmatpush1.msra.mxu0 0.0
      %4622 = vmatprep.subr.mxu0 0.0
      %4623 = vmatpush1.msra.mxu0 0.0
      %4624 = vmatprep.subr.mxu0 0.0
      %4625 = vmatpush1.msra.mxu0 0.0
      %4626 = vmatprep.subr.mxu0 0.0
      %4627 = vmatpush1.msra.mxu0 0.0
      %4628 = vmatprep.subr.mxu0 0.0
      %4629 = vmatpush1.msra.mxu0 0.0
      %4630 = vmatprep.subr.mxu0 0.0
      %4631 = vmatpush1.msra.mxu0 0.0
      %4632 = vmatprep.subr.mxu0 0.0
      %4633 = vmatpush1.msra.mxu0 0.0
      %4634 = vmatprep.subr.mxu0 0.0
      %4635 = vmatpush1.msra.mxu0 0.0
      %4636 = vmatprep.subr.mxu0 0.0
      %4637 = vmatpush1.msra.mxu0 0.0
      %4638 = vmatprep.subr.mxu0 0.0
      %4639 = vmatpush1.msra.mxu0 0.0
      %4640 = vmatprep.mubr.f32.mxu0 0.0
      %4641 = vmatmul.mubr.f32.gmra.mrb[0].mxu0 %v4560
      %v4642 = vpop.f32.mrb[0].mxu0
      %v4643 = vadd.f32 0.0, %v4642
      %v4644 = vpop.f32.mrb[0].mxu0
      %4645 = vmatprep.mubr.f32.mxu0 0.0
      %4646 = vmatmul.mubr.f32.gmra.mrb[0].mxu0 %v4562
      %v4647 = vpop.f32.mrb[0].mxu0
      %v4648 = vadd.f32 0.0, %v4647
      %v4649 = vpop.f32.mrb[0].mxu0
      %4650 = vmatprep.mubr.f32.mxu0 0.0
      %4651 = vmatmul.mubr.f32.gmra.mrb[0].mxu0 %v4564
      %v4652 = vpop.f32.mrb[0].mxu0
      %v4653 = vadd.f32 0.0, %v4652
      %v4654 = vpop.f32.mrb[0].mxu0
      %4655 = vmatprep.mubr.f32.mxu0 0.0
      %4656 = vmatmul.mubr.f32.gmra.mrb[0].mxu0 %v4566
      %v4657 = vpop.f32.mrb[0].mxu0
      %v4658 = vadd.f32 0.0, %v4657
      %v4659 = vpop.f32.mrb[0].mxu0
      %4660 = vmatprep.mubr.f32.mxu0 0.0
      %4661 = vmatmul.mubr.f32.gmra.mrb[0].mxu0 %v4568
      %v4662 = vpop.f32.mrb[0].mxu0
      %v4663 = vadd.f32 0.0, %v4662
      %v4664 = vpop.f32.mrb[0].mxu0
      %4665 = vmatprep.mubr.f32.mxu0 0.0
      %4666 = vmatmul.mubr.f32.gmra.mrb[0].mxu0 %v4570
      %v4667 = vpop.f32.mrb[0].mxu0
      %v4668 = vadd.f32 0.0, %v4667
      %v4669 = vpop.f32.mrb[0].mxu0
      %4670 = vmatprep.mubr.f32.mxu0 0.0
      %4671 = vmatmul.mubr.f32.gmra.mrb[0].mxu0 %v4572
      %v4672 = vpop.f32.mrb[0].mxu0
      %v4673 = vadd.f32 0.0, %v4672
      %v4674 = vpop.f32.mrb[0].mxu0
      %4675 = vmatprep.mubr.f32.mxu0 0.0
      %4676 = vmatmul.mubr.f32.gmra.mrb[0].mxu0 %v4574
      %v4677 = vpop.f32.mrb[0].mxu0
      %v4678 = vadd.f32 0.0, %v4677
      %v4679 = vpop.f32.mrb[0].mxu0
      %4680 = vdwg.mxu0
      %v4681 = vsel %vm1716, %v4525, 0
      %v4683 = vsel %vm1716, %v4526, 0
      %v4685 = vsel %vm1716, %v4527, 0
      %v4687 = vsel %vm1716, %v4528, 0
      %v4689 = vsel %vm1716, %v4529, 0
      %v4691 = vsel %vm1716, %v4530, 0
      %v4693 = vsel %vm1716, %v4531, 0
      %v4695 = vsel %vm1716, %v4532, 0
      %4697 = vmatprep.subr.mxu0 0.0
      %4698 = vmatpush1.msra.mxu0 %v4533
      %4699 = vmatprep.subr.mxu0 0.0
      %4700 = vmatpush1.msra.mxu0 %v4534
      %4701 = vmatprep.subr.mxu0 0.0
      %4702 = vmatpush1.msra.mxu0 0.0
      %4703 = vmatprep.subr.mxu0 0.0
      %4704 = vmatpush1.msra.mxu0 0.0
      %4705 = vmatprep.subr.mxu0 0.0
      %4706 = vmatpush1.msra.mxu0 0.0
      %4707 = vmatprep.subr.mxu0 0.0
      %4708 = vmatpush1.msra.mxu0 0.0
      %4709 = vmatprep.subr.mxu0 0.0
      %4710 = vmatpush1.msra.mxu0 0.0
      %4711 = vmatprep.subr.mxu0 0.0
      %4712 = vmatpush1.msra.mxu0 0.0
      %4713 = vmatprep.subr.mxu0 0.0
      %4714 = vmatpush1.msra.mxu0 0.0
      %4715 = vmatprep.subr.mxu0 0.0
      %4716 = vmatpush1.msra.mxu0 0.0
      %4717 = vmatprep.subr.mxu0 0.0
      %4718 = vmatpush1.msra.mxu0 0.0
      %4719 = vmatprep.subr.mxu0 0.0
      %4720 = vmatpush1.msra.mxu0 0.0
      %4721 = vmatprep.subr.mxu0 0.0
      %4722 = vmatpush1.msra.mxu0 0.0
      %4723 = vmatprep.subr.mxu0 0.0
      %4724 = vmatpush1.msra.mxu0 0.0
      %4725 = vmatprep.subr.mxu0 0.0
      %4726 = vmatpush1.msra.mxu0 0.0
      %4727 = vmatprep.subr.mxu0 0.0
      %4728 = vmatpush1.msra.mxu0 0.0
      %4729 = vmatprep.subr.mxu0 0.0
      %4730 = vmatpush1.msra.mxu0 0.0
      %4731 = vmatprep.subr.mxu0 0.0
      %4732 = vmatpush1.msra.mxu0 0.0
      %4733 = vmatprep.subr.mxu0 0.0
      %4734 = vmatpush1.msra.mxu0 0.0
      %4735 = vmatprep.subr.mxu0 0.0
      %4736 = vmatpush1.msra.mxu0 0.0
      %4737 = vmatprep.subr.mxu0 0.0
      %4738 = vmatpush1.msra.mxu0 0.0
      %4739 = vmatprep.subr.mxu0 0.0
      %4740 = vmatpush1.msra.mxu0 0.0
      %4741 = vmatprep.subr.mxu0 0.0
      %4742 = vmatpush1.msra.mxu0 0.0
      %4743 = vmatprep.subr.mxu0 0.0
      %4744 = vmatpush1.msra.mxu0 0.0
      %4745 = vmatprep.subr.mxu0 0.0
      %4746 = vmatpush1.msra.mxu0 0.0
      %4747 = vmatprep.subr.mxu0 0.0
      %4748 = vmatpush1.msra.mxu0 0.0
      %4749 = vmatprep.subr.mxu0 0.0
      %4750 = vmatpush1.msra.mxu0 0.0
      %4751 = vmatprep.subr.mxu0 0.0
      %4752 = vmatpush1.msra.mxu0 0.0
      %4753 = vmatprep.subr.mxu0 0.0
      %4754 = vmatpush1.msra.mxu0 0.0
      %4755 = vmatprep.subr.mxu0 0.0
      %4756 = vmatpush1.msra.mxu0 0.0
      %4757 = vmatprep.subr.mxu0 0.0
      %4758 = vmatpush1.msra.mxu0 0.0
      %4759 = vmatprep.subr.mxu0 0.0
      %4760 = vmatpush1.msra.mxu0 0.0
      %4761 = vmatprep.mubr.f32.mxu0 0.0
      %4762 = vmatmul.mubr.f32.gmra.mrb[0].mxu0 %v4681
      %v4763 = vpop.f32.mrb[0].mxu0
      %v4764 = vadd.f32 %v4643, %v4763
      %v4765 = vpop.f32.mrb[0].mxu0
      %4766 = vmatprep.mubr.f32.mxu0 0.0
      %4767 = vmatmul.mubr.f32.gmra.mrb[0].mxu0 %v4683
      %v4768 = vpop.f32.mrb[0].mxu0
      %v4769 = vadd.f32 %v4648, %v4768
      %v4770 = vpop.f32.mrb[0].mxu0
      %4771 = vmatprep.mubr.f32.mxu0 0.0
      %4772 = vmatmul.mubr.f32.gmra.mrb[0].mxu0 %v4685
      %v4773 = vpop.f32.mrb[0].mxu0
      %v4774 = vadd.f32 %v4653, %v4773
      %v4775 = vpop.f32.mrb[0].mxu0
      %4776 = vmatprep.mubr.f32.mxu0 0.0
      %4777 = vmatmul.mubr.f32.gmra.mrb[0].mxu0 %v4687
      %v4778 = vpop.f32.mrb[0].mxu0
      %v4779 = vadd.f32 %v4658, %v4778
      %v4780 = vpop.f32.mrb[0].mxu0
      %4781 = vmatprep.mubr.f32.mxu0 0.0
      %4782 = vmatmul.mubr.f32.gmra.mrb[0].mxu0 %v4689
      %v4783 = vpop.f32.mrb[0].mxu0
      %v4784 = vadd.f32 %v4663, %v4783
      %v4785 = vpop.f32.mrb[0].mxu0
      %4786 = vmatprep.mubr.f32.mxu0 0.0
      %4787 = vmatmul.mubr.f32.gmra.mrb[0].mxu0 %v4691
      %v4788 = vpop.f32.mrb[0].mxu0
      %v4789 = vadd.f32 %v4668, %v4788
      %v4790 = vpop.f32.mrb[0].mxu0
      %4791 = vmatprep.mubr.f32.mxu0 0.0
      %4792 = vmatmul.mubr.f32.gmra.mrb[0].mxu0 %v4693
      %v4793 = vpop.f32.mrb[0].mxu0
      %v4794 = vadd.f32 %v4673, %v4793
      %v4795 = vpop.f32.mrb[0].mxu0
      %4796 = vmatprep.mubr.f32.mxu0 0.0
      %4797 = vmatmul.mubr.f32.gmra.mrb[0].mxu0 %v4695
      %v4798 = vpop.f32.mrb[0].mxu0
      %v4799 = vadd.f32 %v4678, %v4798
      %v4800 = vpop.f32.mrb[0].mxu0
      %4801 = vdwg.mxu0
      %v4802 = vld [vmem:[%s4 + $0x20] sm:$0xff]
      %v4803 = vld [vmem:[%s4 + $0x28] sm:$0xff]
      %v4804 = vrot.slane %v4525, 2
      %v4805 = vrot.slane %v4526, 2
      %v4806 = vsel %vm793, %v4804, %v4805
      %v4807 = vrot.slane %v4527, 2
      %v4808 = vsel %vm793, %v4805, %v4807
      %v4809 = vrot.slane %v4528, 2
      %v4810 = vsel %vm793, %v4807, %v4809
      %v4811 = vrot.slane %v4529, 2
      %v4812 = vsel %vm793, %v4809, %v4811
      %v4813 = vrot.slane %v4530, 2
      %v4814 = vsel %vm793, %v4811, %v4813
      %v4815 = vrot.slane %v4531, 2
      %v4816 = vsel %vm793, %v4813, %v4815
      %v4817 = vrot.slane %v4532, 2
      %v4818 = vsel %vm793, %v4815, %v4817
      %v4819 = vsel %vm1716, %v4806, 0
      %v4821 = vsel %vm1716, %v4808, 0
      %v4823 = vsel %vm1716, %v4810, 0
      %v4825 = vsel %vm1716, %v4812, 0
      %v4827 = vsel %vm1716, %v4814, 0
      %v4829 = vsel %vm1716, %v4816, 0
      %v4831 = vsel %vm1716, %v4818, 0
      %v4833 = vsel %vm1716, %v4817, 0
      %4835 = vmatprep.subr.mxu0 0.0
      %4836 = vmatpush1.msra.mxu0 %v4802
      %4837 = vmatprep.subr.mxu0 0.0
      %4838 = vmatpush1.msra.mxu0 %v4803
      %4839 = vmatprep.subr.mxu0 0.0
      %4840 = vmatpush1.msra.mxu0 0.0
      %4841 = vmatprep.subr.mxu0 0.0
      %4842 = vmatpush1.msra.mxu0 0.0
      %4843 = vmatprep.subr.mxu0 0.0
      %4844 = vmatpush1.msra.mxu0 0.0
      %4845 = vmatprep.subr.mxu0 0.0
      %4846 = vmatpush1.msra.mxu0 0.0
      %4847 = vmatprep.subr.mxu0 0.0
      %4848 = vmatpush1.msra.mxu0 0.0
      %4849 = vmatprep.subr.mxu0 0.0
      %4850 = vmatpush1.msra.mxu0 0.0
      %4851 = vmatprep.subr.mxu0 0.0
      %4852 = vmatpush1.msra.mxu0 0.0
      %4853 = vmatprep.subr.mxu0 0.0
      %4854 = vmatpush1.msra.mxu0 0.0
      %4855 = vmatprep.subr.mxu0 0.0
      %4856 = vmatpush1.msra.mxu0 0.0
      %4857 = vmatprep.subr.mxu0 0.0
      %4858 = vmatpush1.msra.mxu0 0.0
      %4859 = vmatprep.subr.mxu0 0.0
      %4860 = vmatpush1.msra.mxu0 0.0
      %4861 = vmatprep.subr.mxu0 0.0
      %4862 = vmatpush1.msra.mxu0 0.0
      %4863 = vmatprep.subr.mxu0 0.0
      %4864 = vmatpush1.msra.mxu0 0.0
      %4865 = vmatprep.subr.mxu0 0.0
      %4866 = vmatpush1.msra.mxu0 0.0
      %4867 = vmatprep.subr.mxu0 0.0
      %4868 = vmatpush1.msra.mxu0 0.0
      %4869 = vmatprep.subr.mxu0 0.0
      %4870 = vmatpush1.msra.mxu0 0.0
      %4871 = vmatprep.subr.mxu0 0.0
      %4872 = vmatpush1.msra.mxu0 0.0
      %4873 = vmatprep.subr.mxu0 0.0
      %4874 = vmatpush1.msra.mxu0 0.0
      %4875 = vmatprep.subr.mxu0 0.0
      %4876 = vmatpush1.msra.mxu0 0.0
      %4877 = vmatprep.subr.mxu0 0.0
      %4878 = vmatpush1.msra.mxu0 0.0
      %4879 = vmatprep.subr.mxu0 0.0
      %4880 = vmatpush1.msra.mxu0 0.0
      %4881 = vmatprep.subr.mxu0 0.0
      %4882 = vmatpush1.msra.mxu0 0.0
      %4883 = vmatprep.subr.mxu0 0.0
      %4884 = vmatpush1.msra.mxu0 0.0
      %4885 = vmatprep.subr.mxu0 0.0
      %4886 = vmatpush1.msra.mxu0 0.0
      %4887 = vmatprep.subr.mxu0 0.0
      %4888 = vmatpush1.msra.mxu0 0.0
      %4889 = vmatprep.subr.mxu0 0.0
      %4890 = vmatpush1.msra.mxu0 0.0
      %4891 = vmatprep.subr.mxu0 0.0
      %4892 = vmatpush1.msra.mxu0 0.0
      %4893 = vmatprep.subr.mxu0 0.0
      %4894 = vmatpush1.msra.mxu0 0.0
      %4895 = vmatprep.subr.mxu0 0.0
      %4896 = vmatpush1.msra.mxu0 0.0
      %4897 = vmatprep.subr.mxu0 0.0
      %4898 = vmatpush1.msra.mxu0 0.0
      %4899 = vmatprep.mubr.f32.mxu0 0.0
      %4900 = vmatmul.mubr.f32.gmra.mrb[0].mxu0 %v4819
      %v4901 = vpop.f32.mrb[0].mxu0
      %v4902 = vadd.f32 0.0, %v4901
      %v4903 = vpop.f32.mrb[0].mxu0
      %4904 = vmatprep.mubr.f32.mxu0 0.0
      %4905 = vmatmul.mubr.f32.gmra.mrb[0].mxu0 %v4821
      %v4906 = vpop.f32.mrb[0].mxu0
      %v4907 = vadd.f32 0.0, %v4906
      %v4908 = vpop.f32.mrb[0].mxu0
      %4909 = vmatprep.mubr.f32.mxu0 0.0
      %4910 = vmatmul.mubr.f32.gmra.mrb[0].mxu0 %v4823
      %v4911 = vpop.f32.mrb[0].mxu0
      %v4912 = vadd.f32 0.0, %v4911
      %v4913 = vpop.f32.mrb[0].mxu0
      %4914 = vmatprep.mubr.f32.mxu0 0.0
      %4915 = vmatmul.mubr.f32.gmra.mrb[0].mxu0 %v4825
      %v4916 = vpop.f32.mrb[0].mxu0
      %v4917 = vadd.f32 0.0, %v4916
      %v4918 = vpop.f32.mrb[0].mxu0
      %4919 = vmatprep.mubr.f32.mxu0 0.0
      %4920 = vmatmul.mubr.f32.gmra.mrb[0].mxu0 %v4827
      %v4921 = vpop.f32.mrb[0].mxu0
      %v4922 = vadd.f32 0.0, %v4921
      %v4923 = vpop.f32.mrb[0].mxu0
      %4924 = vmatprep.mubr.f32.mxu0 0.0
      %4925 = vmatmul.mubr.f32.gmra.mrb[0].mxu0 %v4829
      %v4926 = vpop.f32.mrb[0].mxu0
      %v4927 = vadd.f32 0.0, %v4926
      %v4928 = vpop.f32.mrb[0].mxu0
      %4929 = vmatprep.mubr.f32.mxu0 0.0
      %4930 = vmatmul.mubr.f32.gmra.mrb[0].mxu0 %v4831
      %v4931 = vpop.f32.mrb[0].mxu0
      %v4932 = vadd.f32 0.0, %v4931
      %v4933 = vpop.f32.mrb[0].mxu0
      %4934 = vmatprep.mubr.f32.mxu0 0.0
      %4935 = vmatmul.mubr.f32.gmra.mrb[0].mxu0 %v4833
      %v4936 = vpop.f32.mrb[0].mxu0
      %v4937 = vadd.f32 0.0, %v4936
      %v4938 = vpop.f32.mrb[0].mxu0
      %4939 = vdwg.mxu0
      %v4940 = vadd.f32 %v4764, %v4902
      %v4941 = vadd.f32 %v4769, %v4907
      %v4942 = vadd.f32 %v4774, %v4912
      %v4943 = vadd.f32 %v4779, %v4917
      %v4944 = vadd.f32 %v4784, %v4922
      %v4945 = vadd.f32 %v4789, %v4927
      %v4946 = vadd.f32 %v4794, %v4932
      %v4947 = vadd.f32 %v4799, %v4937
      %v4948 = vld [vmem:[%s4 + $0x30] sm:$0xff]
      %v4949 = vld [vmem:[%s4 + $0x38] sm:$0xff]
      %v4950 = vrot.slane %v4525, 3
      %v4951 = vrot.slane %v4526, 3
      %v4952 = vsel %vm944, %v4950, %v4951
      %v4953 = vrot.slane %v4527, 3
      %v4954 = vsel %vm944, %v4951, %v4953
      %v4955 = vrot.slane %v4528, 3
      %v4956 = vsel %vm944, %v4953, %v4955
      %v4957 = vrot.slane %v4529, 3
      %v4958 = vsel %vm944, %v4955, %v4957
      %v4959 = vrot.slane %v4530, 3
      %v4960 = vsel %vm944, %v4957, %v4959
      %v4961 = vrot.slane %v4531, 3
      %v4962 = vsel %vm944, %v4959, %v4961
      %v4963 = vrot.slane %v4532, 3
      %v4964 = vsel %vm944, %v4961, %v4963
      %v4965 = vsel %vm1716, %v4952, 0
      %v4967 = vsel %vm1716, %v4954, 0
      %v4969 = vsel %vm1716, %v4956, 0
      %v4971 = vsel %vm1716, %v4958, 0
      %v4973 = vsel %vm1716, %v4960, 0
      %v4975 = vsel %vm1716, %v4962, 0
      %v4977 = vsel %vm1716, %v4964, 0
      %v4979 = vsel %vm1716, %v4963, 0
      %4981 = vmatprep.subr.mxu0 0.0
      %4982 = vmatpush1.msra.mxu0 %v4948
      %4983 = vmatprep.subr.mxu0 0.0
      %4984 = vmatpush1.msra.mxu0 %v4949
      %4985 = vmatprep.subr.mxu0 0.0
      %4986 = vmatpush1.msra.mxu0 0.0
      %4987 = vmatprep.subr.mxu0 0.0
      %4988 = vmatpush1.msra.mxu0 0.0
      %4989 = vmatprep.subr.mxu0 0.0
      %4990 = vmatpush1.msra.mxu0 0.0
      %4991 = vmatprep.subr.mxu0 0.0
      %4992 = vmatpush1.msra.mxu0 0.0
      %4993 = vmatprep.subr.mxu0 0.0
      %4994 = vmatpush1.msra.mxu0 0.0
      %4995 = vmatprep.subr.mxu0 0.0
      %4996 = vmatpush1.msra.mxu0 0.0
      %4997 = vmatprep.subr.mxu0 0.0
      %4998 = vmatpush1.msra.mxu0 0.0
      %4999 = vmatprep.subr.mxu0 0.0
      %5000 = vmatpush1.msra.mxu0 0.0
      %5001 = vmatprep.subr.mxu0 0.0
      %5002 = vmatpush1.msra.mxu0 0.0
      %5003 = vmatprep.subr.mxu0 0.0
      %5004 = vmatpush1.msra.mxu0 0.0
      %5005 = vmatprep.subr.mxu0 0.0
      %5006 = vmatpush1.msra.mxu0 0.0
      %5007 = vmatprep.subr.mxu0 0.0
      %5008 = vmatpush1.msra.mxu0 0.0
      %5009 = vmatprep.subr.mxu0 0.0
      %5010 = vmatpush1.msra.mxu0 0.0
      %5011 = vmatprep.subr.mxu0 0.0
      %5012 = vmatpush1.msra.mxu0 0.0
      %5013 = vmatprep.subr.mxu0 0.0
      %5014 = vmatpush1.msra.mxu0 0.0
      %5015 = vmatprep.subr.mxu0 0.0
      %5016 = vmatpush1.msra.mxu0 0.0
      %5017 = vmatprep.subr.mxu0 0.0
      %5018 = vmatpush1.msra.mxu0 0.0
      %5019 = vmatprep.subr.mxu0 0.0
      %5020 = vmatpush1.msra.mxu0 0.0
      %5021 = vmatprep.subr.mxu0 0.0
      %5022 = vmatpush1.msra.mxu0 0.0
      %5023 = vmatprep.subr.mxu0 0.0
      %5024 = vmatpush1.msra.mxu0 0.0
      %5025 = vmatprep.subr.mxu0 0.0
      %5026 = vmatpush1.msra.mxu0 0.0
      %5027 = vmatprep.subr.mxu0 0.0
      %5028 = vmatpush1.msra.mxu0 0.0
      %5029 = vmatprep.subr.mxu0 0.0
      %5030 = vmatpush1.msra.mxu0 0.0
      %5031 = vmatprep.subr.mxu0 0.0
      %5032 = vmatpush1.msra.mxu0 0.0
      %5033 = vmatprep.subr.mxu0 0.0
      %5034 = vmatpush1.msra.mxu0 0.0
      %5035 = vmatprep.subr.mxu0 0.0
      %5036 = vmatpush1.msra.mxu0 0.0
      %5037 = vmatprep.subr.mxu0 0.0
      %5038 = vmatpush1.msra.mxu0 0.0
      %5039 = vmatprep.subr.mxu0 0.0
      %5040 = vmatpush1.msra.mxu0 0.0
      %5041 = vmatprep.subr.mxu0 0.0
      %5042 = vmatpush1.msra.mxu0 0.0
      %5043 = vmatprep.subr.mxu0 0.0
      %5044 = vmatpush1.msra.mxu0 0.0
      %5045 = vmatprep.mubr.f32.mxu0 0.0
      %5046 = vmatmul.mubr.f32.gmra.mrb[0].mxu0 %v4965
      %v5047 = vpop.f32.mrb[0].mxu0
      %v5048 = vadd.f32 0.0, %v5047
      %v5049 = vpop.f32.mrb[0].mxu0
      %5050 = vmatprep.mubr.f32.mxu0 0.0
      %5051 = vmatmul.mubr.f32.gmra.mrb[0].mxu0 %v4967
      %v5052 = vpop.f32.mrb[0].mxu0
      %v5053 = vadd.f32 0.0, %v5052
      %v5054 = vpop.f32.mrb[0].mxu0
      %5055 = vmatprep.mubr.f32.mxu0 0.0
      %5056 = vmatmul.mubr.f32.gmra.mrb[0].mxu0 %v4969
      %v5057 = vpop.f32.mrb[0].mxu0
      %v5058 = vadd.f32 0.0, %v5057
      %v5059 = vpop.f32.mrb[0].mxu0
      %5060 = vmatprep.mubr.f32.mxu0 0.0
      %5061 = vmatmul.mubr.f32.gmra.mrb[0].mxu0 %v4971
      %v5062 = vpop.f32.mrb[0].mxu0
      %v5063 = vadd.f32 0.0, %v5062
      %v5064 = vpop.f32.mrb[0].mxu0
      %5065 = vmatprep.mubr.f32.mxu0 0.0
      %5066 = vmatmul.mubr.f32.gmra.mrb[0].mxu0 %v4973
      %v5067 = vpop.f32.mrb[0].mxu0
      %v5068 = vadd.f32 0.0, %v5067
      %v5069 = vpop.f32.mrb[0].mxu0
      %5070 = vmatprep.mubr.f32.mxu0 0.0
      %5071 = vmatmul.mubr.f32.gmra.mrb[0].mxu0 %v4975
      %v5072 = vpop.f32.mrb[0].mxu0
      %v5073 = vadd.f32 0.0, %v5072
      %v5074 = vpop.f32.mrb[0].mxu0
      %5075 = vmatprep.mubr.f32.mxu0 0.0
      %5076 = vmatmul.mubr.f32.gmra.mrb[0].mxu0 %v4977
      %v5077 = vpop.f32.mrb[0].mxu0
      %v5078 = vadd.f32 0.0, %v5077
      %v5079 = vpop.f32.mrb[0].mxu0
      %5080 = vmatprep.mubr.f32.mxu0 0.0
      %5081 = vmatmul.mubr.f32.gmra.mrb[0].mxu0 %v4979
      %v5082 = vpop.f32.mrb[0].mxu0
      %v5083 = vadd.f32 0.0, %v5082
      %v5084 = vpop.f32.mrb[0].mxu0
      %5085 = vdwg.mxu0
      %v5086 = vadd.f32 %v4940, %v5048
      %v5087 = vadd.f32 %v4941, %v5053
      %v5088 = vadd.f32 %v4942, %v5058
      %v5089 = vadd.f32 %v4943, %v5063
      %v5090 = vadd.f32 %v4944, %v5068
      %v5091 = vadd.f32 %v4945, %v5073
      %v5092 = vadd.f32 %v4946, %v5078
      %v5093 = vadd.f32 %v4947, %v5083
      %v5094 = vld [vmem:[%s4 + $0x40] sm:$0xff]
      %v5095 = vld [vmem:[%s4 + $0x48] sm:$0xff]
      %v5096 = vrot.slane %v4525, 4
      %v5097 = vrot.slane %v4526, 4
      %v5098 = vsel %vm1095, %v5096, %v5097
      %v5099 = vrot.slane %v4527, 4
      %v5100 = vsel %vm1095, %v5097, %v5099
      %v5101 = vrot.slane %v4528, 4
      %v5102 = vsel %vm1095, %v5099, %v5101
      %v5103 = vrot.slane %v4529, 4
      %v5104 = vsel %vm1095, %v5101, %v5103
      %v5105 = vrot.slane %v4530, 4
      %v5106 = vsel %vm1095, %v5103, %v5105
      %v5107 = vrot.slane %v4531, 4
      %v5108 = vsel %vm1095, %v5105, %v5107
      %v5109 = vrot.slane %v4532, 4
      %v5110 = vsel %vm1095, %v5107, %v5109
      %v5111 = vsel %vm1716, %v5098, 0
      %v5113 = vsel %vm1716, %v5100, 0
      %v5115 = vsel %vm1716, %v5102, 0
      %v5117 = vsel %vm1716, %v5104, 0
      %v5119 = vsel %vm1716, %v5106, 0
      %v5121 = vsel %vm1716, %v5108, 0
      %v5123 = vsel %vm1716, %v5110, 0
      %v5125 = vsel %vm1716, %v5109, 0
      %5127 = vmatprep.subr.mxu0 0.0
      %5128 = vmatpush1.msra.mxu0 %v5094
      %5129 = vmatprep.subr.mxu0 0.0
      %5130 = vmatpush1.msra.mxu0 %v5095
      %5131 = vmatprep.subr.mxu0 0.0
      %5132 = vmatpush1.msra.mxu0 0.0
      %5133 = vmatprep.subr.mxu0 0.0
      %5134 = vmatpush1.msra.mxu0 0.0
      %5135 = vmatprep.subr.mxu0 0.0
      %5136 = vmatpush1.msra.mxu0 0.0
      %5137 = vmatprep.subr.mxu0 0.0
      %5138 = vmatpush1.msra.mxu0 0.0
      %5139 = vmatprep.subr.mxu0 0.0
      %5140 = vmatpush1.msra.mxu0 0.0
      %5141 = vmatprep.subr.mxu0 0.0
      %5142 = vmatpush1.msra.mxu0 0.0
      %5143 = vmatprep.subr.mxu0 0.0
      %5144 = vmatpush1.msra.mxu0 0.0
      %5145 = vmatprep.subr.mxu0 0.0
      %5146 = vmatpush1.msra.mxu0 0.0
      %5147 = vmatprep.subr.mxu0 0.0
      %5148 = vmatpush1.msra.mxu0 0.0
      %5149 = vmatprep.subr.mxu0 0.0
      %5150 = vmatpush1.msra.mxu0 0.0
      %5151 = vmatprep.subr.mxu0 0.0
      %5152 = vmatpush1.msra.mxu0 0.0
      %5153 = vmatprep.subr.mxu0 0.0
      %5154 = vmatpush1.msra.mxu0 0.0
      %5155 = vmatprep.subr.mxu0 0.0
      %5156 = vmatpush1.msra.mxu0 0.0
      %5157 = vmatprep.subr.mxu0 0.0
      %5158 = vmatpush1.msra.mxu0 0.0
      %5159 = vmatprep.subr.mxu0 0.0
      %5160 = vmatpush1.msra.mxu0 0.0
      %5161 = vmatprep.subr.mxu0 0.0
      %5162 = vmatpush1.msra.mxu0 0.0
      %5163 = vmatprep.subr.mxu0 0.0
      %5164 = vmatpush1.msra.mxu0 0.0
      %5165 = vmatprep.subr.mxu0 0.0
      %5166 = vmatpush1.msra.mxu0 0.0
      %5167 = vmatprep.subr.mxu0 0.0
      %5168 = vmatpush1.msra.mxu0 0.0
      %5169 = vmatprep.subr.mxu0 0.0
      %5170 = vmatpush1.msra.mxu0 0.0
      %5171 = vmatprep.subr.mxu0 0.0
      %5172 = vmatpush1.msra.mxu0 0.0
      %5173 = vmatprep.subr.mxu0 0.0
      %5174 = vmatpush1.msra.mxu0 0.0
      %5175 = vmatprep.subr.mxu0 0.0
      %5176 = vmatpush1.msra.mxu0 0.0
      %5177 = vmatprep.subr.mxu0 0.0
      %5178 = vmatpush1.msra.mxu0 0.0
      %5179 = vmatprep.subr.mxu0 0.0
      %5180 = vmatpush1.msra.mxu0 0.0
      %5181 = vmatprep.subr.mxu0 0.0
      %5182 = vmatpush1.msra.mxu0 0.0
      %5183 = vmatprep.subr.mxu0 0.0
      %5184 = vmatpush1.msra.mxu0 0.0
      %5185 = vmatprep.subr.mxu0 0.0
      %5186 = vmatpush1.msra.mxu0 0.0
      %5187 = vmatprep.subr.mxu0 0.0
      %5188 = vmatpush1.msra.mxu0 0.0
      %5189 = vmatprep.subr.mxu0 0.0
      %5190 = vmatpush1.msra.mxu0 0.0
      %5191 = vmatprep.mubr.f32.mxu0 0.0
      %5192 = vmatmul.mubr.f32.gmra.mrb[0].mxu0 %v5111
      %v5193 = vpop.f32.mrb[0].mxu0
      %v5194 = vadd.f32 0.0, %v5193
      %v5195 = vpop.f32.mrb[0].mxu0
      %5196 = vmatprep.mubr.f32.mxu0 0.0
      %5197 = vmatmul.mubr.f32.gmra.mrb[0].mxu0 %v5113
      %v5198 = vpop.f32.mrb[0].mxu0
      %v5199 = vadd.f32 0.0, %v5198
      %v5200 = vpop.f32.mrb[0].mxu0
      %5201 = vmatprep.mubr.f32.mxu0 0.0
      %5202 = vmatmul.mubr.f32.gmra.mrb[0].mxu0 %v5115
      %v5203 = vpop.f32.mrb[0].mxu0
      %v5204 = vadd.f32 0.0, %v5203
      %v5205 = vpop.f32.mrb[0].mxu0
      %5206 = vmatprep.mubr.f32.mxu0 0.0
      %5207 = vmatmul.mubr.f32.gmra.mrb[0].mxu0 %v5117
      %v5208 = vpop.f32.mrb[0].mxu0
      %v5209 = vadd.f32 0.0, %v5208
      %v5210 = vpop.f32.mrb[0].mxu0
      %5211 = vmatprep.mubr.f32.mxu0 0.0
      %5212 = vmatmul.mubr.f32.gmra.mrb[0].mxu0 %v5119
      %v5213 = vpop.f32.mrb[0].mxu0
      %v5214 = vadd.f32 0.0, %v5213
      %v5215 = vpop.f32.mrb[0].mxu0
      %5216 = vmatprep.mubr.f32.mxu0 0.0
      %5217 = vmatmul.mubr.f32.gmra.mrb[0].mxu0 %v5121
      %v5218 = vpop.f32.mrb[0].mxu0
      %v5219 = vadd.f32 0.0, %v5218
      %v5220 = vpop.f32.mrb[0].mxu0
      %5221 = vmatprep.mubr.f32.mxu0 0.0
      %5222 = vmatmul.mubr.f32.gmra.mrb[0].mxu0 %v5123
      %v5223 = vpop.f32.mrb[0].mxu0
      %v5224 = vadd.f32 0.0, %v5223
      %v5225 = vpop.f32.mrb[0].mxu0
      %5226 = vmatprep.mubr.f32.mxu0 0.0
      %5227 = vmatmul.mubr.f32.gmra.mrb[0].mxu0 %v5125
      %v5228 = vpop.f32.mrb[0].mxu0
      %v5229 = vadd.f32 0.0, %v5228
      %v5230 = vpop.f32.mrb[0].mxu0
      %5231 = vdwg.mxu0
      %v5232 = vadd.f32 %v5086, %v5194
      %v5233 = vadd.f32 %v5087, %v5199
      %v5234 = vadd.f32 %v5088, %v5204
      %v5235 = vadd.f32 %v5089, %v5209
      %v5236 = vadd.f32 %v5090, %v5214
      %v5237 = vadd.f32 %v5091, %v5219
      %v5238 = vadd.f32 %v5092, %v5224
      %v5239 = vadd.f32 %v5093, %v5229
      %v5240 = vadd.f32 %v5232, %v495
      %v5241 = vadd.f32 %v5233, %v495
      %v5242 = vadd.f32 %v5234, %v495
      %v5243 = vadd.f32 %v5235, %v495
      %v5244 = vadd.f32 %v5236, %v495
      %v5245 = vadd.f32 %v5237, %v495
      %v5246 = vadd.f32 %v5238, %v495
      %v5247 = vadd.f32 %v5239, %v495
      %v5248 = vmax.f32 %v5240, 0.0
      %v5249 = vmax.f32 %v5241, 0.0
      %v5250 = vmax.f32 %v5242, 0.0
      %v5251 = vmax.f32 %v5243, 0.0
      %v5252 = vmax.f32 %v5244, 0.0
      %v5253 = vmax.f32 %v5245, 0.0
      %v5254 = vmax.f32 %v5246, 0.0
      %v5255 = vmax.f32 %v5247, 0.0
      %5256 = vst.msk [vmem:[#allocation3] sm:$0xff] %vm2413, %v5248
      %5257 = vst.msk [vmem:[#allocation3 + $0x8] sm:$0xff] %vm2413, %v5249
      %5258 = vst.msk [vmem:[#allocation3 + $0x10] sm:$0xff] %vm2413, %v5250
      %5259 = vst.msk [vmem:[#allocation3 + $0x18] sm:$0xff] %vm2413, %v5251
      %5260 = vst.msk [vmem:[#allocation3 + $0x20] sm:$0xff] %vm2413, %v5252
      %5261 = vst.msk [vmem:[#allocation3 + $0x28] sm:$0xff] %vm2413, %v5253
      %5262 = vst.msk [vmem:[#allocation3 + $0x30] sm:$0xff] %vm2413, %v5254
      %5263 = vst.msk [vmem:[#allocation3 + $0x38] sm:$0xf] %vm2421, %v5255
      %v5264 = vld [vmem:[#allocation3] ss:$2 sm:$0xff]
      %v5265 = vld [vmem:[%s2424] ss:$2 sm:$0xff]
      %v5266 = vld [vmem:[%s2426] ss:$2 sm:$0xff]
      %v5267 = vld [vmem:[%s2428] ss:$2 sm:$0x3f]
      %v5268 = vld [vmem:[%s2430] ss:$2 sm:$0xff]
      %v5269 = vld [vmem:[%s2432] ss:$2 sm:$0xff]
      %v5270 = vld [vmem:[%s2434] ss:$2 sm:$0xff]
      %v5271 = vld [vmem:[%s2436] ss:$2 sm:$0x3f]
      %v5272 = vmax.f32 %v5264, %v5268
      %v5273 = vmax.f32 %v5265, %v5269
      %v5274 = vmax.f32 %v5266, %v5270
      %v5275 = vmax.f32 %v5267, %v5271
      %v5276 = vld [vmem:[%s5] sm:$0xff]
      %v5277 = vld [vmem:[%s5 + $0x8] sm:$0xff]
      %v5278 = vld [vmem:[%s5 + $0x10] sm:$0xff]
      %v5279 = vld [vmem:[%s5 + $0x18] sm:$0xff]
      %v5280 = vld [vmem:[%s5 + $0x20] sm:$0xff]
      %v5281 = vld [vmem:[%s5 + $0x28] sm:$0xff]
      %v5282 = vld [vmem:[%s5 + $0x30] sm:$0xff]
      %v5283 = vld [vmem:[%s5 + $0x38] sm:$0xff]
      %v5284 = vld [vmem:[%s5 + $0x40] sm:$0xff]
      %v5285 = vld [vmem:[%s5 + $0x48] sm:$0xff]
      %v5286 = vld [vmem:[%s5 + $0x50] sm:$0xff]
      %v5287 = vld [vmem:[%s5 + $0x58] sm:$0xff]
      %v5288 = vld [vmem:[%s5 + $0x60] sm:$0xff]
      %v5289 = vld [vmem:[%s5 + $0x68] sm:$0xff]
      %v5290 = vld [vmem:[%s5 + $0x70] sm:$0xff]
      %v5291 = vld [vmem:[%s5 + $0x78] sm:$0xff]
      %v5296 = vrot.slane %v5272, 1
      %v5297 = vrot.slane %v5273, 1
      %v5298 = vsel %vm528, %v5296, %v5297
      %v5299 = vrot.slane %v5274, 1
      %v5300 = vsel %vm528, %v5297, %v5299
      %v5301 = vrot.slane %v5275, 1
      %v5302 = vsel %vm528, %v5299, %v5301
      %v5303 = vsel %vm2413, %v5298, 0
      %v5305 = vsel %vm2413, %v5300, 0
      %v5307 = vsel %vm2413, %v5302, 0
      %v5309 = vsel %vm2413, %v5301, 0
      %5311 = vmatprep.subr.mxu0 0.0
      %5312 = vmatpush1.msra.mxu0 %v5284
      %5313 = vmatprep.subr.mxu0 0.0
      %5314 = vmatpush1.msra.mxu0 %v5285
      %5315 = vmatprep.subr.mxu0 0.0
      %5316 = vmatpush1.msra.mxu0 %v5286
      %5317 = vmatprep.subr.mxu0 0.0
      %5318 = vmatpush1.msra.mxu0 %v5287
      %5319 = vmatprep.subr.mxu0 0.0
      %5320 = vmatpush1.msra.mxu0 %v5288
      %5321 = vmatprep.subr.mxu0 0.0
      %5322 = vmatpush1.msra.mxu0 %v5289
      %5323 = vmatprep.subr.mxu0 0.0
      %5324 = vmatpush1.msra.mxu0 %v5290
      %5325 = vmatprep.subr.mxu0 0.0
      %5326 = vmatpush1.msra.mxu0 %v5291
      %5327 = vmatprep.subr.mxu0 0.0
      %5328 = vmatpush1.msra.mxu0 0.0
      %5329 = vmatprep.subr.mxu0 0.0
      %5330 = vmatpush1.msra.mxu0 0.0
      %5331 = vmatprep.subr.mxu0 0.0
      %5332 = vmatpush1.msra.mxu0 0.0
      %5333 = vmatprep.subr.mxu0 0.0
      %5334 = vmatpush1.msra.mxu0 0.0
      %5335 = vmatprep.subr.mxu0 0.0
      %5336 = vmatpush1.msra.mxu0 0.0
      %5337 = vmatprep.subr.mxu0 0.0
      %5338 = vmatpush1.msra.mxu0 0.0
      %5339 = vmatprep.subr.mxu0 0.0
      %5340 = vmatpush1.msra.mxu0 0.0
      %5341 = vmatprep.subr.mxu0 0.0
      %5342 = vmatpush1.msra.mxu0 0.0
      %5343 = vmatprep.subr.mxu0 0.0
      %5344 = vmatpush1.msra.mxu0 0.0
      %5345 = vmatprep.subr.mxu0 0.0
      %5346 = vmatpush1.msra.mxu0 0.0
      %5347 = vmatprep.subr.mxu0 0.0
      %5348 = vmatpush1.msra.mxu0 0.0
      %5349 = vmatprep.subr.mxu0 0.0
      %5350 = vmatpush1.msra.mxu0 0.0
      %5351 = vmatprep.subr.mxu0 0.0
      %5352 = vmatpush1.msra.mxu0 0.0
      %5353 = vmatprep.subr.mxu0 0.0
      %5354 = vmatpush1.msra.mxu0 0.0
      %5355 = vmatprep.subr.mxu0 0.0
      %5356 = vmatpush1.msra.mxu0 0.0
      %5357 = vmatprep.subr.mxu0 0.0
      %5358 = vmatpush1.msra.mxu0 0.0
      %5359 = vmatprep.subr.mxu0 0.0
      %5360 = vmatpush1.msra.mxu0 0.0
      %5361 = vmatprep.subr.mxu0 0.0
      %5362 = vmatpush1.msra.mxu0 0.0
      %5363 = vmatprep.subr.mxu0 0.0
      %5364 = vmatpush1.msra.mxu0 0.0
      %5365 = vmatprep.subr.mxu0 0.0
      %5366 = vmatpush1.msra.mxu0 0.0
      %5367 = vmatprep.subr.mxu0 0.0
      %5368 = vmatpush1.msra.mxu0 0.0
      %5369 = vmatprep.subr.mxu0 0.0
      %5370 = vmatpush1.msra.mxu0 0.0
      %5371 = vmatprep.subr.mxu0 0.0
      %5372 = vmatpush1.msra.mxu0 0.0
      %5373 = vmatprep.subr.mxu0 0.0
      %5374 = vmatpush1.msra.mxu0 0.0
      %5375 = vmatprep.mubr.f32.mxu0 0.0
      %5376 = vmatmul.mubr.f32.gmra.mrb[0].mxu0 %v5303
      %v5377 = vpop.f32.mrb[0].mxu0
      %v5378 = vadd.f32 0.0, %v5377
      %v5379 = vpop.f32.mrb[0].mxu0
      %5380 = vmatprep.mubr.f32.mxu0 0.0
      %5381 = vmatmul.mubr.f32.gmra.mrb[0].mxu0 %v5305
      %v5382 = vpop.f32.mrb[0].mxu0
      %v5383 = vadd.f32 0.0, %v5382
      %v5384 = vpop.f32.mrb[0].mxu0
      %5385 = vmatprep.mubr.f32.mxu0 0.0
      %5386 = vmatmul.mubr.f32.gmra.mrb[0].mxu0 %v5307
      %v5387 = vpop.f32.mrb[0].mxu0
      %v5388 = vadd.f32 0.0, %v5387
      %v5389 = vpop.f32.mrb[0].mxu0
      %5390 = vmatprep.mubr.f32.mxu0 0.0
      %5391 = vmatmul.mubr.f32.gmra.mrb[0].mxu0 %v5309
      %v5392 = vpop.f32.mrb[0].mxu0
      %v5393 = vadd.f32 0.0, %v5392
      %v5394 = vpop.f32.mrb[0].mxu0
      %5395 = vdwg.mxu0
      %v5396 = vsel %vm2413, %v5272, 0
      %v5398 = vsel %vm2413, %v5273, 0
      %v5400 = vsel %vm2413, %v5274, 0
      %v5402 = vsel %vm2413, %v5275, 0
      %5404 = vmatprep.subr.mxu0 0.0
      %5405 = vmatpush1.msra.mxu0 %v5276
      %5406 = vmatprep.subr.mxu0 0.0
      %5407 = vmatpush1.msra.mxu0 %v5277
      %5408 = vmatprep.subr.mxu0 0.0
      %5409 = vmatpush1.msra.mxu0 %v5278
      %5410 = vmatprep.subr.mxu0 0.0
      %5411 = vmatpush1.msra.mxu0 %v5279
      %5412 = vmatprep.subr.mxu0 0.0
      %5413 = vmatpush1.msra.mxu0 %v5280
      %5414 = vmatprep.subr.mxu0 0.0
      %5415 = vmatpush1.msra.mxu0 %v5281
      %5416 = vmatprep.subr.mxu0 0.0
      %5417 = vmatpush1.msra.mxu0 %v5282
      %5418 = vmatprep.subr.mxu0 0.0
      %5419 = vmatpush1.msra.mxu0 %v5283
      %5420 = vmatprep.subr.mxu0 0.0
      %5421 = vmatpush1.msra.mxu0 0.0
      %5422 = vmatprep.subr.mxu0 0.0
      %5423 = vmatpush1.msra.mxu0 0.0
      %5424 = vmatprep.subr.mxu0 0.0
      %5425 = vmatpush1.msra.mxu0 0.0
      %5426 = vmatprep.subr.mxu0 0.0
      %5427 = vmatpush1.msra.mxu0 0.0
      %5428 = vmatprep.subr.mxu0 0.0
      %5429 = vmatpush1.msra.mxu0 0.0
      %5430 = vmatprep.subr.mxu0 0.0
      %5431 = vmatpush1.msra.mxu0 0.0
      %5432 = vmatprep.subr.mxu0 0.0
      %5433 = vmatpush1.msra.mxu0 0.0
      %5434 = vmatprep.subr.mxu0 0.0
      %5435 = vmatpush1.msra.mxu0 0.0
      %5436 = vmatprep.subr.mxu0 0.0
      %5437 = vmatpush1.msra.mxu0 0.0
      %5438 = vmatprep.subr.mxu0 0.0
      %5439 = vmatpush1.msra.mxu0 0.0
      %5440 = vmatprep.subr.mxu0 0.0
      %5441 = vmatpush1.msra.mxu0 0.0
      %5442 = vmatprep.subr.mxu0 0.0
      %5443 = vmatpush1.msra.mxu0 0.0
      %5444 = vmatprep.subr.mxu0 0.0
      %5445 = vmatpush1.msra.mxu0 0.0
      %5446 = vmatprep.subr.mxu0 0.0
      %5447 = vmatpush1.msra.mxu0 0.0
      %5448 = vmatprep.subr.mxu0 0.0
      %5449 = vmatpush1.msra.mxu0 0.0
      %5450 = vmatprep.subr.mxu0 0.0
      %5451 = vmatpush1.msra.mxu0 0.0
      %5452 = vmatprep.subr.mxu0 0.0
      %5453 = vmatpush1.msra.mxu0 0.0
      %5454 = vmatprep.subr.mxu0 0.0
      %5455 = vmatpush1.msra.mxu0 0.0
      %5456 = vmatprep.subr.mxu0 0.0
      %5457 = vmatpush1.msra.mxu0 0.0
      %5458 = vmatprep.subr.mxu0 0.0
      %5459 = vmatpush1.msra.mxu0 0.0
      %5460 = vmatprep.subr.mxu0 0.0
      %5461 = vmatpush1.msra.mxu0 0.0
      %5462 = vmatprep.subr.mxu0 0.0
      %5463 = vmatpush1.msra.mxu0 0.0
      %5464 = vmatprep.subr.mxu0 0.0
      %5465 = vmatpush1.msra.mxu0 0.0
      %5466 = vmatprep.subr.mxu0 0.0
      %5467 = vmatpush1.msra.mxu0 0.0
      %5468 = vmatprep.mubr.f32.mxu0 0.0
      %5469 = vmatmul.mubr.f32.gmra.mrb[0].mxu0 %v5396
      %v5470 = vpop.f32.mrb[0].mxu0
      %v5471 = vadd.f32 %v5378, %v5470
      %v5472 = vpop.f32.mrb[0].mxu0
      %5473 = vmatprep.mubr.f32.mxu0 0.0
      %5474 = vmatmul.mubr.f32.gmra.mrb[0].mxu0 %v5398
      %v5475 = vpop.f32.mrb[0].mxu0
      %v5476 = vadd.f32 %v5383, %v5475
      %v5477 = vpop.f32.mrb[0].mxu0
      %5478 = vmatprep.mubr.f32.mxu0 0.0
      %5479 = vmatmul.mubr.f32.gmra.mrb[0].mxu0 %v5400
      %v5480 = vpop.f32.mrb[0].mxu0
      %v5481 = vadd.f32 %v5388, %v5480
      %v5482 = vpop.f32.mrb[0].mxu0
      %5483 = vmatprep.mubr.f32.mxu0 0.0
      %5484 = vmatmul.mubr.f32.gmra.mrb[0].mxu0 %v5402
      %v5485 = vpop.f32.mrb[0].mxu0
      %v5486 = vadd.f32 %v5393, %v5485
      %v5487 = vpop.f32.mrb[0].mxu0
      %5488 = vdwg.mxu0
      %v5489 = vld [vmem:[%s5 + $0x80] sm:$0xff]
      %v5490 = vld [vmem:[%s5 + $0x88] sm:$0xff]
      %v5491 = vld [vmem:[%s5 + $0x90] sm:$0xff]
      %v5492 = vld [vmem:[%s5 + $0x98] sm:$0xff]
      %v5493 = vld [vmem:[%s5 + $0xa0] sm:$0xff]
      %v5494 = vld [vmem:[%s5 + $0xa8] sm:$0xff]
      %v5495 = vld [vmem:[%s5 + $0xb0] sm:$0xff]
      %v5496 = vld [vmem:[%s5 + $0xb8] sm:$0xff]
      %v5497 = vrot.slane %v5272, 2
      %v5498 = vrot.slane %v5273, 2
      %v5499 = vsel %vm793, %v5497, %v5498
      %v5500 = vrot.slane %v5274, 2
      %v5501 = vsel %vm793, %v5498, %v5500
      %v5502 = vrot.slane %v5275, 2
      %v5503 = vsel %vm793, %v5500, %v5502
      %v5504 = vsel %vm2413, %v5499, 0
      %v5506 = vsel %vm2413, %v5501, 0
      %v5508 = vsel %vm2413, %v5503, 0
      %v5510 = vsel %vm2413, %v5502, 0
      %5512 = vmatprep.subr.mxu0 0.0
      %5513 = vmatpush1.msra.mxu0 %v5489
      %5514 = vmatprep.subr.mxu0 0.0
      %5515 = vmatpush1.msra.mxu0 %v5490
      %5516 = vmatprep.subr.mxu0 0.0
      %5517 = vmatpush1.msra.mxu0 %v5491
      %5518 = vmatprep.subr.mxu0 0.0
      %5519 = vmatpush1.msra.mxu0 %v5492
      %5520 = vmatprep.subr.mxu0 0.0
      %5521 = vmatpush1.msra.mxu0 %v5493
      %5522 = vmatprep.subr.mxu0 0.0
      %5523 = vmatpush1.msra.mxu0 %v5494
      %5524 = vmatprep.subr.mxu0 0.0
      %5525 = vmatpush1.msra.mxu0 %v5495
      %5526 = vmatprep.subr.mxu0 0.0
      %5527 = vmatpush1.msra.mxu0 %v5496
      %5528 = vmatprep.subr.mxu0 0.0
      %5529 = vmatpush1.msra.mxu0 0.0
      %5530 = vmatprep.subr.mxu0 0.0
      %5531 = vmatpush1.msra.mxu0 0.0
      %5532 = vmatprep.subr.mxu0 0.0
      %5533 = vmatpush1.msra.mxu0 0.0
      %5534 = vmatprep.subr.mxu0 0.0
      %5535 = vmatpush1.msra.mxu0 0.0
      %5536 = vmatprep.subr.mxu0 0.0
      %5537 = vmatpush1.msra.mxu0 0.0
      %5538 = vmatprep.subr.mxu0 0.0
      %5539 = vmatpush1.msra.mxu0 0.0
      %5540 = vmatprep.subr.mxu0 0.0
      %5541 = vmatpush1.msra.mxu0 0.0
      %5542 = vmatprep.subr.mxu0 0.0
      %5543 = vmatpush1.msra.mxu0 0.0
      %5544 = vmatprep.subr.mxu0 0.0
      %5545 = vmatpush1.msra.mxu0 0.0
      %5546 = vmatprep.subr.mxu0 0.0
      %5547 = vmatpush1.msra.mxu0 0.0
      %5548 = vmatprep.subr.mxu0 0.0
      %5549 = vmatpush1.msra.mxu0 0.0
      %5550 = vmatprep.subr.mxu0 0.0
      %5551 = vmatpush1.msra.mxu0 0.0
      %5552 = vmatprep.subr.mxu0 0.0
      %5553 = vmatpush1.msra.mxu0 0.0
      %5554 = vmatprep.subr.mxu0 0.0
      %5555 = vmatpush1.msra.mxu0 0.0
      %5556 = vmatprep.subr.mxu0 0.0
      %5557 = vmatpush1.msra.mxu0 0.0
      %5558 = vmatprep.subr.mxu0 0.0
      %5559 = vmatpush1.msra.mxu0 0.0
      %5560 = vmatprep.subr.mxu0 0.0
      %5561 = vmatpush1.msra.mxu0 0.0
      %5562 = vmatprep.subr.mxu0 0.0
      %5563 = vmatpush1.msra.mxu0 0.0
      %5564 = vmatprep.subr.mxu0 0.0
      %5565 = vmatpush1.msra.mxu0 0.0
      %5566 = vmatprep.subr.mxu0 0.0
      %5567 = vmatpush1.msra.mxu0 0.0
      %5568 = vmatprep.subr.mxu0 0.0
      %5569 = vmatpush1.msra.mxu0 0.0
      %5570 = vmatprep.subr.mxu0 0.0
      %5571 = vmatpush1.msra.mxu0 0.0
      %5572 = vmatprep.subr.mxu0 0.0
      %5573 = vmatpush1.msra.mxu0 0.0
      %5574 = vmatprep.subr.mxu0 0.0
      %5575 = vmatpush1.msra.mxu0 0.0
      %5576 = vmatprep.mubr.f32.mxu0 0.0
      %5577 = vmatmul.mubr.f32.gmra.mrb[0].mxu0 %v5504
      %v5578 = vpop.f32.mrb[0].mxu0
      %v5579 = vadd.f32 0.0, %v5578
      %v5580 = vpop.f32.mrb[0].mxu0
      %5581 = vmatprep.mubr.f32.mxu0 0.0
      %5582 = vmatmul.mubr.f32.gmra.mrb[0].mxu0 %v5506
      %v5583 = vpop.f32.mrb[0].mxu0
      %v5584 = vadd.f32 0.0, %v5583
      %v5585 = vpop.f32.mrb[0].mxu0
      %5586 = vmatprep.mubr.f32.mxu0 0.0
      %5587 = vmatmul.mubr.f32.gmra.mrb[0].mxu0 %v5508
      %v5588 = vpop.f32.mrb[0].mxu0
      %v5589 = vadd.f32 0.0, %v5588
      %v5590 = vpop.f32.mrb[0].mxu0
      %5591 = vmatprep.mubr.f32.mxu0 0.0
      %5592 = vmatmul.mubr.f32.gmra.mrb[0].mxu0 %v5510
      %v5593 = vpop.f32.mrb[0].mxu0
      %v5594 = vadd.f32 0.0, %v5593
      %v5595 = vpop.f32.mrb[0].mxu0
      %5596 = vdwg.mxu0
      %v5597 = vadd.f32 %v5471, %v5579
      %v5598 = vadd.f32 %v5476, %v5584
      %v5599 = vadd.f32 %v5481, %v5589
      %v5600 = vadd.f32 %v5486, %v5594
      %v5601 = vld [vmem:[%s5 + $0xc0] sm:$0xff]
      %v5602 = vld [vmem:[%s5 + $0xc8] sm:$0xff]
      %v5603 = vld [vmem:[%s5 + $0xd0] sm:$0xff]
      %v5604 = vld [vmem:[%s5 + $0xd8] sm:$0xff]
      %v5605 = vld [vmem:[%s5 + $0xe0] sm:$0xff]
      %v5606 = vld [vmem:[%s5 + $0xe8] sm:$0xff]
      %v5607 = vld [vmem:[%s5 + $0xf0] sm:$0xff]
      %v5608 = vld [vmem:[%s5 + $0xf8] sm:$0xff]
      %v5609 = vrot.slane %v5272, 3
      %v5610 = vrot.slane %v5273, 3
      %v5611 = vsel %vm944, %v5609, %v5610
      %v5612 = vrot.slane %v5274, 3
      %v5613 = vsel %vm944, %v5610, %v5612
      %v5614 = vrot.slane %v5275, 3
      %v5615 = vsel %vm944, %v5612, %v5614
      %v5616 = vsel %vm2413, %v5611, 0
      %v5618 = vsel %vm2413, %v5613, 0
      %v5620 = vsel %vm2413, %v5615, 0
      %v5622 = vsel %vm2413, %v5614, 0
      %5624 = vmatprep.subr.mxu0 0.0
      %5625 = vmatpush1.msra.mxu0 %v5601
      %5626 = vmatprep.subr.mxu0 0.0
      %5627 = vmatpush1.msra.mxu0 %v5602
      %5628 = vmatprep.subr.mxu0 0.0
      %5629 = vmatpush1.msra.mxu0 %v5603
      %5630 = vmatprep.subr.mxu0 0.0
      %5631 = vmatpush1.msra.mxu0 %v5604
      %5632 = vmatprep.subr.mxu0 0.0
      %5633 = vmatpush1.msra.mxu0 %v5605
      %5634 = vmatprep.subr.mxu0 0.0
      %5635 = vmatpush1.msra.mxu0 %v5606
      %5636 = vmatprep.subr.mxu0 0.0
      %5637 = vmatpush1.msra.mxu0 %v5607
      %5638 = vmatprep.subr.mxu0 0.0
      %5639 = vmatpush1.msra.mxu0 %v5608
      %5640 = vmatprep.subr.mxu0 0.0
      %5641 = vmatpush1.msra.mxu0 0.0
      %5642 = vmatprep.subr.mxu0 0.0
      %5643 = vmatpush1.msra.mxu0 0.0
      %5644 = vmatprep.subr.mxu0 0.0
      %5645 = vmatpush1.msra.mxu0 0.0
      %5646 = vmatprep.subr.mxu0 0.0
      %5647 = vmatpush1.msra.mxu0 0.0
      %5648 = vmatprep.subr.mxu0 0.0
      %5649 = vmatpush1.msra.mxu0 0.0
      %5650 = vmatprep.subr.mxu0 0.0
      %5651 = vmatpush1.msra.mxu0 0.0
      %5652 = vmatprep.subr.mxu0 0.0
      %5653 = vmatpush1.msra.mxu0 0.0
      %5654 = vmatprep.subr.mxu0 0.0
      %5655 = vmatpush1.msra.mxu0 0.0
      %5656 = vmatprep.subr.mxu0 0.0
      %5657 = vmatpush1.msra.mxu0 0.0
      %5658 = vmatprep.subr.mxu0 0.0
      %5659 = vmatpush1.msra.mxu0 0.0
      %5660 = vmatprep.subr.mxu0 0.0
      %5661 = vmatpush1.msra.mxu0 0.0
      %5662 = vmatprep.subr.mxu0 0.0
      %5663 = vmatpush1.msra.mxu0 0.0
      %5664 = vmatprep.subr.mxu0 0.0
      %5665 = vmatpush1.msra.mxu0 0.0
      %5666 = vmatprep.subr.mxu0 0.0
      %5667 = vmatpush1.msra.mxu0 0.0
      %5668 = vmatprep.subr.mxu0 0.0
      %5669 = vmatpush1.msra.mxu0 0.0
      %5670 = vmatprep.subr.mxu0 0.0
      %5671 = vmatpush1.msra.mxu0 0.0
      %5672 = vmatprep.subr.mxu0 0.0
      %5673 = vmatpush1.msra.mxu0 0.0
      %5674 = vmatprep.subr.mxu0 0.0
      %5675 = vmatpush1.msra.mxu0 0.0
      %5676 = vmatprep.subr.mxu0 0.0
      %5677 = vmatpush1.msra.mxu0 0.0
      %5678 = vmatprep.subr.mxu0 0.0
      %5679 = vmatpush1.msra.mxu0 0.0
      %5680 = vmatprep.subr.mxu0 0.0
      %5681 = vmatpush1.msra.mxu0 0.0
      %5682 = vmatprep.subr.mxu0 0.0
      %5683 = vmatpush1.msra.mxu0 0.0
      %5684 = vmatprep.subr.mxu0 0.0
      %5685 = vmatpush1.msra.mxu0 0.0
      %5686 = vmatprep.subr.mxu0 0.0
      %5687 = vmatpush1.msra.mxu0 0.0
      %5688 = vmatprep.mubr.f32.mxu0 0.0
      %5689 = vmatmul.mubr.f32.gmra.mrb[0].mxu0 %v5616
      %v5690 = vpop.f32.mrb[0].mxu0
      %v5691 = vadd.f32 0.0, %v5690
      %v5692 = vpop.f32.mrb[0].mxu0
      %5693 = vmatprep.mubr.f32.mxu0 0.0
      %5694 = vmatmul.mubr.f32.gmra.mrb[0].mxu0 %v5618
      %v5695 = vpop.f32.mrb[0].mxu0
      %v5696 = vadd.f32 0.0, %v5695
      %v5697 = vpop.f32.mrb[0].mxu0
      %5698 = vmatprep.mubr.f32.mxu0 0.0
      %5699 = vmatmul.mubr.f32.gmra.mrb[0].mxu0 %v5620
      %v5700 = vpop.f32.mrb[0].mxu0
      %v5701 = vadd.f32 0.0, %v5700
      %v5702 = vpop.f32.mrb[0].mxu0
      %5703 = vmatprep.mubr.f32.mxu0 0.0
      %5704 = vmatmul.mubr.f32.gmra.mrb[0].mxu0 %v5622
      %v5705 = vpop.f32.mrb[0].mxu0
      %v5706 = vadd.f32 0.0, %v5705
      %v5707 = vpop.f32.mrb[0].mxu0
      %5708 = vdwg.mxu0
      %v5709 = vadd.f32 %v5597, %v5691
      %v5710 = vadd.f32 %v5598, %v5696
      %v5711 = vadd.f32 %v5599, %v5701
      %v5712 = vadd.f32 %v5600, %v5706
      %v5713 = vld [vmem:[%s5 + $0x100] sm:$0xff]
      %v5714 = vld [vmem:[%s5 + $0x108] sm:$0xff]
      %v5715 = vld [vmem:[%s5 + $0x110] sm:$0xff]
      %v5716 = vld [vmem:[%s5 + $0x118] sm:$0xff]
      %v5717 = vld [vmem:[%s5 + $0x120] sm:$0xff]
      %v5718 = vld [vmem:[%s5 + $0x128] sm:$0xff]
      %v5719 = vld [vmem:[%s5 + $0x130] sm:$0xff]
      %v5720 = vld [vmem:[%s5 + $0x138] sm:$0xff]
      %v5721 = vrot.slane %v5272, 4
      %v5722 = vrot.slane %v5273, 4
      %v5723 = vsel %vm1095, %v5721, %v5722
      %v5724 = vrot.slane %v5274, 4
      %v5725 = vsel %vm1095, %v5722, %v5724
      %v5726 = vrot.slane %v5275, 4
      %v5727 = vsel %vm1095, %v5724, %v5726
      %v5728 = vsel %vm2413, %v5723, 0
      %v5730 = vsel %vm2413, %v5725, 0
      %v5732 = vsel %vm2413, %v5727, 0
      %v5734 = vsel %vm2413, %v5726, 0
      %5736 = vmatprep.subr.mxu0 0.0
      %5737 = vmatpush1.msra.mxu0 %v5713
      %5738 = vmatprep.subr.mxu0 0.0
      %5739 = vmatpush1.msra.mxu0 %v5714
      %5740 = vmatprep.subr.mxu0 0.0
      %5741 = vmatpush1.msra.mxu0 %v5715
      %5742 = vmatprep.subr.mxu0 0.0
      %5743 = vmatpush1.msra.mxu0 %v5716
      %5744 = vmatprep.subr.mxu0 0.0
      %5745 = vmatpush1.msra.mxu0 %v5717
      %5746 = vmatprep.subr.mxu0 0.0
      %5747 = vmatpush1.msra.mxu0 %v5718
      %5748 = vmatprep.subr.mxu0 0.0
      %5749 = vmatpush1.msra.mxu0 %v5719
      %5750 = vmatprep.subr.mxu0 0.0
      %5751 = vmatpush1.msra.mxu0 %v5720
      %5752 = vmatprep.subr.mxu0 0.0
      %5753 = vmatpush1.msra.mxu0 0.0
      %5754 = vmatprep.subr.mxu0 0.0
      %5755 = vmatpush1.msra.mxu0 0.0
      %5756 = vmatprep.subr.mxu0 0.0
      %5757 = vmatpush1.msra.mxu0 0.0
      %5758 = vmatprep.subr.mxu0 0.0
      %5759 = vmatpush1.msra.mxu0 0.0
      %5760 = vmatprep.subr.mxu0 0.0
      %5761 = vmatpush1.msra.mxu0 0.0
      %5762 = vmatprep.subr.mxu0 0.0
      %5763 = vmatpush1.msra.mxu0 0.0
      %5764 = vmatprep.subr.mxu0 0.0
      %5765 = vmatpush1.msra.mxu0 0.0
      %5766 = vmatprep.subr.mxu0 0.0
      %5767 = vmatpush1.msra.mxu0 0.0
      %5768 = vmatprep.subr.mxu0 0.0
      %5769 = vmatpush1.msra.mxu0 0.0
      %5770 = vmatprep.subr.mxu0 0.0
      %5771 = vmatpush1.msra.mxu0 0.0
      %5772 = vmatprep.subr.mxu0 0.0
      %5773 = vmatpush1.msra.mxu0 0.0
      %5774 = vmatprep.subr.mxu0 0.0
      %5775 = vmatpush1.msra.mxu0 0.0
      %5776 = vmatprep.subr.mxu0 0.0
      %5777 = vmatpush1.msra.mxu0 0.0
      %5778 = vmatprep.subr.mxu0 0.0
      %5779 = vmatpush1.msra.mxu0 0.0
      %5780 = vmatprep.subr.mxu0 0.0
      %5781 = vmatpush1.msra.mxu0 0.0
      %5782 = vmatprep.subr.mxu0 0.0
      %5783 = vmatpush1.msra.mxu0 0.0
      %5784 = vmatprep.subr.mxu0 0.0
      %5785 = vmatpush1.msra.mxu0 0.0
      %5786 = vmatprep.subr.mxu0 0.0
      %5787 = vmatpush1.msra.mxu0 0.0
      %5788 = vmatprep.subr.mxu0 0.0
      %5789 = vmatpush1.msra.mxu0 0.0
      %5790 = vmatprep.subr.mxu0 0.0
      %5791 = vmatpush1.msra.mxu0 0.0
      %5792 = vmatprep.subr.mxu0 0.0
      %5793 = vmatpush1.msra.mxu0 0.0
      %5794 = vmatprep.subr.mxu0 0.0
      %5795 = vmatpush1.msra.mxu0 0.0
      %5796 = vmatprep.subr.mxu0 0.0
      %5797 = vmatpush1.msra.mxu0 0.0
      %5798 = vmatprep.subr.mxu0 0.0
      %5799 = vmatpush1.msra.mxu0 0.0
      %5800 = vmatprep.mubr.f32.mxu0 0.0
      %5801 = vmatmul.mubr.f32.gmra.mrb[0].mxu0 %v5728
      %v5802 = vpop.f32.mrb[0].mxu0
      %v5803 = vadd.f32 0.0, %v5802
      %v5804 = vpop.f32.mrb[0].mxu0
      %5805 = vmatprep.mubr.f32.mxu0 0.0
      %5806 = vmatmul.mubr.f32.gmra.mrb[0].mxu0 %v5730
      %v5807 = vpop.f32.mrb[0].mxu0
      %v5808 = vadd.f32 0.0, %v5807
      %v5809 = vpop.f32.mrb[0].mxu0
      %5810 = vmatprep.mubr.f32.mxu0 0.0
      %5811 = vmatmul.mubr.f32.gmra.mrb[0].mxu0 %v5732
      %v5812 = vpop.f32.mrb[0].mxu0
      %v5813 = vadd.f32 0.0, %v5812
      %v5814 = vpop.f32.mrb[0].mxu0
      %5815 = vmatprep.mubr.f32.mxu0 0.0
      %5816 = vmatmul.mubr.f32.gmra.mrb[0].mxu0 %v5734
      %v5817 = vpop.f32.mrb[0].mxu0
      %v5818 = vadd.f32 0.0, %v5817
      %v5819 = vpop.f32.mrb[0].mxu0
      %5820 = vdwg.mxu0
      %v5821 = vadd.f32 %v5709, %v5803
      %v5822 = vadd.f32 %v5710, %v5808
      %v5823 = vadd.f32 %v5711, %v5813
      %v5824 = vadd.f32 %v5712, %v5818
      %v5825 = vadd.f32 %v5821, %v496
      %v5826 = vadd.f32 %v5822, %v496
      %v5827 = vadd.f32 %v5823, %v496
      %v5828 = vadd.f32 %v5824, %v496
      %v5829 = vmax.f32 %v5825, 0.0
      %v5830 = vmax.f32 %v5826, 0.0
      %v5831 = vmax.f32 %v5827, 0.0
      %v5832 = vmax.f32 %v5828, 0.0
      %5833 = vst.msk [vmem:[#allocation3] sm:$0xff] %vm2413, %v5829
      %5834 = vst.msk [vmem:[#allocation3 + $0x8] sm:$0xff] %vm2413, %v5830
      %5835 = vst.msk [vmem:[#allocation3 + $0x10] sm:$0xff] %vm2413, %v5831
      %5836 = vst.msk [vmem:[#allocation3 + $0x18] sm:$0x3] %vm3002, %v5832
      %v5837 = vld [vmem:[#allocation3] ss:$2 sm:$0xff]
      %v5838 = vld [vmem:[%s2424] ss:$2 sm:$0x1f]
      %v5839 = vld [vmem:[%s2430] ss:$2 sm:$0xff]
      %v5840 = vld [vmem:[%s2432] ss:$2 sm:$0x1f]
      %v5841 = vmax.f32 %v5837, %v5839
      %v5842 = vmax.f32 %v5838, %v5840
      %s5843 = scalar_lea.vmem %s470, 16
      %5844 = vst [vmem:[%s5843] sm:$0xff] %v4522
      %5845 = vst [vmem:[%s5843 + $0x8] sm:$0x1f] %v4523
      %s5846 = scalar_lea.vmem %s477, 16
      %5847 = vst.msk [vmem:[%s5846] sm:$0xff] %vm2413, %v5841
      %5848 = vst.msk [vmem:[%s5846 + $0x8] sm:$0x1f] %vm3013, %v5842
      %v5849 = vld [vmem:[%s6] sm:$0xff]
      %v5850 = vld [vmem:[%s6 + $0x8] sm:$0xff]
      %v5851 = vld [vmem:[%s6 + $0x10] sm:$0xff]
      %v5852 = vld [vmem:[%s6 + $0x18] sm:$0xff]
      %v5853 = vld [vmem:[%s6 + $0x20] sm:$0xff]
      %v5854 = vld [vmem:[%s6 + $0x28] sm:$0xff]
      %v5855 = vld [vmem:[%s6 + $0x30] sm:$0xff]
      %v5856 = vld [vmem:[%s6 + $0x38] sm:$0xff]
      %v5857 = vld [vmem:[%s6 + $0x40] sm:$0xff]
      %v5858 = vld [vmem:[%s6 + $0x48] sm:$0xff]
      %v5859 = vld [vmem:[%s6 + $0x50] sm:$0xff]
      %v5860 = vld [vmem:[%s6 + $0x58] sm:$0xff]
      %v5861 = vld [vmem:[%s6 + $0x60] sm:$0xff]
      %v5862 = vld [vmem:[%s6 + $0x68] sm:$0xff]
      %v5863 = vld [vmem:[%s6 + $0x70] sm:$0xff]
      %v5864 = vld [vmem:[%s6 + $0x78] sm:$0xff]
      %v5865 = vld [vmem:[%s6 + $0x80] sm:$0xff]
      %v5866 = vld [vmem:[%s6 + $0x88] sm:$0xff]
      %v5867 = vld [vmem:[%s6 + $0x90] sm:$0xff]
      %v5868 = vld [vmem:[%s6 + $0x98] sm:$0xff]
      %v5869 = vld [vmem:[%s6 + $0xa0] sm:$0xff]
      %v5870 = vld [vmem:[%s6 + $0xa8] sm:$0xff]
      %v5871 = vld [vmem:[%s6 + $0xb0] sm:$0xff]
      %v5872 = vld [vmem:[%s6 + $0xb8] sm:$0xff]
      %v5873 = vld [vmem:[%s6 + $0xc0] sm:$0xff]
      %v5874 = vld [vmem:[%s6 + $0xc8] sm:$0xff]
      %v5875 = vld [vmem:[%s6 + $0xd0] sm:$0xff]
      %v5876 = vld [vmem:[%s6 + $0xd8] sm:$0xff]
      %v5877 = vld [vmem:[%s6 + $0xe0] sm:$0xff]
      %v5878 = vld [vmem:[%s6 + $0xe8] sm:$0xff]
      %v5879 = vld [vmem:[%s6 + $0xf0] sm:$0xff]
      %v5880 = vld [vmem:[%s6 + $0xf8] sm:$0xff]
      %v5881 = vld [vmem:[%s6 + $0x100] sm:$0xff]
      %v5882 = vld [vmem:[%s6 + $0x108] sm:$0xff]
      %v5883 = vld [vmem:[%s6 + $0x110] sm:$0xff]
      %v5884 = vld [vmem:[%s6 + $0x118] sm:$0xff]
      %v5885 = vld [vmem:[%s6 + $0x120] sm:$0xff]
      %v5886 = vld [vmem:[%s6 + $0x128] sm:$0xff]
      %v5887 = vld [vmem:[%s6 + $0x130] sm:$0xff]
      %v5888 = vld [vmem:[%s6 + $0x138] sm:$0xff]
      %v5889 = vld [vmem:[%s6 + $0x140] sm:$0xff]
      %v5890 = vld [vmem:[%s6 + $0x148] sm:$0xff]
      %v5891 = vld [vmem:[%s6 + $0x150] sm:$0xff]
      %v5892 = vld [vmem:[%s6 + $0x158] sm:$0xff]
      %v5893 = vld [vmem:[%s6 + $0x160] sm:$0xff]
      %v5894 = vld [vmem:[%s6 + $0x168] sm:$0xff]
      %v5895 = vld [vmem:[%s6 + $0x170] sm:$0xff]
      %v5896 = vld [vmem:[%s6 + $0x178] sm:$0xff]
      %v5898 = vsel %vm2413, %v5841, 0
      %v5901 = vsel %vm2413, %v5842, 0
      %5903 = vmatprep.subr.mxu0 %v5882
      %5904 = vmatpush1.msra.mxu0 %v5881
      %5905 = vmatprep.subr.mxu0 %v5884
      %5906 = vmatpush1.msra.mxu0 %v5883
      %5907 = vmatprep.subr.mxu0 %v5886
      %5908 = vmatpush1.msra.mxu0 %v5885
      %5909 = vmatprep.subr.mxu0 %v5888
      %5910 = vmatpush1.msra.mxu0 %v5887
      %5911 = vmatprep.subr.mxu0 %v5890
      %5912 = vmatpush1.msra.mxu0 %v5889
      %5913 = vmatprep.subr.mxu0 %v5892
      %5914 = vmatpush1.msra.mxu0 %v5891
      %5915 = vmatprep.subr.mxu0 %v5894
      %5916 = vmatpush1.msra.mxu0 %v5893
      %5917 = vmatprep.subr.mxu0 %v5896
      %5918 = vmatpush1.msra.mxu0 %v5895
      %5919 = vmatprep.subr.mxu0 0.0
      %5920 = vmatpush1.msra.mxu0 0.0
      %5921 = vmatprep.subr.mxu0 0.0
      %5922 = vmatpush1.msra.mxu0 0.0
      %5923 = vmatprep.subr.mxu0 0.0
      %5924 = vmatpush1.msra.mxu0 0.0
      %5925 = vmatprep.subr.mxu0 0.0
      %5926 = vmatpush1.msra.mxu0 0.0
      %5927 = vmatprep.subr.mxu0 0.0
      %5928 = vmatpush1.msra.mxu0 0.0
      %5929 = vmatprep.subr.mxu0 0.0
      %5930 = vmatpush1.msra.mxu0 0.0
      %5931 = vmatprep.subr.mxu0 0.0
      %5932 = vmatpush1.msra.mxu0 0.0
      %5933 = vmatprep.subr.mxu0 0.0
      %5934 = vmatpush1.msra.mxu0 0.0
      %5935 = vmatprep.subr.mxu0 0.0
      %5936 = vmatpush1.msra.mxu0 0.0
      %5937 = vmatprep.subr.mxu0 0.0
      %5938 = vmatpush1.msra.mxu0 0.0
      %5939 = vmatprep.subr.mxu0 0.0
      %5940 = vmatpush1.msra.mxu0 0.0
      %5941 = vmatprep.subr.mxu0 0.0
      %5942 = vmatpush1.msra.mxu0 0.0
      %5943 = vmatprep.subr.mxu0 0.0
      %5944 = vmatpush1.msra.mxu0 0.0
      %5945 = vmatprep.subr.mxu0 0.0
      %5946 = vmatpush1.msra.mxu0 0.0
      %5947 = vmatprep.subr.mxu0 0.0
      %5948 = vmatpush1.msra.mxu0 0.0
      %5949 = vmatprep.subr.mxu0 0.0
      %5950 = vmatpush1.msra.mxu0 0.0
      %5951 = vmatprep.subr.mxu0 0.0
      %5952 = vmatpush1.msra.mxu0 0.0
      %5953 = vmatprep.subr.mxu0 0.0
      %5954 = vmatpush1.msra.mxu0 0.0
      %5955 = vmatprep.subr.mxu0 0.0
      %5956 = vmatpush1.msra.mxu0 0.0
      %5957 = vmatprep.subr.mxu0 0.0
      %5958 = vmatpush1.msra.mxu0 0.0
      %5959 = vmatprep.subr.mxu0 0.0
      %5960 = vmatpush1.msra.mxu0 0.0
      %5961 = vmatprep.subr.mxu0 0.0
      %5962 = vmatpush1.msra.mxu0 0.0
      %5963 = vmatprep.subr.mxu0 0.0
      %5964 = vmatpush1.msra.mxu0 0.0
      %5965 = vmatprep.subr.mxu0 0.0
      %5966 = vmatpush1.msra.mxu0 0.0
      %5967 = vmatprep.mubr.f32.mxu0 0.0
      %5968 = vmatmul.mubr.f32.gmra.mrb[0].mxu0 %v5898
      %v5969 = vpop.f32.mrb[0].mxu0
      %v5970 = vadd.f32 0.0, %v5969
      %v5971 = vpop.f32.mrb[0].mxu0
      %v5972 = vadd.f32 0.0, %v5971
      %5973 = vmatprep.mubr.f32.mxu0 0.0
      %5974 = vmatmul.mubr.f32.gmra.mrb[0].mxu0 %v5901
      %v5975 = vpop.f32.mrb[0].mxu0
      %v5976 = vadd.f32 0.0, %v5975
      %v5977 = vpop.f32.mrb[0].mxu0
      %v5978 = vadd.f32 0.0, %v5977
      %5979 = vdwg.mxu0
      %5980 = vmatprep.subr.mxu0 %v5850
      %5981 = vmatpush1.msra.mxu0 %v5849
      %5982 = vmatprep.subr.mxu0 %v5852
      %5983 = vmatpush1.msra.mxu0 %v5851
      %5984 = vmatprep.subr.mxu0 %v5854
      %5985 = vmatpush1.msra.mxu0 %v5853
      %5986 = vmatprep.subr.mxu0 %v5856
      %5987 = vmatpush1.msra.mxu0 %v5855
      %5988 = vmatprep.subr.mxu0 %v5858
      %5989 = vmatpush1.msra.mxu0 %v5857
      %5990 = vmatprep.subr.mxu0 %v5860
      %5991 = vmatpush1.msra.mxu0 %v5859
      %5992 = vmatprep.subr.mxu0 %v5862
      %5993 = vmatpush1.msra.mxu0 %v5861
      %5994 = vmatprep.subr.mxu0 %v5864
      %5995 = vmatpush1.msra.mxu0 %v5863
      %5996 = vmatprep.subr.mxu0 %v5866
      %5997 = vmatpush1.msra.mxu0 %v5865
      %5998 = vmatprep.subr.mxu0 %v5868
      %5999 = vmatpush1.msra.mxu0 %v5867
      %6000 = vmatprep.subr.mxu0 %v5870
      %6001 = vmatpush1.msra.mxu0 %v5869
      %6002 = vmatprep.subr.mxu0 %v5872
      %6003 = vmatpush1.msra.mxu0 %v5871
      %6004 = vmatprep.subr.mxu0 %v5874
      %6005 = vmatpush1.msra.mxu0 %v5873
      %6006 = vmatprep.subr.mxu0 %v5876
      %6007 = vmatpush1.msra.mxu0 %v5875
      %6008 = vmatprep.subr.mxu0 %v5878
      %6009 = vmatpush1.msra.mxu0 %v5877
      %6010 = vmatprep.subr.mxu0 %v5880
      %6011 = vmatpush1.msra.mxu0 %v5879
      %6012 = vmatprep.subr.mxu0 0.0
      %6013 = vmatpush1.msra.mxu0 0.0
      %6014 = vmatprep.subr.mxu0 0.0
      %6015 = vmatpush1.msra.mxu0 0.0
      %6016 = vmatprep.subr.mxu0 0.0
      %6017 = vmatpush1.msra.mxu0 0.0
      %6018 = vmatprep.subr.mxu0 0.0
      %6019 = vmatpush1.msra.mxu0 0.0
      %6020 = vmatprep.subr.mxu0 0.0
      %6021 = vmatpush1.msra.mxu0 0.0
      %6022 = vmatprep.subr.mxu0 0.0
      %6023 = vmatpush1.msra.mxu0 0.0
      %6024 = vmatprep.subr.mxu0 0.0
      %6025 = vmatpush1.msra.mxu0 0.0
      %6026 = vmatprep.subr.mxu0 0.0
      %6027 = vmatpush1.msra.mxu0 0.0
      %6028 = vmatprep.subr.mxu0 0.0
      %6029 = vmatpush1.msra.mxu0 0.0
      %6030 = vmatprep.subr.mxu0 0.0
      %6031 = vmatpush1.msra.mxu0 0.0
      %6032 = vmatprep.subr.mxu0 0.0
      %6033 = vmatpush1.msra.mxu0 0.0
      %6034 = vmatprep.subr.mxu0 0.0
      %6035 = vmatpush1.msra.mxu0 0.0
      %6036 = vmatprep.subr.mxu0 0.0
      %6037 = vmatpush1.msra.mxu0 0.0
      %6038 = vmatprep.subr.mxu0 0.0
      %6039 = vmatpush1.msra.mxu0 0.0
      %6040 = vmatprep.subr.mxu0 0.0
      %6041 = vmatpush1.msra.mxu0 0.0
      %6042 = vmatprep.subr.mxu0 0.0
      %6043 = vmatpush1.msra.mxu0 0.0
      %6044 = vmatprep.mubr.f32.mxu0 0.0
      %6045 = vmatmul.mubr.f32.gmra.mrb[0].mxu0 %v4522
      %v6046 = vpop.f32.mrb[0].mxu0
      %v6047 = vadd.f32 %v5970, %v6046
      %v6048 = vpop.f32.mrb[0].mxu0
      %v6049 = vadd.f32 %v5972, %v6048
      %6050 = vmatprep.mubr.f32.mxu0 0.0
      %6051 = vmatmul.mubr.f32.gmra.mrb[0].mxu0 %v4523
      %v6052 = vpop.f32.mrb[0].mxu0
      %v6053 = vadd.f32 %v5976, %v6052
      %v6054 = vpop.f32.mrb[0].mxu0
      %v6055 = vadd.f32 %v5978, %v6054
      %6056 = vdwg.mxu0
      %v6057 = vadd.f32 %v6047, %v3227
      %v6058 = vadd.f32 %v6049, %v3231
      %v6059 = vadd.f32 %v6053, %v3227
      %v6060 = vadd.f32 %v6055, %v3231
      %v6061 = vmax.f32 %v6057, 0.0
      %v6062 = vmax.f32 %v6058, 0.0
      %v6063 = vmax.f32 %v6059, 0.0
      %v6064 = vmax.f32 %v6060, 0.0
      %s6065 = scalar_lea.vmem %s484, 32
      %6066 = vst [vmem:[%s6065] sm:$0xff] %v6061
      %6067 = vst.msk [vmem:[%s6065 + $0x8] sm:$0xff] %vm2413, %v6062
      %6068 = vst [vmem:[%s6065 + $0x10] sm:$0x1f] %v6063
      %6069 = vst.msk [vmem:[%s6065 + $0x18] sm:$0x1f] %vm3013, %v6064
      %v6070 = vld [vmem:[%s7] sm:$0xff]
      %v6071 = vld [vmem:[%s7 + $0x8] sm:$0xff]
      %v6072 = vld [vmem:[%s7 + $0x10] sm:$0xff]
      %v6073 = vld [vmem:[%s7 + $0x18] sm:$0xff]
      %v6074 = vld [vmem:[%s7 + $0x20] sm:$0xff]
      %v6075 = vld [vmem:[%s7 + $0x28] sm:$0xff]
      %v6076 = vld [vmem:[%s7 + $0x30] sm:$0xff]
      %v6077 = vld [vmem:[%s7 + $0x38] sm:$0xff]
      %v6078 = vld [vmem:[%s7 + $0x40] sm:$0xff]
      %v6079 = vld [vmem:[%s7 + $0x48] sm:$0xff]
      %v6080 = vld [vmem:[%s7 + $0x50] sm:$0xff]
      %v6081 = vld [vmem:[%s7 + $0x58] sm:$0xff]
      %v6082 = vld [vmem:[%s7 + $0x60] sm:$0xff]
      %v6083 = vld [vmem:[%s7 + $0x68] sm:$0xff]
      %v6084 = vld [vmem:[%s7 + $0x70] sm:$0xff]
      %v6085 = vld [vmem:[%s7 + $0x78] sm:$0xff]
      %v6086 = vld [vmem:[%s7 + $0x80] sm:$0xff]
      %v6087 = vld [vmem:[%s7 + $0x88] sm:$0xff]
      %v6088 = vld [vmem:[%s7 + $0x90] sm:$0xff]
      %v6089 = vld [vmem:[%s7 + $0x98] sm:$0xff]
      %v6090 = vld [vmem:[%s7 + $0xa0] sm:$0xff]
      %v6091 = vld [vmem:[%s7 + $0xa8] sm:$0xff]
      %v6092 = vld [vmem:[%s7 + $0xb0] sm:$0xff]
      %v6093 = vld [vmem:[%s7 + $0xb8] sm:$0xff]
      %v6095 = vsel %vm2413, %v6062, 0
      %v6098 = vsel %vm2413, %v6064, 0
      %6100 = vmatprep.subr.mxu0 0.0
      %6101 = vmatpush1.msra.mxu0 %v6070
      %6102 = vmatprep.subr.mxu0 0.0
      %6103 = vmatpush1.msra.mxu0 %v6071
      %6104 = vmatprep.subr.mxu0 0.0
      %6105 = vmatpush1.msra.mxu0 %v6072
      %6106 = vmatprep.subr.mxu0 0.0
      %6107 = vmatpush1.msra.mxu0 %v6073
      %6108 = vmatprep.subr.mxu0 0.0
      %6109 = vmatpush1.msra.mxu0 %v6074
      %6110 = vmatprep.subr.mxu0 0.0
      %6111 = vmatpush1.msra.mxu0 %v6075
      %6112 = vmatprep.subr.mxu0 0.0
      %6113 = vmatpush1.msra.mxu0 %v6076
      %6114 = vmatprep.subr.mxu0 0.0
      %6115 = vmatpush1.msra.mxu0 %v6077
      %6116 = vmatprep.subr.mxu0 0.0
      %6117 = vmatpush1.msra.mxu0 %v6078
      %6118 = vmatprep.subr.mxu0 0.0
      %6119 = vmatpush1.msra.mxu0 %v6079
      %6120 = vmatprep.subr.mxu0 0.0
      %6121 = vmatpush1.msra.mxu0 %v6080
      %6122 = vmatprep.subr.mxu0 0.0
      %6123 = vmatpush1.msra.mxu0 %v6081
      %6124 = vmatprep.subr.mxu0 0.0
      %6125 = vmatpush1.msra.mxu0 %v6082
      %6126 = vmatprep.subr.mxu0 0.0
      %6127 = vmatpush1.msra.mxu0 %v6083
      %6128 = vmatprep.subr.mxu0 0.0
      %6129 = vmatpush1.msra.mxu0 %v6084
      %6130 = vmatprep.subr.mxu0 0.0
      %6131 = vmatpush1.msra.mxu0 %v6085
      %6132 = vmatprep.subr.mxu0 0.0
      %6133 = vmatpush1.msra.mxu0 %v6086
      %6134 = vmatprep.subr.mxu0 0.0
      %6135 = vmatpush1.msra.mxu0 %v6087
      %6136 = vmatprep.subr.mxu0 0.0
      %6137 = vmatpush1.msra.mxu0 %v6088
      %6138 = vmatprep.subr.mxu0 0.0
      %6139 = vmatpush1.msra.mxu0 %v6089
      %6140 = vmatprep.subr.mxu0 0.0
      %6141 = vmatpush1.msra.mxu0 %v6090
      %6142 = vmatprep.subr.mxu0 0.0
      %6143 = vmatpush1.msra.mxu0 %v6091
      %6144 = vmatprep.subr.mxu0 0.0
      %6145 = vmatpush1.msra.mxu0 %v6092
      %6146 = vmatprep.subr.mxu0 0.0
      %6147 = vmatpush1.msra.mxu0 %v6093
      %6148 = vmatprep.subr.mxu0 0.0
      %6149 = vmatpush1.msra.mxu0 0.0
      %6150 = vmatprep.subr.mxu0 0.0
      %6151 = vmatpush1.msra.mxu0 0.0
      %6152 = vmatprep.subr.mxu0 0.0
      %6153 = vmatpush1.msra.mxu0 0.0
      %6154 = vmatprep.subr.mxu0 0.0
      %6155 = vmatpush1.msra.mxu0 0.0
      %6156 = vmatprep.subr.mxu0 0.0
      %6157 = vmatpush1.msra.mxu0 0.0
      %6158 = vmatprep.subr.mxu0 0.0
      %6159 = vmatpush1.msra.mxu0 0.0
      %6160 = vmatprep.subr.mxu0 0.0
      %6161 = vmatpush1.msra.mxu0 0.0
      %6162 = vmatprep.subr.mxu0 0.0
      %6163 = vmatpush1.msra.mxu0 0.0
      %6164 = vmatprep.mubr.f32.mxu0 %v6095
      %6165 = vmatmul.mubr.f32.gmra.mrb[0].mxu0 %v6061
      %v6166 = vpop.f32.mrb[0].mxu0
      %v6167 = vadd.f32 %v499, %v6166
      %v6168 = vpop.f32.mrb[0].mxu0
      %6169 = vmatprep.mubr.f32.mxu0 %v6098
      %6170 = vmatmul.mubr.f32.gmra.mrb[0].mxu0 %v6063
      %v6171 = vpop.f32.mrb[0].mxu0
      %v6172 = vadd.f32 %v499, %v6171
      %v6173 = vpop.f32.mrb[0].mxu0
      %6174 = vdwg.mxu0
      %s6175 = scalar_lea.vmem %s491, 16
      %6176 = vst.msk [vmem:[%s6175] sm:$0xff] %vm3351, %v6167
      %6177 = vst.msk [vmem:[%s6175 + $0x8] sm:$0x1f] %vm3353, %v6172
      %s6178 = smul.u32 2, %s24
      %p6179 = scmp.lt.s32.totalorder %s6178, 3
      %s6180 = scalar_select %p6179, %s6178, 3
      %s6181 = smul.addr %s6180, 2
      %s6182 = smul.addr %s6181, 8
      %s6183 = scalar_lea.vmem %s9, %s6182
      %s6184 = smul.u32 2, %s24
      %p6185 = scmp.lt.s32.totalorder %s6184, 3
      %s6186 = scalar_select %p6185, %s6184, 3
      %s6187 = smul.addr %s6186, 2
      %s6188 = smul.addr %s6187, 8
      %s6189 = scalar_lea.vmem %s10, %s6188
      %s6190 = smul.u32 2, %s24
      %p6191 = scmp.lt.s32.totalorder %s6190, 3
      %s6192 = scalar_select %p6191, %s6190, 3
      %s6193 = smul.addr %s6192, 4
      %s6194 = smul.addr %s6193, 8
      %s6195 = scalar_lea.vmem %s11, %s6194
      %s6196 = smul.u32 2, %s24
      %p6197 = scmp.lt.s32.totalorder %s6196, 3
      %s6198 = scalar_select %p6197, %s6196, 3
      %s6199 = smul.addr %s6198, 2
      %s6200 = smul.addr %s6199, 8
      %s6201 = scalar_lea.vmem %s12, %s6200
      // Predicated region
      $region57: #{dual_feature_temporal_conv_forward.1} parent=55 // pred_check
        %p6202 = pneg %p241
      $region58: #{dual_feature_temporal_conv_forward.1} parent=55 // pred_check_branch
        %6204 = sbr.rel (%p6202) target = $region60
      $region59: #{dual_feature_temporal_conv_forward.1} parent=55 // pred_region
        %s6205 = smul.u32 2, %s24
      $region60: #{dual_feature_temporal_conv_forward.1} parent=55 // pred_fallthru
        _
      // Predicated region
      $region61: #{dual_feature_temporal_conv_forward.1} parent=55 // pred_check
        %p6206 = pneg %p267
      $region62: #{dual_feature_temporal_conv_forward.1} parent=55 // pred_check_branch
        %6208 = sbr.rel (%p6206) target = $region64
      $region63: #{dual_feature_temporal_conv_forward.1} parent=55 // pred_region
        %s6209 = smul.u32 2, %s24
      $region64: #{dual_feature_temporal_conv_forward.1} parent=55 // pred_fallthru
        _
      // Predicated region
      $region65: #{dual_feature_temporal_conv_forward.1} parent=55 // pred_check
        %p6210 = pneg %p293
      $region66: #{dual_feature_temporal_conv_forward.1} parent=55 // pred_check_branch
        %6212 = sbr.rel (%p6210) target = $region68
      $region67: #{dual_feature_temporal_conv_forward.1} parent=55 // pred_region
        %s6213 = smul.u32 2, %s24
      $region68: #{dual_feature_temporal_conv_forward.1} parent=55 // pred_fallthru
        _
      // Predicated region
      $region69: #{dual_feature_temporal_conv_forward.1} parent=55 // pred_check
        %p6214 = pneg %p319
      $region70: #{dual_feature_temporal_conv_forward.1} parent=55 // pred_check_branch
        %6216 = sbr.rel (%p6214) target = $region72
      $region71: #{dual_feature_temporal_conv_forward.1} parent=55 // pred_region
        %s6217 = smul.u32 2, %s24
      $region72: #{dual_feature_temporal_conv_forward.1} parent=55 // pred_fallthru
        _
    $region56: #{dual_feature_temporal_conv_forward.1} parent=5 // pred_fallthru
      _
    %p6218 = scmp.le.s32.totalorder 2, %s19
    // Predicated region
    $region73: #{dual_feature_temporal_conv_forward.1} parent=5 // pred_check
      %p6219 = pneg %p6218
    $region74: #{dual_feature_temporal_conv_forward.1} parent=5 // pred_check_branch
      %6221 = sbr.rel (%p6219) target = $region76
    $region75: #{dual_feature_temporal_conv_forward.1} parent=5 // pred_region
      %s6222 = ssub.s32 %s19, 2
      // Predicated region
      $region77: #{dual_feature_temporal_conv_forward.1} parent=75 // pred_check
        %p6223 = pneg %p247
      $region78: #{dual_feature_temporal_conv_forward.1} parent=75 // pred_check_branch
        %6225 = sbr.rel (%p6223) target = $region80
      $region79: #{dual_feature_temporal_conv_forward.1} parent=75 // pred_region
        %s6226 = smul.u32 2, %s25
        %p6227 = scmp.lt.s32.totalorder %s6226, 3
        %s6228 = scalar_select %p6227, %s6226, 3
        %s6229 = smul.addr %s6228, 2
        %s6230 = smul.addr %s6229, 8
        %s6231 = scalar_lea.vmem %s9, %s6230
      $region80: #{dual_feature_temporal_conv_forward.1} parent=75 // pred_fallthru
        _
      // Predicated region
      $region81: #{dual_feature_temporal_conv_forward.1} parent=75 // pred_check
        %p6232 = pneg %p273
      $region82: #{dual_feature_temporal_conv_forward.1} parent=75 // pred_check_branch
        %6234 = sbr.rel (%p6232) target = $region84
      $region83: #{dual_feature_temporal_conv_forward.1} parent=75 // pred_region
        %s6235 = smul.u32 2, %s25
        %p6236 = scmp.lt.s32.totalorder %s6235, 3
        %s6237 = scalar_select %p6236, %s6235, 3
        %s6238 = smul.addr %s6237, 2
        %s6239 = smul.addr %s6238, 8
        %s6240 = scalar_lea.vmem %s10, %s6239
      $region84: #{dual_feature_temporal_conv_forward.1} parent=75 // pred_fallthru
        _
      // Predicated region
      $region85: #{dual_feature_temporal_conv_forward.1} parent=75 // pred_check
        %p6241 = pneg %p299
      $region86: #{dual_feature_temporal_conv_forward.1} parent=75 // pred_check_branch
        %6243 = sbr.rel (%p6241) target = $region88
      $region87: #{dual_feature_temporal_conv_forward.1} parent=75 // pred_region
        %s6244 = smul.u32 2, %s25
        %p6245 = scmp.lt.s32.totalorder %s6244, 3
        %s6246 = scalar_select %p6245, %s6244, 3
        %s6247 = smul.addr %s6246, 4
        %s6248 = smul.addr %s6247, 8
        %s6249 = scalar_lea.vmem %s11, %s6248
      $region88: #{dual_feature_temporal_conv_forward.1} parent=75 // pred_fallthru
        _
      // Predicated region
      $region89: #{dual_feature_temporal_conv_forward.1} parent=75 // pred_check
        %p6250 = pneg %p325
      $region90: #{dual_feature_temporal_conv_forward.1} parent=75 // pred_check_branch
        %6252 = sbr.rel (%p6250) target = $region92
      $region91: #{dual_feature_temporal_conv_forward.1} parent=75 // pred_region
        %s6253 = smul.u32 2, %s25
        %p6254 = scmp.lt.s32.totalorder %s6253, 3
        %s6255 = scalar_select %p6254, %s6253, 3
        %s6256 = smul.addr %s6255, 2
        %s6257 = smul.addr %s6256, 8
        %s6258 = scalar_lea.vmem %s12, %s6257
      $region92: #{dual_feature_temporal_conv_forward.1} parent=75 // pred_fallthru
        _
    $region76: #{dual_feature_temporal_conv_forward.1} parent=5 // pred_fallthru
      _
  $region6: #{dual_feature_temporal_conv_forward.1} parent=0 // loop_footer
    %s23 = sadd.s32 1, %s19
  $region7: #{dual_feature_temporal_conv_forward.1} parent=0 // loop_footer_branch
    %18 = sbr.rel target = $region3
  $region8: #{dual_feature_temporal_conv_forward.1} parent=0 // loop_exit
    _

</llo_original>
